<compile_context>
chip_gen: v7x
topology: tpu7x:2x2x1
jax: 0.10.0
libtpu: 0.0.40
codegen_flags: <defaults>
</compile_context>

<pallas_src>
import functools

import jax
import jax.numpy as jnp
import numpy as np
from jax.experimental import pallas as pl
from jax.experimental.pallas import tpu as pltpu

LEAKY_RATE = 0.1


# ----------------------------------------------------------------------------
# Pallas kernel: WeightNet MLP + fused K-contraction + Linear + LeakyReLU
# ----------------------------------------------------------------------------
def _pointconv_kernel(gxyz_ref, gpts_ref, w1_ref, b1_ref, w2_ref, b2_ref,
                      w3_ref, b3_ref, wl_ref, bl_ref, out_ref, res_scr):
    # gxyz_ref : (1, 3, K, T)  grouped_xyz_norm, channel-major, lane-dense T
    # gpts_ref : (1, K, D, T)  gathered point features, neighbor-major
    # w*/b*    : SMEM scalars for the WeightNet 1x1 convs (3 -> 8 -> 8 -> W)
    # wl_ref   : (O, W*C)      Linear weight, row order (w major, c minor), bf16
    # bl_ref   : (O, 1)        Linear bias, f32
    # out_ref  : (1, O, T)
    # res_scr  : (W*C, T)      VMEM scratch for the per-point contraction (bf16)
    K = gxyz_ref.shape[2]
    D = gpts_ref.shape[2]
    C = 3 + D
    H = w3_ref.shape[0]
    W = w3_ref.shape[1]
    acc_dtype = res_scr.dtype

    def wn_layer(h_list, w_ref, b_ref):
        # 1x1 Conv2d (bn=False) + ReLU: each output channel is a scalar-weighted
        # sum of full-lane [K, T] slabs; the scalars live in SMEM.
        cin, cout = w_ref.shape
        outs = []
        for co in range(cout):
            a = h_list[0] * w_ref[0, co]
            for ci in range(1, cin):
                a = a + h_list[ci] * w_ref[ci, co]
            outs.append(jnp.maximum(a + b_ref[co], 0.0))
        return outs

    # WeightNet hidden layers 3 -> 8 -> 8 (ReLU).  Activations are Python lists
    # of [K, T] full-lane slabs (channel index unrolled).
    x = [gxyz_ref[0, c] for c in range(3)]          # 3 x [K, T], stays resident
    h = wn_layer(x, w1_ref, b1_ref)                 # 8 x [K, T]
    h = wn_layer(h, w2_ref, b2_ref)                 # 8 x [K, T]

    # WeightNet layer 3 fused with the K-contraction: one wt slab live per w.
    for w in range(W):
        wt = h[0] * w3_ref[0, w]
        for ci in range(1, H):
            wt = wt + h[ci] * w3_ref[ci, w]
        wt = jnp.maximum(wt + b3_ref[w], 0.0)       # [K, T]

        # xyz channels (c = 0..2): reuse the already-resident gxyz slabs and
        # contract over K with a sublane reduction (XLU slot has slack here).
        for c in range(3):
            r = jnp.sum(x[c] * wt, axis=0, keepdims=True)              # [1, T]
            res_scr[w * C + c:w * C + c + 1, :] = r.astype(acc_dtype)

        # feature channels (c = 3..C-1): lane-dense broadcast-multiply over K:
        #   facc[d, n] = sum_k wt[k, n] * gpts[k, d, n]
        facc = wt[0:1, :] * gpts_ref[0, 0]                              # [D, T]
        for k in range(1, K):
            facc = facc + wt[k:k + 1, :] * gpts_ref[0, k]
        res_scr[w * C + 3:(w + 1) * C, :] = facc.astype(acc_dtype)

    # Linear over the flattened (w, c) axis as ONE MXU matmul (contraction W*C,
    # bf16 operands, f32 accumulation), then bias + LeakyReLU.  The output is
    # written lane-dense [O, T] -- no transpose on the store path.
    out = jnp.dot(wl_ref[...], res_scr[...],
                  preferred_element_type=jnp.float32)                   # [O, T]
    out = out + bl_ref[...]                                             # lane bcast
    out = jnp.where(out > 0, out, LEAKY_RATE * out)
    out_ref[0] = out.astype(out_ref.dtype)


# ----------------------------------------------------------------------------
# Plain-JAX glue: FPS, kNN (data-dependent indexing stays in XLA)
# ----------------------------------------------------------------------------
def _fps_jax(xyz_nc, npoint):
    """Deterministic furthest point sampling (start at index 0). [B,N,3] -> [B,S]."""
    B, N, _ = xyz_nc.shape

    def body(i, state):
        idx, min_d, farthest = state
        idx = idx.at[:, i].set(farthest)
        centroid = jax.vmap(lambda p, f: p[f])(xyz_nc, farthest)[:, None, :]
        d = jnp.sum((xyz_nc - centroid) ** 2, axis=-1)
        min_d = jnp.minimum(min_d, d)
        farthest = jnp.argmax(min_d, axis=-1).astype(jnp.int32)
        return idx, min_d, farthest

    init = (jnp.zeros((B, npoint), jnp.int32),
            jnp.full((B, N), 1e10, jnp.float32),
            jnp.zeros((B,), jnp.int32))
    idx, _, _ = jax.lax.fori_loop(0, npoint, body, init)
    return idx


def _knn_jax(xyz_nc, query_nc, k):
    """k nearest neighbors of query points among all points. -> [B, S, k]."""
    sq_p = jnp.sum(xyz_nc ** 2, axis=-1)       # [B, N]
    sq_q = jnp.sum(query_nc ** 2, axis=-1)     # [B, S]
    d = (-2.0 * jnp.einsum('bsc,bnc->bsn', query_nc, xyz_nc)
         + sq_q[:, :, None] + sq_p[:, None, :])
    _, idx = jax.lax.top_k(-d, k)
    return idx


# ----------------------------------------------------------------------------
# Forward wrapper
# ----------------------------------------------------------------------------
@functools.partial(jax.jit,
                   static_argnames=("npoint", "nsample", "tile_n", "mxu_dtype"))
def pointconv_forward(xyz, points, params, npoint, nsample,
                      tile_n=256, mxu_dtype=jnp.bfloat16):
    """xyz: [B,3,N], points: [B,D,N] -> (new_xyz [B,3,S], feats [B,O,S], fps_idx)."""
    w1, b1, w2, b2, w3, b3, wl, bl = params
    B, _, N = xyz.shape
    D = points.shape[1]
    C = 3 + D
    K = nsample
    W = w3.shape[1]
    O = bl.shape[0]
    S = npoint

    # Full-lane tiles only: a non-multiple-of-128 lane tile would silently turn
    # the output path into masked partial stores.
    assert tile_n % 128 == 0, "tile_n must be a multiple of 128"

    # ---- data-dependent sampling / neighbor search (XLA glue) ----
    # TODO(synk): FPS, kNN top-k and the neighbor gather are data-dependent and
    # have no clean dense-Pallas equivalent; they stay in XLA.
    xyz_nc = jnp.transpose(xyz, (0, 2, 1))                      # [B, N, 3]
    fps_idx = _fps_jax(xyz_nc, S)                               # [B, S]
    new_xyz_nc = jax.vmap(lambda p, i: p[i])(xyz_nc, fps_idx)   # [B, S, 3]
    idx = _knn_jax(xyz_nc, new_xyz_nc, K)                       # [B, S, K]
    idx_ks = jnp.transpose(idx, (0, 2, 1))                      # [B, K, S] (tiny)
    new_xyz = jnp.transpose(new_xyz_nc, (0, 2, 1))              # [B, 3, S]

    # ---- gather straight into the kernel's lane-dense (S-last) layouts ----
    gather_cm = jax.vmap(lambda a, i: a[:, i])                  # [C,N],[K,S]->[C,K,S]
    gxyz = gather_cm(xyz, idx_ks) - new_xyz[:, :, None, :]      # [B, 3, K, S]
    gpts = jnp.transpose(gather_cm(points, idx_ks), (0, 2, 1, 3))  # [B, K, D, S]
    # (On v6e/v7x: cast gxyz/gpts to bf16 here and make res_scr bf16-native for
    #  the full bf16 VPU path; kept f32 for v5e correctness/perf.)

    # Tile over the (lane) point axis; zero-pad to a multiple of the tile.
    ts = tile_n
    S_pad = -(-S // ts) * ts
    if S_pad != S:
        pad = S_pad - S
        gxyz = jnp.pad(gxyz, ((0, 0), (0, 0), (0, 0), (0, pad)))
        gpts = jnp.pad(gpts, ((0, 0), (0, 0), (0, 0), (0, pad)))

    # Linear weight re-ordered to the kernel's (w major, c minor) row order and
    # cast to the MXU operand dtype (bf16 operands, f32 accumulation).
    wl_k = jnp.transpose(wl.reshape(C, W, O), (1, 0, 2)).reshape(W * C, O).T
    wl_k = wl_k.astype(mxu_dtype)                               # [O, W*C]
    bl_col = bl.reshape(O, 1).astype(jnp.float32)

    grid = (B, S_pad // ts)
    out = pl.pallas_call(
        _pointconv_kernel,
        out_shape=jax.ShapeDtypeStruct((B, O, S_pad), jnp.float32),
        grid_spec=pltpu.PrefetchScalarGridSpec(
            num_scalar_prefetch=0,
            grid=grid,
            in_specs=[
                pl.BlockSpec((1, 3, K, ts), lambda b, t: (b, 0, 0, t)),
                pl.BlockSpec((1, K, D, ts), lambda b, t: (b, 0, 0, t)),
                pl.BlockSpec(memory_space=pltpu.MemorySpace.SMEM),   # w1
                pl.BlockSpec(memory_space=pltpu.MemorySpace.SMEM),   # b1
                pl.BlockSpec(memory_space=pltpu.MemorySpace.SMEM),   # w2
                pl.BlockSpec(memory_space=pltpu.MemorySpace.SMEM),   # b2
                pl.BlockSpec(memory_space=pltpu.MemorySpace.SMEM),   # w3
                pl.BlockSpec(memory_space=pltpu.MemorySpace.SMEM),   # b3
                pl.BlockSpec((O, W * C), lambda b, t: (0, 0)),       # wl (constant)
                pl.BlockSpec((O, 1), lambda b, t: (0, 0)),           # bias (constant)
            ],
            out_specs=pl.BlockSpec((1, O, ts), lambda b, t: (b, 0, t)),
            scratch_shapes=[pltpu.VMEM((W * C, ts), mxu_dtype)],
        ),
        compiler_params=pltpu.CompilerParams(
            dimension_semantics=("parallel", "parallel")),
    )(gxyz, gpts, w1, b1, w2, b2, w3, b3, wl_k, bl_col)

    feats = out[:, :, :S]
    return new_xyz, feats, fps_idx


# ----------------------------------------------------------------------------
# Pure-JAX reference (mirrors the PyTorch forward) for correctness checking
# ----------------------------------------------------------------------------
def pointconv_ref(xyz, points, params, npoint, nsample):
    w1, b1, w2, b2, w3, b3, wl, bl = params
    B, _, N = xyz.shape
    HI = jax.lax.Precision.HIGHEST
    xyz_nc = jnp.transpose(xyz, (0, 2, 1))
    pts_nc = jnp.transpose(points, (0, 2, 1))
    fps_idx = _fps_jax(xyz_nc, npoint)
    new_xyz_nc = jax.vmap(lambda p, i: p[i])(xyz_nc, fps_idx)
    idx = _knn_jax(xyz_nc, new_xyz_nc, nsample)
    gather = jax.vmap(lambda p, i: p[i])
    g_xyz = gather(xyz_nc, idx) - new_xyz_nc[:, :, None, :]          # [B,S,K,3]
    g_pts = gather(pts_nc, idx)                                      # [B,S,K,D]
    new_points = jnp.concatenate([g_xyz, g_pts], axis=-1)            # [B,S,K,C]

    h = jax.nn.relu(jnp.einsum('bski,ih->bskh', g_xyz, w1, precision=HI) + b1)
    h = jax.nn.relu(jnp.einsum('bski,ih->bskh', h, w2, precision=HI) + b2)
    wts = jax.nn.relu(jnp.einsum('bski,ih->bskh', h, w3, precision=HI) + b3)
    res = jnp.einsum('bskc,bskw->bscw', new_points, wts, precision=HI)
    S = npoint
    C = new_points.shape[-1]
    W = wts.shape[-1]
    out = jnp.einsum('bsf,fo->bso', res.reshape(B, S, C * W), wl,
                     precision=HI) + bl
    out = jnp.transpose(out, (0, 2, 1))                               # [B,O,S]
    out = jnp.where(out > 0, out, LEAKY_RATE * out)
    new_xyz = jnp.transpose(new_xyz_nc, (0, 2, 1))
    return new_xyz, out, fps_idx


# ----------------------------------------------------------------------------
if __name__ == "__main__":
    # Small shapes consistent with the module:
    #   N=512 input points, npoint=256 sampled, nsample=8,
    #   in_channel = 3 + D = 16, weightnet = 16, out_channel = 32
    B, N, S, K, D, W, O = 2, 512, 256, 8, 13, 16, 32
    C = 3 + D

    key = jax.random.PRNGKey(0)
    ks = jax.random.split(key, 10)
    xyz = jax.random.normal(ks[0], (B, 3, N), dtype=jnp.float32)
    points = jax.random.normal(ks[1], (B, D, N), dtype=jnp.float32)

    def init(k, shape, fan_in):
        return (jax.random.normal(k, shape, dtype=jnp.float32)
                / np.float32(np.sqrt(fan_in)))

    # WeightNet 1x1 conv weights as [C_in, C_out]; biases as [C_out].
    w1 = init(ks[2], (3, 8), 3)
    b1 = init(ks[3], (8,), 1)
    w2 = init(ks[4], (8, 8), 8)
    b2 = init(ks[5], (8,), 1)
    w3 = init(ks[6], (8, W), 8)
    b3 = init(ks[7], (W,), 1)
    # Linear weight stored as [C*W, O] in the torch .view flatten order (c*W + w).
    wl = init(ks[8], (C * W, O), C * W)
    bl = init(ks[9], (O,), 1)
    params = (w1, b1, w2, b2, w3, b3, wl, bl)

    new_xyz, feats, fps_idx = pointconv_forward(xyz, points, params,
                                                npoint=S, nsample=K)
    feats = jax.block_until_ready(feats)
    assert feats.shape == (B, O, S)
    assert new_xyz.shape == (B, 3, S)
    assert fps_idx.shape == (B, S)

    ref_xyz, ref_feats, _ = pointconv_ref(xyz, points, params, S, K)
    np.testing.assert_allclose(np.asarray(new_xyz), np.asarray(ref_xyz),
                               rtol=1e-5, atol=1e-5)
    np.testing.assert_allclose(np.asarray(feats), np.asarray(ref_feats),
                               rtol=2e-2, atol=2e-2)
    print("KERNEL_OK")
</pallas_src>

<mosaic_0001>
module attributes {stable_mosaic.version = 11 : i64} {
  func.func @_pointconv_kernel(%arg0: i32, %arg1: i32, %arg2: memref<1x3x8x256xf32, #tpu.memory_space<vmem>>, %arg3: memref<1x8x13x256xf32, #tpu.memory_space<vmem>>, %arg4: memref<3x8xf32, #tpu.memory_space<smem>>, %arg5: memref<8xf32, #tpu.memory_space<smem>>, %arg6: memref<8x8xf32, #tpu.memory_space<smem>>, %arg7: memref<8xf32, #tpu.memory_space<smem>>, %arg8: memref<8x16xf32, #tpu.memory_space<smem>>, %arg9: memref<16xf32, #tpu.memory_space<smem>>, %arg10: memref<32x256xbf16, #tpu.memory_space<vmem>>, %arg11: memref<32x1xf32, #tpu.memory_space<vmem>>, %arg12: memref<1x32x256xf32, #tpu.memory_space<vmem>>, %arg13: memref<256x256xbf16, #tpu.memory_space<vmem>>) attributes {dimension_semantics = [#tpu.dimension_semantics<parallel>, #tpu.dimension_semantics<parallel>], iteration_bounds = array<i64: 2, 1>, scalar_prefetch = 0 : i64, scratch_operands = 1 : i64, tpu.core_type = #tpu.core_type<tc>, window_params = [{transform_indices = @transform_0, window_bounds = array<i64: 1, 3, 8, 256>}, {transform_indices = @transform_1, window_bounds = array<i64: 1, 8, 13, 256>}, {transform_indices = @transform_2, window_bounds = array<i64: 3, 8>}, {transform_indices = @transform_3, window_bounds = array<i64: 8>}, {transform_indices = @transform_4, window_bounds = array<i64: 8, 8>}, {transform_indices = @transform_5, window_bounds = array<i64: 8>}, {transform_indices = @transform_6, window_bounds = array<i64: 8, 16>}, {transform_indices = @transform_7, window_bounds = array<i64: 16>}, {pipeline_mode = #tpu.pipeline_mode<synchronous>, transform_indices = @transform_8, window_bounds = array<i64: 32, 256>}, {pipeline_mode = #tpu.pipeline_mode<synchronous>, transform_indices = @transform_9, window_bounds = array<i64: 32, 1>}, {transform_indices = @transform_10, window_bounds = array<i64: 1, 32, 256>}]} {
    %c0 = arith.constant 0 : index
    %c0_0 = arith.constant 0 : index
    %c0_1 = arith.constant 0 : index
    %c0_2 = arith.constant 0 : index
    %0 = vector.load %arg2[%c0, %c0_0, %c0_1, %c0_2] : memref<1x3x8x256xf32, #tpu.memory_space<vmem>>, vector<1x1x8x256xf32>
    %1 = vector.shape_cast %0 : vector<1x1x8x256xf32> to vector<8x256xf32>
    %c0_3 = arith.constant 0 : index
    %c1 = arith.constant 1 : index
    %c0_4 = arith.constant 0 : index
    %c0_5 = arith.constant 0 : index
    %2 = vector.load %arg2[%c0_3, %c1, %c0_4, %c0_5] : memref<1x3x8x256xf32, #tpu.memory_space<vmem>>, vector<1x1x8x256xf32>
    %3 = vector.shape_cast %2 : vector<1x1x8x256xf32> to vector<8x256xf32>
    %c0_6 = arith.constant 0 : index
    %c2 = arith.constant 2 : index
    %c0_7 = arith.constant 0 : index
    %c0_8 = arith.constant 0 : index
    %4 = vector.load %arg2[%c0_6, %c2, %c0_7, %c0_8] : memref<1x3x8x256xf32, #tpu.memory_space<vmem>>, vector<1x1x8x256xf32>
    %5 = vector.shape_cast %4 : vector<1x1x8x256xf32> to vector<8x256xf32>
    %c0_9 = arith.constant 0 : index
    %c0_10 = arith.constant 0 : index
    %6 = memref.load %arg4[%c0_9, %c0_10] : memref<3x8xf32, #tpu.memory_space<smem>>
    %7 = vector.broadcast %6 : f32 to vector<8x256xf32>
    %8 = arith.mulf %1, %7 : vector<8x256xf32>
    %c1_11 = arith.constant 1 : index
    %c0_12 = arith.constant 0 : index
    %9 = memref.load %arg4[%c1_11, %c0_12] : memref<3x8xf32, #tpu.memory_space<smem>>
    %10 = vector.broadcast %9 : f32 to vector<8x256xf32>
    %11 = arith.mulf %3, %10 : vector<8x256xf32>
    %12 = arith.addf %8, %11 : vector<8x256xf32>
    %c2_13 = arith.constant 2 : index
    %c0_14 = arith.constant 0 : index
    %13 = memref.load %arg4[%c2_13, %c0_14] : memref<3x8xf32, #tpu.memory_space<smem>>
    %14 = vector.broadcast %13 : f32 to vector<8x256xf32>
    %15 = arith.mulf %5, %14 : vector<8x256xf32>
    %16 = arith.addf %12, %15 : vector<8x256xf32>
    %c0_15 = arith.constant 0 : index
    %17 = memref.load %arg5[%c0_15] : memref<8xf32, #tpu.memory_space<smem>>
    %18 = vector.broadcast %17 : f32 to vector<8x256xf32>
    %19 = arith.addf %16, %18 : vector<8x256xf32>
    %cst = arith.constant 0.000000e+00 : f32
    %20 = vector.broadcast %cst : f32 to vector<8x256xf32>
    %21 = arith.maximumf %19, %20 : vector<8x256xf32>
    %c0_16 = arith.constant 0 : index
    %c1_17 = arith.constant 1 : index
    %22 = memref.load %arg4[%c0_16, %c1_17] : memref<3x8xf32, #tpu.memory_space<smem>>
    %23 = vector.broadcast %22 : f32 to vector<8x256xf32>
    %24 = arith.mulf %1, %23 : vector<8x256xf32>
    %c1_18 = arith.constant 1 : index
    %c1_19 = arith.constant 1 : index
    %25 = memref.load %arg4[%c1_18, %c1_19] : memref<3x8xf32, #tpu.memory_space<smem>>
    %26 = vector.broadcast %25 : f32 to vector<8x256xf32>
    %27 = arith.mulf %3, %26 : vector<8x256xf32>
    %28 = arith.addf %24, %27 : vector<8x256xf32>
    %c2_20 = arith.constant 2 : index
    %c1_21 = arith.constant 1 : index
    %29 = memref.load %arg4[%c2_20, %c1_21] : memref<3x8xf32, #tpu.memory_space<smem>>
    %30 = vector.broadcast %29 : f32 to vector<8x256xf32>
    %31 = arith.mulf %5, %30 : vector<8x256xf32>
    %32 = arith.addf %28, %31 : vector<8x256xf32>
    %c1_22 = arith.constant 1 : index
    %33 = memref.load %arg5[%c1_22] : memref<8xf32, #tpu.memory_space<smem>>
    %34 = vector.broadcast %33 : f32 to vector<8x256xf32>
    %35 = arith.addf %32, %34 : vector<8x256xf32>
    %cst_23 = arith.constant 0.000000e+00 : f32
    %36 = vector.broadcast %cst_23 : f32 to vector<8x256xf32>
    %37 = arith.maximumf %35, %36 : vector<8x256xf32>
    %c0_24 = arith.constant 0 : index
    %c2_25 = arith.constant 2 : index
    %38 = memref.load %arg4[%c0_24, %c2_25] : memref<3x8xf32, #tpu.memory_space<smem>>
    %39 = vector.broadcast %38 : f32 to vector<8x256xf32>
    %40 = arith.mulf %1, %39 : vector<8x256xf32>
    %c1_26 = arith.constant 1 : index
    %c2_27 = arith.constant 2 : index
    %41 = memref.load %arg4[%c1_26, %c2_27] : memref<3x8xf32, #tpu.memory_space<smem>>
    %42 = vector.broadcast %41 : f32 to vector<8x256xf32>
    %43 = arith.mulf %3, %42 : vector<8x256xf32>
    %44 = arith.addf %40, %43 : vector<8x256xf32>
    %c2_28 = arith.constant 2 : index
    %c2_29 = arith.constant 2 : index
    %45 = memref.load %arg4[%c2_28, %c2_29] : memref<3x8xf32, #tpu.memory_space<smem>>
    %46 = vector.broadcast %45 : f32 to vector<8x256xf32>
    %47 = arith.mulf %5, %46 : vector<8x256xf32>
    %48 = arith.addf %44, %47 : vector<8x256xf32>
    %c2_30 = arith.constant 2 : index
    %49 = memref.load %arg5[%c2_30] : memref<8xf32, #tpu.memory_space<smem>>
    %50 = vector.broadcast %49 : f32 to vector<8x256xf32>
    %51 = arith.addf %48, %50 : vector<8x256xf32>
    %cst_31 = arith.constant 0.000000e+00 : f32
    %52 = vector.broadcast %cst_31 : f32 to vector<8x256xf32>
    %53 = arith.maximumf %51, %52 : vector<8x256xf32>
    %c0_32 = arith.constant 0 : index
    %c3 = arith.constant 3 : index
    %54 = memref.load %arg4[%c0_32, %c3] : memref<3x8xf32, #tpu.memory_space<smem>>
    %55 = vector.broadcast %54 : f32 to vector<8x256xf32>
    %56 = arith.mulf %1, %55 : vector<8x256xf32>
    %c1_33 = arith.constant 1 : index
    %c3_34 = arith.constant 3 : index
    %57 = memref.load %arg4[%c1_33, %c3_34] : memref<3x8xf32, #tpu.memory_space<smem>>
    %58 = vector.broadcast %57 : f32 to vector<8x256xf32>
    %59 = arith.mulf %3, %58 : vector<8x256xf32>
    %60 = arith.addf %56, %59 : vector<8x256xf32>
    %c2_35 = arith.constant 2 : index
    %c3_36 = arith.constant 3 : index
    %61 = memref.load %arg4[%c2_35, %c3_36] : memref<3x8xf32, #tpu.memory_space<smem>>
    %62 = vector.broadcast %61 : f32 to vector<8x256xf32>
    %63 = arith.mulf %5, %62 : vector<8x256xf32>
    %64 = arith.addf %60, %63 : vector<8x256xf32>
    %c3_37 = arith.constant 3 : index
    %65 = memref.load %arg5[%c3_37] : memref<8xf32, #tpu.memory_space<smem>>
    %66 = vector.broadcast %65 : f32 to vector<8x256xf32>
    %67 = arith.addf %64, %66 : vector<8x256xf32>
    %cst_38 = arith.constant 0.000000e+00 : f32
    %68 = vector.broadcast %cst_38 : f32 to vector<8x256xf32>
    %69 = arith.maximumf %67, %68 : vector<8x256xf32>
    %c0_39 = arith.constant 0 : index
    %c4 = arith.constant 4 : index
    %70 = memref.load %arg4[%c0_39, %c4] : memref<3x8xf32, #tpu.memory_space<smem>>
    %71 = vector.broadcast %70 : f32 to vector<8x256xf32>
    %72 = arith.mulf %1, %71 : vector<8x256xf32>
    %c1_40 = arith.constant 1 : index
    %c4_41 = arith.constant 4 : index
    %73 = memref.load %arg4[%c1_40, %c4_41] : memref<3x8xf32, #tpu.memory_space<smem>>
    %74 = vector.broadcast %73 : f32 to vector<8x256xf32>
    %75 = arith.mulf %3, %74 : vector<8x256xf32>
    %76 = arith.addf %72, %75 : vector<8x256xf32>
    %c2_42 = arith.constant 2 : index
    %c4_43 = arith.constant 4 : index
    %77 = memref.load %arg4[%c2_42, %c4_43] : memref<3x8xf32, #tpu.memory_space<smem>>
    %78 = vector.broadcast %77 : f32 to vector<8x256xf32>
    %79 = arith.mulf %5, %78 : vector<8x256xf32>
    %80 = arith.addf %76, %79 : vector<8x256xf32>
    %c4_44 = arith.constant 4 : index
    %81 = memref.load %arg5[%c4_44] : memref<8xf32, #tpu.memory_space<smem>>
    %82 = vector.broadcast %81 : f32 to vector<8x256xf32>
    %83 = arith.addf %80, %82 : vector<8x256xf32>
    %cst_45 = arith.constant 0.000000e+00 : f32
    %84 = vector.broadcast %cst_45 : f32 to vector<8x256xf32>
    %85 = arith.maximumf %83, %84 : vector<8x256xf32>
    %c0_46 = arith.constant 0 : index
    %c5 = arith.constant 5 : index
    %86 = memref.load %arg4[%c0_46, %c5] : memref<3x8xf32, #tpu.memory_space<smem>>
    %87 = vector.broadcast %86 : f32 to vector<8x256xf32>
    %88 = arith.mulf %1, %87 : vector<8x256xf32>
    %c1_47 = arith.constant 1 : index
    %c5_48 = arith.constant 5 : index
    %89 = memref.load %arg4[%c1_47, %c5_48] : memref<3x8xf32, #tpu.memory_space<smem>>
    %90 = vector.broadcast %89 : f32 to vector<8x256xf32>
    %91 = arith.mulf %3, %90 : vector<8x256xf32>
    %92 = arith.addf %88, %91 : vector<8x256xf32>
    %c2_49 = arith.constant 2 : index
    %c5_50 = arith.constant 5 : index
    %93 = memref.load %arg4[%c2_49, %c5_50] : memref<3x8xf32, #tpu.memory_space<smem>>
    %94 = vector.broadcast %93 : f32 to vector<8x256xf32>
    %95 = arith.mulf %5, %94 : vector<8x256xf32>
    %96 = arith.addf %92, %95 : vector<8x256xf32>
    %c5_51 = arith.constant 5 : index
    %97 = memref.load %arg5[%c5_51] : memref<8xf32, #tpu.memory_space<smem>>
    %98 = vector.broadcast %97 : f32 to vector<8x256xf32>
    %99 = arith.addf %96, %98 : vector<8x256xf32>
    %cst_52 = arith.constant 0.000000e+00 : f32
    %100 = vector.broadcast %cst_52 : f32 to vector<8x256xf32>
    %101 = arith.maximumf %99, %100 : vector<8x256xf32>
    %c0_53 = arith.constant 0 : index
    %c6 = arith.constant 6 : index
    %102 = memref.load %arg4[%c0_53, %c6] : memref<3x8xf32, #tpu.memory_space<smem>>
    %103 = vector.broadcast %102 : f32 to vector<8x256xf32>
    %104 = arith.mulf %1, %103 : vector<8x256xf32>
    %c1_54 = arith.constant 1 : index
    %c6_55 = arith.constant 6 : index
    %105 = memref.load %arg4[%c1_54, %c6_55] : memref<3x8xf32, #tpu.memory_space<smem>>
    %106 = vector.broadcast %105 : f32 to vector<8x256xf32>
    %107 = arith.mulf %3, %106 : vector<8x256xf32>
    %108 = arith.addf %104, %107 : vector<8x256xf32>
    %c2_56 = arith.constant 2 : index
    %c6_57 = arith.constant 6 : index
    %109 = memref.load %arg4[%c2_56, %c6_57] : memref<3x8xf32, #tpu.memory_space<smem>>
    %110 = vector.broadcast %109 : f32 to vector<8x256xf32>
    %111 = arith.mulf %5, %110 : vector<8x256xf32>
    %112 = arith.addf %108, %111 : vector<8x256xf32>
    %c6_58 = arith.constant 6 : index
    %113 = memref.load %arg5[%c6_58] : memref<8xf32, #tpu.memory_space<smem>>
    %114 = vector.broadcast %113 : f32 to vector<8x256xf32>
    %115 = arith.addf %112, %114 : vector<8x256xf32>
    %cst_59 = arith.constant 0.000000e+00 : f32
    %116 = vector.broadcast %cst_59 : f32 to vector<8x256xf32>
    %117 = arith.maximumf %115, %116 : vector<8x256xf32>
    %c0_60 = arith.constant 0 : index
    %c7 = arith.constant 7 : index
    %118 = memref.load %arg4[%c0_60, %c7] : memref<3x8xf32, #tpu.memory_space<smem>>
    %119 = vector.broadcast %118 : f32 to vector<8x256xf32>
    %120 = arith.mulf %1, %119 : vector<8x256xf32>
    %c1_61 = arith.constant 1 : index
    %c7_62 = arith.constant 7 : index
    %121 = memref.load %arg4[%c1_61, %c7_62] : memref<3x8xf32, #tpu.memory_space<smem>>
    %122 = vector.broadcast %121 : f32 to vector<8x256xf32>
    %123 = arith.mulf %3, %122 : vector<8x256xf32>
    %124 = arith.addf %120, %123 : vector<8x256xf32>
    %c2_63 = arith.constant 2 : index
    %c7_64 = arith.constant 7 : index
    %125 = memref.load %arg4[%c2_63, %c7_64] : memref<3x8xf32, #tpu.memory_space<smem>>
    %126 = vector.broadcast %125 : f32 to vector<8x256xf32>
    %127 = arith.mulf %5, %126 : vector<8x256xf32>
    %128 = arith.addf %124, %127 : vector<8x256xf32>
    %c7_65 = arith.constant 7 : index
    %129 = memref.load %arg5[%c7_65] : memref<8xf32, #tpu.memory_space<smem>>
    %130 = vector.broadcast %129 : f32 to vector<8x256xf32>
    %131 = arith.addf %128, %130 : vector<8x256xf32>
    %cst_66 = arith.constant 0.000000e+00 : f32
    %132 = vector.broadcast %cst_66 : f32 to vector<8x256xf32>
    %133 = arith.maximumf %131, %132 : vector<8x256xf32>
    %c0_67 = arith.constant 0 : index
    %c0_68 = arith.constant 0 : index
    %134 = memref.load %arg6[%c0_67, %c0_68] : memref<8x8xf32, #tpu.memory_space<smem>>
    %135 = vector.broadcast %134 : f32 to vector<8x256xf32>
    %136 = arith.mulf %21, %135 : vector<8x256xf32>
    %c1_69 = arith.constant 1 : index
    %c0_70 = arith.constant 0 : index
    %137 = memref.load %arg6[%c1_69, %c0_70] : memref<8x8xf32, #tpu.memory_space<smem>>
    %138 = vector.broadcast %137 : f32 to vector<8x256xf32>
    %139 = arith.mulf %37, %138 : vector<8x256xf32>
    %140 = arith.addf %136, %139 : vector<8x256xf32>
    %c2_71 = arith.constant 2 : index
    %c0_72 = arith.constant 0 : index
    %141 = memref.load %arg6[%c2_71, %c0_72] : memref<8x8xf32, #tpu.memory_space<smem>>
    %142 = vector.broadcast %141 : f32 to vector<8x256xf32>
    %143 = arith.mulf %53, %142 : vector<8x256xf32>
    %144 = arith.addf %140, %143 : vector<8x256xf32>
    %c3_73 = arith.constant 3 : index
    %c0_74 = arith.constant 0 : index
    %145 = memref.load %arg6[%c3_73, %c0_74] : memref<8x8xf32, #tpu.memory_space<smem>>
    %146 = vector.broadcast %145 : f32 to vector<8x256xf32>
    %147 = arith.mulf %69, %146 : vector<8x256xf32>
    %148 = arith.addf %144, %147 : vector<8x256xf32>
    %c4_75 = arith.constant 4 : index
    %c0_76 = arith.constant 0 : index
    %149 = memref.load %arg6[%c4_75, %c0_76] : memref<8x8xf32, #tpu.memory_space<smem>>
    %150 = vector.broadcast %149 : f32 to vector<8x256xf32>
    %151 = arith.mulf %85, %150 : vector<8x256xf32>
    %152 = arith.addf %148, %151 : vector<8x256xf32>
    %c5_77 = arith.constant 5 : index
    %c0_78 = arith.constant 0 : index
    %153 = memref.load %arg6[%c5_77, %c0_78] : memref<8x8xf32, #tpu.memory_space<smem>>
    %154 = vector.broadcast %153 : f32 to vector<8x256xf32>
    %155 = arith.mulf %101, %154 : vector<8x256xf32>
    %156 = arith.addf %152, %155 : vector<8x256xf32>
    %c6_79 = arith.constant 6 : index
    %c0_80 = arith.constant 0 : index
    %157 = memref.load %arg6[%c6_79, %c0_80] : memref<8x8xf32, #tpu.memory_space<smem>>
    %158 = vector.broadcast %157 : f32 to vector<8x256xf32>
    %159 = arith.mulf %117, %158 : vector<8x256xf32>
    %160 = arith.addf %156, %159 : vector<8x256xf32>
    %c7_81 = arith.constant 7 : index
    %c0_82 = arith.constant 0 : index
    %161 = memref.load %arg6[%c7_81, %c0_82] : memref<8x8xf32, #tpu.memory_space<smem>>
    %162 = vector.broadcast %161 : f32 to vector<8x256xf32>
    %163 = arith.mulf %133, %162 : vector<8x256xf32>
    %164 = arith.addf %160, %163 : vector<8x256xf32>
    %c0_83 = arith.constant 0 : index
    %165 = memref.load %arg7[%c0_83] : memref<8xf32, #tpu.memory_space<smem>>
    %166 = vector.broadcast %165 : f32 to vector<8x256xf32>
    %167 = arith.addf %164, %166 : vector<8x256xf32>
    %cst_84 = arith.constant 0.000000e+00 : f32
    %168 = vector.broadcast %cst_84 : f32 to vector<8x256xf32>
    %169 = arith.maximumf %167, %168 : vector<8x256xf32>
    %c0_85 = arith.constant 0 : index
    %c1_86 = arith.constant 1 : index
    %170 = memref.load %arg6[%c0_85, %c1_86] : memref<8x8xf32, #tpu.memory_space<smem>>
    %171 = vector.broadcast %170 : f32 to vector<8x256xf32>
    %172 = arith.mulf %21, %171 : vector<8x256xf32>
    %c1_87 = arith.constant 1 : index
    %c1_88 = arith.constant 1 : index
    %173 = memref.load %arg6[%c1_87, %c1_88] : memref<8x8xf32, #tpu.memory_space<smem>>
    %174 = vector.broadcast %173 : f32 to vector<8x256xf32>
    %175 = arith.mulf %37, %174 : vector<8x256xf32>
    %176 = arith.addf %172, %175 : vector<8x256xf32>
    %c2_89 = arith.constant 2 : index
    %c1_90 = arith.constant 1 : index
    %177 = memref.load %arg6[%c2_89, %c1_90] : memref<8x8xf32, #tpu.memory_space<smem>>
    %178 = vector.broadcast %177 : f32 to vector<8x256xf32>
    %179 = arith.mulf %53, %178 : vector<8x256xf32>
    %180 = arith.addf %176, %179 : vector<8x256xf32>
    %c3_91 = arith.constant 3 : index
    %c1_92 = arith.constant 1 : index
    %181 = memref.load %arg6[%c3_91, %c1_92] : memref<8x8xf32, #tpu.memory_space<smem>>
    %182 = vector.broadcast %181 : f32 to vector<8x256xf32>
    %183 = arith.mulf %69, %182 : vector<8x256xf32>
    %184 = arith.addf %180, %183 : vector<8x256xf32>
    %c4_93 = arith.constant 4 : index
    %c1_94 = arith.constant 1 : index
    %185 = memref.load %arg6[%c4_93, %c1_94] : memref<8x8xf32, #tpu.memory_space<smem>>
    %186 = vector.broadcast %185 : f32 to vector<8x256xf32>
    %187 = arith.mulf %85, %186 : vector<8x256xf32>
    %188 = arith.addf %184, %187 : vector<8x256xf32>
    %c5_95 = arith.constant 5 : index
    %c1_96 = arith.constant 1 : index
    %189 = memref.load %arg6[%c5_95, %c1_96] : memref<8x8xf32, #tpu.memory_space<smem>>
    %190 = vector.broadcast %189 : f32 to vector<8x256xf32>
    %191 = arith.mulf %101, %190 : vector<8x256xf32>
    %192 = arith.addf %188, %191 : vector<8x256xf32>
    %c6_97 = arith.constant 6 : index
    %c1_98 = arith.constant 1 : index
    %193 = memref.load %arg6[%c6_97, %c1_98] : memref<8x8xf32, #tpu.memory_space<smem>>
    %194 = vector.broadcast %193 : f32 to vector<8x256xf32>
    %195 = arith.mulf %117, %194 : vector<8x256xf32>
    %196 = arith.addf %192, %195 : vector<8x256xf32>
    %c7_99 = arith.constant 7 : index
    %c1_100 = arith.constant 1 : index
    %197 = memref.load %arg6[%c7_99, %c1_100] : memref<8x8xf32, #tpu.memory_space<smem>>
    %198 = vector.broadcast %197 : f32 to vector<8x256xf32>
    %199 = arith.mulf %133, %198 : vector<8x256xf32>
    %200 = arith.addf %196, %199 : vector<8x256xf32>
    %c1_101 = arith.constant 1 : index
    %201 = memref.load %arg7[%c1_101] : memref<8xf32, #tpu.memory_space<smem>>
    %202 = vector.broadcast %201 : f32 to vector<8x256xf32>
    %203 = arith.addf %200, %202 : vector<8x256xf32>
    %cst_102 = arith.constant 0.000000e+00 : f32
    %204 = vector.broadcast %cst_102 : f32 to vector<8x256xf32>
    %205 = arith.maximumf %203, %204 : vector<8x256xf32>
    %c0_103 = arith.constant 0 : index
    %c2_104 = arith.constant 2 : index
    %206 = memref.load %arg6[%c0_103, %c2_104] : memref<8x8xf32, #tpu.memory_space<smem>>
    %207 = vector.broadcast %206 : f32 to vector<8x256xf32>
    %208 = arith.mulf %21, %207 : vector<8x256xf32>
    %c1_105 = arith.constant 1 : index
    %c2_106 = arith.constant 2 : index
    %209 = memref.load %arg6[%c1_105, %c2_106] : memref<8x8xf32, #tpu.memory_space<smem>>
    %210 = vector.broadcast %209 : f32 to vector<8x256xf32>
    %211 = arith.mulf %37, %210 : vector<8x256xf32>
    %212 = arith.addf %208, %211 : vector<8x256xf32>
    %c2_107 = arith.constant 2 : index
    %c2_108 = arith.constant 2 : index
    %213 = memref.load %arg6[%c2_107, %c2_108] : memref<8x8xf32, #tpu.memory_space<smem>>
    %214 = vector.broadcast %213 : f32 to vector<8x256xf32>
    %215 = arith.mulf %53, %214 : vector<8x256xf32>
    %216 = arith.addf %212, %215 : vector<8x256xf32>
    %c3_109 = arith.constant 3 : index
    %c2_110 = arith.constant 2 : index
    %217 = memref.load %arg6[%c3_109, %c2_110] : memref<8x8xf32, #tpu.memory_space<smem>>
    %218 = vector.broadcast %217 : f32 to vector<8x256xf32>
    %219 = arith.mulf %69, %218 : vector<8x256xf32>
    %220 = arith.addf %216, %219 : vector<8x256xf32>
    %c4_111 = arith.constant 4 : index
    %c2_112 = arith.constant 2 : index
    %221 = memref.load %arg6[%c4_111, %c2_112] : memref<8x8xf32, #tpu.memory_space<smem>>
    %222 = vector.broadcast %221 : f32 to vector<8x256xf32>
    %223 = arith.mulf %85, %222 : vector<8x256xf32>
    %224 = arith.addf %220, %223 : vector<8x256xf32>
    %c5_113 = arith.constant 5 : index
    %c2_114 = arith.constant 2 : index
    %225 = memref.load %arg6[%c5_113, %c2_114] : memref<8x8xf32, #tpu.memory_space<smem>>
    %226 = vector.broadcast %225 : f32 to vector<8x256xf32>
    %227 = arith.mulf %101, %226 : vector<8x256xf32>
    %228 = arith.addf %224, %227 : vector<8x256xf32>
    %c6_115 = arith.constant 6 : index
    %c2_116 = arith.constant 2 : index
    %229 = memref.load %arg6[%c6_115, %c2_116] : memref<8x8xf32, #tpu.memory_space<smem>>
    %230 = vector.broadcast %229 : f32 to vector<8x256xf32>
    %231 = arith.mulf %117, %230 : vector<8x256xf32>
    %232 = arith.addf %228, %231 : vector<8x256xf32>
    %c7_117 = arith.constant 7 : index
    %c2_118 = arith.constant 2 : index
    %233 = memref.load %arg6[%c7_117, %c2_118] : memref<8x8xf32, #tpu.memory_space<smem>>
    %234 = vector.broadcast %233 : f32 to vector<8x256xf32>
    %235 = arith.mulf %133, %234 : vector<8x256xf32>
    %236 = arith.addf %232, %235 : vector<8x256xf32>
    %c2_119 = arith.constant 2 : index
    %237 = memref.load %arg7[%c2_119] : memref<8xf32, #tpu.memory_space<smem>>
    %238 = vector.broadcast %237 : f32 to vector<8x256xf32>
    %239 = arith.addf %236, %238 : vector<8x256xf32>
    %cst_120 = arith.constant 0.000000e+00 : f32
    %240 = vector.broadcast %cst_120 : f32 to vector<8x256xf32>
    %241 = arith.maximumf %239, %240 : vector<8x256xf32>
    %c0_121 = arith.constant 0 : index
    %c3_122 = arith.constant 3 : index
    %242 = memref.load %arg6[%c0_121, %c3_122] : memref<8x8xf32, #tpu.memory_space<smem>>
    %243 = vector.broadcast %242 : f32 to vector<8x256xf32>
    %244 = arith.mulf %21, %243 : vector<8x256xf32>
    %c1_123 = arith.constant 1 : index
    %c3_124 = arith.constant 3 : index
    %245 = memref.load %arg6[%c1_123, %c3_124] : memref<8x8xf32, #tpu.memory_space<smem>>
    %246 = vector.broadcast %245 : f32 to vector<8x256xf32>
    %247 = arith.mulf %37, %246 : vector<8x256xf32>
    %248 = arith.addf %244, %247 : vector<8x256xf32>
    %c2_125 = arith.constant 2 : index
    %c3_126 = arith.constant 3 : index
    %249 = memref.load %arg6[%c2_125, %c3_126] : memref<8x8xf32, #tpu.memory_space<smem>>
    %250 = vector.broadcast %249 : f32 to vector<8x256xf32>
    %251 = arith.mulf %53, %250 : vector<8x256xf32>
    %252 = arith.addf %248, %251 : vector<8x256xf32>
    %c3_127 = arith.constant 3 : index
    %c3_128 = arith.constant 3 : index
    %253 = memref.load %arg6[%c3_127, %c3_128] : memref<8x8xf32, #tpu.memory_space<smem>>
    %254 = vector.broadcast %253 : f32 to vector<8x256xf32>
    %255 = arith.mulf %69, %254 : vector<8x256xf32>
    %256 = arith.addf %252, %255 : vector<8x256xf32>
    %c4_129 = arith.constant 4 : index
    %c3_130 = arith.constant 3 : index
    %257 = memref.load %arg6[%c4_129, %c3_130] : memref<8x8xf32, #tpu.memory_space<smem>>
    %258 = vector.broadcast %257 : f32 to vector<8x256xf32>
    %259 = arith.mulf %85, %258 : vector<8x256xf32>
    %260 = arith.addf %256, %259 : vector<8x256xf32>
    %c5_131 = arith.constant 5 : index
    %c3_132 = arith.constant 3 : index
    %261 = memref.load %arg6[%c5_131, %c3_132] : memref<8x8xf32, #tpu.memory_space<smem>>
    %262 = vector.broadcast %261 : f32 to vector<8x256xf32>
    %263 = arith.mulf %101, %262 : vector<8x256xf32>
    %264 = arith.addf %260, %263 : vector<8x256xf32>
    %c6_133 = arith.constant 6 : index
    %c3_134 = arith.constant 3 : index
    %265 = memref.load %arg6[%c6_133, %c3_134] : memref<8x8xf32, #tpu.memory_space<smem>>
    %266 = vector.broadcast %265 : f32 to vector<8x256xf32>
    %267 = arith.mulf %117, %266 : vector<8x256xf32>
    %268 = arith.addf %264, %267 : vector<8x256xf32>
    %c7_135 = arith.constant 7 : index
    %c3_136 = arith.constant 3 : index
    %269 = memref.load %arg6[%c7_135, %c3_136] : memref<8x8xf32, #tpu.memory_space<smem>>
    %270 = vector.broadcast %269 : f32 to vector<8x256xf32>
    %271 = arith.mulf %133, %270 : vector<8x256xf32>
    %272 = arith.addf %268, %271 : vector<8x256xf32>
    %c3_137 = arith.constant 3 : index
    %273 = memref.load %arg7[%c3_137] : memref<8xf32, #tpu.memory_space<smem>>
    %274 = vector.broadcast %273 : f32 to vector<8x256xf32>
    %275 = arith.addf %272, %274 : vector<8x256xf32>
    %cst_138 = arith.constant 0.000000e+00 : f32
    %276 = vector.broadcast %cst_138 : f32 to vector<8x256xf32>
    %277 = arith.maximumf %275, %276 : vector<8x256xf32>
    %c0_139 = arith.constant 0 : index
    %c4_140 = arith.constant 4 : index
    %278 = memref.load %arg6[%c0_139, %c4_140] : memref<8x8xf32, #tpu.memory_space<smem>>
    %279 = vector.broadcast %278 : f32 to vector<8x256xf32>
    %280 = arith.mulf %21, %279 : vector<8x256xf32>
    %c1_141 = arith.constant 1 : index
    %c4_142 = arith.constant 4 : index
    %281 = memref.load %arg6[%c1_141, %c4_142] : memref<8x8xf32, #tpu.memory_space<smem>>
    %282 = vector.broadcast %281 : f32 to vector<8x256xf32>
    %283 = arith.mulf %37, %282 : vector<8x256xf32>
    %284 = arith.addf %280, %283 : vector<8x256xf32>
    %c2_143 = arith.constant 2 : index
    %c4_144 = arith.constant 4 : index
    %285 = memref.load %arg6[%c2_143, %c4_144] : memref<8x8xf32, #tpu.memory_space<smem>>
    %286 = vector.broadcast %285 : f32 to vector<8x256xf32>
    %287 = arith.mulf %53, %286 : vector<8x256xf32>
    %288 = arith.addf %284, %287 : vector<8x256xf32>
    %c3_145 = arith.constant 3 : index
    %c4_146 = arith.constant 4 : index
    %289 = memref.load %arg6[%c3_145, %c4_146] : memref<8x8xf32, #tpu.memory_space<smem>>
    %290 = vector.broadcast %289 : f32 to vector<8x256xf32>
    %291 = arith.mulf %69, %290 : vector<8x256xf32>
    %292 = arith.addf %288, %291 : vector<8x256xf32>
    %c4_147 = arith.constant 4 : index
    %c4_148 = arith.constant 4 : index
    %293 = memref.load %arg6[%c4_147, %c4_148] : memref<8x8xf32, #tpu.memory_space<smem>>
    %294 = vector.broadcast %293 : f32 to vector<8x256xf32>
    %295 = arith.mulf %85, %294 : vector<8x256xf32>
    %296 = arith.addf %292, %295 : vector<8x256xf32>
    %c5_149 = arith.constant 5 : index
    %c4_150 = arith.constant 4 : index
    %297 = memref.load %arg6[%c5_149, %c4_150] : memref<8x8xf32, #tpu.memory_space<smem>>
    %298 = vector.broadcast %297 : f32 to vector<8x256xf32>
    %299 = arith.mulf %101, %298 : vector<8x256xf32>
    %300 = arith.addf %296, %299 : vector<8x256xf32>
    %c6_151 = arith.constant 6 : index
    %c4_152 = arith.constant 4 : index
    %301 = memref.load %arg6[%c6_151, %c4_152] : memref<8x8xf32, #tpu.memory_space<smem>>
    %302 = vector.broadcast %301 : f32 to vector<8x256xf32>
    %303 = arith.mulf %117, %302 : vector<8x256xf32>
    %304 = arith.addf %300, %303 : vector<8x256xf32>
    %c7_153 = arith.constant 7 : index
    %c4_154 = arith.constant 4 : index
    %305 = memref.load %arg6[%c7_153, %c4_154] : memref<8x8xf32, #tpu.memory_space<smem>>
    %306 = vector.broadcast %305 : f32 to vector<8x256xf32>
    %307 = arith.mulf %133, %306 : vector<8x256xf32>
    %308 = arith.addf %304, %307 : vector<8x256xf32>
    %c4_155 = arith.constant 4 : index
    %309 = memref.load %arg7[%c4_155] : memref<8xf32, #tpu.memory_space<smem>>
    %310 = vector.broadcast %309 : f32 to vector<8x256xf32>
    %311 = arith.addf %308, %310 : vector<8x256xf32>
    %cst_156 = arith.constant 0.000000e+00 : f32
    %312 = vector.broadcast %cst_156 : f32 to vector<8x256xf32>
    %313 = arith.maximumf %311, %312 : vector<8x256xf32>
    %c0_157 = arith.constant 0 : index
    %c5_158 = arith.constant 5 : index
    %314 = memref.load %arg6[%c0_157, %c5_158] : memref<8x8xf32, #tpu.memory_space<smem>>
    %315 = vector.broadcast %314 : f32 to vector<8x256xf32>
    %316 = arith.mulf %21, %315 : vector<8x256xf32>
    %c1_159 = arith.constant 1 : index
    %c5_160 = arith.constant 5 : index
    %317 = memref.load %arg6[%c1_159, %c5_160] : memref<8x8xf32, #tpu.memory_space<smem>>
    %318 = vector.broadcast %317 : f32 to vector<8x256xf32>
    %319 = arith.mulf %37, %318 : vector<8x256xf32>
    %320 = arith.addf %316, %319 : vector<8x256xf32>
    %c2_161 = arith.constant 2 : index
    %c5_162 = arith.constant 5 : index
    %321 = memref.load %arg6[%c2_161, %c5_162] : memref<8x8xf32, #tpu.memory_space<smem>>
    %322 = vector.broadcast %321 : f32 to vector<8x256xf32>
    %323 = arith.mulf %53, %322 : vector<8x256xf32>
    %324 = arith.addf %320, %323 : vector<8x256xf32>
    %c3_163 = arith.constant 3 : index
    %c5_164 = arith.constant 5 : index
    %325 = memref.load %arg6[%c3_163, %c5_164] : memref<8x8xf32, #tpu.memory_space<smem>>
    %326 = vector.broadcast %325 : f32 to vector<8x256xf32>
    %327 = arith.mulf %69, %326 : vector<8x256xf32>
    %328 = arith.addf %324, %327 : vector<8x256xf32>
    %c4_165 = arith.constant 4 : index
    %c5_166 = arith.constant 5 : index
    %329 = memref.load %arg6[%c4_165, %c5_166] : memref<8x8xf32, #tpu.memory_space<smem>>
    %330 = vector.broadcast %329 : f32 to vector<8x256xf32>
    %331 = arith.mulf %85, %330 : vector<8x256xf32>
    %332 = arith.addf %328, %331 : vector<8x256xf32>
    %c5_167 = arith.constant 5 : index
    %c5_168 = arith.constant 5 : index
    %333 = memref.load %arg6[%c5_167, %c5_168] : memref<8x8xf32, #tpu.memory_space<smem>>
    %334 = vector.broadcast %333 : f32 to vector<8x256xf32>
    %335 = arith.mulf %101, %334 : vector<8x256xf32>
    %336 = arith.addf %332, %335 : vector<8x256xf32>
    %c6_169 = arith.constant 6 : index
    %c5_170 = arith.constant 5 : index
    %337 = memref.load %arg6[%c6_169, %c5_170] : memref<8x8xf32, #tpu.memory_space<smem>>
    %338 = vector.broadcast %337 : f32 to vector<8x256xf32>
    %339 = arith.mulf %117, %338 : vector<8x256xf32>
    %340 = arith.addf %336, %339 : vector<8x256xf32>
    %c7_171 = arith.constant 7 : index
    %c5_172 = arith.constant 5 : index
    %341 = memref.load %arg6[%c7_171, %c5_172] : memref<8x8xf32, #tpu.memory_space<smem>>
    %342 = vector.broadcast %341 : f32 to vector<8x256xf32>
    %343 = arith.mulf %133, %342 : vector<8x256xf32>
    %344 = arith.addf %340, %343 : vector<8x256xf32>
    %c5_173 = arith.constant 5 : index
    %345 = memref.load %arg7[%c5_173] : memref<8xf32, #tpu.memory_space<smem>>
    %346 = vector.broadcast %345 : f32 to vector<8x256xf32>
    %347 = arith.addf %344, %346 : vector<8x256xf32>
    %cst_174 = arith.constant 0.000000e+00 : f32
    %348 = vector.broadcast %cst_174 : f32 to vector<8x256xf32>
    %349 = arith.maximumf %347, %348 : vector<8x256xf32>
    %c0_175 = arith.constant 0 : index
    %c6_176 = arith.constant 6 : index
    %350 = memref.load %arg6[%c0_175, %c6_176] : memref<8x8xf32, #tpu.memory_space<smem>>
    %351 = vector.broadcast %350 : f32 to vector<8x256xf32>
    %352 = arith.mulf %21, %351 : vector<8x256xf32>
    %c1_177 = arith.constant 1 : index
    %c6_178 = arith.constant 6 : index
    %353 = memref.load %arg6[%c1_177, %c6_178] : memref<8x8xf32, #tpu.memory_space<smem>>
    %354 = vector.broadcast %353 : f32 to vector<8x256xf32>
    %355 = arith.mulf %37, %354 : vector<8x256xf32>
    %356 = arith.addf %352, %355 : vector<8x256xf32>
    %c2_179 = arith.constant 2 : index
    %c6_180 = arith.constant 6 : index
    %357 = memref.load %arg6[%c2_179, %c6_180] : memref<8x8xf32, #tpu.memory_space<smem>>
    %358 = vector.broadcast %357 : f32 to vector<8x256xf32>
    %359 = arith.mulf %53, %358 : vector<8x256xf32>
    %360 = arith.addf %356, %359 : vector<8x256xf32>
    %c3_181 = arith.constant 3 : index
    %c6_182 = arith.constant 6 : index
    %361 = memref.load %arg6[%c3_181, %c6_182] : memref<8x8xf32, #tpu.memory_space<smem>>
    %362 = vector.broadcast %361 : f32 to vector<8x256xf32>
    %363 = arith.mulf %69, %362 : vector<8x256xf32>
    %364 = arith.addf %360, %363 : vector<8x256xf32>
    %c4_183 = arith.constant 4 : index
    %c6_184 = arith.constant 6 : index
    %365 = memref.load %arg6[%c4_183, %c6_184] : memref<8x8xf32, #tpu.memory_space<smem>>
    %366 = vector.broadcast %365 : f32 to vector<8x256xf32>
    %367 = arith.mulf %85, %366 : vector<8x256xf32>
    %368 = arith.addf %364, %367 : vector<8x256xf32>
    %c5_185 = arith.constant 5 : index
    %c6_186 = arith.constant 6 : index
    %369 = memref.load %arg6[%c5_185, %c6_186] : memref<8x8xf32, #tpu.memory_space<smem>>
    %370 = vector.broadcast %369 : f32 to vector<8x256xf32>
    %371 = arith.mulf %101, %370 : vector<8x256xf32>
    %372 = arith.addf %368, %371 : vector<8x256xf32>
    %c6_187 = arith.constant 6 : index
    %c6_188 = arith.constant 6 : index
    %373 = memref.load %arg6[%c6_187, %c6_188] : memref<8x8xf32, #tpu.memory_space<smem>>
    %374 = vector.broadcast %373 : f32 to vector<8x256xf32>
    %375 = arith.mulf %117, %374 : vector<8x256xf32>
    %376 = arith.addf %372, %375 : vector<8x256xf32>
    %c7_189 = arith.constant 7 : index
    %c6_190 = arith.constant 6 : index
    %377 = memref.load %arg6[%c7_189, %c6_190] : memref<8x8xf32, #tpu.memory_space<smem>>
    %378 = vector.broadcast %377 : f32 to vector<8x256xf32>
    %379 = arith.mulf %133, %378 : vector<8x256xf32>
    %380 = arith.addf %376, %379 : vector<8x256xf32>
    %c6_191 = arith.constant 6 : index
    %381 = memref.load %arg7[%c6_191] : memref<8xf32, #tpu.memory_space<smem>>
    %382 = vector.broadcast %381 : f32 to vector<8x256xf32>
    %383 = arith.addf %380, %382 : vector<8x256xf32>
    %cst_192 = arith.constant 0.000000e+00 : f32
    %384 = vector.broadcast %cst_192 : f32 to vector<8x256xf32>
    %385 = arith.maximumf %383, %384 : vector<8x256xf32>
    %c0_193 = arith.constant 0 : index
    %c7_194 = arith.constant 7 : index
    %386 = memref.load %arg6[%c0_193, %c7_194] : memref<8x8xf32, #tpu.memory_space<smem>>
    %387 = vector.broadcast %386 : f32 to vector<8x256xf32>
    %388 = arith.mulf %21, %387 : vector<8x256xf32>
    %c1_195 = arith.constant 1 : index
    %c7_196 = arith.constant 7 : index
    %389 = memref.load %arg6[%c1_195, %c7_196] : memref<8x8xf32, #tpu.memory_space<smem>>
    %390 = vector.broadcast %389 : f32 to vector<8x256xf32>
    %391 = arith.mulf %37, %390 : vector<8x256xf32>
    %392 = arith.addf %388, %391 : vector<8x256xf32>
    %c2_197 = arith.constant 2 : index
    %c7_198 = arith.constant 7 : index
    %393 = memref.load %arg6[%c2_197, %c7_198] : memref<8x8xf32, #tpu.memory_space<smem>>
    %394 = vector.broadcast %393 : f32 to vector<8x256xf32>
    %395 = arith.mulf %53, %394 : vector<8x256xf32>
    %396 = arith.addf %392, %395 : vector<8x256xf32>
    %c3_199 = arith.constant 3 : index
    %c7_200 = arith.constant 7 : index
    %397 = memref.load %arg6[%c3_199, %c7_200] : memref<8x8xf32, #tpu.memory_space<smem>>
    %398 = vector.broadcast %397 : f32 to vector<8x256xf32>
    %399 = arith.mulf %69, %398 : vector<8x256xf32>
    %400 = arith.addf %396, %399 : vector<8x256xf32>
    %c4_201 = arith.constant 4 : index
    %c7_202 = arith.constant 7 : index
    %401 = memref.load %arg6[%c4_201, %c7_202] : memref<8x8xf32, #tpu.memory_space<smem>>
    %402 = vector.broadcast %401 : f32 to vector<8x256xf32>
    %403 = arith.mulf %85, %402 : vector<8x256xf32>
    %404 = arith.addf %400, %403 : vector<8x256xf32>
    %c5_203 = arith.constant 5 : index
    %c7_204 = arith.constant 7 : index
    %405 = memref.load %arg6[%c5_203, %c7_204] : memref<8x8xf32, #tpu.memory_space<smem>>
    %406 = vector.broadcast %405 : f32 to vector<8x256xf32>
    %407 = arith.mulf %101, %406 : vector<8x256xf32>
    %408 = arith.addf %404, %407 : vector<8x256xf32>
    %c6_205 = arith.constant 6 : index
    %c7_206 = arith.constant 7 : index
    %409 = memref.load %arg6[%c6_205, %c7_206] : memref<8x8xf32, #tpu.memory_space<smem>>
    %410 = vector.broadcast %409 : f32 to vector<8x256xf32>
    %411 = arith.mulf %117, %410 : vector<8x256xf32>
    %412 = arith.addf %408, %411 : vector<8x256xf32>
    %c7_207 = arith.constant 7 : index
    %c7_208 = arith.constant 7 : index
    %413 = memref.load %arg6[%c7_207, %c7_208] : memref<8x8xf32, #tpu.memory_space<smem>>
    %414 = vector.broadcast %413 : f32 to vector<8x256xf32>
    %415 = arith.mulf %133, %414 : vector<8x256xf32>
    %416 = arith.addf %412, %415 : vector<8x256xf32>
    %c7_209 = arith.constant 7 : index
    %417 = memref.load %arg7[%c7_209] : memref<8xf32, #tpu.memory_space<smem>>
    %418 = vector.broadcast %417 : f32 to vector<8x256xf32>
    %419 = arith.addf %416, %418 : vector<8x256xf32>
    %cst_210 = arith.constant 0.000000e+00 : f32
    %420 = vector.broadcast %cst_210 : f32 to vector<8x256xf32>
    %421 = arith.maximumf %419, %420 : vector<8x256xf32>
    %c0_211 = arith.constant 0 : index
    %c0_212 = arith.constant 0 : index
    %422 = memref.load %arg8[%c0_211, %c0_212] : memref<8x16xf32, #tpu.memory_space<smem>>
    %423 = vector.broadcast %422 : f32 to vector<8x256xf32>
    %424 = arith.mulf %169, %423 : vector<8x256xf32>
    %c1_213 = arith.constant 1 : index
    %c0_214 = arith.constant 0 : index
    %425 = memref.load %arg8[%c1_213, %c0_214] : memref<8x16xf32, #tpu.memory_space<smem>>
    %426 = vector.broadcast %425 : f32 to vector<8x256xf32>
    %427 = arith.mulf %205, %426 : vector<8x256xf32>
    %428 = arith.addf %424, %427 : vector<8x256xf32>
    %c2_215 = arith.constant 2 : index
    %c0_216 = arith.constant 0 : index
    %429 = memref.load %arg8[%c2_215, %c0_216] : memref<8x16xf32, #tpu.memory_space<smem>>
    %430 = vector.broadcast %429 : f32 to vector<8x256xf32>
    %431 = arith.mulf %241, %430 : vector<8x256xf32>
    %432 = arith.addf %428, %431 : vector<8x256xf32>
    %c3_217 = arith.constant 3 : index
    %c0_218 = arith.constant 0 : index
    %433 = memref.load %arg8[%c3_217, %c0_218] : memref<8x16xf32, #tpu.memory_space<smem>>
    %434 = vector.broadcast %433 : f32 to vector<8x256xf32>
    %435 = arith.mulf %277, %434 : vector<8x256xf32>
    %436 = arith.addf %432, %435 : vector<8x256xf32>
    %c4_219 = arith.constant 4 : index
    %c0_220 = arith.constant 0 : index
    %437 = memref.load %arg8[%c4_219, %c0_220] : memref<8x16xf32, #tpu.memory_space<smem>>
    %438 = vector.broadcast %437 : f32 to vector<8x256xf32>
    %439 = arith.mulf %313, %438 : vector<8x256xf32>
    %440 = arith.addf %436, %439 : vector<8x256xf32>
    %c5_221 = arith.constant 5 : index
    %c0_222 = arith.constant 0 : index
    %441 = memref.load %arg8[%c5_221, %c0_222] : memref<8x16xf32, #tpu.memory_space<smem>>
    %442 = vector.broadcast %441 : f32 to vector<8x256xf32>
    %443 = arith.mulf %349, %442 : vector<8x256xf32>
    %444 = arith.addf %440, %443 : vector<8x256xf32>
    %c6_223 = arith.constant 6 : index
    %c0_224 = arith.constant 0 : index
    %445 = memref.load %arg8[%c6_223, %c0_224] : memref<8x16xf32, #tpu.memory_space<smem>>
    %446 = vector.broadcast %445 : f32 to vector<8x256xf32>
    %447 = arith.mulf %385, %446 : vector<8x256xf32>
    %448 = arith.addf %444, %447 : vector<8x256xf32>
    %c7_225 = arith.constant 7 : index
    %c0_226 = arith.constant 0 : index
    %449 = memref.load %arg8[%c7_225, %c0_226] : memref<8x16xf32, #tpu.memory_space<smem>>
    %450 = vector.broadcast %449 : f32 to vector<8x256xf32>
    %451 = arith.mulf %421, %450 : vector<8x256xf32>
    %452 = arith.addf %448, %451 : vector<8x256xf32>
    %c0_227 = arith.constant 0 : index
    %453 = memref.load %arg9[%c0_227] : memref<16xf32, #tpu.memory_space<smem>>
    %454 = vector.broadcast %453 : f32 to vector<8x256xf32>
    %455 = arith.addf %452, %454 : vector<8x256xf32>
    %cst_228 = arith.constant 0.000000e+00 : f32
    %456 = vector.broadcast %cst_228 : f32 to vector<8x256xf32>
    %457 = arith.maximumf %455, %456 : vector<8x256xf32>
    %458 = arith.mulf %1, %457 : vector<8x256xf32>
    %cst_229 = arith.constant dense<0.000000e+00> : vector<256xf32>
    %459 = vector.multi_reduction <add>, %458, %cst_229 [0] : vector<8x256xf32> to vector<256xf32>
    %460 = vector.shape_cast %459 : vector<256xf32> to vector<1x256xf32>
    %461 = arith.truncf %460 : vector<1x256xf32> to vector<1x256xbf16>
    %c0_230 = arith.constant 0 : index
    %c0_231 = arith.constant 0 : index
    %462 = vector.load %arg13[%c0_230, %c0_231] : memref<256x256xbf16, #tpu.memory_space<vmem>>, vector<1x256xbf16>
    tpu.vector_store %arg13[%c0_230, %c0_231], %461 {strides = array<i32>} : memref<256x256xbf16, #tpu.memory_space<vmem>>, vector<1x256xbf16>,
    %463 = arith.mulf %3, %457 : vector<8x256xf32>
    %cst_232 = arith.constant dense<0.000000e+00> : vector<256xf32>
    %464 = vector.multi_reduction <add>, %463, %cst_232 [0] : vector<8x256xf32> to vector<256xf32>
    %465 = vector.shape_cast %464 : vector<256xf32> to vector<1x256xf32>
    %466 = arith.truncf %465 : vector<1x256xf32> to vector<1x256xbf16>
    %c1_233 = arith.constant 1 : index
    %c0_234 = arith.constant 0 : index
    %467 = vector.load %arg13[%c1_233, %c0_234] : memref<256x256xbf16, #tpu.memory_space<vmem>>, vector<1x256xbf16>
    tpu.vector_store %arg13[%c1_233, %c0_234], %466 {strides = array<i32>} : memref<256x256xbf16, #tpu.memory_space<vmem>>, vector<1x256xbf16>,
    %468 = arith.mulf %5, %457 : vector<8x256xf32>
    %cst_235 = arith.constant dense<0.000000e+00> : vector<256xf32>
    %469 = vector.multi_reduction <add>, %468, %cst_235 [0] : vector<8x256xf32> to vector<256xf32>
    %470 = vector.shape_cast %469 : vector<256xf32> to vector<1x256xf32>
    %471 = arith.truncf %470 : vector<1x256xf32> to vector<1x256xbf16>
    %c2_236 = arith.constant 2 : index
    %c0_237 = arith.constant 0 : index
    %472 = vector.load %arg13[%c2_236, %c0_237] : memref<256x256xbf16, #tpu.memory_space<vmem>>, vector<1x256xbf16>
    tpu.vector_store %arg13[%c2_236, %c0_237], %471 {strides = array<i32>} : memref<256x256xbf16, #tpu.memory_space<vmem>>, vector<1x256xbf16>,
    %473 = vector.extract_strided_slice %457 {offsets = [0, 0], sizes = [1, 256], strides = [1, 1]} : vector<8x256xf32> to vector<1x256xf32>
    %c0_238 = arith.constant 0 : index
    %c0_239 = arith.constant 0 : index
    %c0_240 = arith.constant 0 : index
    %c0_241 = arith.constant 0 : index
    %474 = vector.load %arg3[%c0_238, %c0_239, %c0_240, %c0_241] : memref<1x8x13x256xf32, #tpu.memory_space<vmem>>, vector<1x1x13x256xf32>
    %475 = vector.shape_cast %474 : vector<1x1x13x256xf32> to vector<13x256xf32>
    %476 = vector.broadcast %473 : vector<1x256xf32> to vector<13x256xf32>
    %477 = arith.mulf %476, %475 : vector<13x256xf32>
    %478 = vector.extract_strided_slice %457 {offsets = [1, 0], sizes = [1, 256], strides = [1, 1]} : vector<8x256xf32> to vector<1x256xf32>
    %c0_242 = arith.constant 0 : index
    %c1_243 = arith.constant 1 : index
    %c0_244 = arith.constant 0 : index
    %c0_245 = arith.constant 0 : index
    %479 = vector.load %arg3[%c0_242, %c1_243, %c0_244, %c0_245] : memref<1x8x13x256xf32, #tpu.memory_space<vmem>>, vector<1x1x13x256xf32>
    %480 = vector.shape_cast %479 : vector<1x1x13x256xf32> to vector<13x256xf32>
    %481 = vector.broadcast %478 : vector<1x256xf32> to vector<13x256xf32>
    %482 = arith.mulf %481, %480 : vector<13x256xf32>
    %483 = arith.addf %477, %482 : vector<13x256xf32>
    %484 = vector.extract_strided_slice %457 {offsets = [2, 0], sizes = [1, 256], strides = [1, 1]} : vector<8x256xf32> to vector<1x256xf32>
    %c0_246 = arith.constant 0 : index
    %c2_247 = arith.constant 2 : index
    %c0_248 = arith.constant 0 : index
    %c0_249 = arith.constant 0 : index
    %485 = vector.load %arg3[%c0_246, %c2_247, %c0_248, %c0_249] : memref<1x8x13x256xf32, #tpu.memory_space<vmem>>, vector<1x1x13x256xf32>
    %486 = vector.shape_cast %485 : vector<1x1x13x256xf32> to vector<13x256xf32>
    %487 = vector.broadcast %484 : vector<1x256xf32> to vector<13x256xf32>
    %488 = arith.mulf %487, %486 : vector<13x256xf32>
    %489 = arith.addf %483, %488 : vector<13x256xf32>
    %490 = vector.extract_strided_slice %457 {offsets = [3, 0], sizes = [1, 256], strides = [1, 1]} : vector<8x256xf32> to vector<1x256xf32>
    %c0_250 = arith.constant 0 : index
    %c3_251 = arith.constant 3 : index
    %c0_252 = arith.constant 0 : index
    %c0_253 = arith.constant 0 : index
    %491 = vector.load %arg3[%c0_250, %c3_251, %c0_252, %c0_253] : memref<1x8x13x256xf32, #tpu.memory_space<vmem>>, vector<1x1x13x256xf32>
    %492 = vector.shape_cast %491 : vector<1x1x13x256xf32> to vector<13x256xf32>
    %493 = vector.broadcast %490 : vector<1x256xf32> to vector<13x256xf32>
    %494 = arith.mulf %493, %492 : vector<13x256xf32>
    %495 = arith.addf %489, %494 : vector<13x256xf32>
    %496 = vector.extract_strided_slice %457 {offsets = [4, 0], sizes = [1, 256], strides = [1, 1]} : vector<8x256xf32> to vector<1x256xf32>
    %c0_254 = arith.constant 0 : index
    %c4_255 = arith.constant 4 : index
    %c0_256 = arith.constant 0 : index
    %c0_257 = arith.constant 0 : index
    %497 = vector.load %arg3[%c0_254, %c4_255, %c0_256, %c0_257] : memref<1x8x13x256xf32, #tpu.memory_space<vmem>>, vector<1x1x13x256xf32>
    %498 = vector.shape_cast %497 : vector<1x1x13x256xf32> to vector<13x256xf32>
    %499 = vector.broadcast %496 : vector<1x256xf32> to vector<13x256xf32>
    %500 = arith.mulf %499, %498 : vector<13x256xf32>
    %501 = arith.addf %495, %500 : vector<13x256xf32>
    %502 = vector.extract_strided_slice %457 {offsets = [5, 0], sizes = [1, 256], strides = [1, 1]} : vector<8x256xf32> to vector<1x256xf32>
    %c0_258 = arith.constant 0 : index
    %c5_259 = arith.constant 5 : index
    %c0_260 = arith.constant 0 : index
    %c0_261 = arith.constant 0 : index
    %503 = vector.load %arg3[%c0_258, %c5_259, %c0_260, %c0_261] : memref<1x8x13x256xf32, #tpu.memory_space<vmem>>, vector<1x1x13x256xf32>
    %504 = vector.shape_cast %503 : vector<1x1x13x256xf32> to vector<13x256xf32>
    %505 = vector.broadcast %502 : vector<1x256xf32> to vector<13x256xf32>
    %506 = arith.mulf %505, %504 : vector<13x256xf32>
    %507 = arith.addf %501, %506 : vector<13x256xf32>
    %508 = vector.extract_strided_slice %457 {offsets = [6, 0], sizes = [1, 256], strides = [1, 1]} : vector<8x256xf32> to vector<1x256xf32>
    %c0_262 = arith.constant 0 : index
    %c6_263 = arith.constant 6 : index
    %c0_264 = arith.constant 0 : index
    %c0_265 = arith.constant 0 : index
    %509 = vector.load %arg3[%c0_262, %c6_263, %c0_264, %c0_265] : memref<1x8x13x256xf32, #tpu.memory_space<vmem>>, vector<1x1x13x256xf32>
    %510 = vector.shape_cast %509 : vector<1x1x13x256xf32> to vector<13x256xf32>
    %511 = vector.broadcast %508 : vector<1x256xf32> to vector<13x256xf32>
    %512 = arith.mulf %511, %510 : vector<13x256xf32>
    %513 = arith.addf %507, %512 : vector<13x256xf32>
    %514 = vector.extract_strided_slice %457 {offsets = [7, 0], sizes = [1, 256], strides = [1, 1]} : vector<8x256xf32> to vector<1x256xf32>
    %c0_266 = arith.constant 0 : index
    %c7_267 = arith.constant 7 : index
    %c0_268 = arith.constant 0 : index
    %c0_269 = arith.constant 0 : index
    %515 = vector.load %arg3[%c0_266, %c7_267, %c0_268, %c0_269] : memref<1x8x13x256xf32, #tpu.memory_space<vmem>>, vector<1x1x13x256xf32>
    %516 = vector.shape_cast %515 : vector<1x1x13x256xf32> to vector<13x256xf32>
    %517 = vector.broadcast %514 : vector<1x256xf32> to vector<13x256xf32>
    %518 = arith.mulf %517, %516 : vector<13x256xf32>
    %519 = arith.addf %513, %518 : vector<13x256xf32>
    %520 = arith.truncf %519 : vector<13x256xf32> to vector<13x256xbf16>
    %c3_270 = arith.constant 3 : index
    %c0_271 = arith.constant 0 : index
    %521 = vector.load %arg13[%c3_270, %c0_271] : memref<256x256xbf16, #tpu.memory_space<vmem>>, vector<13x256xbf16>
    tpu.vector_store %arg13[%c3_270, %c0_271], %520 {strides = array<i32>} : memref<256x256xbf16, #tpu.memory_space<vmem>>, vector<13x256xbf16>,
    %c0_272 = arith.constant 0 : index
    %c1_273 = arith.constant 1 : index
    %522 = memref.load %arg8[%c0_272, %c1_273] : memref<8x16xf32, #tpu.memory_space<smem>>
    %523 = vector.broadcast %522 : f32 to vector<8x256xf32>
    %524 = arith.mulf %169, %523 : vector<8x256xf32>
    %c1_274 = arith.constant 1 : index
    %c1_275 = arith.constant 1 : index
    %525 = memref.load %arg8[%c1_274, %c1_275] : memref<8x16xf32, #tpu.memory_space<smem>>
    %526 = vector.broadcast %525 : f32 to vector<8x256xf32>
    %527 = arith.mulf %205, %526 : vector<8x256xf32>
    %528 = arith.addf %524, %527 : vector<8x256xf32>
    %c2_276 = arith.constant 2 : index
    %c1_277 = arith.constant 1 : index
    %529 = memref.load %arg8[%c2_276, %c1_277] : memref<8x16xf32, #tpu.memory_space<smem>>
    %530 = vector.broadcast %529 : f32 to vector<8x256xf32>
    %531 = arith.mulf %241, %530 : vector<8x256xf32>
    %532 = arith.addf %528, %531 : vector<8x256xf32>
    %c3_278 = arith.constant 3 : index
    %c1_279 = arith.constant 1 : index
    %533 = memref.load %arg8[%c3_278, %c1_279] : memref<8x16xf32, #tpu.memory_space<smem>>
    %534 = vector.broadcast %533 : f32 to vector<8x256xf32>
    %535 = arith.mulf %277, %534 : vector<8x256xf32>
    %536 = arith.addf %532, %535 : vector<8x256xf32>
    %c4_280 = arith.constant 4 : index
    %c1_281 = arith.constant 1 : index
    %537 = memref.load %arg8[%c4_280, %c1_281] : memref<8x16xf32, #tpu.memory_space<smem>>
    %538 = vector.broadcast %537 : f32 to vector<8x256xf32>
    %539 = arith.mulf %313, %538 : vector<8x256xf32>
    %540 = arith.addf %536, %539 : vector<8x256xf32>
    %c5_282 = arith.constant 5 : index
    %c1_283 = arith.constant 1 : index
    %541 = memref.load %arg8[%c5_282, %c1_283] : memref<8x16xf32, #tpu.memory_space<smem>>
    %542 = vector.broadcast %541 : f32 to vector<8x256xf32>
    %543 = arith.mulf %349, %542 : vector<8x256xf32>
    %544 = arith.addf %540, %543 : vector<8x256xf32>
    %c6_284 = arith.constant 6 : index
    %c1_285 = arith.constant 1 : index
    %545 = memref.load %arg8[%c6_284, %c1_285] : memref<8x16xf32, #tpu.memory_space<smem>>
    %546 = vector.broadcast %545 : f32 to vector<8x256xf32>
    %547 = arith.mulf %385, %546 : vector<8x256xf32>
    %548 = arith.addf %544, %547 : vector<8x256xf32>
    %c7_286 = arith.constant 7 : index
    %c1_287 = arith.constant 1 : index
    %549 = memref.load %arg8[%c7_286, %c1_287] : memref<8x16xf32, #tpu.memory_space<smem>>
    %550 = vector.broadcast %549 : f32 to vector<8x256xf32>
    %551 = arith.mulf %421, %550 : vector<8x256xf32>
    %552 = arith.addf %548, %551 : vector<8x256xf32>
    %c1_288 = arith.constant 1 : index
    %553 = memref.load %arg9[%c1_288] : memref<16xf32, #tpu.memory_space<smem>>
    %554 = vector.broadcast %553 : f32 to vector<8x256xf32>
    %555 = arith.addf %552, %554 : vector<8x256xf32>
    %cst_289 = arith.constant 0.000000e+00 : f32
    %556 = vector.broadcast %cst_289 : f32 to vector<8x256xf32>
    %557 = arith.maximumf %555, %556 : vector<8x256xf32>
    %558 = arith.mulf %1, %557 : vector<8x256xf32>
    %cst_290 = arith.constant dense<0.000000e+00> : vector<256xf32>
    %559 = vector.multi_reduction <add>, %558, %cst_290 [0] : vector<8x256xf32> to vector<256xf32>
    %560 = vector.shape_cast %559 : vector<256xf32> to vector<1x256xf32>
    %561 = arith.truncf %560 : vector<1x256xf32> to vector<1x256xbf16>
    %c16 = arith.constant 16 : index
    %c0_291 = arith.constant 0 : index
    %562 = vector.load %arg13[%c16, %c0_291] : memref<256x256xbf16, #tpu.memory_space<vmem>>, vector<1x256xbf16>
    tpu.vector_store %arg13[%c16, %c0_291], %561 {strides = array<i32>} : memref<256x256xbf16, #tpu.memory_space<vmem>>, vector<1x256xbf16>,
    %563 = arith.mulf %3, %557 : vector<8x256xf32>
    %cst_292 = arith.constant dense<0.000000e+00> : vector<256xf32>
    %564 = vector.multi_reduction <add>, %563, %cst_292 [0] : vector<8x256xf32> to vector<256xf32>
    %565 = vector.shape_cast %564 : vector<256xf32> to vector<1x256xf32>
    %566 = arith.truncf %565 : vector<1x256xf32> to vector<1x256xbf16>
    %c17 = arith.constant 17 : index
    %c0_293 = arith.constant 0 : index
    %567 = vector.load %arg13[%c17, %c0_293] : memref<256x256xbf16, #tpu.memory_space<vmem>>, vector<1x256xbf16>
    tpu.vector_store %arg13[%c17, %c0_293], %566 {strides = array<i32>} : memref<256x256xbf16, #tpu.memory_space<vmem>>, vector<1x256xbf16>,
    %568 = arith.mulf %5, %557 : vector<8x256xf32>
    %cst_294 = arith.constant dense<0.000000e+00> : vector<256xf32>
    %569 = vector.multi_reduction <add>, %568, %cst_294 [0] : vector<8x256xf32> to vector<256xf32>
    %570 = vector.shape_cast %569 : vector<256xf32> to vector<1x256xf32>
    %571 = arith.truncf %570 : vector<1x256xf32> to vector<1x256xbf16>
    %c18 = arith.constant 18 : index
    %c0_295 = arith.constant 0 : index
    %572 = vector.load %arg13[%c18, %c0_295] : memref<256x256xbf16, #tpu.memory_space<vmem>>, vector<1x256xbf16>
    tpu.vector_store %arg13[%c18, %c0_295], %571 {strides = array<i32>} : memref<256x256xbf16, #tpu.memory_space<vmem>>, vector<1x256xbf16>,
    %573 = vector.extract_strided_slice %557 {offsets = [0, 0], sizes = [1, 256], strides = [1, 1]} : vector<8x256xf32> to vector<1x256xf32>
    %c0_296 = arith.constant 0 : index
    %c0_297 = arith.constant 0 : index
    %c0_298 = arith.constant 0 : index
    %c0_299 = arith.constant 0 : index
    %574 = vector.load %arg3[%c0_296, %c0_297, %c0_298, %c0_299] : memref<1x8x13x256xf32, #tpu.memory_space<vmem>>, vector<1x1x13x256xf32>
    %575 = vector.shape_cast %574 : vector<1x1x13x256xf32> to vector<13x256xf32>
    %576 = vector.broadcast %573 : vector<1x256xf32> to vector<13x256xf32>
    %577 = arith.mulf %576, %575 : vector<13x256xf32>
    %578 = vector.extract_strided_slice %557 {offsets = [1, 0], sizes = [1, 256], strides = [1, 1]} : vector<8x256xf32> to vector<1x256xf32>
    %c0_300 = arith.constant 0 : index
    %c1_301 = arith.constant 1 : index
    %c0_302 = arith.constant 0 : index
    %c0_303 = arith.constant 0 : index
    %579 = vector.load %arg3[%c0_300, %c1_301, %c0_302, %c0_303] : memref<1x8x13x256xf32, #tpu.memory_space<vmem>>, vector<1x1x13x256xf32>
    %580 = vector.shape_cast %579 : vector<1x1x13x256xf32> to vector<13x256xf32>
    %581 = vector.broadcast %578 : vector<1x256xf32> to vector<13x256xf32>
    %582 = arith.mulf %581, %580 : vector<13x256xf32>
    %583 = arith.addf %577, %582 : vector<13x256xf32>
    %584 = vector.extract_strided_slice %557 {offsets = [2, 0], sizes = [1, 256], strides = [1, 1]} : vector<8x256xf32> to vector<1x256xf32>
    %c0_304 = arith.constant 0 : index
    %c2_305 = arith.constant 2 : index
    %c0_306 = arith.constant 0 : index
    %c0_307 = arith.constant 0 : index
    %585 = vector.load %arg3[%c0_304, %c2_305, %c0_306, %c0_307] : memref<1x8x13x256xf32, #tpu.memory_space<vmem>>, vector<1x1x13x256xf32>
    %586 = vector.shape_cast %585 : vector<1x1x13x256xf32> to vector<13x256xf32>
    %587 = vector.broadcast %584 : vector<1x256xf32> to vector<13x256xf32>
    %588 = arith.mulf %587, %586 : vector<13x256xf32>
    %589 = arith.addf %583, %588 : vector<13x256xf32>
    %590 = vector.extract_strided_slice %557 {offsets = [3, 0], sizes = [1, 256], strides = [1, 1]} : vector<8x256xf32> to vector<1x256xf32>
    %c0_308 = arith.constant 0 : index
    %c3_309 = arith.constant 3 : index
    %c0_310 = arith.constant 0 : index
    %c0_311 = arith.constant 0 : index
    %591 = vector.load %arg3[%c0_308, %c3_309, %c0_310, %c0_311] : memref<1x8x13x256xf32, #tpu.memory_space<vmem>>, vector<1x1x13x256xf32>
    %592 = vector.shape_cast %591 : vector<1x1x13x256xf32> to vector<13x256xf32>
    %593 = vector.broadcast %590 : vector<1x256xf32> to vector<13x256xf32>
    %594 = arith.mulf %593, %592 : vector<13x256xf32>
    %595 = arith.addf %589, %594 : vector<13x256xf32>
    %596 = vector.extract_strided_slice %557 {offsets = [4, 0], sizes = [1, 256], strides = [1, 1]} : vector<8x256xf32> to vector<1x256xf32>
    %c0_312 = arith.constant 0 : index
    %c4_313 = arith.constant 4 : index
    %c0_314 = arith.constant 0 : index
    %c0_315 = arith.constant 0 : index
    %597 = vector.load %arg3[%c0_312, %c4_313, %c0_314, %c0_315] : memref<1x8x13x256xf32, #tpu.memory_space<vmem>>, vector<1x1x13x256xf32>
    %598 = vector.shape_cast %597 : vector<1x1x13x256xf32> to vector<13x256xf32>
    %599 = vector.broadcast %596 : vector<1x256xf32> to vector<13x256xf32>
    %600 = arith.mulf %599, %598 : vector<13x256xf32>
    %601 = arith.addf %595, %600 : vector<13x256xf32>
    %602 = vector.extract_strided_slice %557 {offsets = [5, 0], sizes = [1, 256], strides = [1, 1]} : vector<8x256xf32> to vector<1x256xf32>
    %c0_316 = arith.constant 0 : index
    %c5_317 = arith.constant 5 : index
    %c0_318 = arith.constant 0 : index
    %c0_319 = arith.constant 0 : index
    %603 = vector.load %arg3[%c0_316, %c5_317, %c0_318, %c0_319] : memref<1x8x13x256xf32, #tpu.memory_space<vmem>>, vector<1x1x13x256xf32>
    %604 = vector.shape_cast %603 : vector<1x1x13x256xf32> to vector<13x256xf32>
    %605 = vector.broadcast %602 : vector<1x256xf32> to vector<13x256xf32>
    %606 = arith.mulf %605, %604 : vector<13x256xf32>
    %607 = arith.addf %601, %606 : vector<13x256xf32>
    %608 = vector.extract_strided_slice %557 {offsets = [6, 0], sizes = [1, 256], strides = [1, 1]} : vector<8x256xf32> to vector<1x256xf32>
    %c0_320 = arith.constant 0 : index
    %c6_321 = arith.constant 6 : index
    %c0_322 = arith.constant 0 : index
    %c0_323 = arith.constant 0 : index
    %609 = vector.load %arg3[%c0_320, %c6_321, %c0_322, %c0_323] : memref<1x8x13x256xf32, #tpu.memory_space<vmem>>, vector<1x1x13x256xf32>
    %610 = vector.shape_cast %609 : vector<1x1x13x256xf32> to vector<13x256xf32>
    %611 = vector.broadcast %608 : vector<1x256xf32> to vector<13x256xf32>
    %612 = arith.mulf %611, %610 : vector<13x256xf32>
    %613 = arith.addf %607, %612 : vector<13x256xf32>
    %614 = vector.extract_strided_slice %557 {offsets = [7, 0], sizes = [1, 256], strides = [1, 1]} : vector<8x256xf32> to vector<1x256xf32>
    %c0_324 = arith.constant 0 : index
    %c7_325 = arith.constant 7 : index
    %c0_326 = arith.constant 0 : index
    %c0_327 = arith.constant 0 : index
    %615 = vector.load %arg3[%c0_324, %c7_325, %c0_326, %c0_327] : memref<1x8x13x256xf32, #tpu.memory_space<vmem>>, vector<1x1x13x256xf32>
    %616 = vector.shape_cast %615 : vector<1x1x13x256xf32> to vector<13x256xf32>
    %617 = vector.broadcast %614 : vector<1x256xf32> to vector<13x256xf32>
    %618 = arith.mulf %617, %616 : vector<13x256xf32>
    %619 = arith.addf %613, %618 : vector<13x256xf32>
    %620 = arith.truncf %619 : vector<13x256xf32> to vector<13x256xbf16>
    %c19 = arith.constant 19 : index
    %c0_328 = arith.constant 0 : index
    %621 = vector.load %arg13[%c19, %c0_328] : memref<256x256xbf16, #tpu.memory_space<vmem>>, vector<13x256xbf16>
    tpu.vector_store %arg13[%c19, %c0_328], %620 {strides = array<i32>} : memref<256x256xbf16, #tpu.memory_space<vmem>>, vector<13x256xbf16>,
    %c0_329 = arith.constant 0 : index
    %c2_330 = arith.constant 2 : index
    %622 = memref.load %arg8[%c0_329, %c2_330] : memref<8x16xf32, #tpu.memory_space<smem>>
    %623 = vector.broadcast %622 : f32 to vector<8x256xf32>
    %624 = arith.mulf %169, %623 : vector<8x256xf32>
    %c1_331 = arith.constant 1 : index
    %c2_332 = arith.constant 2 : index
    %625 = memref.load %arg8[%c1_331, %c2_332] : memref<8x16xf32, #tpu.memory_space<smem>>
    %626 = vector.broadcast %625 : f32 to vector<8x256xf32>
    %627 = arith.mulf %205, %626 : vector<8x256xf32>
    %628 = arith.addf %624, %627 : vector<8x256xf32>
    %c2_333 = arith.constant 2 : index
    %c2_334 = arith.constant 2 : index
    %629 = memref.load %arg8[%c2_333, %c2_334] : memref<8x16xf32, #tpu.memory_space<smem>>
    %630 = vector.broadcast %629 : f32 to vector<8x256xf32>
    %631 = arith.mulf %241, %630 : vector<8x256xf32>
    %632 = arith.addf %628, %631 : vector<8x256xf32>
    %c3_335 = arith.constant 3 : index
    %c2_336 = arith.constant 2 : index
    %633 = memref.load %arg8[%c3_335, %c2_336] : memref<8x16xf32, #tpu.memory_space<smem>>
    %634 = vector.broadcast %633 : f32 to vector<8x256xf32>
    %635 = arith.mulf %277, %634 : vector<8x256xf32>
    %636 = arith.addf %632, %635 : vector<8x256xf32>
    %c4_337 = arith.constant 4 : index
    %c2_338 = arith.constant 2 : index
    %637 = memref.load %arg8[%c4_337, %c2_338] : memref<8x16xf32, #tpu.memory_space<smem>>
    %638 = vector.broadcast %637 : f32 to vector<8x256xf32>
    %639 = arith.mulf %313, %638 : vector<8x256xf32>
    %640 = arith.addf %636, %639 : vector<8x256xf32>
    %c5_339 = arith.constant 5 : index
    %c2_340 = arith.constant 2 : index
    %641 = memref.load %arg8[%c5_339, %c2_340] : memref<8x16xf32, #tpu.memory_space<smem>>
    %642 = vector.broadcast %641 : f32 to vector<8x256xf32>
    %643 = arith.mulf %349, %642 : vector<8x256xf32>
    %644 = arith.addf %640, %643 : vector<8x256xf32>
    %c6_341 = arith.constant 6 : index
    %c2_342 = arith.constant 2 : index
    %645 = memref.load %arg8[%c6_341, %c2_342] : memref<8x16xf32, #tpu.memory_space<smem>>
    %646 = vector.broadcast %645 : f32 to vector<8x256xf32>
    %647 = arith.mulf %385, %646 : vector<8x256xf32>
    %648 = arith.addf %644, %647 : vector<8x256xf32>
    %c7_343 = arith.constant 7 : index
    %c2_344 = arith.constant 2 : index
    %649 = memref.load %arg8[%c7_343, %c2_344] : memref<8x16xf32, #tpu.memory_space<smem>>
    %650 = vector.broadcast %649 : f32 to vector<8x256xf32>
    %651 = arith.mulf %421, %650 : vector<8x256xf32>
    %652 = arith.addf %648, %651 : vector<8x256xf32>
    %c2_345 = arith.constant 2 : index
    %653 = memref.load %arg9[%c2_345] : memref<16xf32, #tpu.memory_space<smem>>
    %654 = vector.broadcast %653 : f32 to vector<8x256xf32>
    %655 = arith.addf %652, %654 : vector<8x256xf32>
    %cst_346 = arith.constant 0.000000e+00 : f32
    %656 = vector.broadcast %cst_346 : f32 to vector<8x256xf32>
    %657 = arith.maximumf %655, %656 : vector<8x256xf32>
    %658 = arith.mulf %1, %657 : vector<8x256xf32>
    %cst_347 = arith.constant dense<0.000000e+00> : vector<256xf32>
    %659 = vector.multi_reduction <add>, %658, %cst_347 [0] : vector<8x256xf32> to vector<256xf32>
    %660 = vector.shape_cast %659 : vector<256xf32> to vector<1x256xf32>
    %661 = arith.truncf %660 : vector<1x256xf32> to vector<1x256xbf16>
    %c32 = arith.constant 32 : index
    %c0_348 = arith.constant 0 : index
    %662 = vector.load %arg13[%c32, %c0_348] : memref<256x256xbf16, #tpu.memory_space<vmem>>, vector<1x256xbf16>
    tpu.vector_store %arg13[%c32, %c0_348], %661 {strides = array<i32>} : memref<256x256xbf16, #tpu.memory_space<vmem>>, vector<1x256xbf16>,
    %663 = arith.mulf %3, %657 : vector<8x256xf32>
    %cst_349 = arith.constant dense<0.000000e+00> : vector<256xf32>
    %664 = vector.multi_reduction <add>, %663, %cst_349 [0] : vector<8x256xf32> to vector<256xf32>
    %665 = vector.shape_cast %664 : vector<256xf32> to vector<1x256xf32>
    %666 = arith.truncf %665 : vector<1x256xf32> to vector<1x256xbf16>
    %c33 = arith.constant 33 : index
    %c0_350 = arith.constant 0 : index
    %667 = vector.load %arg13[%c33, %c0_350] : memref<256x256xbf16, #tpu.memory_space<vmem>>, vector<1x256xbf16>
    tpu.vector_store %arg13[%c33, %c0_350], %666 {strides = array<i32>} : memref<256x256xbf16, #tpu.memory_space<vmem>>, vector<1x256xbf16>,
    %668 = arith.mulf %5, %657 : vector<8x256xf32>
    %cst_351 = arith.constant dense<0.000000e+00> : vector<256xf32>
    %669 = vector.multi_reduction <add>, %668, %cst_351 [0] : vector<8x256xf32> to vector<256xf32>
    %670 = vector.shape_cast %669 : vector<256xf32> to vector<1x256xf32>
    %671 = arith.truncf %670 : vector<1x256xf32> to vector<1x256xbf16>
    %c34 = arith.constant 34 : index
    %c0_352 = arith.constant 0 : index
    %672 = vector.load %arg13[%c34, %c0_352] : memref<256x256xbf16, #tpu.memory_space<vmem>>, vector<1x256xbf16>
    tpu.vector_store %arg13[%c34, %c0_352], %671 {strides = array<i32>} : memref<256x256xbf16, #tpu.memory_space<vmem>>, vector<1x256xbf16>,
    %673 = vector.extract_strided_slice %657 {offsets = [0, 0], sizes = [1, 256], strides = [1, 1]} : vector<8x256xf32> to vector<1x256xf32>
    %c0_353 = arith.constant 0 : index
    %c0_354 = arith.constant 0 : index
    %c0_355 = arith.constant 0 : index
    %c0_356 = arith.constant 0 : index
    %674 = vector.load %arg3[%c0_353, %c0_354, %c0_355, %c0_356] : memref<1x8x13x256xf32, #tpu.memory_space<vmem>>, vector<1x1x13x256xf32>
    %675 = vector.shape_cast %674 : vector<1x1x13x256xf32> to vector<13x256xf32>
    %676 = vector.broadcast %673 : vector<1x256xf32> to vector<13x256xf32>
    %677 = arith.mulf %676, %675 : vector<13x256xf32>
    %678 = vector.extract_strided_slice %657 {offsets = [1, 0], sizes = [1, 256], strides = [1, 1]} : vector<8x256xf32> to vector<1x256xf32>
    %c0_357 = arith.constant 0 : index
    %c1_358 = arith.constant 1 : index
    %c0_359 = arith.constant 0 : index
    %c0_360 = arith.constant 0 : index
    %679 = vector.load %arg3[%c0_357, %c1_358, %c0_359, %c0_360] : memref<1x8x13x256xf32, #tpu.memory_space<vmem>>, vector<1x1x13x256xf32>
    %680 = vector.shape_cast %679 : vector<1x1x13x256xf32> to vector<13x256xf32>
    %681 = vector.broadcast %678 : vector<1x256xf32> to vector<13x256xf32>
    %682 = arith.mulf %681, %680 : vector<13x256xf32>
    %683 = arith.addf %677, %682 : vector<13x256xf32>
    %684 = vector.extract_strided_slice %657 {offsets = [2, 0], sizes = [1, 256], strides = [1, 1]} : vector<8x256xf32> to vector<1x256xf32>
    %c0_361 = arith.constant 0 : index
    %c2_362 = arith.constant 2 : index
    %c0_363 = arith.constant 0 : index
    %c0_364 = arith.constant 0 : index
    %685 = vector.load %arg3[%c0_361, %c2_362, %c0_363, %c0_364] : memref<1x8x13x256xf32, #tpu.memory_space<vmem>>, vector<1x1x13x256xf32>
    %686 = vector.shape_cast %685 : vector<1x1x13x256xf32> to vector<13x256xf32>
    %687 = vector.broadcast %684 : vector<1x256xf32> to vector<13x256xf32>
    %688 = arith.mulf %687, %686 : vector<13x256xf32>
    %689 = arith.addf %683, %688 : vector<13x256xf32>
    %690 = vector.extract_strided_slice %657 {offsets = [3, 0], sizes = [1, 256], strides = [1, 1]} : vector<8x256xf32> to vector<1x256xf32>
    %c0_365 = arith.constant 0 : index
    %c3_366 = arith.constant 3 : index
    %c0_367 = arith.constant 0 : index
    %c0_368 = arith.constant 0 : index
    %691 = vector.load %arg3[%c0_365, %c3_366, %c0_367, %c0_368] : memref<1x8x13x256xf32, #tpu.memory_space<vmem>>, vector<1x1x13x256xf32>
    %692 = vector.shape_cast %691 : vector<1x1x13x256xf32> to vector<13x256xf32>
    %693 = vector.broadcast %690 : vector<1x256xf32> to vector<13x256xf32>
    %694 = arith.mulf %693, %692 : vector<13x256xf32>
    %695 = arith.addf %689, %694 : vector<13x256xf32>
    %696 = vector.extract_strided_slice %657 {offsets = [4, 0], sizes = [1, 256], strides = [1, 1]} : vector<8x256xf32> to vector<1x256xf32>
    %c0_369 = arith.constant 0 : index
    %c4_370 = arith.constant 4 : index
    %c0_371 = arith.constant 0 : index
    %c0_372 = arith.constant 0 : index
    %697 = vector.load %arg3[%c0_369, %c4_370, %c0_371, %c0_372] : memref<1x8x13x256xf32, #tpu.memory_space<vmem>>, vector<1x1x13x256xf32>
    %698 = vector.shape_cast %697 : vector<1x1x13x256xf32> to vector<13x256xf32>
    %699 = vector.broadcast %696 : vector<1x256xf32> to vector<13x256xf32>
    %700 = arith.mulf %699, %698 : vector<13x256xf32>
    %701 = arith.addf %695, %700 : vector<13x256xf32>
    %702 = vector.extract_strided_slice %657 {offsets = [5, 0], sizes = [1, 256], strides = [1, 1]} : vector<8x256xf32> to vector<1x256xf32>
    %c0_373 = arith.constant 0 : index
    %c5_374 = arith.constant 5 : index
    %c0_375 = arith.constant 0 : index
    %c0_376 = arith.constant 0 : index
    %703 = vector.load %arg3[%c0_373, %c5_374, %c0_375, %c0_376] : memref<1x8x13x256xf32, #tpu.memory_space<vmem>>, vector<1x1x13x256xf32>
    %704 = vector.shape_cast %703 : vector<1x1x13x256xf32> to vector<13x256xf32>
    %705 = vector.broadcast %702 : vector<1x256xf32> to vector<13x256xf32>
    %706 = arith.mulf %705, %704 : vector<13x256xf32>
    %707 = arith.addf %701, %706 : vector<13x256xf32>
    %708 = vector.extract_strided_slice %657 {offsets = [6, 0], sizes = [1, 256], strides = [1, 1]} : vector<8x256xf32> to vector<1x256xf32>
    %c0_377 = arith.constant 0 : index
    %c6_378 = arith.constant 6 : index
    %c0_379 = arith.constant 0 : index
    %c0_380 = arith.constant 0 : index
    %709 = vector.load %arg3[%c0_377, %c6_378, %c0_379, %c0_380] : memref<1x8x13x256xf32, #tpu.memory_space<vmem>>, vector<1x1x13x256xf32>
    %710 = vector.shape_cast %709 : vector<1x1x13x256xf32> to vector<13x256xf32>
    %711 = vector.broadcast %708 : vector<1x256xf32> to vector<13x256xf32>
    %712 = arith.mulf %711, %710 : vector<13x256xf32>
    %713 = arith.addf %707, %712 : vector<13x256xf32>
    %714 = vector.extract_strided_slice %657 {offsets = [7, 0], sizes = [1, 256], strides = [1, 1]} : vector<8x256xf32> to vector<1x256xf32>
    %c0_381 = arith.constant 0 : index
    %c7_382 = arith.constant 7 : index
    %c0_383 = arith.constant 0 : index
    %c0_384 = arith.constant 0 : index
    %715 = vector.load %arg3[%c0_381, %c7_382, %c0_383, %c0_384] : memref<1x8x13x256xf32, #tpu.memory_space<vmem>>, vector<1x1x13x256xf32>
    %716 = vector.shape_cast %715 : vector<1x1x13x256xf32> to vector<13x256xf32>
    %717 = vector.broadcast %714 : vector<1x256xf32> to vector<13x256xf32>
    %718 = arith.mulf %717, %716 : vector<13x256xf32>
    %719 = arith.addf %713, %718 : vector<13x256xf32>
    %720 = arith.truncf %719 : vector<13x256xf32> to vector<13x256xbf16>
    %c35 = arith.constant 35 : index
    %c0_385 = arith.constant 0 : index
    %721 = vector.load %arg13[%c35, %c0_385] : memref<256x256xbf16, #tpu.memory_space<vmem>>, vector<13x256xbf16>
    tpu.vector_store %arg13[%c35, %c0_385], %720 {strides = array<i32>} : memref<256x256xbf16, #tpu.memory_space<vmem>>, vector<13x256xbf16>,
    %c0_386 = arith.constant 0 : index
    %c3_387 = arith.constant 3 : index
    %722 = memref.load %arg8[%c0_386, %c3_387] : memref<8x16xf32, #tpu.memory_space<smem>>
    %723 = vector.broadcast %722 : f32 to vector<8x256xf32>
    %724 = arith.mulf %169, %723 : vector<8x256xf32>
    %c1_388 = arith.constant 1 : index
    %c3_389 = arith.constant 3 : index
    %725 = memref.load %arg8[%c1_388, %c3_389] : memref<8x16xf32, #tpu.memory_space<smem>>
    %726 = vector.broadcast %725 : f32 to vector<8x256xf32>
    %727 = arith.mulf %205, %726 : vector<8x256xf32>
    %728 = arith.addf %724, %727 : vector<8x256xf32>
    %c2_390 = arith.constant 2 : index
    %c3_391 = arith.constant 3 : index
    %729 = memref.load %arg8[%c2_390, %c3_391] : memref<8x16xf32, #tpu.memory_space<smem>>
    %730 = vector.broadcast %729 : f32 to vector<8x256xf32>
    %731 = arith.mulf %241, %730 : vector<8x256xf32>
    %732 = arith.addf %728, %731 : vector<8x256xf32>
    %c3_392 = arith.constant 3 : index
    %c3_393 = arith.constant 3 : index
    %733 = memref.load %arg8[%c3_392, %c3_393] : memref<8x16xf32, #tpu.memory_space<smem>>
    %734 = vector.broadcast %733 : f32 to vector<8x256xf32>
    %735 = arith.mulf %277, %734 : vector<8x256xf32>
    %736 = arith.addf %732, %735 : vector<8x256xf32>
    %c4_394 = arith.constant 4 : index
    %c3_395 = arith.constant 3 : index
    %737 = memref.load %arg8[%c4_394, %c3_395] : memref<8x16xf32, #tpu.memory_space<smem>>
    %738 = vector.broadcast %737 : f32 to vector<8x256xf32>
    %739 = arith.mulf %313, %738 : vector<8x256xf32>
    %740 = arith.addf %736, %739 : vector<8x256xf32>
    %c5_396 = arith.constant 5 : index
    %c3_397 = arith.constant 3 : index
    %741 = memref.load %arg8[%c5_396, %c3_397] : memref<8x16xf32, #tpu.memory_space<smem>>
    %742 = vector.broadcast %741 : f32 to vector<8x256xf32>
    %743 = arith.mulf %349, %742 : vector<8x256xf32>
    %744 = arith.addf %740, %743 : vector<8x256xf32>
    %c6_398 = arith.constant 6 : index
    %c3_399 = arith.constant 3 : index
    %745 = memref.load %arg8[%c6_398, %c3_399] : memref<8x16xf32, #tpu.memory_space<smem>>
    %746 = vector.broadcast %745 : f32 to vector<8x256xf32>
    %747 = arith.mulf %385, %746 : vector<8x256xf32>
    %748 = arith.addf %744, %747 : vector<8x256xf32>
    %c7_400 = arith.constant 7 : index
    %c3_401 = arith.constant 3 : index
    %749 = memref.load %arg8[%c7_400, %c3_401] : memref<8x16xf32, #tpu.memory_space<smem>>
    %750 = vector.broadcast %749 : f32 to vector<8x256xf32>
    %751 = arith.mulf %421, %750 : vector<8x256xf32>
    %752 = arith.addf %748, %751 : vector<8x256xf32>
    %c3_402 = arith.constant 3 : index
    %753 = memref.load %arg9[%c3_402] : memref<16xf32, #tpu.memory_space<smem>>
    %754 = vector.broadcast %753 : f32 to vector<8x256xf32>
    %755 = arith.addf %752, %754 : vector<8x256xf32>
    %cst_403 = arith.constant 0.000000e+00 : f32
    %756 = vector.broadcast %cst_403 : f32 to vector<8x256xf32>
    %757 = arith.maximumf %755, %756 : vector<8x256xf32>
    %758 = arith.mulf %1, %757 : vector<8x256xf32>
    %cst_404 = arith.constant dense<0.000000e+00> : vector<256xf32>
    %759 = vector.multi_reduction <add>, %758, %cst_404 [0] : vector<8x256xf32> to vector<256xf32>
    %760 = vector.shape_cast %759 : vector<256xf32> to vector<1x256xf32>
    %761 = arith.truncf %760 : vector<1x256xf32> to vector<1x256xbf16>
    %c48 = arith.constant 48 : index
    %c0_405 = arith.constant 0 : index
    %762 = vector.load %arg13[%c48, %c0_405] : memref<256x256xbf16, #tpu.memory_space<vmem>>, vector<1x256xbf16>
    tpu.vector_store %arg13[%c48, %c0_405], %761 {strides = array<i32>} : memref<256x256xbf16, #tpu.memory_space<vmem>>, vector<1x256xbf16>,
    %763 = arith.mulf %3, %757 : vector<8x256xf32>
    %cst_406 = arith.constant dense<0.000000e+00> : vector<256xf32>
    %764 = vector.multi_reduction <add>, %763, %cst_406 [0] : vector<8x256xf32> to vector<256xf32>
    %765 = vector.shape_cast %764 : vector<256xf32> to vector<1x256xf32>
    %766 = arith.truncf %765 : vector<1x256xf32> to vector<1x256xbf16>
    %c49 = arith.constant 49 : index
    %c0_407 = arith.constant 0 : index
    %767 = vector.load %arg13[%c49, %c0_407] : memref<256x256xbf16, #tpu.memory_space<vmem>>, vector<1x256xbf16>
    tpu.vector_store %arg13[%c49, %c0_407], %766 {strides = array<i32>} : memref<256x256xbf16, #tpu.memory_space<vmem>>, vector<1x256xbf16>,
    %768 = arith.mulf %5, %757 : vector<8x256xf32>
    %cst_408 = arith.constant dense<0.000000e+00> : vector<256xf32>
    %769 = vector.multi_reduction <add>, %768, %cst_408 [0] : vector<8x256xf32> to vector<256xf32>
    %770 = vector.shape_cast %769 : vector<256xf32> to vector<1x256xf32>
    %771 = arith.truncf %770 : vector<1x256xf32> to vector<1x256xbf16>
    %c50 = arith.constant 50 : index
    %c0_409 = arith.constant 0 : index
    %772 = vector.load %arg13[%c50, %c0_409] : memref<256x256xbf16, #tpu.memory_space<vmem>>, vector<1x256xbf16>
    tpu.vector_store %arg13[%c50, %c0_409], %771 {strides = array<i32>} : memref<256x256xbf16, #tpu.memory_space<vmem>>, vector<1x256xbf16>,
    %773 = vector.extract_strided_slice %757 {offsets = [0, 0], sizes = [1, 256], strides = [1, 1]} : vector<8x256xf32> to vector<1x256xf32>
    %c0_410 = arith.constant 0 : index
    %c0_411 = arith.constant 0 : index
    %c0_412 = arith.constant 0 : index
    %c0_413 = arith.constant 0 : index
    %774 = vector.load %arg3[%c0_410, %c0_411, %c0_412, %c0_413] : memref<1x8x13x256xf32, #tpu.memory_space<vmem>>, vector<1x1x13x256xf32>
    %775 = vector.shape_cast %774 : vector<1x1x13x256xf32> to vector<13x256xf32>
    %776 = vector.broadcast %773 : vector<1x256xf32> to vector<13x256xf32>
    %777 = arith.mulf %776, %775 : vector<13x256xf32>
    %778 = vector.extract_strided_slice %757 {offsets = [1, 0], sizes = [1, 256], strides = [1, 1]} : vector<8x256xf32> to vector<1x256xf32>
    %c0_414 = arith.constant 0 : index
    %c1_415 = arith.constant 1 : index
    %c0_416 = arith.constant 0 : index
    %c0_417 = arith.constant 0 : index
    %779 = vector.load %arg3[%c0_414, %c1_415, %c0_416, %c0_417] : memref<1x8x13x256xf32, #tpu.memory_space<vmem>>, vector<1x1x13x256xf32>
    %780 = vector.shape_cast %779 : vector<1x1x13x256xf32> to vector<13x256xf32>
    %781 = vector.broadcast %778 : vector<1x256xf32> to vector<13x256xf32>
    %782 = arith.mulf %781, %780 : vector<13x256xf32>
    %783 = arith.addf %777, %782 : vector<13x256xf32>
    %784 = vector.extract_strided_slice %757 {offsets = [2, 0], sizes = [1, 256], strides = [1, 1]} : vector<8x256xf32> to vector<1x256xf32>
    %c0_418 = arith.constant 0 : index
    %c2_419 = arith.constant 2 : index
    %c0_420 = arith.constant 0 : index
    %c0_421 = arith.constant 0 : index
    %785 = vector.load %arg3[%c0_418, %c2_419, %c0_420, %c0_421] : memref<1x8x13x256xf32, #tpu.memory_space<vmem>>, vector<1x1x13x256xf32>
    %786 = vector.shape_cast %785 : vector<1x1x13x256xf32> to vector<13x256xf32>
    %787 = vector.broadcast %784 : vector<1x256xf32> to vector<13x256xf32>
    %788 = arith.mulf %787, %786 : vector<13x256xf32>
    %789 = arith.addf %783, %788 : vector<13x256xf32>
    %790 = vector.extract_strided_slice %757 {offsets = [3, 0], sizes = [1, 256], strides = [1, 1]} : vector<8x256xf32> to vector<1x256xf32>
    %c0_422 = arith.constant 0 : index
    %c3_423 = arith.constant 3 : index
    %c0_424 = arith.constant 0 : index
    %c0_425 = arith.constant 0 : index
    %791 = vector.load %arg3[%c0_422, %c3_423, %c0_424, %c0_425] : memref<1x8x13x256xf32, #tpu.memory_space<vmem>>, vector<1x1x13x256xf32>
    %792 = vector.shape_cast %791 : vector<1x1x13x256xf32> to vector<13x256xf32>
    %793 = vector.broadcast %790 : vector<1x256xf32> to vector<13x256xf32>
    %794 = arith.mulf %793, %792 : vector<13x256xf32>
    %795 = arith.addf %789, %794 : vector<13x256xf32>
    %796 = vector.extract_strided_slice %757 {offsets = [4, 0], sizes = [1, 256], strides = [1, 1]} : vector<8x256xf32> to vector<1x256xf32>
    %c0_426 = arith.constant 0 : index
    %c4_427 = arith.constant 4 : index
    %c0_428 = arith.constant 0 : index
    %c0_429 = arith.constant 0 : index
    %797 = vector.load %arg3[%c0_426, %c4_427, %c0_428, %c0_429] : memref<1x8x13x256xf32, #tpu.memory_space<vmem>>, vector<1x1x13x256xf32>
    %798 = vector.shape_cast %797 : vector<1x1x13x256xf32> to vector<13x256xf32>
    %799 = vector.broadcast %796 : vector<1x256xf32> to vector<13x256xf32>
    %800 = arith.mulf %799, %798 : vector<13x256xf32>
    %801 = arith.addf %795, %800 : vector<13x256xf32>
    %802 = vector.extract_strided_slice %757 {offsets = [5, 0], sizes = [1, 256], strides = [1, 1]} : vector<8x256xf32> to vector<1x256xf32>
    %c0_430 = arith.constant 0 : index
    %c5_431 = arith.constant 5 : index
    %c0_432 = arith.constant 0 : index
    %c0_433 = arith.constant 0 : index
    %803 = vector.load %arg3[%c0_430, %c5_431, %c0_432, %c0_433] : memref<1x8x13x256xf32, #tpu.memory_space<vmem>>, vector<1x1x13x256xf32>
    %804 = vector.shape_cast %803 : vector<1x1x13x256xf32> to vector<13x256xf32>
    %805 = vector.broadcast %802 : vector<1x256xf32> to vector<13x256xf32>
    %806 = arith.mulf %805, %804 : vector<13x256xf32>
    %807 = arith.addf %801, %806 : vector<13x256xf32>
    %808 = vector.extract_strided_slice %757 {offsets = [6, 0], sizes = [1, 256], strides = [1, 1]} : vector<8x256xf32> to vector<1x256xf32>
    %c0_434 = arith.constant 0 : index
    %c6_435 = arith.constant 6 : index
    %c0_436 = arith.constant 0 : index
    %c0_437 = arith.constant 0 : index
    %809 = vector.load %arg3[%c0_434, %c6_435, %c0_436, %c0_437] : memref<1x8x13x256xf32, #tpu.memory_space<vmem>>, vector<1x1x13x256xf32>
    %810 = vector.shape_cast %809 : vector<1x1x13x256xf32> to vector<13x256xf32>
    %811 = vector.broadcast %808 : vector<1x256xf32> to vector<13x256xf32>
    %812 = arith.mulf %811, %810 : vector<13x256xf32>
    %813 = arith.addf %807, %812 : vector<13x256xf32>
    %814 = vector.extract_strided_slice %757 {offsets = [7, 0], sizes = [1, 256], strides = [1, 1]} : vector<8x256xf32> to vector<1x256xf32>
    %c0_438 = arith.constant 0 : index
    %c7_439 = arith.constant 7 : index
    %c0_440 = arith.constant 0 : index
    %c0_441 = arith.constant 0 : index
    %815 = vector.load %arg3[%c0_438, %c7_439, %c0_440, %c0_441] : memref<1x8x13x256xf32, #tpu.memory_space<vmem>>, vector<1x1x13x256xf32>
    %816 = vector.shape_cast %815 : vector<1x1x13x256xf32> to vector<13x256xf32>
    %817 = vector.broadcast %814 : vector<1x256xf32> to vector<13x256xf32>
    %818 = arith.mulf %817, %816 : vector<13x256xf32>
    %819 = arith.addf %813, %818 : vector<13x256xf32>
    %820 = arith.truncf %819 : vector<13x256xf32> to vector<13x256xbf16>
    %c51 = arith.constant 51 : index
    %c0_442 = arith.constant 0 : index
    %821 = vector.load %arg13[%c51, %c0_442] : memref<256x256xbf16, #tpu.memory_space<vmem>>, vector<13x256xbf16>
    tpu.vector_store %arg13[%c51, %c0_442], %820 {strides = array<i32>} : memref<256x256xbf16, #tpu.memory_space<vmem>>, vector<13x256xbf16>,
    %c0_443 = arith.constant 0 : index
    %c4_444 = arith.constant 4 : index
    %822 = memref.load %arg8[%c0_443, %c4_444] : memref<8x16xf32, #tpu.memory_space<smem>>
    %823 = vector.broadcast %822 : f32 to vector<8x256xf32>
    %824 = arith.mulf %169, %823 : vector<8x256xf32>
    %c1_445 = arith.constant 1 : index
    %c4_446 = arith.constant 4 : index
    %825 = memref.load %arg8[%c1_445, %c4_446] : memref<8x16xf32, #tpu.memory_space<smem>>
    %826 = vector.broadcast %825 : f32 to vector<8x256xf32>
    %827 = arith.mulf %205, %826 : vector<8x256xf32>
    %828 = arith.addf %824, %827 : vector<8x256xf32>
    %c2_447 = arith.constant 2 : index
    %c4_448 = arith.constant 4 : index
    %829 = memref.load %arg8[%c2_447, %c4_448] : memref<8x16xf32, #tpu.memory_space<smem>>
    %830 = vector.broadcast %829 : f32 to vector<8x256xf32>
    %831 = arith.mulf %241, %830 : vector<8x256xf32>
    %832 = arith.addf %828, %831 : vector<8x256xf32>
    %c3_449 = arith.constant 3 : index
    %c4_450 = arith.constant 4 : index
    %833 = memref.load %arg8[%c3_449, %c4_450] : memref<8x16xf32, #tpu.memory_space<smem>>
    %834 = vector.broadcast %833 : f32 to vector<8x256xf32>
    %835 = arith.mulf %277, %834 : vector<8x256xf32>
    %836 = arith.addf %832, %835 : vector<8x256xf32>
    %c4_451 = arith.constant 4 : index
    %c4_452 = arith.constant 4 : index
    %837 = memref.load %arg8[%c4_451, %c4_452] : memref<8x16xf32, #tpu.memory_space<smem>>
    %838 = vector.broadcast %837 : f32 to vector<8x256xf32>
    %839 = arith.mulf %313, %838 : vector<8x256xf32>
    %840 = arith.addf %836, %839 : vector<8x256xf32>
    %c5_453 = arith.constant 5 : index
    %c4_454 = arith.constant 4 : index
    %841 = memref.load %arg8[%c5_453, %c4_454] : memref<8x16xf32, #tpu.memory_space<smem>>
    %842 = vector.broadcast %841 : f32 to vector<8x256xf32>
    %843 = arith.mulf %349, %842 : vector<8x256xf32>
    %844 = arith.addf %840, %843 : vector<8x256xf32>
    %c6_455 = arith.constant 6 : index
    %c4_456 = arith.constant 4 : index
    %845 = memref.load %arg8[%c6_455, %c4_456] : memref<8x16xf32, #tpu.memory_space<smem>>
    %846 = vector.broadcast %845 : f32 to vector<8x256xf32>
    %847 = arith.mulf %385, %846 : vector<8x256xf32>
    %848 = arith.addf %844, %847 : vector<8x256xf32>
    %c7_457 = arith.constant 7 : index
    %c4_458 = arith.constant 4 : index
    %849 = memref.load %arg8[%c7_457, %c4_458] : memref<8x16xf32, #tpu.memory_space<smem>>
    %850 = vector.broadcast %849 : f32 to vector<8x256xf32>
    %851 = arith.mulf %421, %850 : vector<8x256xf32>
    %852 = arith.addf %848, %851 : vector<8x256xf32>
    %c4_459 = arith.constant 4 : index
    %853 = memref.load %arg9[%c4_459] : memref<16xf32, #tpu.memory_space<smem>>
    %854 = vector.broadcast %853 : f32 to vector<8x256xf32>
    %855 = arith.addf %852, %854 : vector<8x256xf32>
    %cst_460 = arith.constant 0.000000e+00 : f32
    %856 = vector.broadcast %cst_460 : f32 to vector<8x256xf32>
    %857 = arith.maximumf %855, %856 : vector<8x256xf32>
    %858 = arith.mulf %1, %857 : vector<8x256xf32>
    %cst_461 = arith.constant dense<0.000000e+00> : vector<256xf32>
    %859 = vector.multi_reduction <add>, %858, %cst_461 [0] : vector<8x256xf32> to vector<256xf32>
    %860 = vector.shape_cast %859 : vector<256xf32> to vector<1x256xf32>
    %861 = arith.truncf %860 : vector<1x256xf32> to vector<1x256xbf16>
    %c64 = arith.constant 64 : index
    %c0_462 = arith.constant 0 : index
    %862 = vector.load %arg13[%c64, %c0_462] : memref<256x256xbf16, #tpu.memory_space<vmem>>, vector<1x256xbf16>
    tpu.vector_store %arg13[%c64, %c0_462], %861 {strides = array<i32>} : memref<256x256xbf16, #tpu.memory_space<vmem>>, vector<1x256xbf16>,
    %863 = arith.mulf %3, %857 : vector<8x256xf32>
    %cst_463 = arith.constant dense<0.000000e+00> : vector<256xf32>
    %864 = vector.multi_reduction <add>, %863, %cst_463 [0] : vector<8x256xf32> to vector<256xf32>
    %865 = vector.shape_cast %864 : vector<256xf32> to vector<1x256xf32>
    %866 = arith.truncf %865 : vector<1x256xf32> to vector<1x256xbf16>
    %c65 = arith.constant 65 : index
    %c0_464 = arith.constant 0 : index
    %867 = vector.load %arg13[%c65, %c0_464] : memref<256x256xbf16, #tpu.memory_space<vmem>>, vector<1x256xbf16>
    tpu.vector_store %arg13[%c65, %c0_464], %866 {strides = array<i32>} : memref<256x256xbf16, #tpu.memory_space<vmem>>, vector<1x256xbf16>,
    %868 = arith.mulf %5, %857 : vector<8x256xf32>
    %cst_465 = arith.constant dense<0.000000e+00> : vector<256xf32>
    %869 = vector.multi_reduction <add>, %868, %cst_465 [0] : vector<8x256xf32> to vector<256xf32>
    %870 = vector.shape_cast %869 : vector<256xf32> to vector<1x256xf32>
    %871 = arith.truncf %870 : vector<1x256xf32> to vector<1x256xbf16>
    %c66 = arith.constant 66 : index
    %c0_466 = arith.constant 0 : index
    %872 = vector.load %arg13[%c66, %c0_466] : memref<256x256xbf16, #tpu.memory_space<vmem>>, vector<1x256xbf16>
    tpu.vector_store %arg13[%c66, %c0_466], %871 {strides = array<i32>} : memref<256x256xbf16, #tpu.memory_space<vmem>>, vector<1x256xbf16>,
    %873 = vector.extract_strided_slice %857 {offsets = [0, 0], sizes = [1, 256], strides = [1, 1]} : vector<8x256xf32> to vector<1x256xf32>
    %c0_467 = arith.constant 0 : index
    %c0_468 = arith.constant 0 : index
    %c0_469 = arith.constant 0 : index
    %c0_470 = arith.constant 0 : index
    %874 = vector.load %arg3[%c0_467, %c0_468, %c0_469, %c0_470] : memref<1x8x13x256xf32, #tpu.memory_space<vmem>>, vector<1x1x13x256xf32>
    %875 = vector.shape_cast %874 : vector<1x1x13x256xf32> to vector<13x256xf32>
    %876 = vector.broadcast %873 : vector<1x256xf32> to vector<13x256xf32>
    %877 = arith.mulf %876, %875 : vector<13x256xf32>
    %878 = vector.extract_strided_slice %857 {offsets = [1, 0], sizes = [1, 256], strides = [1, 1]} : vector<8x256xf32> to vector<1x256xf32>
    %c0_471 = arith.constant 0 : index
    %c1_472 = arith.constant 1 : index
    %c0_473 = arith.constant 0 : index
    %c0_474 = arith.constant 0 : index
    %879 = vector.load %arg3[%c0_471, %c1_472, %c0_473, %c0_474] : memref<1x8x13x256xf32, #tpu.memory_space<vmem>>, vector<1x1x13x256xf32>
    %880 = vector.shape_cast %879 : vector<1x1x13x256xf32> to vector<13x256xf32>
    %881 = vector.broadcast %878 : vector<1x256xf32> to vector<13x256xf32>
    %882 = arith.mulf %881, %880 : vector<13x256xf32>
    %883 = arith.addf %877, %882 : vector<13x256xf32>
    %884 = vector.extract_strided_slice %857 {offsets = [2, 0], sizes = [1, 256], strides = [1, 1]} : vector<8x256xf32> to vector<1x256xf32>
    %c0_475 = arith.constant 0 : index
    %c2_476 = arith.constant 2 : index
    %c0_477 = arith.constant 0 : index
    %c0_478 = arith.constant 0 : index
    %885 = vector.load %arg3[%c0_475, %c2_476, %c0_477, %c0_478] : memref<1x8x13x256xf32, #tpu.memory_space<vmem>>, vector<1x1x13x256xf32>
    %886 = vector.shape_cast %885 : vector<1x1x13x256xf32> to vector<13x256xf32>
    %887 = vector.broadcast %884 : vector<1x256xf32> to vector<13x256xf32>
    %888 = arith.mulf %887, %886 : vector<13x256xf32>
    %889 = arith.addf %883, %888 : vector<13x256xf32>
    %890 = vector.extract_strided_slice %857 {offsets = [3, 0], sizes = [1, 256], strides = [1, 1]} : vector<8x256xf32> to vector<1x256xf32>
    %c0_479 = arith.constant 0 : index
    %c3_480 = arith.constant 3 : index
    %c0_481 = arith.constant 0 : index
    %c0_482 = arith.constant 0 : index
    %891 = vector.load %arg3[%c0_479, %c3_480, %c0_481, %c0_482] : memref<1x8x13x256xf32, #tpu.memory_space<vmem>>, vector<1x1x13x256xf32>
    %892 = vector.shape_cast %891 : vector<1x1x13x256xf32> to vector<13x256xf32>
    %893 = vector.broadcast %890 : vector<1x256xf32> to vector<13x256xf32>
    %894 = arith.mulf %893, %892 : vector<13x256xf32>
    %895 = arith.addf %889, %894 : vector<13x256xf32>
    %896 = vector.extract_strided_slice %857 {offsets = [4, 0], sizes = [1, 256], strides = [1, 1]} : vector<8x256xf32> to vector<1x256xf32>
    %c0_483 = arith.constant 0 : index
    %c4_484 = arith.constant 4 : index
    %c0_485 = arith.constant 0 : index
    %c0_486 = arith.constant 0 : index
    %897 = vector.load %arg3[%c0_483, %c4_484, %c0_485, %c0_486] : memref<1x8x13x256xf32, #tpu.memory_space<vmem>>, vector<1x1x13x256xf32>
    %898 = vector.shape_cast %897 : vector<1x1x13x256xf32> to vector<13x256xf32>
    %899 = vector.broadcast %896 : vector<1x256xf32> to vector<13x256xf32>
    %900 = arith.mulf %899, %898 : vector<13x256xf32>
    %901 = arith.addf %895, %900 : vector<13x256xf32>
    %902 = vector.extract_strided_slice %857 {offsets = [5, 0], sizes = [1, 256], strides = [1, 1]} : vector<8x256xf32> to vector<1x256xf32>
    %c0_487 = arith.constant 0 : index
    %c5_488 = arith.constant 5 : index
    %c0_489 = arith.constant 0 : index
    %c0_490 = arith.constant 0 : index
    %903 = vector.load %arg3[%c0_487, %c5_488, %c0_489, %c0_490] : memref<1x8x13x256xf32, #tpu.memory_space<vmem>>, vector<1x1x13x256xf32>
    %904 = vector.shape_cast %903 : vector<1x1x13x256xf32> to vector<13x256xf32>
    %905 = vector.broadcast %902 : vector<1x256xf32> to vector<13x256xf32>
    %906 = arith.mulf %905, %904 : vector<13x256xf32>
    %907 = arith.addf %901, %906 : vector<13x256xf32>
    %908 = vector.extract_strided_slice %857 {offsets = [6, 0], sizes = [1, 256], strides = [1, 1]} : vector<8x256xf32> to vector<1x256xf32>
    %c0_491 = arith.constant 0 : index
    %c6_492 = arith.constant 6 : index
    %c0_493 = arith.constant 0 : index
    %c0_494 = arith.constant 0 : index
    %909 = vector.load %arg3[%c0_491, %c6_492, %c0_493, %c0_494] : memref<1x8x13x256xf32, #tpu.memory_space<vmem>>, vector<1x1x13x256xf32>
    %910 = vector.shape_cast %909 : vector<1x1x13x256xf32> to vector<13x256xf32>
    %911 = vector.broadcast %908 : vector<1x256xf32> to vector<13x256xf32>
    %912 = arith.mulf %911, %910 : vector<13x256xf32>
    %913 = arith.addf %907, %912 : vector<13x256xf32>
    %914 = vector.extract_strided_slice %857 {offsets = [7, 0], sizes = [1, 256], strides = [1, 1]} : vector<8x256xf32> to vector<1x256xf32>
    %c0_495 = arith.constant 0 : index
    %c7_496 = arith.constant 7 : index
    %c0_497 = arith.constant 0 : index
    %c0_498 = arith.constant 0 : index
    %915 = vector.load %arg3[%c0_495, %c7_496, %c0_497, %c0_498] : memref<1x8x13x256xf32, #tpu.memory_space<vmem>>, vector<1x1x13x256xf32>
    %916 = vector.shape_cast %915 : vector<1x1x13x256xf32> to vector<13x256xf32>
    %917 = vector.broadcast %914 : vector<1x256xf32> to vector<13x256xf32>
    %918 = arith.mulf %917, %916 : vector<13x256xf32>
    %919 = arith.addf %913, %918 : vector<13x256xf32>
    %920 = arith.truncf %919 : vector<13x256xf32> to vector<13x256xbf16>
    %c67 = arith.constant 67 : index
    %c0_499 = arith.constant 0 : index
    %921 = vector.load %arg13[%c67, %c0_499] : memref<256x256xbf16, #tpu.memory_space<vmem>>, vector<13x256xbf16>
    tpu.vector_store %arg13[%c67, %c0_499], %920 {strides = array<i32>} : memref<256x256xbf16, #tpu.memory_space<vmem>>, vector<13x256xbf16>,
    %c0_500 = arith.constant 0 : index
    %c5_501 = arith.constant 5 : index
    %922 = memref.load %arg8[%c0_500, %c5_501] : memref<8x16xf32, #tpu.memory_space<smem>>
    %923 = vector.broadcast %922 : f32 to vector<8x256xf32>
    %924 = arith.mulf %169, %923 : vector<8x256xf32>
    %c1_502 = arith.constant 1 : index
    %c5_503 = arith.constant 5 : index
    %925 = memref.load %arg8[%c1_502, %c5_503] : memref<8x16xf32, #tpu.memory_space<smem>>
    %926 = vector.broadcast %925 : f32 to vector<8x256xf32>
    %927 = arith.mulf %205, %926 : vector<8x256xf32>
    %928 = arith.addf %924, %927 : vector<8x256xf32>
    %c2_504 = arith.constant 2 : index
    %c5_505 = arith.constant 5 : index
    %929 = memref.load %arg8[%c2_504, %c5_505] : memref<8x16xf32, #tpu.memory_space<smem>>
    %930 = vector.broadcast %929 : f32 to vector<8x256xf32>
    %931 = arith.mulf %241, %930 : vector<8x256xf32>
    %932 = arith.addf %928, %931 : vector<8x256xf32>
    %c3_506 = arith.constant 3 : index
    %c5_507 = arith.constant 5 : index
    %933 = memref.load %arg8[%c3_506, %c5_507] : memref<8x16xf32, #tpu.memory_space<smem>>
    %934 = vector.broadcast %933 : f32 to vector<8x256xf32>
    %935 = arith.mulf %277, %934 : vector<8x256xf32>
    %936 = arith.addf %932, %935 : vector<8x256xf32>
    %c4_508 = arith.constant 4 : index
    %c5_509 = arith.constant 5 : index
    %937 = memref.load %arg8[%c4_508, %c5_509] : memref<8x16xf32, #tpu.memory_space<smem>>
    %938 = vector.broadcast %937 : f32 to vector<8x256xf32>
    %939 = arith.mulf %313, %938 : vector<8x256xf32>
    %940 = arith.addf %936, %939 : vector<8x256xf32>
    %c5_510 = arith.constant 5 : index
    %c5_511 = arith.constant 5 : index
    %941 = memref.load %arg8[%c5_510, %c5_511] : memref<8x16xf32, #tpu.memory_space<smem>>
    %942 = vector.broadcast %941 : f32 to vector<8x256xf32>
    %943 = arith.mulf %349, %942 : vector<8x256xf32>
    %944 = arith.addf %940, %943 : vector<8x256xf32>
    %c6_512 = arith.constant 6 : index
    %c5_513 = arith.constant 5 : index
    %945 = memref.load %arg8[%c6_512, %c5_513] : memref<8x16xf32, #tpu.memory_space<smem>>
    %946 = vector.broadcast %945 : f32 to vector<8x256xf32>
    %947 = arith.mulf %385, %946 : vector<8x256xf32>
    %948 = arith.addf %944, %947 : vector<8x256xf32>
    %c7_514 = arith.constant 7 : index
    %c5_515 = arith.constant 5 : index
    %949 = memref.load %arg8[%c7_514, %c5_515] : memref<8x16xf32, #tpu.memory_space<smem>>
    %950 = vector.broadcast %949 : f32 to vector<8x256xf32>
    %951 = arith.mulf %421, %950 : vector<8x256xf32>
    %952 = arith.addf %948, %951 : vector<8x256xf32>
    %c5_516 = arith.constant 5 : index
    %953 = memref.load %arg9[%c5_516] : memref<16xf32, #tpu.memory_space<smem>>
    %954 = vector.broadcast %953 : f32 to vector<8x256xf32>
    %955 = arith.addf %952, %954 : vector<8x256xf32>
    %cst_517 = arith.constant 0.000000e+00 : f32
    %956 = vector.broadcast %cst_517 : f32 to vector<8x256xf32>
    %957 = arith.maximumf %955, %956 : vector<8x256xf32>
    %958 = arith.mulf %1, %957 : vector<8x256xf32>
    %cst_518 = arith.constant dense<0.000000e+00> : vector<256xf32>
    %959 = vector.multi_reduction <add>, %958, %cst_518 [0] : vector<8x256xf32> to vector<256xf32>
    %960 = vector.shape_cast %959 : vector<256xf32> to vector<1x256xf32>
    %961 = arith.truncf %960 : vector<1x256xf32> to vector<1x256xbf16>
    %c80 = arith.constant 80 : index
    %c0_519 = arith.constant 0 : index
    %962 = vector.load %arg13[%c80, %c0_519] : memref<256x256xbf16, #tpu.memory_space<vmem>>, vector<1x256xbf16>
    tpu.vector_store %arg13[%c80, %c0_519], %961 {strides = array<i32>} : memref<256x256xbf16, #tpu.memory_space<vmem>>, vector<1x256xbf16>,
    %963 = arith.mulf %3, %957 : vector<8x256xf32>
    %cst_520 = arith.constant dense<0.000000e+00> : vector<256xf32>
    %964 = vector.multi_reduction <add>, %963, %cst_520 [0] : vector<8x256xf32> to vector<256xf32>
    %965 = vector.shape_cast %964 : vector<256xf32> to vector<1x256xf32>
    %966 = arith.truncf %965 : vector<1x256xf32> to vector<1x256xbf16>
    %c81 = arith.constant 81 : index
    %c0_521 = arith.constant 0 : index
    %967 = vector.load %arg13[%c81, %c0_521] : memref<256x256xbf16, #tpu.memory_space<vmem>>, vector<1x256xbf16>
    tpu.vector_store %arg13[%c81, %c0_521], %966 {strides = array<i32>} : memref<256x256xbf16, #tpu.memory_space<vmem>>, vector<1x256xbf16>,
    %968 = arith.mulf %5, %957 : vector<8x256xf32>
    %cst_522 = arith.constant dense<0.000000e+00> : vector<256xf32>
    %969 = vector.multi_reduction <add>, %968, %cst_522 [0] : vector<8x256xf32> to vector<256xf32>
    %970 = vector.shape_cast %969 : vector<256xf32> to vector<1x256xf32>
    %971 = arith.truncf %970 : vector<1x256xf32> to vector<1x256xbf16>
    %c82 = arith.constant 82 : index
    %c0_523 = arith.constant 0 : index
    %972 = vector.load %arg13[%c82, %c0_523] : memref<256x256xbf16, #tpu.memory_space<vmem>>, vector<1x256xbf16>
    tpu.vector_store %arg13[%c82, %c0_523], %971 {strides = array<i32>} : memref<256x256xbf16, #tpu.memory_space<vmem>>, vector<1x256xbf16>,
    %973 = vector.extract_strided_slice %957 {offsets = [0, 0], sizes = [1, 256], strides = [1, 1]} : vector<8x256xf32> to vector<1x256xf32>
    %c0_524 = arith.constant 0 : index
    %c0_525 = arith.constant 0 : index
    %c0_526 = arith.constant 0 : index
    %c0_527 = arith.constant 0 : index
    %974 = vector.load %arg3[%c0_524, %c0_525, %c0_526, %c0_527] : memref<1x8x13x256xf32, #tpu.memory_space<vmem>>, vector<1x1x13x256xf32>
    %975 = vector.shape_cast %974 : vector<1x1x13x256xf32> to vector<13x256xf32>
    %976 = vector.broadcast %973 : vector<1x256xf32> to vector<13x256xf32>
    %977 = arith.mulf %976, %975 : vector<13x256xf32>
    %978 = vector.extract_strided_slice %957 {offsets = [1, 0], sizes = [1, 256], strides = [1, 1]} : vector<8x256xf32> to vector<1x256xf32>
    %c0_528 = arith.constant 0 : index
    %c1_529 = arith.constant 1 : index
    %c0_530 = arith.constant 0 : index
    %c0_531 = arith.constant 0 : index
    %979 = vector.load %arg3[%c0_528, %c1_529, %c0_530, %c0_531] : memref<1x8x13x256xf32, #tpu.memory_space<vmem>>, vector<1x1x13x256xf32>
    %980 = vector.shape_cast %979 : vector<1x1x13x256xf32> to vector<13x256xf32>
    %981 = vector.broadcast %978 : vector<1x256xf32> to vector<13x256xf32>
    %982 = arith.mulf %981, %980 : vector<13x256xf32>
    %983 = arith.addf %977, %982 : vector<13x256xf32>
    %984 = vector.extract_strided_slice %957 {offsets = [2, 0], sizes = [1, 256], strides = [1, 1]} : vector<8x256xf32> to vector<1x256xf32>
    %c0_532 = arith.constant 0 : index
    %c2_533 = arith.constant 2 : index
    %c0_534 = arith.constant 0 : index
    %c0_535 = arith.constant 0 : index
    %985 = vector.load %arg3[%c0_532, %c2_533, %c0_534, %c0_535] : memref<1x8x13x256xf32, #tpu.memory_space<vmem>>, vector<1x1x13x256xf32>
    %986 = vector.shape_cast %985 : vector<1x1x13x256xf32> to vector<13x256xf32>
    %987 = vector.broadcast %984 : vector<1x256xf32> to vector<13x256xf32>
    %988 = arith.mulf %987, %986 : vector<13x256xf32>
    %989 = arith.addf %983, %988 : vector<13x256xf32>
    %990 = vector.extract_strided_slice %957 {offsets = [3, 0], sizes = [1, 256], strides = [1, 1]} : vector<8x256xf32> to vector<1x256xf32>
    %c0_536 = arith.constant 0 : index
    %c3_537 = arith.constant 3 : index
    %c0_538 = arith.constant 0 : index
    %c0_539 = arith.constant 0 : index
    %991 = vector.load %arg3[%c0_536, %c3_537, %c0_538, %c0_539] : memref<1x8x13x256xf32, #tpu.memory_space<vmem>>, vector<1x1x13x256xf32>
    %992 = vector.shape_cast %991 : vector<1x1x13x256xf32> to vector<13x256xf32>
    %993 = vector.broadcast %990 : vector<1x256xf32> to vector<13x256xf32>
    %994 = arith.mulf %993, %992 : vector<13x256xf32>
    %995 = arith.addf %989, %994 : vector<13x256xf32>
    %996 = vector.extract_strided_slice %957 {offsets = [4, 0], sizes = [1, 256], strides = [1, 1]} : vector<8x256xf32> to vector<1x256xf32>
    %c0_540 = arith.constant 0 : index
    %c4_541 = arith.constant 4 : index
    %c0_542 = arith.constant 0 : index
    %c0_543 = arith.constant 0 : index
    %997 = vector.load %arg3[%c0_540, %c4_541, %c0_542, %c0_543] : memref<1x8x13x256xf32, #tpu.memory_space<vmem>>, vector<1x1x13x256xf32>
    %998 = vector.shape_cast %997 : vector<1x1x13x256xf32> to vector<13x256xf32>
    %999 = vector.broadcast %996 : vector<1x256xf32> to vector<13x256xf32>
    %1000 = arith.mulf %999, %998 : vector<13x256xf32>
    %1001 = arith.addf %995, %1000 : vector<13x256xf32>
    %1002 = vector.extract_strided_slice %957 {offsets = [5, 0], sizes = [1, 256], strides = [1, 1]} : vector<8x256xf32> to vector<1x256xf32>
    %c0_544 = arith.constant 0 : index
    %c5_545 = arith.constant 5 : index
    %c0_546 = arith.constant 0 : index
    %c0_547 = arith.constant 0 : index
    %1003 = vector.load %arg3[%c0_544, %c5_545, %c0_546, %c0_547] : memref<1x8x13x256xf32, #tpu.memory_space<vmem>>, vector<1x1x13x256xf32>
    %1004 = vector.shape_cast %1003 : vector<1x1x13x256xf32> to vector<13x256xf32>
    %1005 = vector.broadcast %1002 : vector<1x256xf32> to vector<13x256xf32>
    %1006 = arith.mulf %1005, %1004 : vector<13x256xf32>
    %1007 = arith.addf %1001, %1006 : vector<13x256xf32>
    %1008 = vector.extract_strided_slice %957 {offsets = [6, 0], sizes = [1, 256], strides = [1, 1]} : vector<8x256xf32> to vector<1x256xf32>
    %c0_548 = arith.constant 0 : index
    %c6_549 = arith.constant 6 : index
    %c0_550 = arith.constant 0 : index
    %c0_551 = arith.constant 0 : index
    %1009 = vector.load %arg3[%c0_548, %c6_549, %c0_550, %c0_551] : memref<1x8x13x256xf32, #tpu.memory_space<vmem>>, vector<1x1x13x256xf32>
    %1010 = vector.shape_cast %1009 : vector<1x1x13x256xf32> to vector<13x256xf32>
    %1011 = vector.broadcast %1008 : vector<1x256xf32> to vector<13x256xf32>
    %1012 = arith.mulf %1011, %1010 : vector<13x256xf32>
    %1013 = arith.addf %1007, %1012 : vector<13x256xf32>
    %1014 = vector.extract_strided_slice %957 {offsets = [7, 0], sizes = [1, 256], strides = [1, 1]} : vector<8x256xf32> to vector<1x256xf32>
    %c0_552 = arith.constant 0 : index
    %c7_553 = arith.constant 7 : index
    %c0_554 = arith.constant 0 : index
    %c0_555 = arith.constant 0 : index
    %1015 = vector.load %arg3[%c0_552, %c7_553, %c0_554, %c0_555] : memref<1x8x13x256xf32, #tpu.memory_space<vmem>>, vector<1x1x13x256xf32>
    %1016 = vector.shape_cast %1015 : vector<1x1x13x256xf32> to vector<13x256xf32>
    %1017 = vector.broadcast %1014 : vector<1x256xf32> to vector<13x256xf32>
    %1018 = arith.mulf %1017, %1016 : vector<13x256xf32>
    %1019 = arith.addf %1013, %1018 : vector<13x256xf32>
    %1020 = arith.truncf %1019 : vector<13x256xf32> to vector<13x256xbf16>
    %c83 = arith.constant 83 : index
    %c0_556 = arith.constant 0 : index
    %1021 = vector.load %arg13[%c83, %c0_556] : memref<256x256xbf16, #tpu.memory_space<vmem>>, vector<13x256xbf16>
    tpu.vector_store %arg13[%c83, %c0_556], %1020 {strides = array<i32>} : memref<256x256xbf16, #tpu.memory_space<vmem>>, vector<13x256xbf16>,
    %c0_557 = arith.constant 0 : index
    %c6_558 = arith.constant 6 : index
    %1022 = memref.load %arg8[%c0_557, %c6_558] : memref<8x16xf32, #tpu.memory_space<smem>>
    %1023 = vector.broadcast %1022 : f32 to vector<8x256xf32>
    %1024 = arith.mulf %169, %1023 : vector<8x256xf32>
    %c1_559 = arith.constant 1 : index
    %c6_560 = arith.constant 6 : index
    %1025 = memref.load %arg8[%c1_559, %c6_560] : memref<8x16xf32, #tpu.memory_space<smem>>
    %1026 = vector.broadcast %1025 : f32 to vector<8x256xf32>
    %1027 = arith.mulf %205, %1026 : vector<8x256xf32>
    %1028 = arith.addf %1024, %1027 : vector<8x256xf32>
    %c2_561 = arith.constant 2 : index
    %c6_562 = arith.constant 6 : index
    %1029 = memref.load %arg8[%c2_561, %c6_562] : memref<8x16xf32, #tpu.memory_space<smem>>
    %1030 = vector.broadcast %1029 : f32 to vector<8x256xf32>
    %1031 = arith.mulf %241, %1030 : vector<8x256xf32>
    %1032 = arith.addf %1028, %1031 : vector<8x256xf32>
    %c3_563 = arith.constant 3 : index
    %c6_564 = arith.constant 6 : index
    %1033 = memref.load %arg8[%c3_563, %c6_564] : memref<8x16xf32, #tpu.memory_space<smem>>
    %1034 = vector.broadcast %1033 : f32 to vector<8x256xf32>
    %1035 = arith.mulf %277, %1034 : vector<8x256xf32>
    %1036 = arith.addf %1032, %1035 : vector<8x256xf32>
    %c4_565 = arith.constant 4 : index
    %c6_566 = arith.constant 6 : index
    %1037 = memref.load %arg8[%c4_565, %c6_566] : memref<8x16xf32, #tpu.memory_space<smem>>
    %1038 = vector.broadcast %1037 : f32 to vector<8x256xf32>
    %1039 = arith.mulf %313, %1038 : vector<8x256xf32>
    %1040 = arith.addf %1036, %1039 : vector<8x256xf32>
    %c5_567 = arith.constant 5 : index
    %c6_568 = arith.constant 6 : index
    %1041 = memref.load %arg8[%c5_567, %c6_568] : memref<8x16xf32, #tpu.memory_space<smem>>
    %1042 = vector.broadcast %1041 : f32 to vector<8x256xf32>
    %1043 = arith.mulf %349, %1042 : vector<8x256xf32>
    %1044 = arith.addf %1040, %1043 : vector<8x256xf32>
    %c6_569 = arith.constant 6 : index
    %c6_570 = arith.constant 6 : index
    %1045 = memref.load %arg8[%c6_569, %c6_570] : memref<8x16xf32, #tpu.memory_space<smem>>
    %1046 = vector.broadcast %1045 : f32 to vector<8x256xf32>
    %1047 = arith.mulf %385, %1046 : vector<8x256xf32>
    %1048 = arith.addf %1044, %1047 : vector<8x256xf32>
    %c7_571 = arith.constant 7 : index
    %c6_572 = arith.constant 6 : index
    %1049 = memref.load %arg8[%c7_571, %c6_572] : memref<8x16xf32, #tpu.memory_space<smem>>
    %1050 = vector.broadcast %1049 : f32 to vector<8x256xf32>
    %1051 = arith.mulf %421, %1050 : vector<8x256xf32>
    %1052 = arith.addf %1048, %1051 : vector<8x256xf32>
    %c6_573 = arith.constant 6 : index
    %1053 = memref.load %arg9[%c6_573] : memref<16xf32, #tpu.memory_space<smem>>
    %1054 = vector.broadcast %1053 : f32 to vector<8x256xf32>
    %1055 = arith.addf %1052, %1054 : vector<8x256xf32>
    %cst_574 = arith.constant 0.000000e+00 : f32
    %1056 = vector.broadcast %cst_574 : f32 to vector<8x256xf32>
    %1057 = arith.maximumf %1055, %1056 : vector<8x256xf32>
    %1058 = arith.mulf %1, %1057 : vector<8x256xf32>
    %cst_575 = arith.constant dense<0.000000e+00> : vector<256xf32>
    %1059 = vector.multi_reduction <add>, %1058, %cst_575 [0] : vector<8x256xf32> to vector<256xf32>
    %1060 = vector.shape_cast %1059 : vector<256xf32> to vector<1x256xf32>
    %1061 = arith.truncf %1060 : vector<1x256xf32> to vector<1x256xbf16>
    %c96 = arith.constant 96 : index
    %c0_576 = arith.constant 0 : index
    %1062 = vector.load %arg13[%c96, %c0_576] : memref<256x256xbf16, #tpu.memory_space<vmem>>, vector<1x256xbf16>
    tpu.vector_store %arg13[%c96, %c0_576], %1061 {strides = array<i32>} : memref<256x256xbf16, #tpu.memory_space<vmem>>, vector<1x256xbf16>,
    %1063 = arith.mulf %3, %1057 : vector<8x256xf32>
    %cst_577 = arith.constant dense<0.000000e+00> : vector<256xf32>
    %1064 = vector.multi_reduction <add>, %1063, %cst_577 [0] : vector<8x256xf32> to vector<256xf32>
    %1065 = vector.shape_cast %1064 : vector<256xf32> to vector<1x256xf32>
    %1066 = arith.truncf %1065 : vector<1x256xf32> to vector<1x256xbf16>
    %c97 = arith.constant 97 : index
    %c0_578 = arith.constant 0 : index
    %1067 = vector.load %arg13[%c97, %c0_578] : memref<256x256xbf16, #tpu.memory_space<vmem>>, vector<1x256xbf16>
    tpu.vector_store %arg13[%c97, %c0_578], %1066 {strides = array<i32>} : memref<256x256xbf16, #tpu.memory_space<vmem>>, vector<1x256xbf16>,
    %1068 = arith.mulf %5, %1057 : vector<8x256xf32>
    %cst_579 = arith.constant dense<0.000000e+00> : vector<256xf32>
    %1069 = vector.multi_reduction <add>, %1068, %cst_579 [0] : vector<8x256xf32> to vector<256xf32>
    %1070 = vector.shape_cast %1069 : vector<256xf32> to vector<1x256xf32>
    %1071 = arith.truncf %1070 : vector<1x256xf32> to vector<1x256xbf16>
    %c98 = arith.constant 98 : index
    %c0_580 = arith.constant 0 : index
    %1072 = vector.load %arg13[%c98, %c0_580] : memref<256x256xbf16, #tpu.memory_space<vmem>>, vector<1x256xbf16>
    tpu.vector_store %arg13[%c98, %c0_580], %1071 {strides = array<i32>} : memref<256x256xbf16, #tpu.memory_space<vmem>>, vector<1x256xbf16>,
    %1073 = vector.extract_strided_slice %1057 {offsets = [0, 0], sizes = [1, 256], strides = [1, 1]} : vector<8x256xf32> to vector<1x256xf32>
    %c0_581 = arith.constant 0 : index
    %c0_582 = arith.constant 0 : index
    %c0_583 = arith.constant 0 : index
    %c0_584 = arith.constant 0 : index
    %1074 = vector.load %arg3[%c0_581, %c0_582, %c0_583, %c0_584] : memref<1x8x13x256xf32, #tpu.memory_space<vmem>>, vector<1x1x13x256xf32>
    %1075 = vector.shape_cast %1074 : vector<1x1x13x256xf32> to vector<13x256xf32>
    %1076 = vector.broadcast %1073 : vector<1x256xf32> to vector<13x256xf32>
    %1077 = arith.mulf %1076, %1075 : vector<13x256xf32>
    %1078 = vector.extract_strided_slice %1057 {offsets = [1, 0], sizes = [1, 256], strides = [1, 1]} : vector<8x256xf32> to vector<1x256xf32>
    %c0_585 = arith.constant 0 : index
    %c1_586 = arith.constant 1 : index
    %c0_587 = arith.constant 0 : index
    %c0_588 = arith.constant 0 : index
    %1079 = vector.load %arg3[%c0_585, %c1_586, %c0_587, %c0_588] : memref<1x8x13x256xf32, #tpu.memory_space<vmem>>, vector<1x1x13x256xf32>
    %1080 = vector.shape_cast %1079 : vector<1x1x13x256xf32> to vector<13x256xf32>
    %1081 = vector.broadcast %1078 : vector<1x256xf32> to vector<13x256xf32>
    %1082 = arith.mulf %1081, %1080 : vector<13x256xf32>
    %1083 = arith.addf %1077, %1082 : vector<13x256xf32>
    %1084 = vector.extract_strided_slice %1057 {offsets = [2, 0], sizes = [1, 256], strides = [1, 1]} : vector<8x256xf32> to vector<1x256xf32>
    %c0_589 = arith.constant 0 : index
    %c2_590 = arith.constant 2 : index
    %c0_591 = arith.constant 0 : index
    %c0_592 = arith.constant 0 : index
    %1085 = vector.load %arg3[%c0_589, %c2_590, %c0_591, %c0_592] : memref<1x8x13x256xf32, #tpu.memory_space<vmem>>, vector<1x1x13x256xf32>
    %1086 = vector.shape_cast %1085 : vector<1x1x13x256xf32> to vector<13x256xf32>
    %1087 = vector.broadcast %1084 : vector<1x256xf32> to vector<13x256xf32>
    %1088 = arith.mulf %1087, %1086 : vector<13x256xf32>
    %1089 = arith.addf %1083, %1088 : vector<13x256xf32>
    %1090 = vector.extract_strided_slice %1057 {offsets = [3, 0], sizes = [1, 256], strides = [1, 1]} : vector<8x256xf32> to vector<1x256xf32>
    %c0_593 = arith.constant 0 : index
    %c3_594 = arith.constant 3 : index
    %c0_595 = arith.constant 0 : index
    %c0_596 = arith.constant 0 : index
    %1091 = vector.load %arg3[%c0_593, %c3_594, %c0_595, %c0_596] : memref<1x8x13x256xf32, #tpu.memory_space<vmem>>, vector<1x1x13x256xf32>
    %1092 = vector.shape_cast %1091 : vector<1x1x13x256xf32> to vector<13x256xf32>
    %1093 = vector.broadcast %1090 : vector<1x256xf32> to vector<13x256xf32>
    %1094 = arith.mulf %1093, %1092 : vector<13x256xf32>
    %1095 = arith.addf %1089, %1094 : vector<13x256xf32>
    %1096 = vector.extract_strided_slice %1057 {offsets = [4, 0], sizes = [1, 256], strides = [1, 1]} : vector<8x256xf32> to vector<1x256xf32>
    %c0_597 = arith.constant 0 : index
    %c4_598 = arith.constant 4 : index
    %c0_599 = arith.constant 0 : index
    %c0_600 = arith.constant 0 : index
    %1097 = vector.load %arg3[%c0_597, %c4_598, %c0_599, %c0_600] : memref<1x8x13x256xf32, #tpu.memory_space<vmem>>, vector<1x1x13x256xf32>
    %1098 = vector.shape_cast %1097 : vector<1x1x13x256xf32> to vector<13x256xf32>
    %1099 = vector.broadcast %1096 : vector<1x256xf32> to vector<13x256xf32>
    %1100 = arith.mulf %1099, %1098 : vector<13x256xf32>
    %1101 = arith.addf %1095, %1100 : vector<13x256xf32>
    %1102 = vector.extract_strided_slice %1057 {offsets = [5, 0], sizes = [1, 256], strides = [1, 1]} : vector<8x256xf32> to vector<1x256xf32>
    %c0_601 = arith.constant 0 : index
    %c5_602 = arith.constant 5 : index
    %c0_603 = arith.constant 0 : index
    %c0_604 = arith.constant 0 : index
    %1103 = vector.load %arg3[%c0_601, %c5_602, %c0_603, %c0_604] : memref<1x8x13x256xf32, #tpu.memory_space<vmem>>, vector<1x1x13x256xf32>
    %1104 = vector.shape_cast %1103 : vector<1x1x13x256xf32> to vector<13x256xf32>
    %1105 = vector.broadcast %1102 : vector<1x256xf32> to vector<13x256xf32>
    %1106 = arith.mulf %1105, %1104 : vector<13x256xf32>
    %1107 = arith.addf %1101, %1106 : vector<13x256xf32>
    %1108 = vector.extract_strided_slice %1057 {offsets = [6, 0], sizes = [1, 256], strides = [1, 1]} : vector<8x256xf32> to vector<1x256xf32>
    %c0_605 = arith.constant 0 : index
    %c6_606 = arith.constant 6 : index
    %c0_607 = arith.constant 0 : index
    %c0_608 = arith.constant 0 : index
    %1109 = vector.load %arg3[%c0_605, %c6_606, %c0_607, %c0_608] : memref<1x8x13x256xf32, #tpu.memory_space<vmem>>, vector<1x1x13x256xf32>
    %1110 = vector.shape_cast %1109 : vector<1x1x13x256xf32> to vector<13x256xf32>
    %1111 = vector.broadcast %1108 : vector<1x256xf32> to vector<13x256xf32>
    %1112 = arith.mulf %1111, %1110 : vector<13x256xf32>
    %1113 = arith.addf %1107, %1112 : vector<13x256xf32>
    %1114 = vector.extract_strided_slice %1057 {offsets = [7, 0], sizes = [1, 256], strides = [1, 1]} : vector<8x256xf32> to vector<1x256xf32>
    %c0_609 = arith.constant 0 : index
    %c7_610 = arith.constant 7 : index
    %c0_611 = arith.constant 0 : index
    %c0_612 = arith.constant 0 : index
    %1115 = vector.load %arg3[%c0_609, %c7_610, %c0_611, %c0_612] : memref<1x8x13x256xf32, #tpu.memory_space<vmem>>, vector<1x1x13x256xf32>
    %1116 = vector.shape_cast %1115 : vector<1x1x13x256xf32> to vector<13x256xf32>
    %1117 = vector.broadcast %1114 : vector<1x256xf32> to vector<13x256xf32>
    %1118 = arith.mulf %1117, %1116 : vector<13x256xf32>
    %1119 = arith.addf %1113, %1118 : vector<13x256xf32>
    %1120 = arith.truncf %1119 : vector<13x256xf32> to vector<13x256xbf16>
    %c99 = arith.constant 99 : index
    %c0_613 = arith.constant 0 : index
    %1121 = vector.load %arg13[%c99, %c0_613] : memref<256x256xbf16, #tpu.memory_space<vmem>>, vector<13x256xbf16>
    tpu.vector_store %arg13[%c99, %c0_613], %1120 {strides = array<i32>} : memref<256x256xbf16, #tpu.memory_space<vmem>>, vector<13x256xbf16>,
    %c0_614 = arith.constant 0 : index
    %c7_615 = arith.constant 7 : index
    %1122 = memref.load %arg8[%c0_614, %c7_615] : memref<8x16xf32, #tpu.memory_space<smem>>
    %1123 = vector.broadcast %1122 : f32 to vector<8x256xf32>
    %1124 = arith.mulf %169, %1123 : vector<8x256xf32>
    %c1_616 = arith.constant 1 : index
    %c7_617 = arith.constant 7 : index
    %1125 = memref.load %arg8[%c1_616, %c7_617] : memref<8x16xf32, #tpu.memory_space<smem>>
    %1126 = vector.broadcast %1125 : f32 to vector<8x256xf32>
    %1127 = arith.mulf %205, %1126 : vector<8x256xf32>
    %1128 = arith.addf %1124, %1127 : vector<8x256xf32>
    %c2_618 = arith.constant 2 : index
    %c7_619 = arith.constant 7 : index
    %1129 = memref.load %arg8[%c2_618, %c7_619] : memref<8x16xf32, #tpu.memory_space<smem>>
    %1130 = vector.broadcast %1129 : f32 to vector<8x256xf32>
    %1131 = arith.mulf %241, %1130 : vector<8x256xf32>
    %1132 = arith.addf %1128, %1131 : vector<8x256xf32>
    %c3_620 = arith.constant 3 : index
    %c7_621 = arith.constant 7 : index
    %1133 = memref.load %arg8[%c3_620, %c7_621] : memref<8x16xf32, #tpu.memory_space<smem>>
    %1134 = vector.broadcast %1133 : f32 to vector<8x256xf32>
    %1135 = arith.mulf %277, %1134 : vector<8x256xf32>
    %1136 = arith.addf %1132, %1135 : vector<8x256xf32>
    %c4_622 = arith.constant 4 : index
    %c7_623 = arith.constant 7 : index
    %1137 = memref.load %arg8[%c4_622, %c7_623] : memref<8x16xf32, #tpu.memory_space<smem>>
    %1138 = vector.broadcast %1137 : f32 to vector<8x256xf32>
    %1139 = arith.mulf %313, %1138 : vector<8x256xf32>
    %1140 = arith.addf %1136, %1139 : vector<8x256xf32>
    %c5_624 = arith.constant 5 : index
    %c7_625 = arith.constant 7 : index
    %1141 = memref.load %arg8[%c5_624, %c7_625] : memref<8x16xf32, #tpu.memory_space<smem>>
    %1142 = vector.broadcast %1141 : f32 to vector<8x256xf32>
    %1143 = arith.mulf %349, %1142 : vector<8x256xf32>
    %1144 = arith.addf %1140, %1143 : vector<8x256xf32>
    %c6_626 = arith.constant 6 : index
    %c7_627 = arith.constant 7 : index
    %1145 = memref.load %arg8[%c6_626, %c7_627] : memref<8x16xf32, #tpu.memory_space<smem>>
    %1146 = vector.broadcast %1145 : f32 to vector<8x256xf32>
    %1147 = arith.mulf %385, %1146 : vector<8x256xf32>
    %1148 = arith.addf %1144, %1147 : vector<8x256xf32>
    %c7_628 = arith.constant 7 : index
    %c7_629 = arith.constant 7 : index
    %1149 = memref.load %arg8[%c7_628, %c7_629] : memref<8x16xf32, #tpu.memory_space<smem>>
    %1150 = vector.broadcast %1149 : f32 to vector<8x256xf32>
    %1151 = arith.mulf %421, %1150 : vector<8x256xf32>
    %1152 = arith.addf %1148, %1151 : vector<8x256xf32>
    %c7_630 = arith.constant 7 : index
    %1153 = memref.load %arg9[%c7_630] : memref<16xf32, #tpu.memory_space<smem>>
    %1154 = vector.broadcast %1153 : f32 to vector<8x256xf32>
    %1155 = arith.addf %1152, %1154 : vector<8x256xf32>
    %cst_631 = arith.constant 0.000000e+00 : f32
    %1156 = vector.broadcast %cst_631 : f32 to vector<8x256xf32>
    %1157 = arith.maximumf %1155, %1156 : vector<8x256xf32>
    %1158 = arith.mulf %1, %1157 : vector<8x256xf32>
    %cst_632 = arith.constant dense<0.000000e+00> : vector<256xf32>
    %1159 = vector.multi_reduction <add>, %1158, %cst_632 [0] : vector<8x256xf32> to vector<256xf32>
    %1160 = vector.shape_cast %1159 : vector<256xf32> to vector<1x256xf32>
    %1161 = arith.truncf %1160 : vector<1x256xf32> to vector<1x256xbf16>
    %c112 = arith.constant 112 : index
    %c0_633 = arith.constant 0 : index
    %1162 = vector.load %arg13[%c112, %c0_633] : memref<256x256xbf16, #tpu.memory_space<vmem>>, vector<1x256xbf16>
    tpu.vector_store %arg13[%c112, %c0_633], %1161 {strides = array<i32>} : memref<256x256xbf16, #tpu.memory_space<vmem>>, vector<1x256xbf16>,
    %1163 = arith.mulf %3, %1157 : vector<8x256xf32>
    %cst_634 = arith.constant dense<0.000000e+00> : vector<256xf32>
    %1164 = vector.multi_reduction <add>, %1163, %cst_634 [0] : vector<8x256xf32> to vector<256xf32>
    %1165 = vector.shape_cast %1164 : vector<256xf32> to vector<1x256xf32>
    %1166 = arith.truncf %1165 : vector<1x256xf32> to vector<1x256xbf16>
    %c113 = arith.constant 113 : index
    %c0_635 = arith.constant 0 : index
    %1167 = vector.load %arg13[%c113, %c0_635] : memref<256x256xbf16, #tpu.memory_space<vmem>>, vector<1x256xbf16>
    tpu.vector_store %arg13[%c113, %c0_635], %1166 {strides = array<i32>} : memref<256x256xbf16, #tpu.memory_space<vmem>>, vector<1x256xbf16>,
    %1168 = arith.mulf %5, %1157 : vector<8x256xf32>
    %cst_636 = arith.constant dense<0.000000e+00> : vector<256xf32>
    %1169 = vector.multi_reduction <add>, %1168, %cst_636 [0] : vector<8x256xf32> to vector<256xf32>
    %1170 = vector.shape_cast %1169 : vector<256xf32> to vector<1x256xf32>
    %1171 = arith.truncf %1170 : vector<1x256xf32> to vector<1x256xbf16>
    %c114 = arith.constant 114 : index
    %c0_637 = arith.constant 0 : index
    %1172 = vector.load %arg13[%c114, %c0_637] : memref<256x256xbf16, #tpu.memory_space<vmem>>, vector<1x256xbf16>
    tpu.vector_store %arg13[%c114, %c0_637], %1171 {strides = array<i32>} : memref<256x256xbf16, #tpu.memory_space<vmem>>, vector<1x256xbf16>,
    %1173 = vector.extract_strided_slice %1157 {offsets = [0, 0], sizes = [1, 256], strides = [1, 1]} : vector<8x256xf32> to vector<1x256xf32>
    %c0_638 = arith.constant 0 : index
    %c0_639 = arith.constant 0 : index
    %c0_640 = arith.constant 0 : index
    %c0_641 = arith.constant 0 : index
    %1174 = vector.load %arg3[%c0_638, %c0_639, %c0_640, %c0_641] : memref<1x8x13x256xf32, #tpu.memory_space<vmem>>, vector<1x1x13x256xf32>
    %1175 = vector.shape_cast %1174 : vector<1x1x13x256xf32> to vector<13x256xf32>
    %1176 = vector.broadcast %1173 : vector<1x256xf32> to vector<13x256xf32>
    %1177 = arith.mulf %1176, %1175 : vector<13x256xf32>
    %1178 = vector.extract_strided_slice %1157 {offsets = [1, 0], sizes = [1, 256], strides = [1, 1]} : vector<8x256xf32> to vector<1x256xf32>
    %c0_642 = arith.constant 0 : index
    %c1_643 = arith.constant 1 : index
    %c0_644 = arith.constant 0 : index
    %c0_645 = arith.constant 0 : index
    %1179 = vector.load %arg3[%c0_642, %c1_643, %c0_644, %c0_645] : memref<1x8x13x256xf32, #tpu.memory_space<vmem>>, vector<1x1x13x256xf32>
    %1180 = vector.shape_cast %1179 : vector<1x1x13x256xf32> to vector<13x256xf32>
    %1181 = vector.broadcast %1178 : vector<1x256xf32> to vector<13x256xf32>
    %1182 = arith.mulf %1181, %1180 : vector<13x256xf32>
    %1183 = arith.addf %1177, %1182 : vector<13x256xf32>
    %1184 = vector.extract_strided_slice %1157 {offsets = [2, 0], sizes = [1, 256], strides = [1, 1]} : vector<8x256xf32> to vector<1x256xf32>
    %c0_646 = arith.constant 0 : index
    %c2_647 = arith.constant 2 : index
    %c0_648 = arith.constant 0 : index
    %c0_649 = arith.constant 0 : index
    %1185 = vector.load %arg3[%c0_646, %c2_647, %c0_648, %c0_649] : memref<1x8x13x256xf32, #tpu.memory_space<vmem>>, vector<1x1x13x256xf32>
    %1186 = vector.shape_cast %1185 : vector<1x1x13x256xf32> to vector<13x256xf32>
    %1187 = vector.broadcast %1184 : vector<1x256xf32> to vector<13x256xf32>
    %1188 = arith.mulf %1187, %1186 : vector<13x256xf32>
    %1189 = arith.addf %1183, %1188 : vector<13x256xf32>
    %1190 = vector.extract_strided_slice %1157 {offsets = [3, 0], sizes = [1, 256], strides = [1, 1]} : vector<8x256xf32> to vector<1x256xf32>
    %c0_650 = arith.constant 0 : index
    %c3_651 = arith.constant 3 : index
    %c0_652 = arith.constant 0 : index
    %c0_653 = arith.constant 0 : index
    %1191 = vector.load %arg3[%c0_650, %c3_651, %c0_652, %c0_653] : memref<1x8x13x256xf32, #tpu.memory_space<vmem>>, vector<1x1x13x256xf32>
    %1192 = vector.shape_cast %1191 : vector<1x1x13x256xf32> to vector<13x256xf32>
    %1193 = vector.broadcast %1190 : vector<1x256xf32> to vector<13x256xf32>
    %1194 = arith.mulf %1193, %1192 : vector<13x256xf32>
    %1195 = arith.addf %1189, %1194 : vector<13x256xf32>
    %1196 = vector.extract_strided_slice %1157 {offsets = [4, 0], sizes = [1, 256], strides = [1, 1]} : vector<8x256xf32> to vector<1x256xf32>
    %c0_654 = arith.constant 0 : index
    %c4_655 = arith.constant 4 : index
    %c0_656 = arith.constant 0 : index
    %c0_657 = arith.constant 0 : index
    %1197 = vector.load %arg3[%c0_654, %c4_655, %c0_656, %c0_657] : memref<1x8x13x256xf32, #tpu.memory_space<vmem>>, vector<1x1x13x256xf32>
    %1198 = vector.shape_cast %1197 : vector<1x1x13x256xf32> to vector<13x256xf32>
    %1199 = vector.broadcast %1196 : vector<1x256xf32> to vector<13x256xf32>
    %1200 = arith.mulf %1199, %1198 : vector<13x256xf32>
    %1201 = arith.addf %1195, %1200 : vector<13x256xf32>
    %1202 = vector.extract_strided_slice %1157 {offsets = [5, 0], sizes = [1, 256], strides = [1, 1]} : vector<8x256xf32> to vector<1x256xf32>
    %c0_658 = arith.constant 0 : index
    %c5_659 = arith.constant 5 : index
    %c0_660 = arith.constant 0 : index
    %c0_661 = arith.constant 0 : index
    %1203 = vector.load %arg3[%c0_658, %c5_659, %c0_660, %c0_661] : memref<1x8x13x256xf32, #tpu.memory_space<vmem>>, vector<1x1x13x256xf32>
    %1204 = vector.shape_cast %1203 : vector<1x1x13x256xf32> to vector<13x256xf32>
    %1205 = vector.broadcast %1202 : vector<1x256xf32> to vector<13x256xf32>
    %1206 = arith.mulf %1205, %1204 : vector<13x256xf32>
    %1207 = arith.addf %1201, %1206 : vector<13x256xf32>
    %1208 = vector.extract_strided_slice %1157 {offsets = [6, 0], sizes = [1, 256], strides = [1, 1]} : vector<8x256xf32> to vector<1x256xf32>
    %c0_662 = arith.constant 0 : index
    %c6_663 = arith.constant 6 : index
    %c0_664 = arith.constant 0 : index
    %c0_665 = arith.constant 0 : index
    %1209 = vector.load %arg3[%c0_662, %c6_663, %c0_664, %c0_665] : memref<1x8x13x256xf32, #tpu.memory_space<vmem>>, vector<1x1x13x256xf32>
    %1210 = vector.shape_cast %1209 : vector<1x1x13x256xf32> to vector<13x256xf32>
    %1211 = vector.broadcast %1208 : vector<1x256xf32> to vector<13x256xf32>
    %1212 = arith.mulf %1211, %1210 : vector<13x256xf32>
    %1213 = arith.addf %1207, %1212 : vector<13x256xf32>
    %1214 = vector.extract_strided_slice %1157 {offsets = [7, 0], sizes = [1, 256], strides = [1, 1]} : vector<8x256xf32> to vector<1x256xf32>
    %c0_666 = arith.constant 0 : index
    %c7_667 = arith.constant 7 : index
    %c0_668 = arith.constant 0 : index
    %c0_669 = arith.constant 0 : index
    %1215 = vector.load %arg3[%c0_666, %c7_667, %c0_668, %c0_669] : memref<1x8x13x256xf32, #tpu.memory_space<vmem>>, vector<1x1x13x256xf32>
    %1216 = vector.shape_cast %1215 : vector<1x1x13x256xf32> to vector<13x256xf32>
    %1217 = vector.broadcast %1214 : vector<1x256xf32> to vector<13x256xf32>
    %1218 = arith.mulf %1217, %1216 : vector<13x256xf32>
    %1219 = arith.addf %1213, %1218 : vector<13x256xf32>
    %1220 = arith.truncf %1219 : vector<13x256xf32> to vector<13x256xbf16>
    %c115 = arith.constant 115 : index
    %c0_670 = arith.constant 0 : index
    %1221 = vector.load %arg13[%c115, %c0_670] : memref<256x256xbf16, #tpu.memory_space<vmem>>, vector<13x256xbf16>
    tpu.vector_store %arg13[%c115, %c0_670], %1220 {strides = array<i32>} : memref<256x256xbf16, #tpu.memory_space<vmem>>, vector<13x256xbf16>,
    %c0_671 = arith.constant 0 : index
    %c8 = arith.constant 8 : index
    %1222 = memref.load %arg8[%c0_671, %c8] : memref<8x16xf32, #tpu.memory_space<smem>>
    %1223 = vector.broadcast %1222 : f32 to vector<8x256xf32>
    %1224 = arith.mulf %169, %1223 : vector<8x256xf32>
    %c1_672 = arith.constant 1 : index
    %c8_673 = arith.constant 8 : index
    %1225 = memref.load %arg8[%c1_672, %c8_673] : memref<8x16xf32, #tpu.memory_space<smem>>
    %1226 = vector.broadcast %1225 : f32 to vector<8x256xf32>
    %1227 = arith.mulf %205, %1226 : vector<8x256xf32>
    %1228 = arith.addf %1224, %1227 : vector<8x256xf32>
    %c2_674 = arith.constant 2 : index
    %c8_675 = arith.constant 8 : index
    %1229 = memref.load %arg8[%c2_674, %c8_675] : memref<8x16xf32, #tpu.memory_space<smem>>
    %1230 = vector.broadcast %1229 : f32 to vector<8x256xf32>
    %1231 = arith.mulf %241, %1230 : vector<8x256xf32>
    %1232 = arith.addf %1228, %1231 : vector<8x256xf32>
    %c3_676 = arith.constant 3 : index
    %c8_677 = arith.constant 8 : index
    %1233 = memref.load %arg8[%c3_676, %c8_677] : memref<8x16xf32, #tpu.memory_space<smem>>
    %1234 = vector.broadcast %1233 : f32 to vector<8x256xf32>
    %1235 = arith.mulf %277, %1234 : vector<8x256xf32>
    %1236 = arith.addf %1232, %1235 : vector<8x256xf32>
    %c4_678 = arith.constant 4 : index
    %c8_679 = arith.constant 8 : index
    %1237 = memref.load %arg8[%c4_678, %c8_679] : memref<8x16xf32, #tpu.memory_space<smem>>
    %1238 = vector.broadcast %1237 : f32 to vector<8x256xf32>
    %1239 = arith.mulf %313, %1238 : vector<8x256xf32>
    %1240 = arith.addf %1236, %1239 : vector<8x256xf32>
    %c5_680 = arith.constant 5 : index
    %c8_681 = arith.constant 8 : index
    %1241 = memref.load %arg8[%c5_680, %c8_681] : memref<8x16xf32, #tpu.memory_space<smem>>
    %1242 = vector.broadcast %1241 : f32 to vector<8x256xf32>
    %1243 = arith.mulf %349, %1242 : vector<8x256xf32>
    %1244 = arith.addf %1240, %1243 : vector<8x256xf32>
    %c6_682 = arith.constant 6 : index
    %c8_683 = arith.constant 8 : index
    %1245 = memref.load %arg8[%c6_682, %c8_683] : memref<8x16xf32, #tpu.memory_space<smem>>
    %1246 = vector.broadcast %1245 : f32 to vector<8x256xf32>
    %1247 = arith.mulf %385, %1246 : vector<8x256xf32>
    %1248 = arith.addf %1244, %1247 : vector<8x256xf32>
    %c7_684 = arith.constant 7 : index
    %c8_685 = arith.constant 8 : index
    %1249 = memref.load %arg8[%c7_684, %c8_685] : memref<8x16xf32, #tpu.memory_space<smem>>
    %1250 = vector.broadcast %1249 : f32 to vector<8x256xf32>
    %1251 = arith.mulf %421, %1250 : vector<8x256xf32>
    %1252 = arith.addf %1248, %1251 : vector<8x256xf32>
    %c8_686 = arith.constant 8 : index
    %1253 = memref.load %arg9[%c8_686] : memref<16xf32, #tpu.memory_space<smem>>
    %1254 = vector.broadcast %1253 : f32 to vector<8x256xf32>
    %1255 = arith.addf %1252, %1254 : vector<8x256xf32>
    %cst_687 = arith.constant 0.000000e+00 : f32
    %1256 = vector.broadcast %cst_687 : f32 to vector<8x256xf32>
    %1257 = arith.maximumf %1255, %1256 : vector<8x256xf32>
    %1258 = arith.mulf %1, %1257 : vector<8x256xf32>
    %cst_688 = arith.constant dense<0.000000e+00> : vector<256xf32>
    %1259 = vector.multi_reduction <add>, %1258, %cst_688 [0] : vector<8x256xf32> to vector<256xf32>
    %1260 = vector.shape_cast %1259 : vector<256xf32> to vector<1x256xf32>
    %1261 = arith.truncf %1260 : vector<1x256xf32> to vector<1x256xbf16>
    %c128 = arith.constant 128 : index
    %c0_689 = arith.constant 0 : index
    %1262 = vector.load %arg13[%c128, %c0_689] : memref<256x256xbf16, #tpu.memory_space<vmem>>, vector<1x256xbf16>
    tpu.vector_store %arg13[%c128, %c0_689], %1261 {strides = array<i32>} : memref<256x256xbf16, #tpu.memory_space<vmem>>, vector<1x256xbf16>,
    %1263 = arith.mulf %3, %1257 : vector<8x256xf32>
    %cst_690 = arith.constant dense<0.000000e+00> : vector<256xf32>
    %1264 = vector.multi_reduction <add>, %1263, %cst_690 [0] : vector<8x256xf32> to vector<256xf32>
    %1265 = vector.shape_cast %1264 : vector<256xf32> to vector<1x256xf32>
    %1266 = arith.truncf %1265 : vector<1x256xf32> to vector<1x256xbf16>
    %c129 = arith.constant 129 : index
    %c0_691 = arith.constant 0 : index
    %1267 = vector.load %arg13[%c129, %c0_691] : memref<256x256xbf16, #tpu.memory_space<vmem>>, vector<1x256xbf16>
    tpu.vector_store %arg13[%c129, %c0_691], %1266 {strides = array<i32>} : memref<256x256xbf16, #tpu.memory_space<vmem>>, vector<1x256xbf16>,
    %1268 = arith.mulf %5, %1257 : vector<8x256xf32>
    %cst_692 = arith.constant dense<0.000000e+00> : vector<256xf32>
    %1269 = vector.multi_reduction <add>, %1268, %cst_692 [0] : vector<8x256xf32> to vector<256xf32>
    %1270 = vector.shape_cast %1269 : vector<256xf32> to vector<1x256xf32>
    %1271 = arith.truncf %1270 : vector<1x256xf32> to vector<1x256xbf16>
    %c130 = arith.constant 130 : index
    %c0_693 = arith.constant 0 : index
    %1272 = vector.load %arg13[%c130, %c0_693] : memref<256x256xbf16, #tpu.memory_space<vmem>>, vector<1x256xbf16>
    tpu.vector_store %arg13[%c130, %c0_693], %1271 {strides = array<i32>} : memref<256x256xbf16, #tpu.memory_space<vmem>>, vector<1x256xbf16>,
    %1273 = vector.extract_strided_slice %1257 {offsets = [0, 0], sizes = [1, 256], strides = [1, 1]} : vector<8x256xf32> to vector<1x256xf32>
    %c0_694 = arith.constant 0 : index
    %c0_695 = arith.constant 0 : index
    %c0_696 = arith.constant 0 : index
    %c0_697 = arith.constant 0 : index
    %1274 = vector.load %arg3[%c0_694, %c0_695, %c0_696, %c0_697] : memref<1x8x13x256xf32, #tpu.memory_space<vmem>>, vector<1x1x13x256xf32>
    %1275 = vector.shape_cast %1274 : vector<1x1x13x256xf32> to vector<13x256xf32>
    %1276 = vector.broadcast %1273 : vector<1x256xf32> to vector<13x256xf32>
    %1277 = arith.mulf %1276, %1275 : vector<13x256xf32>
    %1278 = vector.extract_strided_slice %1257 {offsets = [1, 0], sizes = [1, 256], strides = [1, 1]} : vector<8x256xf32> to vector<1x256xf32>
    %c0_698 = arith.constant 0 : index
    %c1_699 = arith.constant 1 : index
    %c0_700 = arith.constant 0 : index
    %c0_701 = arith.constant 0 : index
    %1279 = vector.load %arg3[%c0_698, %c1_699, %c0_700, %c0_701] : memref<1x8x13x256xf32, #tpu.memory_space<vmem>>, vector<1x1x13x256xf32>
    %1280 = vector.shape_cast %1279 : vector<1x1x13x256xf32> to vector<13x256xf32>
    %1281 = vector.broadcast %1278 : vector<1x256xf32> to vector<13x256xf32>
    %1282 = arith.mulf %1281, %1280 : vector<13x256xf32>
    %1283 = arith.addf %1277, %1282 : vector<13x256xf32>
    %1284 = vector.extract_strided_slice %1257 {offsets = [2, 0], sizes = [1, 256], strides = [1, 1]} : vector<8x256xf32> to vector<1x256xf32>
    %c0_702 = arith.constant 0 : index
    %c2_703 = arith.constant 2 : index
    %c0_704 = arith.constant 0 : index
    %c0_705 = arith.constant 0 : index
    %1285 = vector.load %arg3[%c0_702, %c2_703, %c0_704, %c0_705] : memref<1x8x13x256xf32, #tpu.memory_space<vmem>>, vector<1x1x13x256xf32>
    %1286 = vector.shape_cast %1285 : vector<1x1x13x256xf32> to vector<13x256xf32>
    %1287 = vector.broadcast %1284 : vector<1x256xf32> to vector<13x256xf32>
    %1288 = arith.mulf %1287, %1286 : vector<13x256xf32>
    %1289 = arith.addf %1283, %1288 : vector<13x256xf32>
    %1290 = vector.extract_strided_slice %1257 {offsets = [3, 0], sizes = [1, 256], strides = [1, 1]} : vector<8x256xf32> to vector<1x256xf32>
    %c0_706 = arith.constant 0 : index
    %c3_707 = arith.constant 3 : index
    %c0_708 = arith.constant 0 : index
    %c0_709 = arith.constant 0 : index
    %1291 = vector.load %arg3[%c0_706, %c3_707, %c0_708, %c0_709] : memref<1x8x13x256xf32, #tpu.memory_space<vmem>>, vector<1x1x13x256xf32>
    %1292 = vector.shape_cast %1291 : vector<1x1x13x256xf32> to vector<13x256xf32>
    %1293 = vector.broadcast %1290 : vector<1x256xf32> to vector<13x256xf32>
    %1294 = arith.mulf %1293, %1292 : vector<13x256xf32>
    %1295 = arith.addf %1289, %1294 : vector<13x256xf32>
    %1296 = vector.extract_strided_slice %1257 {offsets = [4, 0], sizes = [1, 256], strides = [1, 1]} : vector<8x256xf32> to vector<1x256xf32>
    %c0_710 = arith.constant 0 : index
    %c4_711 = arith.constant 4 : index
    %c0_712 = arith.constant 0 : index
    %c0_713 = arith.constant 0 : index
    %1297 = vector.load %arg3[%c0_710, %c4_711, %c0_712, %c0_713] : memref<1x8x13x256xf32, #tpu.memory_space<vmem>>, vector<1x1x13x256xf32>
    %1298 = vector.shape_cast %1297 : vector<1x1x13x256xf32> to vector<13x256xf32>
    %1299 = vector.broadcast %1296 : vector<1x256xf32> to vector<13x256xf32>
    %1300 = arith.mulf %1299, %1298 : vector<13x256xf32>
    %1301 = arith.addf %1295, %1300 : vector<13x256xf32>
    %1302 = vector.extract_strided_slice %1257 {offsets = [5, 0], sizes = [1, 256], strides = [1, 1]} : vector<8x256xf32> to vector<1x256xf32>
    %c0_714 = arith.constant 0 : index
    %c5_715 = arith.constant 5 : index
    %c0_716 = arith.constant 0 : index
    %c0_717 = arith.constant 0 : index
    %1303 = vector.load %arg3[%c0_714, %c5_715, %c0_716, %c0_717] : memref<1x8x13x256xf32, #tpu.memory_space<vmem>>, vector<1x1x13x256xf32>
    %1304 = vector.shape_cast %1303 : vector<1x1x13x256xf32> to vector<13x256xf32>
    %1305 = vector.broadcast %1302 : vector<1x256xf32> to vector<13x256xf32>
    %1306 = arith.mulf %1305, %1304 : vector<13x256xf32>
    %1307 = arith.addf %1301, %1306 : vector<13x256xf32>
    %1308 = vector.extract_strided_slice %1257 {offsets = [6, 0], sizes = [1, 256], strides = [1, 1]} : vector<8x256xf32> to vector<1x256xf32>
    %c0_718 = arith.constant 0 : index
    %c6_719 = arith.constant 6 : index
    %c0_720 = arith.constant 0 : index
    %c0_721 = arith.constant 0 : index
    %1309 = vector.load %arg3[%c0_718, %c6_719, %c0_720, %c0_721] : memref<1x8x13x256xf32, #tpu.memory_space<vmem>>, vector<1x1x13x256xf32>
    %1310 = vector.shape_cast %1309 : vector<1x1x13x256xf32> to vector<13x256xf32>
    %1311 = vector.broadcast %1308 : vector<1x256xf32> to vector<13x256xf32>
    %1312 = arith.mulf %1311, %1310 : vector<13x256xf32>
    %1313 = arith.addf %1307, %1312 : vector<13x256xf32>
    %1314 = vector.extract_strided_slice %1257 {offsets = [7, 0], sizes = [1, 256], strides = [1, 1]} : vector<8x256xf32> to vector<1x256xf32>
    %c0_722 = arith.constant 0 : index
    %c7_723 = arith.constant 7 : index
    %c0_724 = arith.constant 0 : index
    %c0_725 = arith.constant 0 : index
    %1315 = vector.load %arg3[%c0_722, %c7_723, %c0_724, %c0_725] : memref<1x8x13x256xf32, #tpu.memory_space<vmem>>, vector<1x1x13x256xf32>
    %1316 = vector.shape_cast %1315 : vector<1x1x13x256xf32> to vector<13x256xf32>
    %1317 = vector.broadcast %1314 : vector<1x256xf32> to vector<13x256xf32>
    %1318 = arith.mulf %1317, %1316 : vector<13x256xf32>
    %1319 = arith.addf %1313, %1318 : vector<13x256xf32>
    %1320 = arith.truncf %1319 : vector<13x256xf32> to vector<13x256xbf16>
    %c131 = arith.constant 131 : index
    %c0_726 = arith.constant 0 : index
    %1321 = vector.load %arg13[%c131, %c0_726] : memref<256x256xbf16, #tpu.memory_space<vmem>>, vector<13x256xbf16>
    tpu.vector_store %arg13[%c131, %c0_726], %1320 {strides = array<i32>} : memref<256x256xbf16, #tpu.memory_space<vmem>>, vector<13x256xbf16>,
    %c0_727 = arith.constant 0 : index
    %c9 = arith.constant 9 : index
    %1322 = memref.load %arg8[%c0_727, %c9] : memref<8x16xf32, #tpu.memory_space<smem>>
    %1323 = vector.broadcast %1322 : f32 to vector<8x256xf32>
    %1324 = arith.mulf %169, %1323 : vector<8x256xf32>
    %c1_728 = arith.constant 1 : index
    %c9_729 = arith.constant 9 : index
    %1325 = memref.load %arg8[%c1_728, %c9_729] : memref<8x16xf32, #tpu.memory_space<smem>>
    %1326 = vector.broadcast %1325 : f32 to vector<8x256xf32>
    %1327 = arith.mulf %205, %1326 : vector<8x256xf32>
    %1328 = arith.addf %1324, %1327 : vector<8x256xf32>
    %c2_730 = arith.constant 2 : index
    %c9_731 = arith.constant 9 : index
    %1329 = memref.load %arg8[%c2_730, %c9_731] : memref<8x16xf32, #tpu.memory_space<smem>>
    %1330 = vector.broadcast %1329 : f32 to vector<8x256xf32>
    %1331 = arith.mulf %241, %1330 : vector<8x256xf32>
    %1332 = arith.addf %1328, %1331 : vector<8x256xf32>
    %c3_732 = arith.constant 3 : index
    %c9_733 = arith.constant 9 : index
    %1333 = memref.load %arg8[%c3_732, %c9_733] : memref<8x16xf32, #tpu.memory_space<smem>>
    %1334 = vector.broadcast %1333 : f32 to vector<8x256xf32>
    %1335 = arith.mulf %277, %1334 : vector<8x256xf32>
    %1336 = arith.addf %1332, %1335 : vector<8x256xf32>
    %c4_734 = arith.constant 4 : index
    %c9_735 = arith.constant 9 : index
    %1337 = memref.load %arg8[%c4_734, %c9_735] : memref<8x16xf32, #tpu.memory_space<smem>>
    %1338 = vector.broadcast %1337 : f32 to vector<8x256xf32>
    %1339 = arith.mulf %313, %1338 : vector<8x256xf32>
    %1340 = arith.addf %1336, %1339 : vector<8x256xf32>
    %c5_736 = arith.constant 5 : index
    %c9_737 = arith.constant 9 : index
    %1341 = memref.load %arg8[%c5_736, %c9_737] : memref<8x16xf32, #tpu.memory_space<smem>>
    %1342 = vector.broadcast %1341 : f32 to vector<8x256xf32>
    %1343 = arith.mulf %349, %1342 : vector<8x256xf32>
    %1344 = arith.addf %1340, %1343 : vector<8x256xf32>
    %c6_738 = arith.constant 6 : index
    %c9_739 = arith.constant 9 : index
    %1345 = memref.load %arg8[%c6_738, %c9_739] : memref<8x16xf32, #tpu.memory_space<smem>>
    %1346 = vector.broadcast %1345 : f32 to vector<8x256xf32>
    %1347 = arith.mulf %385, %1346 : vector<8x256xf32>
    %1348 = arith.addf %1344, %1347 : vector<8x256xf32>
    %c7_740 = arith.constant 7 : index
    %c9_741 = arith.constant 9 : index
    %1349 = memref.load %arg8[%c7_740, %c9_741] : memref<8x16xf32, #tpu.memory_space<smem>>
    %1350 = vector.broadcast %1349 : f32 to vector<8x256xf32>
    %1351 = arith.mulf %421, %1350 : vector<8x256xf32>
    %1352 = arith.addf %1348, %1351 : vector<8x256xf32>
    %c9_742 = arith.constant 9 : index
    %1353 = memref.load %arg9[%c9_742] : memref<16xf32, #tpu.memory_space<smem>>
    %1354 = vector.broadcast %1353 : f32 to vector<8x256xf32>
    %1355 = arith.addf %1352, %1354 : vector<8x256xf32>
    %cst_743 = arith.constant 0.000000e+00 : f32
    %1356 = vector.broadcast %cst_743 : f32 to vector<8x256xf32>
    %1357 = arith.maximumf %1355, %1356 : vector<8x256xf32>
    %1358 = arith.mulf %1, %1357 : vector<8x256xf32>
    %cst_744 = arith.constant dense<0.000000e+00> : vector<256xf32>
    %1359 = vector.multi_reduction <add>, %1358, %cst_744 [0] : vector<8x256xf32> to vector<256xf32>
    %1360 = vector.shape_cast %1359 : vector<256xf32> to vector<1x256xf32>
    %1361 = arith.truncf %1360 : vector<1x256xf32> to vector<1x256xbf16>
    %c144 = arith.constant 144 : index
    %c0_745 = arith.constant 0 : index
    %1362 = vector.load %arg13[%c144, %c0_745] : memref<256x256xbf16, #tpu.memory_space<vmem>>, vector<1x256xbf16>
    tpu.vector_store %arg13[%c144, %c0_745], %1361 {strides = array<i32>} : memref<256x256xbf16, #tpu.memory_space<vmem>>, vector<1x256xbf16>,
    %1363 = arith.mulf %3, %1357 : vector<8x256xf32>
    %cst_746 = arith.constant dense<0.000000e+00> : vector<256xf32>
    %1364 = vector.multi_reduction <add>, %1363, %cst_746 [0] : vector<8x256xf32> to vector<256xf32>
    %1365 = vector.shape_cast %1364 : vector<256xf32> to vector<1x256xf32>
    %1366 = arith.truncf %1365 : vector<1x256xf32> to vector<1x256xbf16>
    %c145 = arith.constant 145 : index
    %c0_747 = arith.constant 0 : index
    %1367 = vector.load %arg13[%c145, %c0_747] : memref<256x256xbf16, #tpu.memory_space<vmem>>, vector<1x256xbf16>
    tpu.vector_store %arg13[%c145, %c0_747], %1366 {strides = array<i32>} : memref<256x256xbf16, #tpu.memory_space<vmem>>, vector<1x256xbf16>,
    %1368 = arith.mulf %5, %1357 : vector<8x256xf32>
    %cst_748 = arith.constant dense<0.000000e+00> : vector<256xf32>
    %1369 = vector.multi_reduction <add>, %1368, %cst_748 [0] : vector<8x256xf32> to vector<256xf32>
    %1370 = vector.shape_cast %1369 : vector<256xf32> to vector<1x256xf32>
    %1371 = arith.truncf %1370 : vector<1x256xf32> to vector<1x256xbf16>
    %c146 = arith.constant 146 : index
    %c0_749 = arith.constant 0 : index
    %1372 = vector.load %arg13[%c146, %c0_749] : memref<256x256xbf16, #tpu.memory_space<vmem>>, vector<1x256xbf16>
    tpu.vector_store %arg13[%c146, %c0_749], %1371 {strides = array<i32>} : memref<256x256xbf16, #tpu.memory_space<vmem>>, vector<1x256xbf16>,
    %1373 = vector.extract_strided_slice %1357 {offsets = [0, 0], sizes = [1, 256], strides = [1, 1]} : vector<8x256xf32> to vector<1x256xf32>
    %c0_750 = arith.constant 0 : index
    %c0_751 = arith.constant 0 : index
    %c0_752 = arith.constant 0 : index
    %c0_753 = arith.constant 0 : index
    %1374 = vector.load %arg3[%c0_750, %c0_751, %c0_752, %c0_753] : memref<1x8x13x256xf32, #tpu.memory_space<vmem>>, vector<1x1x13x256xf32>
    %1375 = vector.shape_cast %1374 : vector<1x1x13x256xf32> to vector<13x256xf32>
    %1376 = vector.broadcast %1373 : vector<1x256xf32> to vector<13x256xf32>
    %1377 = arith.mulf %1376, %1375 : vector<13x256xf32>
    %1378 = vector.extract_strided_slice %1357 {offsets = [1, 0], sizes = [1, 256], strides = [1, 1]} : vector<8x256xf32> to vector<1x256xf32>
    %c0_754 = arith.constant 0 : index
    %c1_755 = arith.constant 1 : index
    %c0_756 = arith.constant 0 : index
    %c0_757 = arith.constant 0 : index
    %1379 = vector.load %arg3[%c0_754, %c1_755, %c0_756, %c0_757] : memref<1x8x13x256xf32, #tpu.memory_space<vmem>>, vector<1x1x13x256xf32>
    %1380 = vector.shape_cast %1379 : vector<1x1x13x256xf32> to vector<13x256xf32>
    %1381 = vector.broadcast %1378 : vector<1x256xf32> to vector<13x256xf32>
    %1382 = arith.mulf %1381, %1380 : vector<13x256xf32>
    %1383 = arith.addf %1377, %1382 : vector<13x256xf32>
    %1384 = vector.extract_strided_slice %1357 {offsets = [2, 0], sizes = [1, 256], strides = [1, 1]} : vector<8x256xf32> to vector<1x256xf32>
    %c0_758 = arith.constant 0 : index
    %c2_759 = arith.constant 2 : index
    %c0_760 = arith.constant 0 : index
    %c0_761 = arith.constant 0 : index
    %1385 = vector.load %arg3[%c0_758, %c2_759, %c0_760, %c0_761] : memref<1x8x13x256xf32, #tpu.memory_space<vmem>>, vector<1x1x13x256xf32>
    %1386 = vector.shape_cast %1385 : vector<1x1x13x256xf32> to vector<13x256xf32>
    %1387 = vector.broadcast %1384 : vector<1x256xf32> to vector<13x256xf32>
    %1388 = arith.mulf %1387, %1386 : vector<13x256xf32>
    %1389 = arith.addf %1383, %1388 : vector<13x256xf32>
    %1390 = vector.extract_strided_slice %1357 {offsets = [3, 0], sizes = [1, 256], strides = [1, 1]} : vector<8x256xf32> to vector<1x256xf32>
    %c0_762 = arith.constant 0 : index
    %c3_763 = arith.constant 3 : index
    %c0_764 = arith.constant 0 : index
    %c0_765 = arith.constant 0 : index
    %1391 = vector.load %arg3[%c0_762, %c3_763, %c0_764, %c0_765] : memref<1x8x13x256xf32, #tpu.memory_space<vmem>>, vector<1x1x13x256xf32>
    %1392 = vector.shape_cast %1391 : vector<1x1x13x256xf32> to vector<13x256xf32>
    %1393 = vector.broadcast %1390 : vector<1x256xf32> to vector<13x256xf32>
    %1394 = arith.mulf %1393, %1392 : vector<13x256xf32>
    %1395 = arith.addf %1389, %1394 : vector<13x256xf32>
    %1396 = vector.extract_strided_slice %1357 {offsets = [4, 0], sizes = [1, 256], strides = [1, 1]} : vector<8x256xf32> to vector<1x256xf32>
    %c0_766 = arith.constant 0 : index
    %c4_767 = arith.constant 4 : index
    %c0_768 = arith.constant 0 : index
    %c0_769 = arith.constant 0 : index
    %1397 = vector.load %arg3[%c0_766, %c4_767, %c0_768, %c0_769] : memref<1x8x13x256xf32, #tpu.memory_space<vmem>>, vector<1x1x13x256xf32>
    %1398 = vector.shape_cast %1397 : vector<1x1x13x256xf32> to vector<13x256xf32>
    %1399 = vector.broadcast %1396 : vector<1x256xf32> to vector<13x256xf32>
    %1400 = arith.mulf %1399, %1398 : vector<13x256xf32>
    %1401 = arith.addf %1395, %1400 : vector<13x256xf32>
    %1402 = vector.extract_strided_slice %1357 {offsets = [5, 0], sizes = [1, 256], strides = [1, 1]} : vector<8x256xf32> to vector<1x256xf32>
    %c0_770 = arith.constant 0 : index
    %c5_771 = arith.constant 5 : index
    %c0_772 = arith.constant 0 : index
    %c0_773 = arith.constant 0 : index
    %1403 = vector.load %arg3[%c0_770, %c5_771, %c0_772, %c0_773] : memref<1x8x13x256xf32, #tpu.memory_space<vmem>>, vector<1x1x13x256xf32>
    %1404 = vector.shape_cast %1403 : vector<1x1x13x256xf32> to vector<13x256xf32>
    %1405 = vector.broadcast %1402 : vector<1x256xf32> to vector<13x256xf32>
    %1406 = arith.mulf %1405, %1404 : vector<13x256xf32>
    %1407 = arith.addf %1401, %1406 : vector<13x256xf32>
    %1408 = vector.extract_strided_slice %1357 {offsets = [6, 0], sizes = [1, 256], strides = [1, 1]} : vector<8x256xf32> to vector<1x256xf32>
    %c0_774 = arith.constant 0 : index
    %c6_775 = arith.constant 6 : index
    %c0_776 = arith.constant 0 : index
    %c0_777 = arith.constant 0 : index
    %1409 = vector.load %arg3[%c0_774, %c6_775, %c0_776, %c0_777] : memref<1x8x13x256xf32, #tpu.memory_space<vmem>>, vector<1x1x13x256xf32>
    %1410 = vector.shape_cast %1409 : vector<1x1x13x256xf32> to vector<13x256xf32>
    %1411 = vector.broadcast %1408 : vector<1x256xf32> to vector<13x256xf32>
    %1412 = arith.mulf %1411, %1410 : vector<13x256xf32>
    %1413 = arith.addf %1407, %1412 : vector<13x256xf32>
    %1414 = vector.extract_strided_slice %1357 {offsets = [7, 0], sizes = [1, 256], strides = [1, 1]} : vector<8x256xf32> to vector<1x256xf32>
    %c0_778 = arith.constant 0 : index
    %c7_779 = arith.constant 7 : index
    %c0_780 = arith.constant 0 : index
    %c0_781 = arith.constant 0 : index
    %1415 = vector.load %arg3[%c0_778, %c7_779, %c0_780, %c0_781] : memref<1x8x13x256xf32, #tpu.memory_space<vmem>>, vector<1x1x13x256xf32>
    %1416 = vector.shape_cast %1415 : vector<1x1x13x256xf32> to vector<13x256xf32>
    %1417 = vector.broadcast %1414 : vector<1x256xf32> to vector<13x256xf32>
    %1418 = arith.mulf %1417, %1416 : vector<13x256xf32>
    %1419 = arith.addf %1413, %1418 : vector<13x256xf32>
    %1420 = arith.truncf %1419 : vector<13x256xf32> to vector<13x256xbf16>
    %c147 = arith.constant 147 : index
    %c0_782 = arith.constant 0 : index
    %1421 = vector.load %arg13[%c147, %c0_782] : memref<256x256xbf16, #tpu.memory_space<vmem>>, vector<13x256xbf16>
    tpu.vector_store %arg13[%c147, %c0_782], %1420 {strides = array<i32>} : memref<256x256xbf16, #tpu.memory_space<vmem>>, vector<13x256xbf16>,
    %c0_783 = arith.constant 0 : index
    %c10 = arith.constant 10 : index
    %1422 = memref.load %arg8[%c0_783, %c10] : memref<8x16xf32, #tpu.memory_space<smem>>
    %1423 = vector.broadcast %1422 : f32 to vector<8x256xf32>
    %1424 = arith.mulf %169, %1423 : vector<8x256xf32>
    %c1_784 = arith.constant 1 : index
    %c10_785 = arith.constant 10 : index
    %1425 = memref.load %arg8[%c1_784, %c10_785] : memref<8x16xf32, #tpu.memory_space<smem>>
    %1426 = vector.broadcast %1425 : f32 to vector<8x256xf32>
    %1427 = arith.mulf %205, %1426 : vector<8x256xf32>
    %1428 = arith.addf %1424, %1427 : vector<8x256xf32>
    %c2_786 = arith.constant 2 : index
    %c10_787 = arith.constant 10 : index
    %1429 = memref.load %arg8[%c2_786, %c10_787] : memref<8x16xf32, #tpu.memory_space<smem>>
    %1430 = vector.broadcast %1429 : f32 to vector<8x256xf32>
    %1431 = arith.mulf %241, %1430 : vector<8x256xf32>
    %1432 = arith.addf %1428, %1431 : vector<8x256xf32>
    %c3_788 = arith.constant 3 : index
    %c10_789 = arith.constant 10 : index
    %1433 = memref.load %arg8[%c3_788, %c10_789] : memref<8x16xf32, #tpu.memory_space<smem>>
    %1434 = vector.broadcast %1433 : f32 to vector<8x256xf32>
    %1435 = arith.mulf %277, %1434 : vector<8x256xf32>
    %1436 = arith.addf %1432, %1435 : vector<8x256xf32>
    %c4_790 = arith.constant 4 : index
    %c10_791 = arith.constant 10 : index
    %1437 = memref.load %arg8[%c4_790, %c10_791] : memref<8x16xf32, #tpu.memory_space<smem>>
    %1438 = vector.broadcast %1437 : f32 to vector<8x256xf32>
    %1439 = arith.mulf %313, %1438 : vector<8x256xf32>
    %1440 = arith.addf %1436, %1439 : vector<8x256xf32>
    %c5_792 = arith.constant 5 : index
    %c10_793 = arith.constant 10 : index
    %1441 = memref.load %arg8[%c5_792, %c10_793] : memref<8x16xf32, #tpu.memory_space<smem>>
    %1442 = vector.broadcast %1441 : f32 to vector<8x256xf32>
    %1443 = arith.mulf %349, %1442 : vector<8x256xf32>
    %1444 = arith.addf %1440, %1443 : vector<8x256xf32>
    %c6_794 = arith.constant 6 : index
    %c10_795 = arith.constant 10 : index
    %1445 = memref.load %arg8[%c6_794, %c10_795] : memref<8x16xf32, #tpu.memory_space<smem>>
    %1446 = vector.broadcast %1445 : f32 to vector<8x256xf32>
    %1447 = arith.mulf %385, %1446 : vector<8x256xf32>
    %1448 = arith.addf %1444, %1447 : vector<8x256xf32>
    %c7_796 = arith.constant 7 : index
    %c10_797 = arith.constant 10 : index
    %1449 = memref.load %arg8[%c7_796, %c10_797] : memref<8x16xf32, #tpu.memory_space<smem>>
    %1450 = vector.broadcast %1449 : f32 to vector<8x256xf32>
    %1451 = arith.mulf %421, %1450 : vector<8x256xf32>
    %1452 = arith.addf %1448, %1451 : vector<8x256xf32>
    %c10_798 = arith.constant 10 : index
    %1453 = memref.load %arg9[%c10_798] : memref<16xf32, #tpu.memory_space<smem>>
    %1454 = vector.broadcast %1453 : f32 to vector<8x256xf32>
    %1455 = arith.addf %1452, %1454 : vector<8x256xf32>
    %cst_799 = arith.constant 0.000000e+00 : f32
    %1456 = vector.broadcast %cst_799 : f32 to vector<8x256xf32>
    %1457 = arith.maximumf %1455, %1456 : vector<8x256xf32>
    %1458 = arith.mulf %1, %1457 : vector<8x256xf32>
    %cst_800 = arith.constant dense<0.000000e+00> : vector<256xf32>
    %1459 = vector.multi_reduction <add>, %1458, %cst_800 [0] : vector<8x256xf32> to vector<256xf32>
    %1460 = vector.shape_cast %1459 : vector<256xf32> to vector<1x256xf32>
    %1461 = arith.truncf %1460 : vector<1x256xf32> to vector<1x256xbf16>
    %c160 = arith.constant 160 : index
    %c0_801 = arith.constant 0 : index
    %1462 = vector.load %arg13[%c160, %c0_801] : memref<256x256xbf16, #tpu.memory_space<vmem>>, vector<1x256xbf16>
    tpu.vector_store %arg13[%c160, %c0_801], %1461 {strides = array<i32>} : memref<256x256xbf16, #tpu.memory_space<vmem>>, vector<1x256xbf16>,
    %1463 = arith.mulf %3, %1457 : vector<8x256xf32>
    %cst_802 = arith.constant dense<0.000000e+00> : vector<256xf32>
    %1464 = vector.multi_reduction <add>, %1463, %cst_802 [0] : vector<8x256xf32> to vector<256xf32>
    %1465 = vector.shape_cast %1464 : vector<256xf32> to vector<1x256xf32>
    %1466 = arith.truncf %1465 : vector<1x256xf32> to vector<1x256xbf16>
    %c161 = arith.constant 161 : index
    %c0_803 = arith.constant 0 : index
    %1467 = vector.load %arg13[%c161, %c0_803] : memref<256x256xbf16, #tpu.memory_space<vmem>>, vector<1x256xbf16>
    tpu.vector_store %arg13[%c161, %c0_803], %1466 {strides = array<i32>} : memref<256x256xbf16, #tpu.memory_space<vmem>>, vector<1x256xbf16>,
    %1468 = arith.mulf %5, %1457 : vector<8x256xf32>
    %cst_804 = arith.constant dense<0.000000e+00> : vector<256xf32>
    %1469 = vector.multi_reduction <add>, %1468, %cst_804 [0] : vector<8x256xf32> to vector<256xf32>
    %1470 = vector.shape_cast %1469 : vector<256xf32> to vector<1x256xf32>
    %1471 = arith.truncf %1470 : vector<1x256xf32> to vector<1x256xbf16>
    %c162 = arith.constant 162 : index
    %c0_805 = arith.constant 0 : index
    %1472 = vector.load %arg13[%c162, %c0_805] : memref<256x256xbf16, #tpu.memory_space<vmem>>, vector<1x256xbf16>
    tpu.vector_store %arg13[%c162, %c0_805], %1471 {strides = array<i32>} : memref<256x256xbf16, #tpu.memory_space<vmem>>, vector<1x256xbf16>,
    %1473 = vector.extract_strided_slice %1457 {offsets = [0, 0], sizes = [1, 256], strides = [1, 1]} : vector<8x256xf32> to vector<1x256xf32>
    %c0_806 = arith.constant 0 : index
    %c0_807 = arith.constant 0 : index
    %c0_808 = arith.constant 0 : index
    %c0_809 = arith.constant 0 : index
    %1474 = vector.load %arg3[%c0_806, %c0_807, %c0_808, %c0_809] : memref<1x8x13x256xf32, #tpu.memory_space<vmem>>, vector<1x1x13x256xf32>
    %1475 = vector.shape_cast %1474 : vector<1x1x13x256xf32> to vector<13x256xf32>
    %1476 = vector.broadcast %1473 : vector<1x256xf32> to vector<13x256xf32>
    %1477 = arith.mulf %1476, %1475 : vector<13x256xf32>
    %1478 = vector.extract_strided_slice %1457 {offsets = [1, 0], sizes = [1, 256], strides = [1, 1]} : vector<8x256xf32> to vector<1x256xf32>
    %c0_810 = arith.constant 0 : index
    %c1_811 = arith.constant 1 : index
    %c0_812 = arith.constant 0 : index
    %c0_813 = arith.constant 0 : index
    %1479 = vector.load %arg3[%c0_810, %c1_811, %c0_812, %c0_813] : memref<1x8x13x256xf32, #tpu.memory_space<vmem>>, vector<1x1x13x256xf32>
    %1480 = vector.shape_cast %1479 : vector<1x1x13x256xf32> to vector<13x256xf32>
    %1481 = vector.broadcast %1478 : vector<1x256xf32> to vector<13x256xf32>
    %1482 = arith.mulf %1481, %1480 : vector<13x256xf32>
    %1483 = arith.addf %1477, %1482 : vector<13x256xf32>
    %1484 = vector.extract_strided_slice %1457 {offsets = [2, 0], sizes = [1, 256], strides = [1, 1]} : vector<8x256xf32> to vector<1x256xf32>
    %c0_814 = arith.constant 0 : index
    %c2_815 = arith.constant 2 : index
    %c0_816 = arith.constant 0 : index
    %c0_817 = arith.constant 0 : index
    %1485 = vector.load %arg3[%c0_814, %c2_815, %c0_816, %c0_817] : memref<1x8x13x256xf32, #tpu.memory_space<vmem>>, vector<1x1x13x256xf32>
    %1486 = vector.shape_cast %1485 : vector<1x1x13x256xf32> to vector<13x256xf32>
    %1487 = vector.broadcast %1484 : vector<1x256xf32> to vector<13x256xf32>
    %1488 = arith.mulf %1487, %1486 : vector<13x256xf32>
    %1489 = arith.addf %1483, %1488 : vector<13x256xf32>
    %1490 = vector.extract_strided_slice %1457 {offsets = [3, 0], sizes = [1, 256], strides = [1, 1]} : vector<8x256xf32> to vector<1x256xf32>
    %c0_818 = arith.constant 0 : index
    %c3_819 = arith.constant 3 : index
    %c0_820 = arith.constant 0 : index
    %c0_821 = arith.constant 0 : index
    %1491 = vector.load %arg3[%c0_818, %c3_819, %c0_820, %c0_821] : memref<1x8x13x256xf32, #tpu.memory_space<vmem>>, vector<1x1x13x256xf32>
    %1492 = vector.shape_cast %1491 : vector<1x1x13x256xf32> to vector<13x256xf32>
    %1493 = vector.broadcast %1490 : vector<1x256xf32> to vector<13x256xf32>
    %1494 = arith.mulf %1493, %1492 : vector<13x256xf32>
    %1495 = arith.addf %1489, %1494 : vector<13x256xf32>
    %1496 = vector.extract_strided_slice %1457 {offsets = [4, 0], sizes = [1, 256], strides = [1, 1]} : vector<8x256xf32> to vector<1x256xf32>
    %c0_822 = arith.constant 0 : index
    %c4_823 = arith.constant 4 : index
    %c0_824 = arith.constant 0 : index
    %c0_825 = arith.constant 0 : index
    %1497 = vector.load %arg3[%c0_822, %c4_823, %c0_824, %c0_825] : memref<1x8x13x256xf32, #tpu.memory_space<vmem>>, vector<1x1x13x256xf32>
    %1498 = vector.shape_cast %1497 : vector<1x1x13x256xf32> to vector<13x256xf32>
    %1499 = vector.broadcast %1496 : vector<1x256xf32> to vector<13x256xf32>
    %1500 = arith.mulf %1499, %1498 : vector<13x256xf32>
    %1501 = arith.addf %1495, %1500 : vector<13x256xf32>
    %1502 = vector.extract_strided_slice %1457 {offsets = [5, 0], sizes = [1, 256], strides = [1, 1]} : vector<8x256xf32> to vector<1x256xf32>
    %c0_826 = arith.constant 0 : index
    %c5_827 = arith.constant 5 : index
    %c0_828 = arith.constant 0 : index
    %c0_829 = arith.constant 0 : index
    %1503 = vector.load %arg3[%c0_826, %c5_827, %c0_828, %c0_829] : memref<1x8x13x256xf32, #tpu.memory_space<vmem>>, vector<1x1x13x256xf32>
    %1504 = vector.shape_cast %1503 : vector<1x1x13x256xf32> to vector<13x256xf32>
    %1505 = vector.broadcast %1502 : vector<1x256xf32> to vector<13x256xf32>
    %1506 = arith.mulf %1505, %1504 : vector<13x256xf32>
    %1507 = arith.addf %1501, %1506 : vector<13x256xf32>
    %1508 = vector.extract_strided_slice %1457 {offsets = [6, 0], sizes = [1, 256], strides = [1, 1]} : vector<8x256xf32> to vector<1x256xf32>
    %c0_830 = arith.constant 0 : index
    %c6_831 = arith.constant 6 : index
    %c0_832 = arith.constant 0 : index
    %c0_833 = arith.constant 0 : index
    %1509 = vector.load %arg3[%c0_830, %c6_831, %c0_832, %c0_833] : memref<1x8x13x256xf32, #tpu.memory_space<vmem>>, vector<1x1x13x256xf32>
    %1510 = vector.shape_cast %1509 : vector<1x1x13x256xf32> to vector<13x256xf32>
    %1511 = vector.broadcast %1508 : vector<1x256xf32> to vector<13x256xf32>
    %1512 = arith.mulf %1511, %1510 : vector<13x256xf32>
    %1513 = arith.addf %1507, %1512 : vector<13x256xf32>
    %1514 = vector.extract_strided_slice %1457 {offsets = [7, 0], sizes = [1, 256], strides = [1, 1]} : vector<8x256xf32> to vector<1x256xf32>
    %c0_834 = arith.constant 0 : index
    %c7_835 = arith.constant 7 : index
    %c0_836 = arith.constant 0 : index
    %c0_837 = arith.constant 0 : index
    %1515 = vector.load %arg3[%c0_834, %c7_835, %c0_836, %c0_837] : memref<1x8x13x256xf32, #tpu.memory_space<vmem>>, vector<1x1x13x256xf32>
    %1516 = vector.shape_cast %1515 : vector<1x1x13x256xf32> to vector<13x256xf32>
    %1517 = vector.broadcast %1514 : vector<1x256xf32> to vector<13x256xf32>
    %1518 = arith.mulf %1517, %1516 : vector<13x256xf32>
    %1519 = arith.addf %1513, %1518 : vector<13x256xf32>
    %1520 = arith.truncf %1519 : vector<13x256xf32> to vector<13x256xbf16>
    %c163 = arith.constant 163 : index
    %c0_838 = arith.constant 0 : index
    %1521 = vector.load %arg13[%c163, %c0_838] : memref<256x256xbf16, #tpu.memory_space<vmem>>, vector<13x256xbf16>
    tpu.vector_store %arg13[%c163, %c0_838], %1520 {strides = array<i32>} : memref<256x256xbf16, #tpu.memory_space<vmem>>, vector<13x256xbf16>,
    %c0_839 = arith.constant 0 : index
    %c11 = arith.constant 11 : index
    %1522 = memref.load %arg8[%c0_839, %c11] : memref<8x16xf32, #tpu.memory_space<smem>>
    %1523 = vector.broadcast %1522 : f32 to vector<8x256xf32>
    %1524 = arith.mulf %169, %1523 : vector<8x256xf32>
    %c1_840 = arith.constant 1 : index
    %c11_841 = arith.constant 11 : index
    %1525 = memref.load %arg8[%c1_840, %c11_841] : memref<8x16xf32, #tpu.memory_space<smem>>
    %1526 = vector.broadcast %1525 : f32 to vector<8x256xf32>
    %1527 = arith.mulf %205, %1526 : vector<8x256xf32>
    %1528 = arith.addf %1524, %1527 : vector<8x256xf32>
    %c2_842 = arith.constant 2 : index
    %c11_843 = arith.constant 11 : index
    %1529 = memref.load %arg8[%c2_842, %c11_843] : memref<8x16xf32, #tpu.memory_space<smem>>
    %1530 = vector.broadcast %1529 : f32 to vector<8x256xf32>
    %1531 = arith.mulf %241, %1530 : vector<8x256xf32>
    %1532 = arith.addf %1528, %1531 : vector<8x256xf32>
    %c3_844 = arith.constant 3 : index
    %c11_845 = arith.constant 11 : index
    %1533 = memref.load %arg8[%c3_844, %c11_845] : memref<8x16xf32, #tpu.memory_space<smem>>
    %1534 = vector.broadcast %1533 : f32 to vector<8x256xf32>
    %1535 = arith.mulf %277, %1534 : vector<8x256xf32>
    %1536 = arith.addf %1532, %1535 : vector<8x256xf32>
    %c4_846 = arith.constant 4 : index
    %c11_847 = arith.constant 11 : index
    %1537 = memref.load %arg8[%c4_846, %c11_847] : memref<8x16xf32, #tpu.memory_space<smem>>
    %1538 = vector.broadcast %1537 : f32 to vector<8x256xf32>
    %1539 = arith.mulf %313, %1538 : vector<8x256xf32>
    %1540 = arith.addf %1536, %1539 : vector<8x256xf32>
    %c5_848 = arith.constant 5 : index
    %c11_849 = arith.constant 11 : index
    %1541 = memref.load %arg8[%c5_848, %c11_849] : memref<8x16xf32, #tpu.memory_space<smem>>
    %1542 = vector.broadcast %1541 : f32 to vector<8x256xf32>
    %1543 = arith.mulf %349, %1542 : vector<8x256xf32>
    %1544 = arith.addf %1540, %1543 : vector<8x256xf32>
    %c6_850 = arith.constant 6 : index
    %c11_851 = arith.constant 11 : index
    %1545 = memref.load %arg8[%c6_850, %c11_851] : memref<8x16xf32, #tpu.memory_space<smem>>
    %1546 = vector.broadcast %1545 : f32 to vector<8x256xf32>
    %1547 = arith.mulf %385, %1546 : vector<8x256xf32>
    %1548 = arith.addf %1544, %1547 : vector<8x256xf32>
    %c7_852 = arith.constant 7 : index
    %c11_853 = arith.constant 11 : index
    %1549 = memref.load %arg8[%c7_852, %c11_853] : memref<8x16xf32, #tpu.memory_space<smem>>
    %1550 = vector.broadcast %1549 : f32 to vector<8x256xf32>
    %1551 = arith.mulf %421, %1550 : vector<8x256xf32>
    %1552 = arith.addf %1548, %1551 : vector<8x256xf32>
    %c11_854 = arith.constant 11 : index
    %1553 = memref.load %arg9[%c11_854] : memref<16xf32, #tpu.memory_space<smem>>
    %1554 = vector.broadcast %1553 : f32 to vector<8x256xf32>
    %1555 = arith.addf %1552, %1554 : vector<8x256xf32>
    %cst_855 = arith.constant 0.000000e+00 : f32
    %1556 = vector.broadcast %cst_855 : f32 to vector<8x256xf32>
    %1557 = arith.maximumf %1555, %1556 : vector<8x256xf32>
    %1558 = arith.mulf %1, %1557 : vector<8x256xf32>
    %cst_856 = arith.constant dense<0.000000e+00> : vector<256xf32>
    %1559 = vector.multi_reduction <add>, %1558, %cst_856 [0] : vector<8x256xf32> to vector<256xf32>
    %1560 = vector.shape_cast %1559 : vector<256xf32> to vector<1x256xf32>
    %1561 = arith.truncf %1560 : vector<1x256xf32> to vector<1x256xbf16>
    %c176 = arith.constant 176 : index
    %c0_857 = arith.constant 0 : index
    %1562 = vector.load %arg13[%c176, %c0_857] : memref<256x256xbf16, #tpu.memory_space<vmem>>, vector<1x256xbf16>
    tpu.vector_store %arg13[%c176, %c0_857], %1561 {strides = array<i32>} : memref<256x256xbf16, #tpu.memory_space<vmem>>, vector<1x256xbf16>,
    %1563 = arith.mulf %3, %1557 : vector<8x256xf32>
    %cst_858 = arith.constant dense<0.000000e+00> : vector<256xf32>
    %1564 = vector.multi_reduction <add>, %1563, %cst_858 [0] : vector<8x256xf32> to vector<256xf32>
    %1565 = vector.shape_cast %1564 : vector<256xf32> to vector<1x256xf32>
    %1566 = arith.truncf %1565 : vector<1x256xf32> to vector<1x256xbf16>
    %c177 = arith.constant 177 : index
    %c0_859 = arith.constant 0 : index
    %1567 = vector.load %arg13[%c177, %c0_859] : memref<256x256xbf16, #tpu.memory_space<vmem>>, vector<1x256xbf16>
    tpu.vector_store %arg13[%c177, %c0_859], %1566 {strides = array<i32>} : memref<256x256xbf16, #tpu.memory_space<vmem>>, vector<1x256xbf16>,
    %1568 = arith.mulf %5, %1557 : vector<8x256xf32>
    %cst_860 = arith.constant dense<0.000000e+00> : vector<256xf32>
    %1569 = vector.multi_reduction <add>, %1568, %cst_860 [0] : vector<8x256xf32> to vector<256xf32>
    %1570 = vector.shape_cast %1569 : vector<256xf32> to vector<1x256xf32>
    %1571 = arith.truncf %1570 : vector<1x256xf32> to vector<1x256xbf16>
    %c178 = arith.constant 178 : index
    %c0_861 = arith.constant 0 : index
    %1572 = vector.load %arg13[%c178, %c0_861] : memref<256x256xbf16, #tpu.memory_space<vmem>>, vector<1x256xbf16>
    tpu.vector_store %arg13[%c178, %c0_861], %1571 {strides = array<i32>} : memref<256x256xbf16, #tpu.memory_space<vmem>>, vector<1x256xbf16>,
    %1573 = vector.extract_strided_slice %1557 {offsets = [0, 0], sizes = [1, 256], strides = [1, 1]} : vector<8x256xf32> to vector<1x256xf32>
    %c0_862 = arith.constant 0 : index
    %c0_863 = arith.constant 0 : index
    %c0_864 = arith.constant 0 : index
    %c0_865 = arith.constant 0 : index
    %1574 = vector.load %arg3[%c0_862, %c0_863, %c0_864, %c0_865] : memref<1x8x13x256xf32, #tpu.memory_space<vmem>>, vector<1x1x13x256xf32>
    %1575 = vector.shape_cast %1574 : vector<1x1x13x256xf32> to vector<13x256xf32>
    %1576 = vector.broadcast %1573 : vector<1x256xf32> to vector<13x256xf32>
    %1577 = arith.mulf %1576, %1575 : vector<13x256xf32>
    %1578 = vector.extract_strided_slice %1557 {offsets = [1, 0], sizes = [1, 256], strides = [1, 1]} : vector<8x256xf32> to vector<1x256xf32>
    %c0_866 = arith.constant 0 : index
    %c1_867 = arith.constant 1 : index
    %c0_868 = arith.constant 0 : index
    %c0_869 = arith.constant 0 : index
    %1579 = vector.load %arg3[%c0_866, %c1_867, %c0_868, %c0_869] : memref<1x8x13x256xf32, #tpu.memory_space<vmem>>, vector<1x1x13x256xf32>
    %1580 = vector.shape_cast %1579 : vector<1x1x13x256xf32> to vector<13x256xf32>
    %1581 = vector.broadcast %1578 : vector<1x256xf32> to vector<13x256xf32>
    %1582 = arith.mulf %1581, %1580 : vector<13x256xf32>
    %1583 = arith.addf %1577, %1582 : vector<13x256xf32>
    %1584 = vector.extract_strided_slice %1557 {offsets = [2, 0], sizes = [1, 256], strides = [1, 1]} : vector<8x256xf32> to vector<1x256xf32>
    %c0_870 = arith.constant 0 : index
    %c2_871 = arith.constant 2 : index
    %c0_872 = arith.constant 0 : index
    %c0_873 = arith.constant 0 : index
    %1585 = vector.load %arg3[%c0_870, %c2_871, %c0_872, %c0_873] : memref<1x8x13x256xf32, #tpu.memory_space<vmem>>, vector<1x1x13x256xf32>
    %1586 = vector.shape_cast %1585 : vector<1x1x13x256xf32> to vector<13x256xf32>
    %1587 = vector.broadcast %1584 : vector<1x256xf32> to vector<13x256xf32>
    %1588 = arith.mulf %1587, %1586 : vector<13x256xf32>
    %1589 = arith.addf %1583, %1588 : vector<13x256xf32>
    %1590 = vector.extract_strided_slice %1557 {offsets = [3, 0], sizes = [1, 256], strides = [1, 1]} : vector<8x256xf32> to vector<1x256xf32>
    %c0_874 = arith.constant 0 : index
    %c3_875 = arith.constant 3 : index
    %c0_876 = arith.constant 0 : index
    %c0_877 = arith.constant 0 : index
    %1591 = vector.load %arg3[%c0_874, %c3_875, %c0_876, %c0_877] : memref<1x8x13x256xf32, #tpu.memory_space<vmem>>, vector<1x1x13x256xf32>
    %1592 = vector.shape_cast %1591 : vector<1x1x13x256xf32> to vector<13x256xf32>
    %1593 = vector.broadcast %1590 : vector<1x256xf32> to vector<13x256xf32>
    %1594 = arith.mulf %1593, %1592 : vector<13x256xf32>
    %1595 = arith.addf %1589, %1594 : vector<13x256xf32>
    %1596 = vector.extract_strided_slice %1557 {offsets = [4, 0], sizes = [1, 256], strides = [1, 1]} : vector<8x256xf32> to vector<1x256xf32>
    %c0_878 = arith.constant 0 : index
    %c4_879 = arith.constant 4 : index
    %c0_880 = arith.constant 0 : index
    %c0_881 = arith.constant 0 : index
    %1597 = vector.load %arg3[%c0_878, %c4_879, %c0_880, %c0_881] : memref<1x8x13x256xf32, #tpu.memory_space<vmem>>, vector<1x1x13x256xf32>
    %1598 = vector.shape_cast %1597 : vector<1x1x13x256xf32> to vector<13x256xf32>
    %1599 = vector.broadcast %1596 : vector<1x256xf32> to vector<13x256xf32>
    %1600 = arith.mulf %1599, %1598 : vector<13x256xf32>
    %1601 = arith.addf %1595, %1600 : vector<13x256xf32>
    %1602 = vector.extract_strided_slice %1557 {offsets = [5, 0], sizes = [1, 256], strides = [1, 1]} : vector<8x256xf32> to vector<1x256xf32>
    %c0_882 = arith.constant 0 : index
    %c5_883 = arith.constant 5 : index
    %c0_884 = arith.constant 0 : index
    %c0_885 = arith.constant 0 : index
    %1603 = vector.load %arg3[%c0_882, %c5_883, %c0_884, %c0_885] : memref<1x8x13x256xf32, #tpu.memory_space<vmem>>, vector<1x1x13x256xf32>
    %1604 = vector.shape_cast %1603 : vector<1x1x13x256xf32> to vector<13x256xf32>
    %1605 = vector.broadcast %1602 : vector<1x256xf32> to vector<13x256xf32>
    %1606 = arith.mulf %1605, %1604 : vector<13x256xf32>
    %1607 = arith.addf %1601, %1606 : vector<13x256xf32>
    %1608 = vector.extract_strided_slice %1557 {offsets = [6, 0], sizes = [1, 256], strides = [1, 1]} : vector<8x256xf32> to vector<1x256xf32>
    %c0_886 = arith.constant 0 : index
    %c6_887 = arith.constant 6 : index
    %c0_888 = arith.constant 0 : index
    %c0_889 = arith.constant 0 : index
    %1609 = vector.load %arg3[%c0_886, %c6_887, %c0_888, %c0_889] : memref<1x8x13x256xf32, #tpu.memory_space<vmem>>, vector<1x1x13x256xf32>
    %1610 = vector.shape_cast %1609 : vector<1x1x13x256xf32> to vector<13x256xf32>
    %1611 = vector.broadcast %1608 : vector<1x256xf32> to vector<13x256xf32>
    %1612 = arith.mulf %1611, %1610 : vector<13x256xf32>
    %1613 = arith.addf %1607, %1612 : vector<13x256xf32>
    %1614 = vector.extract_strided_slice %1557 {offsets = [7, 0], sizes = [1, 256], strides = [1, 1]} : vector<8x256xf32> to vector<1x256xf32>
    %c0_890 = arith.constant 0 : index
    %c7_891 = arith.constant 7 : index
    %c0_892 = arith.constant 0 : index
    %c0_893 = arith.constant 0 : index
    %1615 = vector.load %arg3[%c0_890, %c7_891, %c0_892, %c0_893] : memref<1x8x13x256xf32, #tpu.memory_space<vmem>>, vector<1x1x13x256xf32>
    %1616 = vector.shape_cast %1615 : vector<1x1x13x256xf32> to vector<13x256xf32>
    %1617 = vector.broadcast %1614 : vector<1x256xf32> to vector<13x256xf32>
    %1618 = arith.mulf %1617, %1616 : vector<13x256xf32>
    %1619 = arith.addf %1613, %1618 : vector<13x256xf32>
    %1620 = arith.truncf %1619 : vector<13x256xf32> to vector<13x256xbf16>
    %c179 = arith.constant 179 : index
    %c0_894 = arith.constant 0 : index
    %1621 = vector.load %arg13[%c179, %c0_894] : memref<256x256xbf16, #tpu.memory_space<vmem>>, vector<13x256xbf16>
    tpu.vector_store %arg13[%c179, %c0_894], %1620 {strides = array<i32>} : memref<256x256xbf16, #tpu.memory_space<vmem>>, vector<13x256xbf16>,
    %c0_895 = arith.constant 0 : index
    %c12 = arith.constant 12 : index
    %1622 = memref.load %arg8[%c0_895, %c12] : memref<8x16xf32, #tpu.memory_space<smem>>
    %1623 = vector.broadcast %1622 : f32 to vector<8x256xf32>
    %1624 = arith.mulf %169, %1623 : vector<8x256xf32>
    %c1_896 = arith.constant 1 : index
    %c12_897 = arith.constant 12 : index
    %1625 = memref.load %arg8[%c1_896, %c12_897] : memref<8x16xf32, #tpu.memory_space<smem>>
    %1626 = vector.broadcast %1625 : f32 to vector<8x256xf32>
    %1627 = arith.mulf %205, %1626 : vector<8x256xf32>
    %1628 = arith.addf %1624, %1627 : vector<8x256xf32>
    %c2_898 = arith.constant 2 : index
    %c12_899 = arith.constant 12 : index
    %1629 = memref.load %arg8[%c2_898, %c12_899] : memref<8x16xf32, #tpu.memory_space<smem>>
    %1630 = vector.broadcast %1629 : f32 to vector<8x256xf32>
    %1631 = arith.mulf %241, %1630 : vector<8x256xf32>
    %1632 = arith.addf %1628, %1631 : vector<8x256xf32>
    %c3_900 = arith.constant 3 : index
    %c12_901 = arith.constant 12 : index
    %1633 = memref.load %arg8[%c3_900, %c12_901] : memref<8x16xf32, #tpu.memory_space<smem>>
    %1634 = vector.broadcast %1633 : f32 to vector<8x256xf32>
    %1635 = arith.mulf %277, %1634 : vector<8x256xf32>
    %1636 = arith.addf %1632, %1635 : vector<8x256xf32>
    %c4_902 = arith.constant 4 : index
    %c12_903 = arith.constant 12 : index
    %1637 = memref.load %arg8[%c4_902, %c12_903] : memref<8x16xf32, #tpu.memory_space<smem>>
    %1638 = vector.broadcast %1637 : f32 to vector<8x256xf32>
    %1639 = arith.mulf %313, %1638 : vector<8x256xf32>
    %1640 = arith.addf %1636, %1639 : vector<8x256xf32>
    %c5_904 = arith.constant 5 : index
    %c12_905 = arith.constant 12 : index
    %1641 = memref.load %arg8[%c5_904, %c12_905] : memref<8x16xf32, #tpu.memory_space<smem>>
    %1642 = vector.broadcast %1641 : f32 to vector<8x256xf32>
    %1643 = arith.mulf %349, %1642 : vector<8x256xf32>
    %1644 = arith.addf %1640, %1643 : vector<8x256xf32>
    %c6_906 = arith.constant 6 : index
    %c12_907 = arith.constant 12 : index
    %1645 = memref.load %arg8[%c6_906, %c12_907] : memref<8x16xf32, #tpu.memory_space<smem>>
    %1646 = vector.broadcast %1645 : f32 to vector<8x256xf32>
    %1647 = arith.mulf %385, %1646 : vector<8x256xf32>
    %1648 = arith.addf %1644, %1647 : vector<8x256xf32>
    %c7_908 = arith.constant 7 : index
    %c12_909 = arith.constant 12 : index
    %1649 = memref.load %arg8[%c7_908, %c12_909] : memref<8x16xf32, #tpu.memory_space<smem>>
    %1650 = vector.broadcast %1649 : f32 to vector<8x256xf32>
    %1651 = arith.mulf %421, %1650 : vector<8x256xf32>
    %1652 = arith.addf %1648, %1651 : vector<8x256xf32>
    %c12_910 = arith.constant 12 : index
    %1653 = memref.load %arg9[%c12_910] : memref<16xf32, #tpu.memory_space<smem>>
    %1654 = vector.broadcast %1653 : f32 to vector<8x256xf32>
    %1655 = arith.addf %1652, %1654 : vector<8x256xf32>
    %cst_911 = arith.constant 0.000000e+00 : f32
    %1656 = vector.broadcast %cst_911 : f32 to vector<8x256xf32>
    %1657 = arith.maximumf %1655, %1656 : vector<8x256xf32>
    %1658 = arith.mulf %1, %1657 : vector<8x256xf32>
    %cst_912 = arith.constant dense<0.000000e+00> : vector<256xf32>
    %1659 = vector.multi_reduction <add>, %1658, %cst_912 [0] : vector<8x256xf32> to vector<256xf32>
    %1660 = vector.shape_cast %1659 : vector<256xf32> to vector<1x256xf32>
    %1661 = arith.truncf %1660 : vector<1x256xf32> to vector<1x256xbf16>
    %c192 = arith.constant 192 : index
    %c0_913 = arith.constant 0 : index
    %1662 = vector.load %arg13[%c192, %c0_913] : memref<256x256xbf16, #tpu.memory_space<vmem>>, vector<1x256xbf16>
    tpu.vector_store %arg13[%c192, %c0_913], %1661 {strides = array<i32>} : memref<256x256xbf16, #tpu.memory_space<vmem>>, vector<1x256xbf16>,
    %1663 = arith.mulf %3, %1657 : vector<8x256xf32>
    %cst_914 = arith.constant dense<0.000000e+00> : vector<256xf32>
    %1664 = vector.multi_reduction <add>, %1663, %cst_914 [0] : vector<8x256xf32> to vector<256xf32>
    %1665 = vector.shape_cast %1664 : vector<256xf32> to vector<1x256xf32>
    %1666 = arith.truncf %1665 : vector<1x256xf32> to vector<1x256xbf16>
    %c193 = arith.constant 193 : index
    %c0_915 = arith.constant 0 : index
    %1667 = vector.load %arg13[%c193, %c0_915] : memref<256x256xbf16, #tpu.memory_space<vmem>>, vector<1x256xbf16>
    tpu.vector_store %arg13[%c193, %c0_915], %1666 {strides = array<i32>} : memref<256x256xbf16, #tpu.memory_space<vmem>>, vector<1x256xbf16>,
    %1668 = arith.mulf %5, %1657 : vector<8x256xf32>
    %cst_916 = arith.constant dense<0.000000e+00> : vector<256xf32>
    %1669 = vector.multi_reduction <add>, %1668, %cst_916 [0] : vector<8x256xf32> to vector<256xf32>
    %1670 = vector.shape_cast %1669 : vector<256xf32> to vector<1x256xf32>
    %1671 = arith.truncf %1670 : vector<1x256xf32> to vector<1x256xbf16>
    %c194 = arith.constant 194 : index
    %c0_917 = arith.constant 0 : index
    %1672 = vector.load %arg13[%c194, %c0_917] : memref<256x256xbf16, #tpu.memory_space<vmem>>, vector<1x256xbf16>
    tpu.vector_store %arg13[%c194, %c0_917], %1671 {strides = array<i32>} : memref<256x256xbf16, #tpu.memory_space<vmem>>, vector<1x256xbf16>,
    %1673 = vector.extract_strided_slice %1657 {offsets = [0, 0], sizes = [1, 256], strides = [1, 1]} : vector<8x256xf32> to vector<1x256xf32>
    %c0_918 = arith.constant 0 : index
    %c0_919 = arith.constant 0 : index
    %c0_920 = arith.constant 0 : index
    %c0_921 = arith.constant 0 : index
    %1674 = vector.load %arg3[%c0_918, %c0_919, %c0_920, %c0_921] : memref<1x8x13x256xf32, #tpu.memory_space<vmem>>, vector<1x1x13x256xf32>
    %1675 = vector.shape_cast %1674 : vector<1x1x13x256xf32> to vector<13x256xf32>
    %1676 = vector.broadcast %1673 : vector<1x256xf32> to vector<13x256xf32>
    %1677 = arith.mulf %1676, %1675 : vector<13x256xf32>
    %1678 = vector.extract_strided_slice %1657 {offsets = [1, 0], sizes = [1, 256], strides = [1, 1]} : vector<8x256xf32> to vector<1x256xf32>
    %c0_922 = arith.constant 0 : index
    %c1_923 = arith.constant 1 : index
    %c0_924 = arith.constant 0 : index
    %c0_925 = arith.constant 0 : index
    %1679 = vector.load %arg3[%c0_922, %c1_923, %c0_924, %c0_925] : memref<1x8x13x256xf32, #tpu.memory_space<vmem>>, vector<1x1x13x256xf32>
    %1680 = vector.shape_cast %1679 : vector<1x1x13x256xf32> to vector<13x256xf32>
    %1681 = vector.broadcast %1678 : vector<1x256xf32> to vector<13x256xf32>
    %1682 = arith.mulf %1681, %1680 : vector<13x256xf32>
    %1683 = arith.addf %1677, %1682 : vector<13x256xf32>
    %1684 = vector.extract_strided_slice %1657 {offsets = [2, 0], sizes = [1, 256], strides = [1, 1]} : vector<8x256xf32> to vector<1x256xf32>
    %c0_926 = arith.constant 0 : index
    %c2_927 = arith.constant 2 : index
    %c0_928 = arith.constant 0 : index
    %c0_929 = arith.constant 0 : index
    %1685 = vector.load %arg3[%c0_926, %c2_927, %c0_928, %c0_929] : memref<1x8x13x256xf32, #tpu.memory_space<vmem>>, vector<1x1x13x256xf32>
    %1686 = vector.shape_cast %1685 : vector<1x1x13x256xf32> to vector<13x256xf32>
    %1687 = vector.broadcast %1684 : vector<1x256xf32> to vector<13x256xf32>
    %1688 = arith.mulf %1687, %1686 : vector<13x256xf32>
    %1689 = arith.addf %1683, %1688 : vector<13x256xf32>
    %1690 = vector.extract_strided_slice %1657 {offsets = [3, 0], sizes = [1, 256], strides = [1, 1]} : vector<8x256xf32> to vector<1x256xf32>
    %c0_930 = arith.constant 0 : index
    %c3_931 = arith.constant 3 : index
    %c0_932 = arith.constant 0 : index
    %c0_933 = arith.constant 0 : index
    %1691 = vector.load %arg3[%c0_930, %c3_931, %c0_932, %c0_933] : memref<1x8x13x256xf32, #tpu.memory_space<vmem>>, vector<1x1x13x256xf32>
    %1692 = vector.shape_cast %1691 : vector<1x1x13x256xf32> to vector<13x256xf32>
    %1693 = vector.broadcast %1690 : vector<1x256xf32> to vector<13x256xf32>
    %1694 = arith.mulf %1693, %1692 : vector<13x256xf32>
    %1695 = arith.addf %1689, %1694 : vector<13x256xf32>
    %1696 = vector.extract_strided_slice %1657 {offsets = [4, 0], sizes = [1, 256], strides = [1, 1]} : vector<8x256xf32> to vector<1x256xf32>
    %c0_934 = arith.constant 0 : index
    %c4_935 = arith.constant 4 : index
    %c0_936 = arith.constant 0 : index
    %c0_937 = arith.constant 0 : index
    %1697 = vector.load %arg3[%c0_934, %c4_935, %c0_936, %c0_937] : memref<1x8x13x256xf32, #tpu.memory_space<vmem>>, vector<1x1x13x256xf32>
    %1698 = vector.shape_cast %1697 : vector<1x1x13x256xf32> to vector<13x256xf32>
    %1699 = vector.broadcast %1696 : vector<1x256xf32> to vector<13x256xf32>
    %1700 = arith.mulf %1699, %1698 : vector<13x256xf32>
    %1701 = arith.addf %1695, %1700 : vector<13x256xf32>
    %1702 = vector.extract_strided_slice %1657 {offsets = [5, 0], sizes = [1, 256], strides = [1, 1]} : vector<8x256xf32> to vector<1x256xf32>
    %c0_938 = arith.constant 0 : index
    %c5_939 = arith.constant 5 : index
    %c0_940 = arith.constant 0 : index
    %c0_941 = arith.constant 0 : index
    %1703 = vector.load %arg3[%c0_938, %c5_939, %c0_940, %c0_941] : memref<1x8x13x256xf32, #tpu.memory_space<vmem>>, vector<1x1x13x256xf32>
    %1704 = vector.shape_cast %1703 : vector<1x1x13x256xf32> to vector<13x256xf32>
    %1705 = vector.broadcast %1702 : vector<1x256xf32> to vector<13x256xf32>
    %1706 = arith.mulf %1705, %1704 : vector<13x256xf32>
    %1707 = arith.addf %1701, %1706 : vector<13x256xf32>
    %1708 = vector.extract_strided_slice %1657 {offsets = [6, 0], sizes = [1, 256], strides = [1, 1]} : vector<8x256xf32> to vector<1x256xf32>
    %c0_942 = arith.constant 0 : index
    %c6_943 = arith.constant 6 : index
    %c0_944 = arith.constant 0 : index
    %c0_945 = arith.constant 0 : index
    %1709 = vector.load %arg3[%c0_942, %c6_943, %c0_944, %c0_945] : memref<1x8x13x256xf32, #tpu.memory_space<vmem>>, vector<1x1x13x256xf32>
    %1710 = vector.shape_cast %1709 : vector<1x1x13x256xf32> to vector<13x256xf32>
    %1711 = vector.broadcast %1708 : vector<1x256xf32> to vector<13x256xf32>
    %1712 = arith.mulf %1711, %1710 : vector<13x256xf32>
    %1713 = arith.addf %1707, %1712 : vector<13x256xf32>
    %1714 = vector.extract_strided_slice %1657 {offsets = [7, 0], sizes = [1, 256], strides = [1, 1]} : vector<8x256xf32> to vector<1x256xf32>
    %c0_946 = arith.constant 0 : index
    %c7_947 = arith.constant 7 : index
    %c0_948 = arith.constant 0 : index
    %c0_949 = arith.constant 0 : index
    %1715 = vector.load %arg3[%c0_946, %c7_947, %c0_948, %c0_949] : memref<1x8x13x256xf32, #tpu.memory_space<vmem>>, vector<1x1x13x256xf32>
    %1716 = vector.shape_cast %1715 : vector<1x1x13x256xf32> to vector<13x256xf32>
    %1717 = vector.broadcast %1714 : vector<1x256xf32> to vector<13x256xf32>
    %1718 = arith.mulf %1717, %1716 : vector<13x256xf32>
    %1719 = arith.addf %1713, %1718 : vector<13x256xf32>
    %1720 = arith.truncf %1719 : vector<13x256xf32> to vector<13x256xbf16>
    %c195 = arith.constant 195 : index
    %c0_950 = arith.constant 0 : index
    %1721 = vector.load %arg13[%c195, %c0_950] : memref<256x256xbf16, #tpu.memory_space<vmem>>, vector<13x256xbf16>
    tpu.vector_store %arg13[%c195, %c0_950], %1720 {strides = array<i32>} : memref<256x256xbf16, #tpu.memory_space<vmem>>, vector<13x256xbf16>,
    %c0_951 = arith.constant 0 : index
    %c13 = arith.constant 13 : index
    %1722 = memref.load %arg8[%c0_951, %c13] : memref<8x16xf32, #tpu.memory_space<smem>>
    %1723 = vector.broadcast %1722 : f32 to vector<8x256xf32>
    %1724 = arith.mulf %169, %1723 : vector<8x256xf32>
    %c1_952 = arith.constant 1 : index
    %c13_953 = arith.constant 13 : index
    %1725 = memref.load %arg8[%c1_952, %c13_953] : memref<8x16xf32, #tpu.memory_space<smem>>
    %1726 = vector.broadcast %1725 : f32 to vector<8x256xf32>
    %1727 = arith.mulf %205, %1726 : vector<8x256xf32>
    %1728 = arith.addf %1724, %1727 : vector<8x256xf32>
    %c2_954 = arith.constant 2 : index
    %c13_955 = arith.constant 13 : index
    %1729 = memref.load %arg8[%c2_954, %c13_955] : memref<8x16xf32, #tpu.memory_space<smem>>
    %1730 = vector.broadcast %1729 : f32 to vector<8x256xf32>
    %1731 = arith.mulf %241, %1730 : vector<8x256xf32>
    %1732 = arith.addf %1728, %1731 : vector<8x256xf32>
    %c3_956 = arith.constant 3 : index
    %c13_957 = arith.constant 13 : index
    %1733 = memref.load %arg8[%c3_956, %c13_957] : memref<8x16xf32, #tpu.memory_space<smem>>
    %1734 = vector.broadcast %1733 : f32 to vector<8x256xf32>
    %1735 = arith.mulf %277, %1734 : vector<8x256xf32>
    %1736 = arith.addf %1732, %1735 : vector<8x256xf32>
    %c4_958 = arith.constant 4 : index
    %c13_959 = arith.constant 13 : index
    %1737 = memref.load %arg8[%c4_958, %c13_959] : memref<8x16xf32, #tpu.memory_space<smem>>
    %1738 = vector.broadcast %1737 : f32 to vector<8x256xf32>
    %1739 = arith.mulf %313, %1738 : vector<8x256xf32>
    %1740 = arith.addf %1736, %1739 : vector<8x256xf32>
    %c5_960 = arith.constant 5 : index
    %c13_961 = arith.constant 13 : index
    %1741 = memref.load %arg8[%c5_960, %c13_961] : memref<8x16xf32, #tpu.memory_space<smem>>
    %1742 = vector.broadcast %1741 : f32 to vector<8x256xf32>
    %1743 = arith.mulf %349, %1742 : vector<8x256xf32>
    %1744 = arith.addf %1740, %1743 : vector<8x256xf32>
    %c6_962 = arith.constant 6 : index
    %c13_963 = arith.constant 13 : index
    %1745 = memref.load %arg8[%c6_962, %c13_963] : memref<8x16xf32, #tpu.memory_space<smem>>
    %1746 = vector.broadcast %1745 : f32 to vector<8x256xf32>
    %1747 = arith.mulf %385, %1746 : vector<8x256xf32>
    %1748 = arith.addf %1744, %1747 : vector<8x256xf32>
    %c7_964 = arith.constant 7 : index
    %c13_965 = arith.constant 13 : index
    %1749 = memref.load %arg8[%c7_964, %c13_965] : memref<8x16xf32, #tpu.memory_space<smem>>
    %1750 = vector.broadcast %1749 : f32 to vector<8x256xf32>
    %1751 = arith.mulf %421, %1750 : vector<8x256xf32>
    %1752 = arith.addf %1748, %1751 : vector<8x256xf32>
    %c13_966 = arith.constant 13 : index
    %1753 = memref.load %arg9[%c13_966] : memref<16xf32, #tpu.memory_space<smem>>
    %1754 = vector.broadcast %1753 : f32 to vector<8x256xf32>
    %1755 = arith.addf %1752, %1754 : vector<8x256xf32>
    %cst_967 = arith.constant 0.000000e+00 : f32
    %1756 = vector.broadcast %cst_967 : f32 to vector<8x256xf32>
    %1757 = arith.maximumf %1755, %1756 : vector<8x256xf32>
    %1758 = arith.mulf %1, %1757 : vector<8x256xf32>
    %cst_968 = arith.constant dense<0.000000e+00> : vector<256xf32>
    %1759 = vector.multi_reduction <add>, %1758, %cst_968 [0] : vector<8x256xf32> to vector<256xf32>
    %1760 = vector.shape_cast %1759 : vector<256xf32> to vector<1x256xf32>
    %1761 = arith.truncf %1760 : vector<1x256xf32> to vector<1x256xbf16>
    %c208 = arith.constant 208 : index
    %c0_969 = arith.constant 0 : index
    %1762 = vector.load %arg13[%c208, %c0_969] : memref<256x256xbf16, #tpu.memory_space<vmem>>, vector<1x256xbf16>
    tpu.vector_store %arg13[%c208, %c0_969], %1761 {strides = array<i32>} : memref<256x256xbf16, #tpu.memory_space<vmem>>, vector<1x256xbf16>,
    %1763 = arith.mulf %3, %1757 : vector<8x256xf32>
    %cst_970 = arith.constant dense<0.000000e+00> : vector<256xf32>
    %1764 = vector.multi_reduction <add>, %1763, %cst_970 [0] : vector<8x256xf32> to vector<256xf32>
    %1765 = vector.shape_cast %1764 : vector<256xf32> to vector<1x256xf32>
    %1766 = arith.truncf %1765 : vector<1x256xf32> to vector<1x256xbf16>
    %c209 = arith.constant 209 : index
    %c0_971 = arith.constant 0 : index
    %1767 = vector.load %arg13[%c209, %c0_971] : memref<256x256xbf16, #tpu.memory_space<vmem>>, vector<1x256xbf16>
    tpu.vector_store %arg13[%c209, %c0_971], %1766 {strides = array<i32>} : memref<256x256xbf16, #tpu.memory_space<vmem>>, vector<1x256xbf16>,
    %1768 = arith.mulf %5, %1757 : vector<8x256xf32>
    %cst_972 = arith.constant dense<0.000000e+00> : vector<256xf32>
    %1769 = vector.multi_reduction <add>, %1768, %cst_972 [0] : vector<8x256xf32> to vector<256xf32>
    %1770 = vector.shape_cast %1769 : vector<256xf32> to vector<1x256xf32>
    %1771 = arith.truncf %1770 : vector<1x256xf32> to vector<1x256xbf16>
    %c210 = arith.constant 210 : index
    %c0_973 = arith.constant 0 : index
    %1772 = vector.load %arg13[%c210, %c0_973] : memref<256x256xbf16, #tpu.memory_space<vmem>>, vector<1x256xbf16>
    tpu.vector_store %arg13[%c210, %c0_973], %1771 {strides = array<i32>} : memref<256x256xbf16, #tpu.memory_space<vmem>>, vector<1x256xbf16>,
    %1773 = vector.extract_strided_slice %1757 {offsets = [0, 0], sizes = [1, 256], strides = [1, 1]} : vector<8x256xf32> to vector<1x256xf32>
    %c0_974 = arith.constant 0 : index
    %c0_975 = arith.constant 0 : index
    %c0_976 = arith.constant 0 : index
    %c0_977 = arith.constant 0 : index
    %1774 = vector.load %arg3[%c0_974, %c0_975, %c0_976, %c0_977] : memref<1x8x13x256xf32, #tpu.memory_space<vmem>>, vector<1x1x13x256xf32>
    %1775 = vector.shape_cast %1774 : vector<1x1x13x256xf32> to vector<13x256xf32>
    %1776 = vector.broadcast %1773 : vector<1x256xf32> to vector<13x256xf32>
    %1777 = arith.mulf %1776, %1775 : vector<13x256xf32>
    %1778 = vector.extract_strided_slice %1757 {offsets = [1, 0], sizes = [1, 256], strides = [1, 1]} : vector<8x256xf32> to vector<1x256xf32>
    %c0_978 = arith.constant 0 : index
    %c1_979 = arith.constant 1 : index
    %c0_980 = arith.constant 0 : index
    %c0_981 = arith.constant 0 : index
    %1779 = vector.load %arg3[%c0_978, %c1_979, %c0_980, %c0_981] : memref<1x8x13x256xf32, #tpu.memory_space<vmem>>, vector<1x1x13x256xf32>
    %1780 = vector.shape_cast %1779 : vector<1x1x13x256xf32> to vector<13x256xf32>
    %1781 = vector.broadcast %1778 : vector<1x256xf32> to vector<13x256xf32>
    %1782 = arith.mulf %1781, %1780 : vector<13x256xf32>
    %1783 = arith.addf %1777, %1782 : vector<13x256xf32>
    %1784 = vector.extract_strided_slice %1757 {offsets = [2, 0], sizes = [1, 256], strides = [1, 1]} : vector<8x256xf32> to vector<1x256xf32>
    %c0_982 = arith.constant 0 : index
    %c2_983 = arith.constant 2 : index
    %c0_984 = arith.constant 0 : index
    %c0_985 = arith.constant 0 : index
    %1785 = vector.load %arg3[%c0_982, %c2_983, %c0_984, %c0_985] : memref<1x8x13x256xf32, #tpu.memory_space<vmem>>, vector<1x1x13x256xf32>
    %1786 = vector.shape_cast %1785 : vector<1x1x13x256xf32> to vector<13x256xf32>
    %1787 = vector.broadcast %1784 : vector<1x256xf32> to vector<13x256xf32>
    %1788 = arith.mulf %1787, %1786 : vector<13x256xf32>
    %1789 = arith.addf %1783, %1788 : vector<13x256xf32>
    %1790 = vector.extract_strided_slice %1757 {offsets = [3, 0], sizes = [1, 256], strides = [1, 1]} : vector<8x256xf32> to vector<1x256xf32>
    %c0_986 = arith.constant 0 : index
    %c3_987 = arith.constant 3 : index
    %c0_988 = arith.constant 0 : index
    %c0_989 = arith.constant 0 : index
    %1791 = vector.load %arg3[%c0_986, %c3_987, %c0_988, %c0_989] : memref<1x8x13x256xf32, #tpu.memory_space<vmem>>, vector<1x1x13x256xf32>
    %1792 = vector.shape_cast %1791 : vector<1x1x13x256xf32> to vector<13x256xf32>
    %1793 = vector.broadcast %1790 : vector<1x256xf32> to vector<13x256xf32>
    %1794 = arith.mulf %1793, %1792 : vector<13x256xf32>
    %1795 = arith.addf %1789, %1794 : vector<13x256xf32>
    %1796 = vector.extract_strided_slice %1757 {offsets = [4, 0], sizes = [1, 256], strides = [1, 1]} : vector<8x256xf32> to vector<1x256xf32>
    %c0_990 = arith.constant 0 : index
    %c4_991 = arith.constant 4 : index
    %c0_992 = arith.constant 0 : index
    %c0_993 = arith.constant 0 : index
    %1797 = vector.load %arg3[%c0_990, %c4_991, %c0_992, %c0_993] : memref<1x8x13x256xf32, #tpu.memory_space<vmem>>, vector<1x1x13x256xf32>
    %1798 = vector.shape_cast %1797 : vector<1x1x13x256xf32> to vector<13x256xf32>
    %1799 = vector.broadcast %1796 : vector<1x256xf32> to vector<13x256xf32>
    %1800 = arith.mulf %1799, %1798 : vector<13x256xf32>
    %1801 = arith.addf %1795, %1800 : vector<13x256xf32>
    %1802 = vector.extract_strided_slice %1757 {offsets = [5, 0], sizes = [1, 256], strides = [1, 1]} : vector<8x256xf32> to vector<1x256xf32>
    %c0_994 = arith.constant 0 : index
    %c5_995 = arith.constant 5 : index
    %c0_996 = arith.constant 0 : index
    %c0_997 = arith.constant 0 : index
    %1803 = vector.load %arg3[%c0_994, %c5_995, %c0_996, %c0_997] : memref<1x8x13x256xf32, #tpu.memory_space<vmem>>, vector<1x1x13x256xf32>
    %1804 = vector.shape_cast %1803 : vector<1x1x13x256xf32> to vector<13x256xf32>
    %1805 = vector.broadcast %1802 : vector<1x256xf32> to vector<13x256xf32>
    %1806 = arith.mulf %1805, %1804 : vector<13x256xf32>
    %1807 = arith.addf %1801, %1806 : vector<13x256xf32>
    %1808 = vector.extract_strided_slice %1757 {offsets = [6, 0], sizes = [1, 256], strides = [1, 1]} : vector<8x256xf32> to vector<1x256xf32>
    %c0_998 = arith.constant 0 : index
    %c6_999 = arith.constant 6 : index
    %c0_1000 = arith.constant 0 : index
    %c0_1001 = arith.constant 0 : index
    %1809 = vector.load %arg3[%c0_998, %c6_999, %c0_1000, %c0_1001] : memref<1x8x13x256xf32, #tpu.memory_space<vmem>>, vector<1x1x13x256xf32>
    %1810 = vector.shape_cast %1809 : vector<1x1x13x256xf32> to vector<13x256xf32>
    %1811 = vector.broadcast %1808 : vector<1x256xf32> to vector<13x256xf32>
    %1812 = arith.mulf %1811, %1810 : vector<13x256xf32>
    %1813 = arith.addf %1807, %1812 : vector<13x256xf32>
    %1814 = vector.extract_strided_slice %1757 {offsets = [7, 0], sizes = [1, 256], strides = [1, 1]} : vector<8x256xf32> to vector<1x256xf32>
    %c0_1002 = arith.constant 0 : index
    %c7_1003 = arith.constant 7 : index
    %c0_1004 = arith.constant 0 : index
    %c0_1005 = arith.constant 0 : index
    %1815 = vector.load %arg3[%c0_1002, %c7_1003, %c0_1004, %c0_1005] : memref<1x8x13x256xf32, #tpu.memory_space<vmem>>, vector<1x1x13x256xf32>
    %1816 = vector.shape_cast %1815 : vector<1x1x13x256xf32> to vector<13x256xf32>
    %1817 = vector.broadcast %1814 : vector<1x256xf32> to vector<13x256xf32>
    %1818 = arith.mulf %1817, %1816 : vector<13x256xf32>
    %1819 = arith.addf %1813, %1818 : vector<13x256xf32>
    %1820 = arith.truncf %1819 : vector<13x256xf32> to vector<13x256xbf16>
    %c211 = arith.constant 211 : index
    %c0_1006 = arith.constant 0 : index
    %1821 = vector.load %arg13[%c211, %c0_1006] : memref<256x256xbf16, #tpu.memory_space<vmem>>, vector<13x256xbf16>
    tpu.vector_store %arg13[%c211, %c0_1006], %1820 {strides = array<i32>} : memref<256x256xbf16, #tpu.memory_space<vmem>>, vector<13x256xbf16>,
    %c0_1007 = arith.constant 0 : index
    %c14 = arith.constant 14 : index
    %1822 = memref.load %arg8[%c0_1007, %c14] : memref<8x16xf32, #tpu.memory_space<smem>>
    %1823 = vector.broadcast %1822 : f32 to vector<8x256xf32>
    %1824 = arith.mulf %169, %1823 : vector<8x256xf32>
    %c1_1008 = arith.constant 1 : index
    %c14_1009 = arith.constant 14 : index
    %1825 = memref.load %arg8[%c1_1008, %c14_1009] : memref<8x16xf32, #tpu.memory_space<smem>>
    %1826 = vector.broadcast %1825 : f32 to vector<8x256xf32>
    %1827 = arith.mulf %205, %1826 : vector<8x256xf32>
    %1828 = arith.addf %1824, %1827 : vector<8x256xf32>
    %c2_1010 = arith.constant 2 : index
    %c14_1011 = arith.constant 14 : index
    %1829 = memref.load %arg8[%c2_1010, %c14_1011] : memref<8x16xf32, #tpu.memory_space<smem>>
    %1830 = vector.broadcast %1829 : f32 to vector<8x256xf32>
    %1831 = arith.mulf %241, %1830 : vector<8x256xf32>
    %1832 = arith.addf %1828, %1831 : vector<8x256xf32>
    %c3_1012 = arith.constant 3 : index
    %c14_1013 = arith.constant 14 : index
    %1833 = memref.load %arg8[%c3_1012, %c14_1013] : memref<8x16xf32, #tpu.memory_space<smem>>
    %1834 = vector.broadcast %1833 : f32 to vector<8x256xf32>
    %1835 = arith.mulf %277, %1834 : vector<8x256xf32>
    %1836 = arith.addf %1832, %1835 : vector<8x256xf32>
    %c4_1014 = arith.constant 4 : index
    %c14_1015 = arith.constant 14 : index
    %1837 = memref.load %arg8[%c4_1014, %c14_1015] : memref<8x16xf32, #tpu.memory_space<smem>>
    %1838 = vector.broadcast %1837 : f32 to vector<8x256xf32>
    %1839 = arith.mulf %313, %1838 : vector<8x256xf32>
    %1840 = arith.addf %1836, %1839 : vector<8x256xf32>
    %c5_1016 = arith.constant 5 : index
    %c14_1017 = arith.constant 14 : index
    %1841 = memref.load %arg8[%c5_1016, %c14_1017] : memref<8x16xf32, #tpu.memory_space<smem>>
    %1842 = vector.broadcast %1841 : f32 to vector<8x256xf32>
    %1843 = arith.mulf %349, %1842 : vector<8x256xf32>
    %1844 = arith.addf %1840, %1843 : vector<8x256xf32>
    %c6_1018 = arith.constant 6 : index
    %c14_1019 = arith.constant 14 : index
    %1845 = memref.load %arg8[%c6_1018, %c14_1019] : memref<8x16xf32, #tpu.memory_space<smem>>
    %1846 = vector.broadcast %1845 : f32 to vector<8x256xf32>
    %1847 = arith.mulf %385, %1846 : vector<8x256xf32>
    %1848 = arith.addf %1844, %1847 : vector<8x256xf32>
    %c7_1020 = arith.constant 7 : index
    %c14_1021 = arith.constant 14 : index
    %1849 = memref.load %arg8[%c7_1020, %c14_1021] : memref<8x16xf32, #tpu.memory_space<smem>>
    %1850 = vector.broadcast %1849 : f32 to vector<8x256xf32>
    %1851 = arith.mulf %421, %1850 : vector<8x256xf32>
    %1852 = arith.addf %1848, %1851 : vector<8x256xf32>
    %c14_1022 = arith.constant 14 : index
    %1853 = memref.load %arg9[%c14_1022] : memref<16xf32, #tpu.memory_space<smem>>
    %1854 = vector.broadcast %1853 : f32 to vector<8x256xf32>
    %1855 = arith.addf %1852, %1854 : vector<8x256xf32>
    %cst_1023 = arith.constant 0.000000e+00 : f32
    %1856 = vector.broadcast %cst_1023 : f32 to vector<8x256xf32>
    %1857 = arith.maximumf %1855, %1856 : vector<8x256xf32>
    %1858 = arith.mulf %1, %1857 : vector<8x256xf32>
    %cst_1024 = arith.constant dense<0.000000e+00> : vector<256xf32>
    %1859 = vector.multi_reduction <add>, %1858, %cst_1024 [0] : vector<8x256xf32> to vector<256xf32>
    %1860 = vector.shape_cast %1859 : vector<256xf32> to vector<1x256xf32>
    %1861 = arith.truncf %1860 : vector<1x256xf32> to vector<1x256xbf16>
    %c224 = arith.constant 224 : index
    %c0_1025 = arith.constant 0 : index
    %1862 = vector.load %arg13[%c224, %c0_1025] : memref<256x256xbf16, #tpu.memory_space<vmem>>, vector<1x256xbf16>
    tpu.vector_store %arg13[%c224, %c0_1025], %1861 {strides = array<i32>} : memref<256x256xbf16, #tpu.memory_space<vmem>>, vector<1x256xbf16>,
    %1863 = arith.mulf %3, %1857 : vector<8x256xf32>
    %cst_1026 = arith.constant dense<0.000000e+00> : vector<256xf32>
    %1864 = vector.multi_reduction <add>, %1863, %cst_1026 [0] : vector<8x256xf32> to vector<256xf32>
    %1865 = vector.shape_cast %1864 : vector<256xf32> to vector<1x256xf32>
    %1866 = arith.truncf %1865 : vector<1x256xf32> to vector<1x256xbf16>
    %c225 = arith.constant 225 : index
    %c0_1027 = arith.constant 0 : index
    %1867 = vector.load %arg13[%c225, %c0_1027] : memref<256x256xbf16, #tpu.memory_space<vmem>>, vector<1x256xbf16>
    tpu.vector_store %arg13[%c225, %c0_1027], %1866 {strides = array<i32>} : memref<256x256xbf16, #tpu.memory_space<vmem>>, vector<1x256xbf16>,
    %1868 = arith.mulf %5, %1857 : vector<8x256xf32>
    %cst_1028 = arith.constant dense<0.000000e+00> : vector<256xf32>
    %1869 = vector.multi_reduction <add>, %1868, %cst_1028 [0] : vector<8x256xf32> to vector<256xf32>
    %1870 = vector.shape_cast %1869 : vector<256xf32> to vector<1x256xf32>
    %1871 = arith.truncf %1870 : vector<1x256xf32> to vector<1x256xbf16>
    %c226 = arith.constant 226 : index
    %c0_1029 = arith.constant 0 : index
    %1872 = vector.load %arg13[%c226, %c0_1029] : memref<256x256xbf16, #tpu.memory_space<vmem>>, vector<1x256xbf16>
    tpu.vector_store %arg13[%c226, %c0_1029], %1871 {strides = array<i32>} : memref<256x256xbf16, #tpu.memory_space<vmem>>, vector<1x256xbf16>,
    %1873 = vector.extract_strided_slice %1857 {offsets = [0, 0], sizes = [1, 256], strides = [1, 1]} : vector<8x256xf32> to vector<1x256xf32>
    %c0_1030 = arith.constant 0 : index
    %c0_1031 = arith.constant 0 : index
    %c0_1032 = arith.constant 0 : index
    %c0_1033 = arith.constant 0 : index
    %1874 = vector.load %arg3[%c0_1030, %c0_1031, %c0_1032, %c0_1033] : memref<1x8x13x256xf32, #tpu.memory_space<vmem>>, vector<1x1x13x256xf32>
    %1875 = vector.shape_cast %1874 : vector<1x1x13x256xf32> to vector<13x256xf32>
    %1876 = vector.broadcast %1873 : vector<1x256xf32> to vector<13x256xf32>
    %1877 = arith.mulf %1876, %1875 : vector<13x256xf32>
    %1878 = vector.extract_strided_slice %1857 {offsets = [1, 0], sizes = [1, 256], strides = [1, 1]} : vector<8x256xf32> to vector<1x256xf32>
    %c0_1034 = arith.constant 0 : index
    %c1_1035 = arith.constant 1 : index
    %c0_1036 = arith.constant 0 : index
    %c0_1037 = arith.constant 0 : index
    %1879 = vector.load %arg3[%c0_1034, %c1_1035, %c0_1036, %c0_1037] : memref<1x8x13x256xf32, #tpu.memory_space<vmem>>, vector<1x1x13x256xf32>
    %1880 = vector.shape_cast %1879 : vector<1x1x13x256xf32> to vector<13x256xf32>
    %1881 = vector.broadcast %1878 : vector<1x256xf32> to vector<13x256xf32>
    %1882 = arith.mulf %1881, %1880 : vector<13x256xf32>
    %1883 = arith.addf %1877, %1882 : vector<13x256xf32>
    %1884 = vector.extract_strided_slice %1857 {offsets = [2, 0], sizes = [1, 256], strides = [1, 1]} : vector<8x256xf32> to vector<1x256xf32>
    %c0_1038 = arith.constant 0 : index
    %c2_1039 = arith.constant 2 : index
    %c0_1040 = arith.constant 0 : index
    %c0_1041 = arith.constant 0 : index
    %1885 = vector.load %arg3[%c0_1038, %c2_1039, %c0_1040, %c0_1041] : memref<1x8x13x256xf32, #tpu.memory_space<vmem>>, vector<1x1x13x256xf32>
    %1886 = vector.shape_cast %1885 : vector<1x1x13x256xf32> to vector<13x256xf32>
    %1887 = vector.broadcast %1884 : vector<1x256xf32> to vector<13x256xf32>
    %1888 = arith.mulf %1887, %1886 : vector<13x256xf32>
    %1889 = arith.addf %1883, %1888 : vector<13x256xf32>
    %1890 = vector.extract_strided_slice %1857 {offsets = [3, 0], sizes = [1, 256], strides = [1, 1]} : vector<8x256xf32> to vector<1x256xf32>
    %c0_1042 = arith.constant 0 : index
    %c3_1043 = arith.constant 3 : index
    %c0_1044 = arith.constant 0 : index
    %c0_1045 = arith.constant 0 : index
    %1891 = vector.load %arg3[%c0_1042, %c3_1043, %c0_1044, %c0_1045] : memref<1x8x13x256xf32, #tpu.memory_space<vmem>>, vector<1x1x13x256xf32>
    %1892 = vector.shape_cast %1891 : vector<1x1x13x256xf32> to vector<13x256xf32>
    %1893 = vector.broadcast %1890 : vector<1x256xf32> to vector<13x256xf32>
    %1894 = arith.mulf %1893, %1892 : vector<13x256xf32>
    %1895 = arith.addf %1889, %1894 : vector<13x256xf32>
    %1896 = vector.extract_strided_slice %1857 {offsets = [4, 0], sizes = [1, 256], strides = [1, 1]} : vector<8x256xf32> to vector<1x256xf32>
    %c0_1046 = arith.constant 0 : index
    %c4_1047 = arith.constant 4 : index
    %c0_1048 = arith.constant 0 : index
    %c0_1049 = arith.constant 0 : index
    %1897 = vector.load %arg3[%c0_1046, %c4_1047, %c0_1048, %c0_1049] : memref<1x8x13x256xf32, #tpu.memory_space<vmem>>, vector<1x1x13x256xf32>
    %1898 = vector.shape_cast %1897 : vector<1x1x13x256xf32> to vector<13x256xf32>
    %1899 = vector.broadcast %1896 : vector<1x256xf32> to vector<13x256xf32>
    %1900 = arith.mulf %1899, %1898 : vector<13x256xf32>
    %1901 = arith.addf %1895, %1900 : vector<13x256xf32>
    %1902 = vector.extract_strided_slice %1857 {offsets = [5, 0], sizes = [1, 256], strides = [1, 1]} : vector<8x256xf32> to vector<1x256xf32>
    %c0_1050 = arith.constant 0 : index
    %c5_1051 = arith.constant 5 : index
    %c0_1052 = arith.constant 0 : index
    %c0_1053 = arith.constant 0 : index
    %1903 = vector.load %arg3[%c0_1050, %c5_1051, %c0_1052, %c0_1053] : memref<1x8x13x256xf32, #tpu.memory_space<vmem>>, vector<1x1x13x256xf32>
    %1904 = vector.shape_cast %1903 : vector<1x1x13x256xf32> to vector<13x256xf32>
    %1905 = vector.broadcast %1902 : vector<1x256xf32> to vector<13x256xf32>
    %1906 = arith.mulf %1905, %1904 : vector<13x256xf32>
    %1907 = arith.addf %1901, %1906 : vector<13x256xf32>
    %1908 = vector.extract_strided_slice %1857 {offsets = [6, 0], sizes = [1, 256], strides = [1, 1]} : vector<8x256xf32> to vector<1x256xf32>
    %c0_1054 = arith.constant 0 : index
    %c6_1055 = arith.constant 6 : index
    %c0_1056 = arith.constant 0 : index
    %c0_1057 = arith.constant 0 : index
    %1909 = vector.load %arg3[%c0_1054, %c6_1055, %c0_1056, %c0_1057] : memref<1x8x13x256xf32, #tpu.memory_space<vmem>>, vector<1x1x13x256xf32>
    %1910 = vector.shape_cast %1909 : vector<1x1x13x256xf32> to vector<13x256xf32>
    %1911 = vector.broadcast %1908 : vector<1x256xf32> to vector<13x256xf32>
    %1912 = arith.mulf %1911, %1910 : vector<13x256xf32>
    %1913 = arith.addf %1907, %1912 : vector<13x256xf32>
    %1914 = vector.extract_strided_slice %1857 {offsets = [7, 0], sizes = [1, 256], strides = [1, 1]} : vector<8x256xf32> to vector<1x256xf32>
    %c0_1058 = arith.constant 0 : index
    %c7_1059 = arith.constant 7 : index
    %c0_1060 = arith.constant 0 : index
    %c0_1061 = arith.constant 0 : index
    %1915 = vector.load %arg3[%c0_1058, %c7_1059, %c0_1060, %c0_1061] : memref<1x8x13x256xf32, #tpu.memory_space<vmem>>, vector<1x1x13x256xf32>
    %1916 = vector.shape_cast %1915 : vector<1x1x13x256xf32> to vector<13x256xf32>
    %1917 = vector.broadcast %1914 : vector<1x256xf32> to vector<13x256xf32>
    %1918 = arith.mulf %1917, %1916 : vector<13x256xf32>
    %1919 = arith.addf %1913, %1918 : vector<13x256xf32>
    %1920 = arith.truncf %1919 : vector<13x256xf32> to vector<13x256xbf16>
    %c227 = arith.constant 227 : index
    %c0_1062 = arith.constant 0 : index
    %1921 = vector.load %arg13[%c227, %c0_1062] : memref<256x256xbf16, #tpu.memory_space<vmem>>, vector<13x256xbf16>
    tpu.vector_store %arg13[%c227, %c0_1062], %1920 {strides = array<i32>} : memref<256x256xbf16, #tpu.memory_space<vmem>>, vector<13x256xbf16>,
    %c0_1063 = arith.constant 0 : index
    %c15 = arith.constant 15 : index
    %1922 = memref.load %arg8[%c0_1063, %c15] : memref<8x16xf32, #tpu.memory_space<smem>>
    %1923 = vector.broadcast %1922 : f32 to vector<8x256xf32>
    %1924 = arith.mulf %169, %1923 : vector<8x256xf32>
    %c1_1064 = arith.constant 1 : index
    %c15_1065 = arith.constant 15 : index
    %1925 = memref.load %arg8[%c1_1064, %c15_1065] : memref<8x16xf32, #tpu.memory_space<smem>>
    %1926 = vector.broadcast %1925 : f32 to vector<8x256xf32>
    %1927 = arith.mulf %205, %1926 : vector<8x256xf32>
    %1928 = arith.addf %1924, %1927 : vector<8x256xf32>
    %c2_1066 = arith.constant 2 : index
    %c15_1067 = arith.constant 15 : index
    %1929 = memref.load %arg8[%c2_1066, %c15_1067] : memref<8x16xf32, #tpu.memory_space<smem>>
    %1930 = vector.broadcast %1929 : f32 to vector<8x256xf32>
    %1931 = arith.mulf %241, %1930 : vector<8x256xf32>
    %1932 = arith.addf %1928, %1931 : vector<8x256xf32>
    %c3_1068 = arith.constant 3 : index
    %c15_1069 = arith.constant 15 : index
    %1933 = memref.load %arg8[%c3_1068, %c15_1069] : memref<8x16xf32, #tpu.memory_space<smem>>
    %1934 = vector.broadcast %1933 : f32 to vector<8x256xf32>
    %1935 = arith.mulf %277, %1934 : vector<8x256xf32>
    %1936 = arith.addf %1932, %1935 : vector<8x256xf32>
    %c4_1070 = arith.constant 4 : index
    %c15_1071 = arith.constant 15 : index
    %1937 = memref.load %arg8[%c4_1070, %c15_1071] : memref<8x16xf32, #tpu.memory_space<smem>>
    %1938 = vector.broadcast %1937 : f32 to vector<8x256xf32>
    %1939 = arith.mulf %313, %1938 : vector<8x256xf32>
    %1940 = arith.addf %1936, %1939 : vector<8x256xf32>
    %c5_1072 = arith.constant 5 : index
    %c15_1073 = arith.constant 15 : index
    %1941 = memref.load %arg8[%c5_1072, %c15_1073] : memref<8x16xf32, #tpu.memory_space<smem>>
    %1942 = vector.broadcast %1941 : f32 to vector<8x256xf32>
    %1943 = arith.mulf %349, %1942 : vector<8x256xf32>
    %1944 = arith.addf %1940, %1943 : vector<8x256xf32>
    %c6_1074 = arith.constant 6 : index
    %c15_1075 = arith.constant 15 : index
    %1945 = memref.load %arg8[%c6_1074, %c15_1075] : memref<8x16xf32, #tpu.memory_space<smem>>
    %1946 = vector.broadcast %1945 : f32 to vector<8x256xf32>
    %1947 = arith.mulf %385, %1946 : vector<8x256xf32>
    %1948 = arith.addf %1944, %1947 : vector<8x256xf32>
    %c7_1076 = arith.constant 7 : index
    %c15_1077 = arith.constant 15 : index
    %1949 = memref.load %arg8[%c7_1076, %c15_1077] : memref<8x16xf32, #tpu.memory_space<smem>>
    %1950 = vector.broadcast %1949 : f32 to vector<8x256xf32>
    %1951 = arith.mulf %421, %1950 : vector<8x256xf32>
    %1952 = arith.addf %1948, %1951 : vector<8x256xf32>
    %c15_1078 = arith.constant 15 : index
    %1953 = memref.load %arg9[%c15_1078] : memref<16xf32, #tpu.memory_space<smem>>
    %1954 = vector.broadcast %1953 : f32 to vector<8x256xf32>
    %1955 = arith.addf %1952, %1954 : vector<8x256xf32>
    %cst_1079 = arith.constant 0.000000e+00 : f32
    %1956 = vector.broadcast %cst_1079 : f32 to vector<8x256xf32>
    %1957 = arith.maximumf %1955, %1956 : vector<8x256xf32>
    %1958 = arith.mulf %1, %1957 : vector<8x256xf32>
    %cst_1080 = arith.constant dense<0.000000e+00> : vector<256xf32>
    %1959 = vector.multi_reduction <add>, %1958, %cst_1080 [0] : vector<8x256xf32> to vector<256xf32>
    %1960 = vector.shape_cast %1959 : vector<256xf32> to vector<1x256xf32>
    %1961 = arith.truncf %1960 : vector<1x256xf32> to vector<1x256xbf16>
    %c240 = arith.constant 240 : index
    %c0_1081 = arith.constant 0 : index
    %1962 = vector.load %arg13[%c240, %c0_1081] : memref<256x256xbf16, #tpu.memory_space<vmem>>, vector<1x256xbf16>
    tpu.vector_store %arg13[%c240, %c0_1081], %1961 {strides = array<i32>} : memref<256x256xbf16, #tpu.memory_space<vmem>>, vector<1x256xbf16>,
    %1963 = arith.mulf %3, %1957 : vector<8x256xf32>
    %cst_1082 = arith.constant dense<0.000000e+00> : vector<256xf32>
    %1964 = vector.multi_reduction <add>, %1963, %cst_1082 [0] : vector<8x256xf32> to vector<256xf32>
    %1965 = vector.shape_cast %1964 : vector<256xf32> to vector<1x256xf32>
    %1966 = arith.truncf %1965 : vector<1x256xf32> to vector<1x256xbf16>
    %c241 = arith.constant 241 : index
    %c0_1083 = arith.constant 0 : index
    %1967 = vector.load %arg13[%c241, %c0_1083] : memref<256x256xbf16, #tpu.memory_space<vmem>>, vector<1x256xbf16>
    tpu.vector_store %arg13[%c241, %c0_1083], %1966 {strides = array<i32>} : memref<256x256xbf16, #tpu.memory_space<vmem>>, vector<1x256xbf16>,
    %1968 = arith.mulf %5, %1957 : vector<8x256xf32>
    %cst_1084 = arith.constant dense<0.000000e+00> : vector<256xf32>
    %1969 = vector.multi_reduction <add>, %1968, %cst_1084 [0] : vector<8x256xf32> to vector<256xf32>
    %1970 = vector.shape_cast %1969 : vector<256xf32> to vector<1x256xf32>
    %1971 = arith.truncf %1970 : vector<1x256xf32> to vector<1x256xbf16>
    %c242 = arith.constant 242 : index
    %c0_1085 = arith.constant 0 : index
    %1972 = vector.load %arg13[%c242, %c0_1085] : memref<256x256xbf16, #tpu.memory_space<vmem>>, vector<1x256xbf16>
    tpu.vector_store %arg13[%c242, %c0_1085], %1971 {strides = array<i32>} : memref<256x256xbf16, #tpu.memory_space<vmem>>, vector<1x256xbf16>,
    %1973 = vector.extract_strided_slice %1957 {offsets = [0, 0], sizes = [1, 256], strides = [1, 1]} : vector<8x256xf32> to vector<1x256xf32>
    %c0_1086 = arith.constant 0 : index
    %c0_1087 = arith.constant 0 : index
    %c0_1088 = arith.constant 0 : index
    %c0_1089 = arith.constant 0 : index
    %1974 = vector.load %arg3[%c0_1086, %c0_1087, %c0_1088, %c0_1089] : memref<1x8x13x256xf32, #tpu.memory_space<vmem>>, vector<1x1x13x256xf32>
    %1975 = vector.shape_cast %1974 : vector<1x1x13x256xf32> to vector<13x256xf32>
    %1976 = vector.broadcast %1973 : vector<1x256xf32> to vector<13x256xf32>
    %1977 = arith.mulf %1976, %1975 : vector<13x256xf32>
    %1978 = vector.extract_strided_slice %1957 {offsets = [1, 0], sizes = [1, 256], strides = [1, 1]} : vector<8x256xf32> to vector<1x256xf32>
    %c0_1090 = arith.constant 0 : index
    %c1_1091 = arith.constant 1 : index
    %c0_1092 = arith.constant 0 : index
    %c0_1093 = arith.constant 0 : index
    %1979 = vector.load %arg3[%c0_1090, %c1_1091, %c0_1092, %c0_1093] : memref<1x8x13x256xf32, #tpu.memory_space<vmem>>, vector<1x1x13x256xf32>
    %1980 = vector.shape_cast %1979 : vector<1x1x13x256xf32> to vector<13x256xf32>
    %1981 = vector.broadcast %1978 : vector<1x256xf32> to vector<13x256xf32>
    %1982 = arith.mulf %1981, %1980 : vector<13x256xf32>
    %1983 = arith.addf %1977, %1982 : vector<13x256xf32>
    %1984 = vector.extract_strided_slice %1957 {offsets = [2, 0], sizes = [1, 256], strides = [1, 1]} : vector<8x256xf32> to vector<1x256xf32>
    %c0_1094 = arith.constant 0 : index
    %c2_1095 = arith.constant 2 : index
    %c0_1096 = arith.constant 0 : index
    %c0_1097 = arith.constant 0 : index
    %1985 = vector.load %arg3[%c0_1094, %c2_1095, %c0_1096, %c0_1097] : memref<1x8x13x256xf32, #tpu.memory_space<vmem>>, vector<1x1x13x256xf32>
    %1986 = vector.shape_cast %1985 : vector<1x1x13x256xf32> to vector<13x256xf32>
    %1987 = vector.broadcast %1984 : vector<1x256xf32> to vector<13x256xf32>
    %1988 = arith.mulf %1987, %1986 : vector<13x256xf32>
    %1989 = arith.addf %1983, %1988 : vector<13x256xf32>
    %1990 = vector.extract_strided_slice %1957 {offsets = [3, 0], sizes = [1, 256], strides = [1, 1]} : vector<8x256xf32> to vector<1x256xf32>
    %c0_1098 = arith.constant 0 : index
    %c3_1099 = arith.constant 3 : index
    %c0_1100 = arith.constant 0 : index
    %c0_1101 = arith.constant 0 : index
    %1991 = vector.load %arg3[%c0_1098, %c3_1099, %c0_1100, %c0_1101] : memref<1x8x13x256xf32, #tpu.memory_space<vmem>>, vector<1x1x13x256xf32>
    %1992 = vector.shape_cast %1991 : vector<1x1x13x256xf32> to vector<13x256xf32>
    %1993 = vector.broadcast %1990 : vector<1x256xf32> to vector<13x256xf32>
    %1994 = arith.mulf %1993, %1992 : vector<13x256xf32>
    %1995 = arith.addf %1989, %1994 : vector<13x256xf32>
    %1996 = vector.extract_strided_slice %1957 {offsets = [4, 0], sizes = [1, 256], strides = [1, 1]} : vector<8x256xf32> to vector<1x256xf32>
    %c0_1102 = arith.constant 0 : index
    %c4_1103 = arith.constant 4 : index
    %c0_1104 = arith.constant 0 : index
    %c0_1105 = arith.constant 0 : index
    %1997 = vector.load %arg3[%c0_1102, %c4_1103, %c0_1104, %c0_1105] : memref<1x8x13x256xf32, #tpu.memory_space<vmem>>, vector<1x1x13x256xf32>
    %1998 = vector.shape_cast %1997 : vector<1x1x13x256xf32> to vector<13x256xf32>
    %1999 = vector.broadcast %1996 : vector<1x256xf32> to vector<13x256xf32>
    %2000 = arith.mulf %1999, %1998 : vector<13x256xf32>
    %2001 = arith.addf %1995, %2000 : vector<13x256xf32>
    %2002 = vector.extract_strided_slice %1957 {offsets = [5, 0], sizes = [1, 256], strides = [1, 1]} : vector<8x256xf32> to vector<1x256xf32>
    %c0_1106 = arith.constant 0 : index
    %c5_1107 = arith.constant 5 : index
    %c0_1108 = arith.constant 0 : index
    %c0_1109 = arith.constant 0 : index
    %2003 = vector.load %arg3[%c0_1106, %c5_1107, %c0_1108, %c0_1109] : memref<1x8x13x256xf32, #tpu.memory_space<vmem>>, vector<1x1x13x256xf32>
    %2004 = vector.shape_cast %2003 : vector<1x1x13x256xf32> to vector<13x256xf32>
    %2005 = vector.broadcast %2002 : vector<1x256xf32> to vector<13x256xf32>
    %2006 = arith.mulf %2005, %2004 : vector<13x256xf32>
    %2007 = arith.addf %2001, %2006 : vector<13x256xf32>
    %2008 = vector.extract_strided_slice %1957 {offsets = [6, 0], sizes = [1, 256], strides = [1, 1]} : vector<8x256xf32> to vector<1x256xf32>
    %c0_1110 = arith.constant 0 : index
    %c6_1111 = arith.constant 6 : index
    %c0_1112 = arith.constant 0 : index
    %c0_1113 = arith.constant 0 : index
    %2009 = vector.load %arg3[%c0_1110, %c6_1111, %c0_1112, %c0_1113] : memref<1x8x13x256xf32, #tpu.memory_space<vmem>>, vector<1x1x13x256xf32>
    %2010 = vector.shape_cast %2009 : vector<1x1x13x256xf32> to vector<13x256xf32>
    %2011 = vector.broadcast %2008 : vector<1x256xf32> to vector<13x256xf32>
    %2012 = arith.mulf %2011, %2010 : vector<13x256xf32>
    %2013 = arith.addf %2007, %2012 : vector<13x256xf32>
    %2014 = vector.extract_strided_slice %1957 {offsets = [7, 0], sizes = [1, 256], strides = [1, 1]} : vector<8x256xf32> to vector<1x256xf32>
    %c0_1114 = arith.constant 0 : index
    %c7_1115 = arith.constant 7 : index
    %c0_1116 = arith.constant 0 : index
    %c0_1117 = arith.constant 0 : index
    %2015 = vector.load %arg3[%c0_1114, %c7_1115, %c0_1116, %c0_1117] : memref<1x8x13x256xf32, #tpu.memory_space<vmem>>, vector<1x1x13x256xf32>
    %2016 = vector.shape_cast %2015 : vector<1x1x13x256xf32> to vector<13x256xf32>
    %2017 = vector.broadcast %2014 : vector<1x256xf32> to vector<13x256xf32>
    %2018 = arith.mulf %2017, %2016 : vector<13x256xf32>
    %2019 = arith.addf %2013, %2018 : vector<13x256xf32>
    %2020 = arith.truncf %2019 : vector<13x256xf32> to vector<13x256xbf16>
    %c243 = arith.constant 243 : index
    %c0_1118 = arith.constant 0 : index
    %2021 = vector.load %arg13[%c243, %c0_1118] : memref<256x256xbf16, #tpu.memory_space<vmem>>, vector<13x256xbf16>
    tpu.vector_store %arg13[%c243, %c0_1118], %2020 {strides = array<i32>} : memref<256x256xbf16, #tpu.memory_space<vmem>>, vector<13x256xbf16>,
    %c0_1119 = arith.constant 0 : index
    %c0_1120 = arith.constant 0 : index
    %2022 = vector.load %arg10[%c0_1119, %c0_1120] : memref<32x256xbf16, #tpu.memory_space<vmem>>, vector<32x256xbf16>
    %c0_1121 = arith.constant 0 : index
    %c0_1122 = arith.constant 0 : index
    %2023 = vector.load %arg13[%c0_1121, %c0_1122] : memref<256x256xbf16, #tpu.memory_space<vmem>>, vector<256x256xbf16>
    %cst_1123 = arith.constant dense<0.000000e+00> : vector<32x256xf32>
    %2024 = tpu.matmul %2022, %2023, %cst_1123 {dimension_numbers = #tpu.dot_dimension_numbers<[1], [0], [0], [1], [0, 0, 1, 1], [], []>} : vector<32x256xbf16>, vector<256x256xbf16>, vector<32x256xf32> -> vector<32x256xf32>
    %c0_1124 = arith.constant 0 : index
    %c0_1125 = arith.constant 0 : index
    %2025 = vector.load %arg11[%c0_1124, %c0_1125] : memref<32x1xf32, #tpu.memory_space<vmem>>, vector<32x1xf32>
    %2026 = vector.broadcast %2025 : vector<32x1xf32> to vector<32x256xf32>
    %2027 = arith.addf %2024, %2026 : vector<32x256xf32>
    %cst_1126 = arith.constant 0.000000e+00 : f32
    %2028 = vector.broadcast %cst_1126 : f32 to vector<32x256xf32>
    %2029 = arith.cmpf ogt, %2027, %2028 : vector<32x256xf32>
    %cst_1127 = arith.constant 1.000000e-01 : f32
    %2030 = vector.broadcast %cst_1127 : f32 to vector<32x256xf32>
    %2031 = arith.mulf %2030, %2027 : vector<32x256xf32>
    %2032 = arith.select %2029, %2027, %2031 : vector<32x256xi1>, vector<32x256xf32>
    %c0_1128 = arith.constant 0 : index
    %c0_1129 = arith.constant 0 : index
    %c0_1130 = arith.constant 0 : index
    %2033 = vector.load %arg12[%c0_1128, %c0_1129, %c0_1130] : memref<1x32x256xf32, #tpu.memory_space<vmem>>, vector<1x32x256xf32>
    %2034 = vector.shape_cast %2033 : vector<1x32x256xf32> to vector<32x256xf32>
    %2035 = vector.shape_cast %2032 : vector<32x256xf32> to vector<1x32x256xf32>
    tpu.vector_store %arg12[%c0_1128, %c0_1129, %c0_1130], %2035 {strides = array<i32>} : memref<1x32x256xf32, #tpu.memory_space<vmem>>, vector<1x32x256xf32>,
    return
  }
  func.func @transform_0(%arg0: i32, %arg1: i32) -> (i32, i32, i32, i32) {
    %c0_i32 = arith.constant 0 : i32
    %c0_i32_0 = arith.constant 0 : i32
    %c0_i32_1 = arith.constant 0 : i32
    return %arg0, %c0_i32, %c0_i32_0, %arg1 : i32, i32, i32, i32
  }
  func.func @transform_1(%arg0: i32, %arg1: i32) -> (i32, i32, i32, i32) {
    %c0_i32 = arith.constant 0 : i32
    %c0_i32_0 = arith.constant 0 : i32
    %c0_i32_1 = arith.constant 0 : i32
    return %arg0, %c0_i32, %c0_i32_0, %arg1 : i32, i32, i32, i32
  }
  func.func @transform_2(%arg0: i32, %arg1: i32) -> (i32, i32) {
    %c0_i32 = arith.constant 0 : i32
    %c0_i32_0 = arith.constant 0 : i32
    %c0_i32_1 = arith.constant 0 : i32
    return %c0_i32, %c0_i32_0 : i32, i32
  }
  func.func @transform_3(%arg0: i32, %arg1: i32) -> i32 {
    %c0_i32 = arith.constant 0 : i32
    %c0_i32_0 = arith.constant 0 : i32
    return %c0_i32 : i32
  }
  func.func @transform_4(%arg0: i32, %arg1: i32) -> (i32, i32) {
    %c0_i32 = arith.constant 0 : i32
    %c0_i32_0 = arith.constant 0 : i32
    %c0_i32_1 = arith.constant 0 : i32
    return %c0_i32, %c0_i32_0 : i32, i32
  }
  func.func @transform_5(%arg0: i32, %arg1: i32) -> i32 {
    %c0_i32 = arith.constant 0 : i32
    %c0_i32_0 = arith.constant 0 : i32
    return %c0_i32 : i32
  }
  func.func @transform_6(%arg0: i32, %arg1: i32) -> (i32, i32) {
    %c0_i32 = arith.constant 0 : i32
    %c0_i32_0 = arith.constant 0 : i32
    %c0_i32_1 = arith.constant 0 : i32
    return %c0_i32, %c0_i32_0 : i32, i32
  }
  func.func @transform_7(%arg0: i32, %arg1: i32) -> i32 {
    %c0_i32 = arith.constant 0 : i32
    %c0_i32_0 = arith.constant 0 : i32
    return %c0_i32 : i32
  }
  func.func @transform_8(%arg0: i32, %arg1: i32) -> (i32, i32) {
    %c0_i32 = arith.constant 0 : i32
    %c0_i32_0 = arith.constant 0 : i32
    %c0_i32_1 = arith.constant 0 : i32
    return %c0_i32, %c0_i32_0 : i32, i32
  }
  func.func @transform_9(%arg0: i32, %arg1: i32) -> (i32, i32) {
    %c0_i32 = arith.constant 0 : i32
    %c0_i32_0 = arith.constant 0 : i32
    %c0_i32_1 = arith.constant 0 : i32
    return %c0_i32, %c0_i32_0 : i32, i32
  }
  func.func @transform_10(%arg0: i32, %arg1: i32) -> (i32, i32, i32) {
    %c0_i32 = arith.constant 0 : i32
    %c0_i32_0 = arith.constant 0 : i32
    return %arg0, %c0_i32, %arg1 : i32, i32, i32
  }
}

</mosaic_0001>

<llo_original>
// kernel: custom-call.8
$region0: #{custom-call.8}
  %s0 = inlined_call_operand.vmem [shape: f32[2,512], index: 0, kind: output, shape index: {}]

// kernel: pointconv_forward.1
$region0: #{pointconv_forward.1}
  #allocation0 [shape = 'u32[]', space=smem, size = 0x4, offset = 0x4, fixed_abs, tag = 'smem constant byte address 0x4 - core index']
  #allocation1 [shape = 'u32[144,128]{1,0:T(1,128)}', space=vmem, size = 0x12000, scoped, tag = 'internal scratch']
  #allocation2 [shape = 'bf16[256,256]{1,0:T(16,128)(2,1)}', space=vmem, size = 0x20000, scoped, tag = 'scratch operand']
  %s0 = inlined_call_operand.vmem [shape: f32[2,3,8,256], index: 0, kind: input, shape index: {}]
  %s1 = inlined_call_operand.vmem [shape: f32[2,8,13,256], index: 1, kind: input, shape index: {}]
  %s2 = inlined_call_operand.vmem [shape: f32[3,8], index: 2, kind: input, shape index: {}]
  %s3 = inlined_call_operand.vmem [shape: f32[8], index: 3, kind: input, shape index: {}]
  %s4 = inlined_call_operand.vmem [shape: f32[8,8], index: 4, kind: input, shape index: {}]
  %s5 = inlined_call_operand.vmem [shape: f32[8], index: 5, kind: input, shape index: {}]
  %s6 = inlined_call_operand.vmem [shape: f32[8,16], index: 6, kind: input, shape index: {}]
  %s7 = inlined_call_operand.vmem [shape: f32[16], index: 7, kind: input, shape index: {}]
  %s8 = inlined_call_operand.vmem [shape: bf16[32,256], index: 8, kind: input, shape index: {}]
  %s9 = inlined_call_operand.vmem [shape: f32[32,1], index: 9, kind: input, shape index: {}]
  %s10 = inlined_call_operand.hbm [shape: f32[2,32,256], index: 10, kind: output, shape index: {}]
  %s11 = sld [smem:[#allocation0]]
  $region97: #{pointconv_forward.1} parent=0
    _
  %s13 = ssub.s32 1, %s11
  %s14 = scalar_select 0, %s13, %s11
  $region1: #{pointconv_forward.1} parent=0
    #allocation3 [shape = 'u8[2048]{0}', space=smem, size = 0x800, scoped, tag = 'input window, operand 2, single buffered']
    #allocation4 [shape = 's32[2]{0}', space=sflag, size = 0x8, scoped, tag = 'scoped memory for pointconv_forward.1']
    #allocation5 [shape = 's32[2]{0}', space=sflag, size = 0x8, scoped, tag = 'scoped memory for pointconv_forward.1']
    #allocation6 [shape = 'u8[512]{0}', space=smem, size = 0x200, scoped, tag = 'input window, operand 3, single buffered']
    #allocation7 [shape = 's32[1]{0}', space=sflag, size = 0x4, scoped, tag = 'scoped memory for pointconv_forward.1']
    #allocation8 [shape = 'u8[4096]{0}', space=smem, size = 0x1000, scoped, tag = 'input window, operand 4, single buffered']
    #allocation9 [shape = 'u8[512]{0}', space=smem, size = 0x200, scoped, tag = 'input window, operand 5, single buffered']
    #allocation10 [shape = 's32[1]{0}', space=sflag, size = 0x4, scoped, tag = 'scoped memory for pointconv_forward.1']
    #allocation11 [shape = 'u8[4096]{0}', space=smem, size = 0x1000, scoped, tag = 'input window, operand 6, single buffered']
    #allocation12 [shape = 'u8[512]{0}', space=smem, size = 0x200, scoped, tag = 'input window, operand 7, single buffered']
    #allocation13 [shape = 's32[1]{0}', space=sflag, size = 0x4, scoped, tag = 'scoped memory for pointconv_forward.1']
    #allocation14 [shape = 'u8[65536]{0}', space=vmem, size = 0x10000, scoped, tag = 'output window, operand 0']
    %15 = vsyncpa [#allocation5], 0
    %16 = vsyncpa [#allocation7], 0
    %17 = vsyncpa [#allocation10], 0
    %18 = vsyncpa [#allocation13], 0
    %19 = vsyncpa [#allocation4], 0
    %s20 = scalar_lea.sflag [#allocation4], 1
    %21 = vsyncpa %s20, 0
    loop: start=0, step=1, limit=4
    $region2: #{pointconv_forward.1} parent=1 // loop_pre_header
      _
    $region3: #{pointconv_forward.1} parent=1 // loop_header
      %s23 = sphi 0, %s27
      %p24 = scmp.ge.s32.totalorder %s23, 4
      %s30 = sphi 0, %s42
      %s31 = sphi 0, %s38
      %s32 = sphi 0, %s30
      %s33 = sphi 0, %s31
      %s34 = sphi 0, %s32
      %s35 = sphi 0, %s33
      %s47 = sphi 0, %s49
      %s50 = sphi 0, %s47
      %s51 = sphi 0, %s50
      %s67 = sphi 0, %s51
      %s75 = sphi 0, %s77
      %s78 = sphi 0, %s75
      %s79 = sphi 0, %s78
      %s95 = sphi 0, %s79
      %s99 = sphi 0, %s99
      %s101 = sphi 0, %s99
      %s102 = sphi 0, %s101
      %s116 = sphi 0, %s102
      %s120 = sphi 0, %s120
      %s122 = sphi 0, %s120
      %s123 = sphi 0, %s122
      %s137 = sphi 0, %s123
      %s141 = sphi 0, %s141
      %s143 = sphi 0, %s141
      %s144 = sphi 0, %s143
      %s158 = sphi 0, %s144
      %s162 = sphi 0, %s162
      %s164 = sphi 0, %s162
      %s165 = sphi 0, %s164
      %s179 = sphi 0, %s165
      %s183 = sphi 0, %s183
      %s185 = sphi 0, %s183
      %s186 = sphi 0, %s185
      %s200 = sphi 0, %s186
      %s204 = sphi 0, %s204
      %s206 = sphi 0, %s204
      %s207 = sphi 0, %s206
      %s221 = sphi 0, %s207
      %s225 = sphi 0, %s225
      %s227 = sphi 0, %s225
      %s228 = sphi 0, %s227
      %s242 = sphi 0, %s228
      %s246 = sphi 0, %s246
      %s248 = sphi 0, %s246
      %s249 = sphi 0, %s248
      %s263 = sphi 0, %s249
      %s271 = sphi 0, %s273
      %s274 = sphi 0, %s271
      %s275 = sphi 0, %s274
      %s291 = sphi 0, %s275
    $region4: #{pointconv_forward.1} parent=1 // loop_header_branch
      %26 = sbr.rel (%p24) target = $region8
    $region5: #{pointconv_forward.1} parent=1 // loop_body
      %s28 = ssub.s32 %s23, 1
      %s29 = ssub.s32 %s23, 2
      %s36 = sadd.s32 1, %s31
      %p37 = scmp.ge.s32.totalorder %s36, 1
      %s38 = scalar_select %p37, 0, %s36
      %s39 = sadd.s32 1, %s30
      %s40 = scalar_select %p37, %s39, %s30
      %p41 = scmp.ge.s32.totalorder %s40, 2
      %s42 = scalar_select %p41, 0, %s40
      %s43 = ssub.s32 %s30, %s42
      %s44 = ssub.s32 %s31, %s38
      %s45 = sor.u32 %s43, %s44
      %p46 = scmp.eq.s32.totalorder %s45, 0
      %s48 = sadd.s32 %s47, 1
      %s49 = scalar_select %p46, %s47, %s48
      %p52 = pneg %p46
      %p53 = scmp.eq.s32.totalorder %s23, 1
      %p54 = por %p52, %p53
      %p55 = scmp.ne.s32.totalorder %s47, %s50
      %p56 = scmp.eq.s32.totalorder %s23, 0
      %p57 = por %p55, %p56
      %p58 = scmp.ne.s32.totalorder %s47, %s50
      %p59 = scmp.eq.s32.totalorder %s28, 1
      %p60 = por %p58, %p59
      %p61 = scmp.ne.s32.totalorder %s50, %s51
      %p62 = scmp.eq.s32.totalorder %s28, 0
      %p63 = por %p61, %p62
      %p64 = scmp.ne.s32.totalorder %s50, %s51
      %p65 = scmp.eq.s32.totalorder %s29, 1
      %p66 = por %p64, %p65
      %p68 = scmp.ne.s32.totalorder %s51, %s67
      %p69 = scmp.eq.s32.totalorder %s29, 0
      %p70 = por %p68, %p69
      %s71 = ssub.s32 %s30, %s42
      %s72 = ssub.s32 %s31, %s38
      %s73 = sor.u32 %s71, %s72
      %p74 = scmp.eq.s32.totalorder %s73, 0
      %s76 = sadd.s32 %s75, 1
      %s77 = scalar_select %p74, %s75, %s76
      %p80 = pneg %p74
      %p81 = scmp.eq.s32.totalorder %s23, 1
      %p82 = por %p80, %p81
      %p83 = scmp.ne.s32.totalorder %s75, %s78
      %p84 = scmp.eq.s32.totalorder %s23, 0
      %p85 = por %p83, %p84
      %p86 = scmp.ne.s32.totalorder %s75, %s78
      %p87 = scmp.eq.s32.totalorder %s28, 1
      %p88 = por %p86, %p87
      %p89 = scmp.ne.s32.totalorder %s78, %s79
      %p90 = scmp.eq.s32.totalorder %s28, 0
      %p91 = por %p89, %p90
      %p92 = scmp.ne.s32.totalorder %s78, %s79
      %p93 = scmp.eq.s32.totalorder %s29, 1
      %p94 = por %p92, %p93
      %p96 = scmp.ne.s32.totalorder %s79, %s95
      %p97 = scmp.eq.s32.totalorder %s29, 0
      %p98 = por %p96, %p97
      %s100 = sadd.s32 %s99, 1
      %p103 = scmp.eq.s32.totalorder %s23, 1
      %p104 = scmp.ne.s32.totalorder %s99, %s101
      %p105 = scmp.eq.s32.totalorder %s23, 0
      %p106 = por %p104, %p105
      %p107 = scmp.ne.s32.totalorder %s99, %s101
      %p108 = scmp.eq.s32.totalorder %s28, 1
      %p109 = por %p107, %p108
      %p110 = scmp.ne.s32.totalorder %s101, %s102
      %p111 = scmp.eq.s32.totalorder %s28, 0
      %p112 = por %p110, %p111
      %p113 = scmp.ne.s32.totalorder %s101, %s102
      %p114 = scmp.eq.s32.totalorder %s29, 1
      %p115 = por %p113, %p114
      %p117 = scmp.ne.s32.totalorder %s102, %s116
      %p118 = scmp.eq.s32.totalorder %s29, 0
      %p119 = por %p117, %p118
      %s121 = sadd.s32 %s120, 1
      %p124 = scmp.eq.s32.totalorder %s23, 1
      %p125 = scmp.ne.s32.totalorder %s120, %s122
      %p126 = scmp.eq.s32.totalorder %s23, 0
      %p127 = por %p125, %p126
      %p128 = scmp.ne.s32.totalorder %s120, %s122
      %p129 = scmp.eq.s32.totalorder %s28, 1
      %p130 = por %p128, %p129
      %p131 = scmp.ne.s32.totalorder %s122, %s123
      %p132 = scmp.eq.s32.totalorder %s28, 0
      %p133 = por %p131, %p132
      %p134 = scmp.ne.s32.totalorder %s122, %s123
      %p135 = scmp.eq.s32.totalorder %s29, 1
      %p136 = por %p134, %p135
      %p138 = scmp.ne.s32.totalorder %s123, %s137
      %p139 = scmp.eq.s32.totalorder %s29, 0
      %p140 = por %p138, %p139
      %s142 = sadd.s32 %s141, 1
      %p145 = scmp.eq.s32.totalorder %s23, 1
      %p146 = scmp.ne.s32.totalorder %s141, %s143
      %p147 = scmp.eq.s32.totalorder %s23, 0
      %p148 = por %p146, %p147
      %p149 = scmp.ne.s32.totalorder %s141, %s143
      %p150 = scmp.eq.s32.totalorder %s28, 1
      %p151 = por %p149, %p150
      %p152 = scmp.ne.s32.totalorder %s143, %s144
      %p153 = scmp.eq.s32.totalorder %s28, 0
      %p154 = por %p152, %p153
      %p155 = scmp.ne.s32.totalorder %s143, %s144
      %p156 = scmp.eq.s32.totalorder %s29, 1
      %p157 = por %p155, %p156
      %p159 = scmp.ne.s32.totalorder %s144, %s158
      %p160 = scmp.eq.s32.totalorder %s29, 0
      %p161 = por %p159, %p160
      %s163 = sadd.s32 %s162, 1
      %p166 = scmp.eq.s32.totalorder %s23, 1
      %p167 = scmp.ne.s32.totalorder %s162, %s164
      %p168 = scmp.eq.s32.totalorder %s23, 0
      %p169 = por %p167, %p168
      %p170 = scmp.ne.s32.totalorder %s162, %s164
      %p171 = scmp.eq.s32.totalorder %s28, 1
      %p172 = por %p170, %p171
      %p173 = scmp.ne.s32.totalorder %s164, %s165
      %p174 = scmp.eq.s32.totalorder %s28, 0
      %p175 = por %p173, %p174
      %p176 = scmp.ne.s32.totalorder %s164, %s165
      %p177 = scmp.eq.s32.totalorder %s29, 1
      %p178 = por %p176, %p177
      %p180 = scmp.ne.s32.totalorder %s165, %s179
      %p181 = scmp.eq.s32.totalorder %s29, 0
      %p182 = por %p180, %p181
      %s184 = sadd.s32 %s183, 1
      %p187 = scmp.eq.s32.totalorder %s23, 1
      %p188 = scmp.ne.s32.totalorder %s183, %s185
      %p189 = scmp.eq.s32.totalorder %s23, 0
      %p190 = por %p188, %p189
      %p191 = scmp.ne.s32.totalorder %s183, %s185
      %p192 = scmp.eq.s32.totalorder %s28, 1
      %p193 = por %p191, %p192
      %p194 = scmp.ne.s32.totalorder %s185, %s186
      %p195 = scmp.eq.s32.totalorder %s28, 0
      %p196 = por %p194, %p195
      %p197 = scmp.ne.s32.totalorder %s185, %s186
      %p198 = scmp.eq.s32.totalorder %s29, 1
      %p199 = por %p197, %p198
      %p201 = scmp.ne.s32.totalorder %s186, %s200
      %p202 = scmp.eq.s32.totalorder %s29, 0
      %p203 = por %p201, %p202
      %s205 = sadd.s32 %s204, 1
      %p208 = scmp.eq.s32.totalorder %s23, 1
      %p209 = scmp.ne.s32.totalorder %s204, %s206
      %p210 = scmp.eq.s32.totalorder %s23, 0
      %p211 = por %p209, %p210
      %p212 = scmp.ne.s32.totalorder %s204, %s206
      %p213 = scmp.eq.s32.totalorder %s28, 1
      %p214 = por %p212, %p213
      %p215 = scmp.ne.s32.totalorder %s206, %s207
      %p216 = scmp.eq.s32.totalorder %s28, 0
      %p217 = por %p215, %p216
      %p218 = scmp.ne.s32.totalorder %s206, %s207
      %p219 = scmp.eq.s32.totalorder %s29, 1
      %p220 = por %p218, %p219
      %p222 = scmp.ne.s32.totalorder %s207, %s221
      %p223 = scmp.eq.s32.totalorder %s29, 0
      %p224 = por %p222, %p223
      %s226 = sadd.s32 %s225, 1
      %p229 = scmp.eq.s32.totalorder %s23, 1
      %p230 = scmp.ne.s32.totalorder %s225, %s227
      %p231 = scmp.eq.s32.totalorder %s23, 0
      %p232 = por %p230, %p231
      %p233 = scmp.ne.s32.totalorder %s225, %s227
      %p234 = scmp.eq.s32.totalorder %s28, 1
      %p235 = por %p233, %p234
      %p236 = scmp.ne.s32.totalorder %s227, %s228
      %p237 = scmp.eq.s32.totalorder %s28, 0
      %p238 = por %p236, %p237
      %p239 = scmp.ne.s32.totalorder %s227, %s228
      %p240 = scmp.eq.s32.totalorder %s29, 1
      %p241 = por %p239, %p240
      %p243 = scmp.ne.s32.totalorder %s228, %s242
      %p244 = scmp.eq.s32.totalorder %s29, 0
      %p245 = por %p243, %p244
      %s247 = sadd.s32 %s246, 1
      %p250 = scmp.eq.s32.totalorder %s23, 1
      %p251 = scmp.ne.s32.totalorder %s246, %s248
      %p252 = scmp.eq.s32.totalorder %s23, 0
      %p253 = por %p251, %p252
      %p254 = scmp.ne.s32.totalorder %s246, %s248
      %p255 = scmp.eq.s32.totalorder %s28, 1
      %p256 = por %p254, %p255
      %p257 = scmp.ne.s32.totalorder %s248, %s249
      %p258 = scmp.eq.s32.totalorder %s28, 0
      %p259 = por %p257, %p258
      %p260 = scmp.ne.s32.totalorder %s248, %s249
      %p261 = scmp.eq.s32.totalorder %s29, 1
      %p262 = por %p260, %p261
      %p264 = scmp.ne.s32.totalorder %s249, %s263
      %p265 = scmp.eq.s32.totalorder %s29, 0
      %p266 = por %p264, %p265
      %s267 = ssub.s32 %s30, %s42
      %s268 = ssub.s32 %s31, %s38
      %s269 = sor.u32 %s267, %s268
      %p270 = scmp.eq.s32.totalorder %s269, 0
      %s272 = sadd.s32 %s271, 1
      %s273 = scalar_select %p270, %s271, %s272
      %p276 = pneg %p270
      %p277 = scmp.eq.s32.totalorder %s23, 1
      %p278 = por %p276, %p277
      %p279 = scmp.ne.s32.totalorder %s271, %s274
      %p280 = scmp.eq.s32.totalorder %s23, 0
      %p281 = por %p279, %p280
      %p282 = scmp.ne.s32.totalorder %s271, %s274
      %p283 = scmp.eq.s32.totalorder %s28, 1
      %p284 = por %p282, %p283
      %p285 = scmp.ne.s32.totalorder %s274, %s275
      %p286 = scmp.eq.s32.totalorder %s28, 0
      %p287 = por %p285, %p286
      %p288 = scmp.ne.s32.totalorder %s274, %s275
      %p289 = scmp.eq.s32.totalorder %s29, 1
      %p290 = por %p288, %p289
      %p292 = scmp.ne.s32.totalorder %s275, %s291
      %p293 = scmp.eq.s32.totalorder %s29, 0
      %p294 = por %p292, %p293
      %p295 = scmp.le.s32.totalorder 1, %s23
      %p296 = scmp.lt.s32.totalorder %s23, 3
      %p297 = pnand %p295, %p296
      %p298 = pneg %p297
      // Predicated region
      $region9: #{pointconv_forward.1} parent=5 // pred_check
        _
      $region10: #{pointconv_forward.1} parent=5 // pred_check_branch
        %300 = sbr.rel (%p297) target = $region12
      $region11: #{pointconv_forward.1} parent=5 // pred_region
        %s301 = ssub.s32 %s23, 1
        // Predicated region
        $region13: #{pointconv_forward.1} parent=11 // pred_check
          %p302 = pneg %p112
        $region14: #{pointconv_forward.1} parent=11 // pred_check_branch
          %304 = sbr.rel (%p302) target = $region16
        $region15: #{pointconv_forward.1} parent=11 // pred_region
          %s306 = ssub.s32 64, 64
          %307 = vsyncadd [#allocation5], %s306
          %s309 = sshll.u32 %s2, 4
          %s310 = int_to_ptr.vmem [resolvable:$true] %s309
          %312 = dma.vmem_to_smem %s310, 64, [#allocation3], [#allocation5]
        $region16: #{pointconv_forward.1} parent=11 // pred_fallthru
          _
        // Predicated region
        $region17: #{pointconv_forward.1} parent=11 // pred_check
          %p313 = pneg %p133
        $region18: #{pointconv_forward.1} parent=11 // pred_check_branch
          %315 = sbr.rel (%p313) target = $region20
        $region19: #{pointconv_forward.1} parent=11 // pred_region
          %s317 = ssub.s32 16, 16
          %318 = vsyncadd [#allocation7], %s317
          %s320 = sshll.u32 %s3, 4
          %s321 = int_to_ptr.vmem [resolvable:$true] %s320
          %323 = dma.vmem_to_smem %s321, 16, [#allocation6], [#allocation7]
        $region20: #{pointconv_forward.1} parent=11 // pred_fallthru
          _
        // Predicated region
        $region21: #{pointconv_forward.1} parent=11 // pred_check
          %p324 = pneg %p154
        $region22: #{pointconv_forward.1} parent=11 // pred_check_branch
          %326 = sbr.rel (%p324) target = $region24
        $region23: #{pointconv_forward.1} parent=11 // pred_region
          %s328 = ssub.s32 128, 128
          %329 = vsyncadd [#allocation7], %s328
          %s331 = sshll.u32 %s4, 4
          %s332 = int_to_ptr.vmem [resolvable:$true] %s331
          %334 = dma.vmem_to_smem %s332, 128, [#allocation8], [#allocation7]
        $region24: #{pointconv_forward.1} parent=11 // pred_fallthru
          _
        // Predicated region
        $region25: #{pointconv_forward.1} parent=11 // pred_check
          %p335 = pneg %p175
        $region26: #{pointconv_forward.1} parent=11 // pred_check_branch
          %337 = sbr.rel (%p335) target = $region28
        $region27: #{pointconv_forward.1} parent=11 // pred_region
          %s339 = ssub.s32 16, 16
          %340 = vsyncadd [#allocation10], %s339
          %s342 = sshll.u32 %s5, 4
          %s343 = int_to_ptr.vmem [resolvable:$true] %s342
          %345 = dma.vmem_to_smem %s343, 16, [#allocation9], [#allocation10]
        $region28: #{pointconv_forward.1} parent=11 // pred_fallthru
          _
        // Predicated region
        $region29: #{pointconv_forward.1} parent=11 // pred_check
          %p346 = pneg %p196
        $region30: #{pointconv_forward.1} parent=11 // pred_check_branch
          %348 = sbr.rel (%p346) target = $region32
        $region31: #{pointconv_forward.1} parent=11 // pred_region
          %s350 = ssub.s32 128, 128
          %351 = vsyncadd [#allocation10], %s350
          %s353 = sshll.u32 %s6, 4
          %s354 = int_to_ptr.vmem [resolvable:$true] %s353
          %356 = dma.vmem_to_smem %s354, 128, [#allocation11], [#allocation10]
        $region32: #{pointconv_forward.1} parent=11 // pred_fallthru
          _
        // Predicated region
        $region33: #{pointconv_forward.1} parent=11 // pred_check
          %p357 = pneg %p217
        $region34: #{pointconv_forward.1} parent=11 // pred_check_branch
          %359 = sbr.rel (%p357) target = $region36
        $region35: #{pointconv_forward.1} parent=11 // pred_region
          %s361 = ssub.s32 16, 16
          %362 = vsyncadd [#allocation13], %s361
          %s364 = sshll.u32 %s7, 4
          %s365 = int_to_ptr.vmem [resolvable:$true] %s364
          %367 = dma.vmem_to_smem %s365, 16, [#allocation12], [#allocation13]
        $region36: #{pointconv_forward.1} parent=11 // pred_fallthru
          _
        // Predicated region
        $region37: #{pointconv_forward.1} parent=11 // pred_check
          %p368 = pneg %p238
        $region38: #{pointconv_forward.1} parent=11 // pred_check_branch
          %370 = sbr.rel (%p368) target = $region40
        $region39: #{pointconv_forward.1} parent=11 // pred_region
          _
        $region40: #{pointconv_forward.1} parent=11 // pred_fallthru
          _
        // Predicated region
        $region41: #{pointconv_forward.1} parent=11 // pred_check
          %p371 = pneg %p259
        $region42: #{pointconv_forward.1} parent=11 // pred_check_branch
          %373 = sbr.rel (%p371) target = $region44
        $region43: #{pointconv_forward.1} parent=11 // pred_region
          _
        $region44: #{pointconv_forward.1} parent=11 // pred_fallthru
          _
      $region12: #{pointconv_forward.1} parent=5 // pred_fallthru
        _
      %p374 = scmp.lt.s32.totalorder %s23, 2
      // Predicated region
      $region45: #{pointconv_forward.1} parent=5 // pred_check
        %p375 = pneg %p374
      $region46: #{pointconv_forward.1} parent=5 // pred_check_branch
        %377 = sbr.rel (%p375) target = $region48
      $region47: #{pointconv_forward.1} parent=5 // pred_region
        // Predicated region
        $region49: #{pointconv_forward.1} parent=47 // pred_check
          %p378 = pneg %p57
        $region50: #{pointconv_forward.1} parent=47 // pred_check_branch
          %380 = sbr.rel (%p378) target = $region52
        $region51: #{pointconv_forward.1} parent=47 // pred_region
          %s381 = smul.u32 2, %s31
          %p382 = scmp.lt.s32.totalorder %s30, 1
          %s383 = scalar_select %p382, %s30, 1
          %p384 = scmp.lt.s32.totalorder %s381, 1
          %s385 = scalar_select %p384, %s381, 1
          %s386 = smul.addr %s383, 6
          %s387 = sadd.s32 %s385, %s386
          %s388 = smul.addr %s387, 8
          %s389 = scalar_lea.vmem %s0, %s388
          %s390 = smul.u32 2, %s31
        $region52: #{pointconv_forward.1} parent=47 // pred_fallthru
          _
        // Predicated region
        $region53: #{pointconv_forward.1} parent=47 // pred_check
          %p391 = pneg %p85
        $region54: #{pointconv_forward.1} parent=47 // pred_check_branch
          %393 = sbr.rel (%p391) target = $region56
        $region55: #{pointconv_forward.1} parent=47 // pred_region
          %s394 = smul.u32 2, %s31
          %p395 = scmp.lt.s32.totalorder %s30, 1
          %s396 = scalar_select %p395, %s30, 1
          %p397 = scmp.lt.s32.totalorder %s394, 1
          %s398 = scalar_select %p397, %s394, 1
          %s399 = smul.addr %s396, 32
          %s400 = sadd.s32 %s398, %s399
          %s401 = smul.addr %s400, 8
          %s402 = scalar_lea.vmem %s1, %s401
          %s403 = smul.u32 2, %s31
        $region56: #{pointconv_forward.1} parent=47 // pred_fallthru
          _
      $region48: #{pointconv_forward.1} parent=5 // pred_fallthru
        _
      %p404 = scmp.le.s32.totalorder 1, %s23
      %p405 = scmp.lt.s32.totalorder %s23, 3
      %p406 = pnand %p404, %p405
      %p407 = pneg %p406
      // Predicated region
      $region57: #{pointconv_forward.1} parent=5 // pred_check
        _
      $region58: #{pointconv_forward.1} parent=5 // pred_check_branch
        %409 = sbr.rel (%p406) target = $region60
      $region59: #{pointconv_forward.1} parent=5 // pred_region
        %s410 = ssub.s32 %s23, 1
        // Predicated region
        $region61: #{pointconv_forward.1} parent=59 // pred_check
          %p411 = pneg %p112
        $region62: #{pointconv_forward.1} parent=59 // pred_check_branch
          %413 = sbr.rel (%p411) target = $region64
        $region63: #{pointconv_forward.1} parent=59 // pred_region
          %414 = dma.done [#allocation5], 64
        $region64: #{pointconv_forward.1} parent=59 // pred_fallthru
          _
        // Predicated region
        $region65: #{pointconv_forward.1} parent=59 // pred_check
          %p415 = pneg %p133
        $region66: #{pointconv_forward.1} parent=59 // pred_check_branch
          %417 = sbr.rel (%p415) target = $region68
        $region67: #{pointconv_forward.1} parent=59 // pred_region
          %418 = dma.done [#allocation7], 16
        $region68: #{pointconv_forward.1} parent=59 // pred_fallthru
          _
        // Predicated region
        $region69: #{pointconv_forward.1} parent=59 // pred_check
          %p419 = pneg %p154
        $region70: #{pointconv_forward.1} parent=59 // pred_check_branch
          %421 = sbr.rel (%p419) target = $region72
        $region71: #{pointconv_forward.1} parent=59 // pred_region
          %422 = dma.done [#allocation7], 128
        $region72: #{pointconv_forward.1} parent=59 // pred_fallthru
          _
        // Predicated region
        $region73: #{pointconv_forward.1} parent=59 // pred_check
          %p423 = pneg %p175
        $region74: #{pointconv_forward.1} parent=59 // pred_check_branch
          %425 = sbr.rel (%p423) target = $region76
        $region75: #{pointconv_forward.1} parent=59 // pred_region
          %426 = dma.done [#allocation10], 16
        $region76: #{pointconv_forward.1} parent=59 // pred_fallthru
          _
        // Predicated region
        $region77: #{pointconv_forward.1} parent=59 // pred_check
          %p427 = pneg %p196
        $region78: #{pointconv_forward.1} parent=59 // pred_check_branch
          %429 = sbr.rel (%p427) target = $region80
        $region79: #{pointconv_forward.1} parent=59 // pred_region
          %430 = dma.done [#allocation10], 128
        $region80: #{pointconv_forward.1} parent=59 // pred_fallthru
          _
        // Predicated region
        $region81: #{pointconv_forward.1} parent=59 // pred_check
          %p431 = pneg %p217
        $region82: #{pointconv_forward.1} parent=59 // pred_check_branch
          %433 = sbr.rel (%p431) target = $region84
        $region83: #{pointconv_forward.1} parent=59 // pred_region
          %434 = dma.done [#allocation13], 16
        $region84: #{pointconv_forward.1} parent=59 // pred_fallthru
          _
        %435 = sfence
        %s436 = smul.u32 2, %s33
        %p437 = scmp.lt.s32.totalorder %s32, 1
        %s438 = scalar_select %p437, %s32, 1
        %p439 = scmp.lt.s32.totalorder %s436, 1
        %s440 = scalar_select %p439, %s436, 1
        %s441 = smul.addr %s438, 6
        %s442 = sadd.s32 %s440, %s441
        %s443 = smul.addr %s442, 8
        %s444 = scalar_lea.vmem %s0, %s443
        %p445 = pneg %p63
        %p446 = pneg %p60
        %s447 = smul.u32 2, %s33
        %p448 = scmp.lt.s32.totalorder %s32, 1
        %s449 = scalar_select %p448, %s32, 1
        %p450 = scmp.lt.s32.totalorder %s447, 1
        %s451 = scalar_select %p450, %s447, 1
        %s452 = smul.addr %s449, 32
        %s453 = sadd.s32 %s451, %s452
        %s454 = smul.addr %s453, 8
        %s455 = scalar_lea.vmem %s1, %s454
        %p456 = pneg %p91
        %p457 = pneg %p88
        %p458 = pneg %p112
        %p459 = pneg %p109
        %p460 = pneg %p133
        %p461 = pneg %p130
        %p462 = pneg %p154
        %p463 = pneg %p151
        %p464 = pneg %p175
        %p465 = pneg %p172
        %p466 = pneg %p196
        %p467 = pneg %p193
        %p468 = pneg %p217
        %p469 = pneg %p214
        %p470 = pneg %p238
        %p471 = pneg %p235
        %p472 = pneg %p259
        %p473 = pneg %p256
        %p474 = pneg %p287
        %p475 = pneg %p284
        %s476 = sand.u32 %s274, 1
        %s477 = scalar_lea.sflag [#allocation4], %s476
        %s478 = sand.u32 %s274, 1
        %s479 = smul.addr %s478, 64
        %s480 = scalar_lea.vmem [#allocation14], %s479
        %s481 = smul.u32 2, %s33
        %p482 = scmp.lt.s32.totalorder %s32, 1
        %s483 = scalar_select %p482, %s32, 1
        %p484 = scmp.lt.s32.totalorder %s481, 1
        %s485 = scalar_select %p484, %s481, 1
        %s486 = smul.addr %s483, 6
        %s487 = sadd.s32 %s485, %s486
        %s488 = smul.addr %s487, 8
        %s489 = scalar_lea.vmem %s0, %s488
        %s490 = smul.u32 2, %s33
        %s491 = smul.u32 2, %s33
        %p492 = scmp.lt.s32.totalorder %s32, 1
        %s493 = scalar_select %p492, %s32, 1
        %p494 = scmp.lt.s32.totalorder %s491, 1
        %s495 = scalar_select %p494, %s491, 1
        %s496 = smul.addr %s493, 32
        %s497 = sadd.s32 %s495, %s496
        %s498 = smul.addr %s497, 8
        %s499 = scalar_lea.vmem %s1, %s498
        %s500 = smul.u32 2, %s33
        %s501 = smul.u32 2, %s33
        %v502 = vld [vmem:[%s489] sm:$0xff]
        %v503 = vld [vmem:[%s489 + $0x8] sm:$0xff]
        %s504 = scalar_lea.vmem %s489, 16
        %v505 = vld [vmem:[%s504] sm:$0xff]
        %v506 = vld [vmem:[%s504 + $0x8] sm:$0xff]
        %s507 = scalar_lea.vmem %s489, 32
        %v508 = vld [vmem:[%s507] sm:$0xff]
        %v509 = vld [vmem:[%s507 + $0x8] sm:$0xff]
        %s510 = sld [smem:[#allocation3]]
        %v511 = vstv %s510
        %v512 = vmul.f32 %v502, %v511
        %v513 = vmul.f32 %v503, %v511
        %s514 = sld [smem:[#allocation3 + $0x80]]
        %v515 = vstv %s514
        %v516 = vmul.f32 %v505, %v515
        %v517 = vmul.f32 %v506, %v515
        %v518 = vadd.f32 %v512, %v516
        %v519 = vadd.f32 %v513, %v517
        %s520 = sld [smem:[#allocation3 + $0x100]]
        %v521 = vstv %s520
        %v522 = vmul.f32 %v508, %v521
        %v523 = vmul.f32 %v509, %v521
        %v524 = vadd.f32 %v518, %v522
        %v525 = vadd.f32 %v519, %v523
        %s526 = sld [smem:[#allocation6]]
        %v527 = vstv %s526
        %v528 = vadd.f32 %v524, %v527
        %v529 = vadd.f32 %v525, %v527
        %v530 = vmax.f32 %v528, 0.0
        %v531 = vmax.f32 %v529, 0.0
        %s532 = sld [smem:[#allocation3 + $0x1]]
        %v533 = vstv %s532
        %v534 = vmul.f32 %v502, %v533
        %v535 = vmul.f32 %v503, %v533
        %s536 = sld [smem:[#allocation3 + $0x81]]
        %v537 = vstv %s536
        %v538 = vmul.f32 %v505, %v537
        %v539 = vmul.f32 %v506, %v537
        %v540 = vadd.f32 %v534, %v538
        %v541 = vadd.f32 %v535, %v539
        %s542 = sld [smem:[#allocation3 + $0x101]]
        %v543 = vstv %s542
        %v544 = vmul.f32 %v508, %v543
        %v545 = vmul.f32 %v509, %v543
        %v546 = vadd.f32 %v540, %v544
        %v547 = vadd.f32 %v541, %v545
        %s548 = sld [smem:[#allocation6 + $0x1]]
        %v549 = vstv %s548
        %v550 = vadd.f32 %v546, %v549
        %v551 = vadd.f32 %v547, %v549
        %v552 = vmax.f32 %v550, 0.0
        %v553 = vmax.f32 %v551, 0.0
        %s554 = sld [smem:[#allocation3 + $0x2]]
        %v555 = vstv %s554
        %v556 = vmul.f32 %v502, %v555
        %v557 = vmul.f32 %v503, %v555
        %s558 = sld [smem:[#allocation3 + $0x82]]
        %v559 = vstv %s558
        %v560 = vmul.f32 %v505, %v559
        %v561 = vmul.f32 %v506, %v559
        %v562 = vadd.f32 %v556, %v560
        %v563 = vadd.f32 %v557, %v561
        %s564 = sld [smem:[#allocation3 + $0x102]]
        %v565 = vstv %s564
        %v566 = vmul.f32 %v508, %v565
        %v567 = vmul.f32 %v509, %v565
        %v568 = vadd.f32 %v562, %v566
        %v569 = vadd.f32 %v563, %v567
        %s570 = sld [smem:[#allocation6 + $0x2]]
        %v571 = vstv %s570
        %v572 = vadd.f32 %v568, %v571
        %v573 = vadd.f32 %v569, %v571
        %v574 = vmax.f32 %v572, 0.0
        %v575 = vmax.f32 %v573, 0.0
        %s576 = sld [smem:[#allocation3 + $0x3]]
        %v577 = vstv %s576
        %v578 = vmul.f32 %v502, %v577
        %v579 = vmul.f32 %v503, %v577
        %s580 = sld [smem:[#allocation3 + $0x83]]
        %v581 = vstv %s580
        %v582 = vmul.f32 %v505, %v581
        %v583 = vmul.f32 %v506, %v581
        %v584 = vadd.f32 %v578, %v582
        %v585 = vadd.f32 %v579, %v583
        %s586 = sld [smem:[#allocation3 + $0x103]]
        %v587 = vstv %s586
        %v588 = vmul.f32 %v508, %v587
        %v589 = vmul.f32 %v509, %v587
        %v590 = vadd.f32 %v584, %v588
        %v591 = vadd.f32 %v585, %v589
        %s592 = sld [smem:[#allocation6 + $0x3]]
        %v593 = vstv %s592
        %v594 = vadd.f32 %v590, %v593
        %v595 = vadd.f32 %v591, %v593
        %v596 = vmax.f32 %v594, 0.0
        %v597 = vmax.f32 %v595, 0.0
        %s598 = sld [smem:[#allocation3 + $0x4]]
        %v599 = vstv %s598
        %v600 = vmul.f32 %v502, %v599
        %v601 = vmul.f32 %v503, %v599
        %s602 = sld [smem:[#allocation3 + $0x84]]
        %v603 = vstv %s602
        %v604 = vmul.f32 %v505, %v603
        %v605 = vmul.f32 %v506, %v603
        %v606 = vadd.f32 %v600, %v604
        %v607 = vadd.f32 %v601, %v605
        %s608 = sld [smem:[#allocation3 + $0x104]]
        %v609 = vstv %s608
        %v610 = vmul.f32 %v508, %v609
        %v611 = vmul.f32 %v509, %v609
        %v612 = vadd.f32 %v606, %v610
        %v613 = vadd.f32 %v607, %v611
        %s614 = sld [smem:[#allocation6 + $0x4]]
        %v615 = vstv %s614
        %v616 = vadd.f32 %v612, %v615
        %v617 = vadd.f32 %v613, %v615
        %v618 = vmax.f32 %v616, 0.0
        %v619 = vmax.f32 %v617, 0.0
        %s620 = sld [smem:[#allocation3 + $0x5]]
        %v621 = vstv %s620
        %v622 = vmul.f32 %v502, %v621
        %v623 = vmul.f32 %v503, %v621
        %s624 = sld [smem:[#allocation3 + $0x85]]
        %v625 = vstv %s624
        %v626 = vmul.f32 %v505, %v625
        %v627 = vmul.f32 %v506, %v625
        %v628 = vadd.f32 %v622, %v626
        %v629 = vadd.f32 %v623, %v627
        %s630 = sld [smem:[#allocation3 + $0x105]]
        %v631 = vstv %s630
        %v632 = vmul.f32 %v508, %v631
        %v633 = vmul.f32 %v509, %v631
        %v634 = vadd.f32 %v628, %v632
        %v635 = vadd.f32 %v629, %v633
        %s636 = sld [smem:[#allocation6 + $0x5]]
        %v637 = vstv %s636
        %v638 = vadd.f32 %v634, %v637
        %v639 = vadd.f32 %v635, %v637
        %v640 = vmax.f32 %v638, 0.0
        %v641 = vmax.f32 %v639, 0.0
        %s642 = sld [smem:[#allocation3 + $0x6]]
        %v643 = vstv %s642
        %v644 = vmul.f32 %v502, %v643
        %v645 = vmul.f32 %v503, %v643
        %s646 = sld [smem:[#allocation3 + $0x86]]
        %v647 = vstv %s646
        %v648 = vmul.f32 %v505, %v647
        %v649 = vmul.f32 %v506, %v647
        %v650 = vadd.f32 %v644, %v648
        %v651 = vadd.f32 %v645, %v649
        %s652 = sld [smem:[#allocation3 + $0x106]]
        %v653 = vstv %s652
        %v654 = vmul.f32 %v508, %v653
        %v655 = vmul.f32 %v509, %v653
        %v656 = vadd.f32 %v650, %v654
        %v657 = vadd.f32 %v651, %v655
        %s658 = sld [smem:[#allocation6 + $0x6]]
        %v659 = vstv %s658
        %v660 = vadd.f32 %v656, %v659
        %v661 = vadd.f32 %v657, %v659
        %v662 = vmax.f32 %v660, 0.0
        %v663 = vmax.f32 %v661, 0.0
        %s664 = sld [smem:[#allocation3 + $0x7]]
        %v665 = vstv %s664
        %v666 = vmul.f32 %v502, %v665
        %v667 = vmul.f32 %v503, %v665
        %s668 = sld [smem:[#allocation3 + $0x87]]
        %v669 = vstv %s668
        %v670 = vmul.f32 %v505, %v669
        %v671 = vmul.f32 %v506, %v669
        %v672 = vadd.f32 %v666, %v670
        %v673 = vadd.f32 %v667, %v671
        %s674 = sld [smem:[#allocation3 + $0x107]]
        %v675 = vstv %s674
        %v676 = vmul.f32 %v508, %v675
        %v677 = vmul.f32 %v509, %v675
        %v678 = vadd.f32 %v672, %v676
        %v679 = vadd.f32 %v673, %v677
        %s680 = sld [smem:[#allocation6 + $0x7]]
        %v681 = vstv %s680
        %v682 = vadd.f32 %v678, %v681
        %v683 = vadd.f32 %v679, %v681
        %v684 = vmax.f32 %v682, 0.0
        %v685 = vmax.f32 %v683, 0.0
        %s686 = sld [smem:[#allocation8]]
        %v687 = vstv %s686
        %v688 = vmul.f32 %v530, %v687
        %v689 = vmul.f32 %v531, %v687
        %s690 = sld [smem:[#allocation8 + $0x80]]
        %v691 = vstv %s690
        %v692 = vmul.f32 %v552, %v691
        %v693 = vmul.f32 %v553, %v691
        %v694 = vadd.f32 %v688, %v692
        %v695 = vadd.f32 %v689, %v693
        %s696 = sld [smem:[#allocation8 + $0x100]]
        %v697 = vstv %s696
        %v698 = vmul.f32 %v574, %v697
        %v699 = vmul.f32 %v575, %v697
        %v700 = vadd.f32 %v694, %v698
        %v701 = vadd.f32 %v695, %v699
        %s702 = sld [smem:[#allocation8 + $0x180]]
        %v703 = vstv %s702
        %v704 = vmul.f32 %v596, %v703
        %v705 = vmul.f32 %v597, %v703
        %v706 = vadd.f32 %v700, %v704
        %v707 = vadd.f32 %v701, %v705
        %s708 = sld [smem:[#allocation8 + $0x200]]
        %v709 = vstv %s708
        %v710 = vmul.f32 %v618, %v709
        %v711 = vmul.f32 %v619, %v709
        %v712 = vadd.f32 %v706, %v710
        %v713 = vadd.f32 %v707, %v711
        %s714 = sld [smem:[#allocation8 + $0x280]]
        %v715 = vstv %s714
        %v716 = vmul.f32 %v640, %v715
        %v717 = vmul.f32 %v641, %v715
        %v718 = vadd.f32 %v712, %v716
        %v719 = vadd.f32 %v713, %v717
        %s720 = sld [smem:[#allocation8 + $0x300]]
        %v721 = vstv %s720
        %v722 = vmul.f32 %v662, %v721
        %v723 = vmul.f32 %v663, %v721
        %v724 = vadd.f32 %v718, %v722
        %v725 = vadd.f32 %v719, %v723
        %s726 = sld [smem:[#allocation8 + $0x380]]
        %v727 = vstv %s726
        %v728 = vmul.f32 %v684, %v727
        %v729 = vmul.f32 %v685, %v727
        %v730 = vadd.f32 %v724, %v728
        %v731 = vadd.f32 %v725, %v729
        %s732 = sld [smem:[#allocation9]]
        %v733 = vstv %s732
        %v734 = vadd.f32 %v730, %v733
        %v735 = vadd.f32 %v731, %v733
        %v736 = vmax.f32 %v734, 0.0
        %v737 = vmax.f32 %v735, 0.0
        %s738 = sld [smem:[#allocation8 + $0x1]]
        %v739 = vstv %s738
        %v740 = vmul.f32 %v530, %v739
        %v741 = vmul.f32 %v531, %v739
        %s742 = sld [smem:[#allocation8 + $0x81]]
        %v743 = vstv %s742
        %v744 = vmul.f32 %v552, %v743
        %v745 = vmul.f32 %v553, %v743
        %v746 = vadd.f32 %v740, %v744
        %v747 = vadd.f32 %v741, %v745
        %s748 = sld [smem:[#allocation8 + $0x101]]
        %v749 = vstv %s748
        %v750 = vmul.f32 %v574, %v749
        %v751 = vmul.f32 %v575, %v749
        %v752 = vadd.f32 %v746, %v750
        %v753 = vadd.f32 %v747, %v751
        %s754 = sld [smem:[#allocation8 + $0x181]]
        %v755 = vstv %s754
        %v756 = vmul.f32 %v596, %v755
        %v757 = vmul.f32 %v597, %v755
        %v758 = vadd.f32 %v752, %v756
        %v759 = vadd.f32 %v753, %v757
        %s760 = sld [smem:[#allocation8 + $0x201]]
        %v761 = vstv %s760
        %v762 = vmul.f32 %v618, %v761
        %v763 = vmul.f32 %v619, %v761
        %v764 = vadd.f32 %v758, %v762
        %v765 = vadd.f32 %v759, %v763
        %s766 = sld [smem:[#allocation8 + $0x281]]
        %v767 = vstv %s766
        %v768 = vmul.f32 %v640, %v767
        %v769 = vmul.f32 %v641, %v767
        %v770 = vadd.f32 %v764, %v768
        %v771 = vadd.f32 %v765, %v769
        %s772 = sld [smem:[#allocation8 + $0x301]]
        %v773 = vstv %s772
        %v774 = vmul.f32 %v662, %v773
        %v775 = vmul.f32 %v663, %v773
        %v776 = vadd.f32 %v770, %v774
        %v777 = vadd.f32 %v771, %v775
        %s778 = sld [smem:[#allocation8 + $0x381]]
        %v779 = vstv %s778
        %v780 = vmul.f32 %v684, %v779
        %v781 = vmul.f32 %v685, %v779
        %v782 = vadd.f32 %v776, %v780
        %v783 = vadd.f32 %v777, %v781
        %s784 = sld [smem:[#allocation9 + $0x1]]
        %v785 = vstv %s784
        %v786 = vadd.f32 %v782, %v785
        %v787 = vadd.f32 %v783, %v785
        %v788 = vmax.f32 %v786, 0.0
        %v789 = vmax.f32 %v787, 0.0
        %s790 = sld [smem:[#allocation8 + $0x2]]
        %v791 = vstv %s790
        %v792 = vmul.f32 %v530, %v791
        %v793 = vmul.f32 %v531, %v791
        %s794 = sld [smem:[#allocation8 + $0x82]]
        %v795 = vstv %s794
        %v796 = vmul.f32 %v552, %v795
        %v797 = vmul.f32 %v553, %v795
        %v798 = vadd.f32 %v792, %v796
        %v799 = vadd.f32 %v793, %v797
        %s800 = sld [smem:[#allocation8 + $0x102]]
        %v801 = vstv %s800
        %v802 = vmul.f32 %v574, %v801
        %v803 = vmul.f32 %v575, %v801
        %v804 = vadd.f32 %v798, %v802
        %v805 = vadd.f32 %v799, %v803
        %s806 = sld [smem:[#allocation8 + $0x182]]
        %v807 = vstv %s806
        %v808 = vmul.f32 %v596, %v807
        %v809 = vmul.f32 %v597, %v807
        %v810 = vadd.f32 %v804, %v808
        %v811 = vadd.f32 %v805, %v809
        %s812 = sld [smem:[#allocation8 + $0x202]]
        %v813 = vstv %s812
        %v814 = vmul.f32 %v618, %v813
        %v815 = vmul.f32 %v619, %v813
        %v816 = vadd.f32 %v810, %v814
        %v817 = vadd.f32 %v811, %v815
        %s818 = sld [smem:[#allocation8 + $0x282]]
        %v819 = vstv %s818
        %v820 = vmul.f32 %v640, %v819
        %v821 = vmul.f32 %v641, %v819
        %v822 = vadd.f32 %v816, %v820
        %v823 = vadd.f32 %v817, %v821
        %s824 = sld [smem:[#allocation8 + $0x302]]
        %v825 = vstv %s824
        %v826 = vmul.f32 %v662, %v825
        %v827 = vmul.f32 %v663, %v825
        %v828 = vadd.f32 %v822, %v826
        %v829 = vadd.f32 %v823, %v827
        %s830 = sld [smem:[#allocation8 + $0x382]]
        %v831 = vstv %s830
        %v832 = vmul.f32 %v684, %v831
        %v833 = vmul.f32 %v685, %v831
        %v834 = vadd.f32 %v828, %v832
        %v835 = vadd.f32 %v829, %v833
        %s836 = sld [smem:[#allocation9 + $0x2]]
        %v837 = vstv %s836
        %v838 = vadd.f32 %v834, %v837
        %v839 = vadd.f32 %v835, %v837
        %v840 = vmax.f32 %v838, 0.0
        %v841 = vmax.f32 %v839, 0.0
        %s842 = sld [smem:[#allocation8 + $0x3]]
        %v843 = vstv %s842
        %v844 = vmul.f32 %v530, %v843
        %v845 = vmul.f32 %v531, %v843
        %s846 = sld [smem:[#allocation8 + $0x83]]
        %v847 = vstv %s846
        %v848 = vmul.f32 %v552, %v847
        %v849 = vmul.f32 %v553, %v847
        %v850 = vadd.f32 %v844, %v848
        %v851 = vadd.f32 %v845, %v849
        %s852 = sld [smem:[#allocation8 + $0x103]]
        %v853 = vstv %s852
        %v854 = vmul.f32 %v574, %v853
        %v855 = vmul.f32 %v575, %v853
        %v856 = vadd.f32 %v850, %v854
        %v857 = vadd.f32 %v851, %v855
        %s858 = sld [smem:[#allocation8 + $0x183]]
        %v859 = vstv %s858
        %v860 = vmul.f32 %v596, %v859
        %v861 = vmul.f32 %v597, %v859
        %v862 = vadd.f32 %v856, %v860
        %v863 = vadd.f32 %v857, %v861
        %s864 = sld [smem:[#allocation8 + $0x203]]
        %v865 = vstv %s864
        %v866 = vmul.f32 %v618, %v865
        %v867 = vmul.f32 %v619, %v865
        %v868 = vadd.f32 %v862, %v866
        %v869 = vadd.f32 %v863, %v867
        %s870 = sld [smem:[#allocation8 + $0x283]]
        %v871 = vstv %s870
        %v872 = vmul.f32 %v640, %v871
        %v873 = vmul.f32 %v641, %v871
        %v874 = vadd.f32 %v868, %v872
        %v875 = vadd.f32 %v869, %v873
        %s876 = sld [smem:[#allocation8 + $0x303]]
        %v877 = vstv %s876
        %v878 = vmul.f32 %v662, %v877
        %v879 = vmul.f32 %v663, %v877
        %v880 = vadd.f32 %v874, %v878
        %v881 = vadd.f32 %v875, %v879
        %s882 = sld [smem:[#allocation8 + $0x383]]
        %v883 = vstv %s882
        %v884 = vmul.f32 %v684, %v883
        %v885 = vmul.f32 %v685, %v883
        %v886 = vadd.f32 %v880, %v884
        %v887 = vadd.f32 %v881, %v885
        %s888 = sld [smem:[#allocation9 + $0x3]]
        %v889 = vstv %s888
        %v890 = vadd.f32 %v886, %v889
        %v891 = vadd.f32 %v887, %v889
        %v892 = vmax.f32 %v890, 0.0
        %v893 = vmax.f32 %v891, 0.0
        %s894 = sld [smem:[#allocation8 + $0x4]]
        %v895 = vstv %s894
        %v896 = vmul.f32 %v530, %v895
        %v897 = vmul.f32 %v531, %v895
        %s898 = sld [smem:[#allocation8 + $0x84]]
        %v899 = vstv %s898
        %v900 = vmul.f32 %v552, %v899
        %v901 = vmul.f32 %v553, %v899
        %v902 = vadd.f32 %v896, %v900
        %v903 = vadd.f32 %v897, %v901
        %s904 = sld [smem:[#allocation8 + $0x104]]
        %v905 = vstv %s904
        %v906 = vmul.f32 %v574, %v905
        %v907 = vmul.f32 %v575, %v905
        %v908 = vadd.f32 %v902, %v906
        %v909 = vadd.f32 %v903, %v907
        %s910 = sld [smem:[#allocation8 + $0x184]]
        %v911 = vstv %s910
        %v912 = vmul.f32 %v596, %v911
        %v913 = vmul.f32 %v597, %v911
        %v914 = vadd.f32 %v908, %v912
        %v915 = vadd.f32 %v909, %v913
        %s916 = sld [smem:[#allocation8 + $0x204]]
        %v917 = vstv %s916
        %v918 = vmul.f32 %v618, %v917
        %v919 = vmul.f32 %v619, %v917
        %v920 = vadd.f32 %v914, %v918
        %v921 = vadd.f32 %v915, %v919
        %s922 = sld [smem:[#allocation8 + $0x284]]
        %v923 = vstv %s922
        %v924 = vmul.f32 %v640, %v923
        %v925 = vmul.f32 %v641, %v923
        %v926 = vadd.f32 %v920, %v924
        %v927 = vadd.f32 %v921, %v925
        %s928 = sld [smem:[#allocation8 + $0x304]]
        %v929 = vstv %s928
        %v930 = vmul.f32 %v662, %v929
        %v931 = vmul.f32 %v663, %v929
        %v932 = vadd.f32 %v926, %v930
        %v933 = vadd.f32 %v927, %v931
        %s934 = sld [smem:[#allocation8 + $0x384]]
        %v935 = vstv %s934
        %v936 = vmul.f32 %v684, %v935
        %v937 = vmul.f32 %v685, %v935
        %v938 = vadd.f32 %v932, %v936
        %v939 = vadd.f32 %v933, %v937
        %s940 = sld [smem:[#allocation9 + $0x4]]
        %v941 = vstv %s940
        %v942 = vadd.f32 %v938, %v941
        %v943 = vadd.f32 %v939, %v941
        %v944 = vmax.f32 %v942, 0.0
        %v945 = vmax.f32 %v943, 0.0
        %s946 = sld [smem:[#allocation8 + $0x5]]
        %v947 = vstv %s946
        %v948 = vmul.f32 %v530, %v947
        %v949 = vmul.f32 %v531, %v947
        %s950 = sld [smem:[#allocation8 + $0x85]]
        %v951 = vstv %s950
        %v952 = vmul.f32 %v552, %v951
        %v953 = vmul.f32 %v553, %v951
        %v954 = vadd.f32 %v948, %v952
        %v955 = vadd.f32 %v949, %v953
        %s956 = sld [smem:[#allocation8 + $0x105]]
        %v957 = vstv %s956
        %v958 = vmul.f32 %v574, %v957
        %v959 = vmul.f32 %v575, %v957
        %v960 = vadd.f32 %v954, %v958
        %v961 = vadd.f32 %v955, %v959
        %s962 = sld [smem:[#allocation8 + $0x185]]
        %v963 = vstv %s962
        %v964 = vmul.f32 %v596, %v963
        %v965 = vmul.f32 %v597, %v963
        %v966 = vadd.f32 %v960, %v964
        %v967 = vadd.f32 %v961, %v965
        %s968 = sld [smem:[#allocation8 + $0x205]]
        %v969 = vstv %s968
        %v970 = vmul.f32 %v618, %v969
        %v971 = vmul.f32 %v619, %v969
        %v972 = vadd.f32 %v966, %v970
        %v973 = vadd.f32 %v967, %v971
        %s974 = sld [smem:[#allocation8 + $0x285]]
        %v975 = vstv %s974
        %v976 = vmul.f32 %v640, %v975
        %v977 = vmul.f32 %v641, %v975
        %v978 = vadd.f32 %v972, %v976
        %v979 = vadd.f32 %v973, %v977
        %s980 = sld [smem:[#allocation8 + $0x305]]
        %v981 = vstv %s980
        %v982 = vmul.f32 %v662, %v981
        %v983 = vmul.f32 %v663, %v981
        %v984 = vadd.f32 %v978, %v982
        %v985 = vadd.f32 %v979, %v983
        %s986 = sld [smem:[#allocation8 + $0x385]]
        %v987 = vstv %s986
        %v988 = vmul.f32 %v684, %v987
        %v989 = vmul.f32 %v685, %v987
        %v990 = vadd.f32 %v984, %v988
        %v991 = vadd.f32 %v985, %v989
        %s992 = sld [smem:[#allocation9 + $0x5]]
        %v993 = vstv %s992
        %v994 = vadd.f32 %v990, %v993
        %v995 = vadd.f32 %v991, %v993
        %v996 = vmax.f32 %v994, 0.0
        %v997 = vmax.f32 %v995, 0.0
        %s998 = sld [smem:[#allocation8 + $0x6]]
        %v999 = vstv %s998
        %v1000 = vmul.f32 %v530, %v999
        %v1001 = vmul.f32 %v531, %v999
        %s1002 = sld [smem:[#allocation8 + $0x86]]
        %v1003 = vstv %s1002
        %v1004 = vmul.f32 %v552, %v1003
        %v1005 = vmul.f32 %v553, %v1003
        %v1006 = vadd.f32 %v1000, %v1004
        %v1007 = vadd.f32 %v1001, %v1005
        %s1008 = sld [smem:[#allocation8 + $0x106]]
        %v1009 = vstv %s1008
        %v1010 = vmul.f32 %v574, %v1009
        %v1011 = vmul.f32 %v575, %v1009
        %v1012 = vadd.f32 %v1006, %v1010
        %v1013 = vadd.f32 %v1007, %v1011
        %s1014 = sld [smem:[#allocation8 + $0x186]]
        %v1015 = vstv %s1014
        %v1016 = vmul.f32 %v596, %v1015
        %v1017 = vmul.f32 %v597, %v1015
        %v1018 = vadd.f32 %v1012, %v1016
        %v1019 = vadd.f32 %v1013, %v1017
        %s1020 = sld [smem:[#allocation8 + $0x206]]
        %v1021 = vstv %s1020
        %v1022 = vmul.f32 %v618, %v1021
        %v1023 = vmul.f32 %v619, %v1021
        %v1024 = vadd.f32 %v1018, %v1022
        %v1025 = vadd.f32 %v1019, %v1023
        %s1026 = sld [smem:[#allocation8 + $0x286]]
        %v1027 = vstv %s1026
        %v1028 = vmul.f32 %v640, %v1027
        %v1029 = vmul.f32 %v641, %v1027
        %v1030 = vadd.f32 %v1024, %v1028
        %v1031 = vadd.f32 %v1025, %v1029
        %s1032 = sld [smem:[#allocation8 + $0x306]]
        %v1033 = vstv %s1032
        %v1034 = vmul.f32 %v662, %v1033
        %v1035 = vmul.f32 %v663, %v1033
        %v1036 = vadd.f32 %v1030, %v1034
        %v1037 = vadd.f32 %v1031, %v1035
        %s1038 = sld [smem:[#allocation8 + $0x386]]
        %v1039 = vstv %s1038
        %v1040 = vmul.f32 %v684, %v1039
        %v1041 = vmul.f32 %v685, %v1039
        %v1042 = vadd.f32 %v1036, %v1040
        %v1043 = vadd.f32 %v1037, %v1041
        %s1044 = sld [smem:[#allocation9 + $0x6]]
        %v1045 = vstv %s1044
        %v1046 = vadd.f32 %v1042, %v1045
        %v1047 = vadd.f32 %v1043, %v1045
        %v1048 = vmax.f32 %v1046, 0.0
        %v1049 = vmax.f32 %v1047, 0.0
        %s1050 = sld [smem:[#allocation8 + $0x7]]
        %v1051 = vstv %s1050
        %v1052 = vmul.f32 %v530, %v1051
        %v1053 = vmul.f32 %v531, %v1051
        %s1054 = sld [smem:[#allocation8 + $0x87]]
        %v1055 = vstv %s1054
        %v1056 = vmul.f32 %v552, %v1055
        %v1057 = vmul.f32 %v553, %v1055
        %v1058 = vadd.f32 %v1052, %v1056
        %v1059 = vadd.f32 %v1053, %v1057
        %s1060 = sld [smem:[#allocation8 + $0x107]]
        %v1061 = vstv %s1060
        %v1062 = vmul.f32 %v574, %v1061
        %v1063 = vmul.f32 %v575, %v1061
        %v1064 = vadd.f32 %v1058, %v1062
        %v1065 = vadd.f32 %v1059, %v1063
        %s1066 = sld [smem:[#allocation8 + $0x187]]
        %v1067 = vstv %s1066
        %v1068 = vmul.f32 %v596, %v1067
        %v1069 = vmul.f32 %v597, %v1067
        %v1070 = vadd.f32 %v1064, %v1068
        %v1071 = vadd.f32 %v1065, %v1069
        %s1072 = sld [smem:[#allocation8 + $0x207]]
        %v1073 = vstv %s1072
        %v1074 = vmul.f32 %v618, %v1073
        %v1075 = vmul.f32 %v619, %v1073
        %v1076 = vadd.f32 %v1070, %v1074
        %v1077 = vadd.f32 %v1071, %v1075
        %s1078 = sld [smem:[#allocation8 + $0x287]]
        %v1079 = vstv %s1078
        %v1080 = vmul.f32 %v640, %v1079
        %v1081 = vmul.f32 %v641, %v1079
        %v1082 = vadd.f32 %v1076, %v1080
        %v1083 = vadd.f32 %v1077, %v1081
        %s1084 = sld [smem:[#allocation8 + $0x307]]
        %v1085 = vstv %s1084
        %v1086 = vmul.f32 %v662, %v1085
        %v1087 = vmul.f32 %v663, %v1085
        %v1088 = vadd.f32 %v1082, %v1086
        %v1089 = vadd.f32 %v1083, %v1087
        %s1090 = sld [smem:[#allocation8 + $0x387]]
        %v1091 = vstv %s1090
        %v1092 = vmul.f32 %v684, %v1091
        %v1093 = vmul.f32 %v685, %v1091
        %v1094 = vadd.f32 %v1088, %v1092
        %v1095 = vadd.f32 %v1089, %v1093
        %s1096 = sld [smem:[#allocation9 + $0x7]]
        %v1097 = vstv %s1096
        %v1098 = vadd.f32 %v1094, %v1097
        %v1099 = vadd.f32 %v1095, %v1097
        %v1100 = vmax.f32 %v1098, 0.0
        %v1101 = vmax.f32 %v1099, 0.0
        %s1102 = sld [smem:[#allocation11]]
        %v1103 = vstv %s1102
        %v1104 = vmul.f32 %v736, %v1103
        %v1105 = vmul.f32 %v737, %v1103
        %s1106 = sld [smem:[#allocation11 + $0x80]]
        %v1107 = vstv %s1106
        %v1108 = vmul.f32 %v788, %v1107
        %v1109 = vmul.f32 %v789, %v1107
        %v1110 = vadd.f32 %v1104, %v1108
        %v1111 = vadd.f32 %v1105, %v1109
        %s1112 = sld [smem:[#allocation11 + $0x100]]
        %v1113 = vstv %s1112
        %v1114 = vmul.f32 %v840, %v1113
        %v1115 = vmul.f32 %v841, %v1113
        %v1116 = vadd.f32 %v1110, %v1114
        %v1117 = vadd.f32 %v1111, %v1115
        %s1118 = sld [smem:[#allocation11 + $0x180]]
        %v1119 = vstv %s1118
        %v1120 = vmul.f32 %v892, %v1119
        %v1121 = vmul.f32 %v893, %v1119
        %v1122 = vadd.f32 %v1116, %v1120
        %v1123 = vadd.f32 %v1117, %v1121
        %s1124 = sld [smem:[#allocation11 + $0x200]]
        %v1125 = vstv %s1124
        %v1126 = vmul.f32 %v944, %v1125
        %v1127 = vmul.f32 %v945, %v1125
        %v1128 = vadd.f32 %v1122, %v1126
        %v1129 = vadd.f32 %v1123, %v1127
        %s1130 = sld [smem:[#allocation11 + $0x280]]
        %v1131 = vstv %s1130
        %v1132 = vmul.f32 %v996, %v1131
        %v1133 = vmul.f32 %v997, %v1131
        %v1134 = vadd.f32 %v1128, %v1132
        %v1135 = vadd.f32 %v1129, %v1133
        %s1136 = sld [smem:[#allocation11 + $0x300]]
        %v1137 = vstv %s1136
        %v1138 = vmul.f32 %v1048, %v1137
        %v1139 = vmul.f32 %v1049, %v1137
        %v1140 = vadd.f32 %v1134, %v1138
        %v1141 = vadd.f32 %v1135, %v1139
        %s1142 = sld [smem:[#allocation11 + $0x380]]
        %v1143 = vstv %s1142
        %v1144 = vmul.f32 %v1100, %v1143
        %v1145 = vmul.f32 %v1101, %v1143
        %v1146 = vadd.f32 %v1140, %v1144
        %v1147 = vadd.f32 %v1141, %v1145
        %s1148 = sld [smem:[#allocation12]]
        %v1149 = vstv %s1148
        %v1150 = vadd.f32 %v1146, %v1149
        %v1151 = vadd.f32 %v1147, %v1149
        %v1152 = vmax.f32 %v1150, 0.0
        %v1153 = vmax.f32 %v1151, 0.0
        %v1154 = vmul.f32 %v502, %v1152
        %v1155 = vmul.f32 %v503, %v1153
        %v1156 = vrot.slane %v1154, 4
        %v1157 = vadd.f32 %v1154, %v1156
        %v1158 = vrot.slane %v1157, 2
        %v1159 = vadd.f32 %v1157, %v1158
        %v1160 = vrot.slane %v1159, 1
        %v1161 = vadd.f32 %v1159, %v1160
        %v1162 = vrot.slane %v1155, 4
        %v1163 = vadd.f32 %v1155, %v1162
        %v1164 = vrot.slane %v1163, 2
        %v1165 = vadd.f32 %v1163, %v1164
        %v1166 = vrot.slane %v1165, 1
        %v1167 = vadd.f32 %v1165, %v1166
        %v1168 = vpack.c.bf16 %v1161, %v1161
        %v1169 = vpack.c.bf16 %v1167, %v1167
        %vm1170 = vcmask 1040384
        %vm1171 = vsmask.f32 256
        %vm1172 = vmand %vm1170, %vm1171
        %v1173 = vld [vmem:[#allocation2] sm:$0x1]
        %v1174 = vsel %vm1172, %v1168, %v1173
        %1175 = vst [vmem:[#allocation2] sm:$0x1] %v1174
        %v1176 = vld [vmem:[#allocation2 + $0x8] sm:$0x1]
        %v1177 = vsel %vm1172, %v1169, %v1176
        %1178 = vst [vmem:[#allocation2 + $0x8] sm:$0x1] %v1177
        %v1179 = vmul.f32 %v505, %v1152
        %v1180 = vmul.f32 %v506, %v1153
        %v1181 = vrot.slane %v1179, 4
        %v1182 = vadd.f32 %v1179, %v1181
        %v1183 = vrot.slane %v1182, 2
        %v1184 = vadd.f32 %v1182, %v1183
        %v1185 = vrot.slane %v1184, 1
        %v1186 = vadd.f32 %v1184, %v1185
        %v1187 = vrot.slane %v1180, 4
        %v1188 = vadd.f32 %v1180, %v1187
        %v1189 = vrot.slane %v1188, 2
        %v1190 = vadd.f32 %v1188, %v1189
        %v1191 = vrot.slane %v1190, 1
        %v1192 = vadd.f32 %v1190, %v1191
        %v1193 = vpack.c.bf16 %v1186, %v1186
        %v1194 = vpack.c.bf16 %v1192, %v1192
        %vm1195 = vsmask.f32 7938
        %vm1196 = vmand %vm1170, %vm1195
        %v1197 = vld [vmem:[#allocation2] sm:$0x1]
        %v1198 = vsel %vm1196, %v1193, %v1197
        %1199 = vst [vmem:[#allocation2] sm:$0x1] %v1198
        %v1200 = vld [vmem:[#allocation2 + $0x8] sm:$0x1]
        %v1201 = vsel %vm1196, %v1194, %v1200
        %1202 = vst [vmem:[#allocation2 + $0x8] sm:$0x1] %v1201
        %v1203 = vmul.f32 %v508, %v1152
        %v1204 = vmul.f32 %v509, %v1153
        %v1205 = vrot.slane %v1203, 4
        %v1206 = vadd.f32 %v1203, %v1205
        %v1207 = vrot.slane %v1206, 2
        %v1208 = vadd.f32 %v1206, %v1207
        %v1209 = vrot.slane %v1208, 1
        %v1210 = vadd.f32 %v1208, %v1209
        %v1211 = vrot.slane %v1204, 4
        %v1212 = vadd.f32 %v1204, %v1211
        %v1213 = vrot.slane %v1212, 2
        %v1214 = vadd.f32 %v1212, %v1213
        %v1215 = vrot.slane %v1214, 1
        %v1216 = vadd.f32 %v1214, %v1215
        %v1217 = vpack.c.bf16 %v1210, %v1210
        %v1218 = vpack.c.bf16 %v1216, %v1216
        %vm1219 = vcmask 1041409
        %vm1220 = vsmask.f32 1280
        %vm1221 = vmand %vm1219, %vm1220
        %v1222 = vld [vmem:[#allocation2] sm:$0x2]
        %v1223 = vsel %vm1221, %v1217, %v1222
        %1224 = vst [vmem:[#allocation2] sm:$0x2] %v1223
        %v1225 = vld [vmem:[#allocation2 + $0x8] sm:$0x2]
        %v1226 = vsel %vm1221, %v1218, %v1225
        %1227 = vst [vmem:[#allocation2 + $0x8] sm:$0x2] %v1226
        %v1228 = vld [vmem:[%s499] sm:$0xff]
        %v1229 = vld [vmem:[%s499 + $0x8] sm:$0xff]
        %v1230 = vld [vmem:[%s499 + $0x10] sm:$0x1f]
        %v1231 = vld [vmem:[%s499 + $0x18] sm:$0x1f]
        %v1232 = vlaneseq
        %v1233 = vshrl.u32 %v1232, 7
        %v1234 = vsub.s32 0, %v1233
        %v1235 = vrot.slane %v1152, %v1234
        %v1236 = vlaneseq
        %v1237 = vshrl.u32 %v1236, 7
        %v1238 = vsub.s32 0, %v1237
        %v1239 = vrot.slane %v1153, %v1238
        %v1240 = vmul.f32 %v1235, %v1228
        %v1241 = vmul.f32 %v1239, %v1229
        %v1242 = vmul.f32 %v1235, %v1230
        %v1243 = vmul.f32 %v1239, %v1231
        %s1244 = scalar_lea.vmem %s499, 32
        %v1245 = vld [vmem:[%s1244] sm:$0xff]
        %v1246 = vld [vmem:[%s1244 + $0x8] sm:$0xff]
        %v1247 = vld [vmem:[%s1244 + $0x10] sm:$0x1f]
        %v1248 = vld [vmem:[%s1244 + $0x18] sm:$0x1f]
        %v1249 = vlaneseq
        %v1250 = vshrl.u32 %v1249, 7
        %v1251 = vsub.s32 1, %v1250
        %v1252 = vrot.slane %v1152, %v1251
        %v1253 = vlaneseq
        %v1254 = vshrl.u32 %v1253, 7
        %v1255 = vsub.s32 1, %v1254
        %v1256 = vrot.slane %v1153, %v1255
        %v1257 = vmul.f32 %v1252, %v1245
        %v1258 = vmul.f32 %v1256, %v1246
        %v1259 = vmul.f32 %v1252, %v1247
        %v1260 = vmul.f32 %v1256, %v1248
        %v1261 = vadd.f32 %v1240, %v1257
        %v1262 = vadd.f32 %v1241, %v1258
        %v1263 = vadd.f32 %v1242, %v1259
        %v1264 = vadd.f32 %v1243, %v1260
        %s1265 = scalar_lea.vmem %s499, 64
        %v1266 = vld [vmem:[%s1265] sm:$0xff]
        %v1267 = vld [vmem:[%s1265 + $0x8] sm:$0xff]
        %v1268 = vld [vmem:[%s1265 + $0x10] sm:$0x1f]
        %v1269 = vld [vmem:[%s1265 + $0x18] sm:$0x1f]
        %v1270 = vlaneseq
        %v1271 = vshrl.u32 %v1270, 7
        %v1272 = vsub.s32 2, %v1271
        %v1273 = vrot.slane %v1152, %v1272
        %v1274 = vlaneseq
        %v1275 = vshrl.u32 %v1274, 7
        %v1276 = vsub.s32 2, %v1275
        %v1277 = vrot.slane %v1153, %v1276
        %v1278 = vmul.f32 %v1273, %v1266
        %v1279 = vmul.f32 %v1277, %v1267
        %v1280 = vmul.f32 %v1273, %v1268
        %v1281 = vmul.f32 %v1277, %v1269
        %v1282 = vadd.f32 %v1261, %v1278
        %v1283 = vadd.f32 %v1262, %v1279
        %v1284 = vadd.f32 %v1263, %v1280
        %v1285 = vadd.f32 %v1264, %v1281
        %s1286 = scalar_lea.vmem %s499, 96
        %v1287 = vld [vmem:[%s1286] sm:$0xff]
        %v1288 = vld [vmem:[%s1286 + $0x8] sm:$0xff]
        %v1289 = vld [vmem:[%s1286 + $0x10] sm:$0x1f]
        %v1290 = vld [vmem:[%s1286 + $0x18] sm:$0x1f]
        %v1291 = vlaneseq
        %v1292 = vshrl.u32 %v1291, 7
        %v1293 = vsub.s32 3, %v1292
        %v1294 = vrot.slane %v1152, %v1293
        %v1295 = vlaneseq
        %v1296 = vshrl.u32 %v1295, 7
        %v1297 = vsub.s32 3, %v1296
        %v1298 = vrot.slane %v1153, %v1297
        %v1299 = vmul.f32 %v1294, %v1287
        %v1300 = vmul.f32 %v1298, %v1288
        %v1301 = vmul.f32 %v1294, %v1289
        %v1302 = vmul.f32 %v1298, %v1290
        %v1303 = vadd.f32 %v1282, %v1299
        %v1304 = vadd.f32 %v1283, %v1300
        %v1305 = vadd.f32 %v1284, %v1301
        %v1306 = vadd.f32 %v1285, %v1302
        %s1307 = scalar_lea.vmem %s499, 128
        %v1308 = vld [vmem:[%s1307] sm:$0xff]
        %v1309 = vld [vmem:[%s1307 + $0x8] sm:$0xff]
        %v1310 = vld [vmem:[%s1307 + $0x10] sm:$0x1f]
        %v1311 = vld [vmem:[%s1307 + $0x18] sm:$0x1f]
        %v1312 = vlaneseq
        %v1313 = vshrl.u32 %v1312, 7
        %v1314 = vsub.s32 4, %v1313
        %v1315 = vrot.slane %v1152, %v1314
        %v1316 = vlaneseq
        %v1317 = vshrl.u32 %v1316, 7
        %v1318 = vsub.s32 4, %v1317
        %v1319 = vrot.slane %v1153, %v1318
        %v1320 = vmul.f32 %v1315, %v1308
        %v1321 = vmul.f32 %v1319, %v1309
        %v1322 = vmul.f32 %v1315, %v1310
        %v1323 = vmul.f32 %v1319, %v1311
        %v1324 = vadd.f32 %v1303, %v1320
        %v1325 = vadd.f32 %v1304, %v1321
        %v1326 = vadd.f32 %v1305, %v1322
        %v1327 = vadd.f32 %v1306, %v1323
        %s1328 = scalar_lea.vmem %s499, 160
        %v1329 = vld [vmem:[%s1328] sm:$0xff]
        %v1330 = vld [vmem:[%s1328 + $0x8] sm:$0xff]
        %v1331 = vld [vmem:[%s1328 + $0x10] sm:$0x1f]
        %v1332 = vld [vmem:[%s1328 + $0x18] sm:$0x1f]
        %v1333 = vlaneseq
        %v1334 = vshrl.u32 %v1333, 7
        %v1335 = vsub.s32 5, %v1334
        %v1336 = vrot.slane %v1152, %v1335
        %v1337 = vlaneseq
        %v1338 = vshrl.u32 %v1337, 7
        %v1339 = vsub.s32 5, %v1338
        %v1340 = vrot.slane %v1153, %v1339
        %v1341 = vmul.f32 %v1336, %v1329
        %v1342 = vmul.f32 %v1340, %v1330
        %v1343 = vmul.f32 %v1336, %v1331
        %v1344 = vmul.f32 %v1340, %v1332
        %v1345 = vadd.f32 %v1324, %v1341
        %v1346 = vadd.f32 %v1325, %v1342
        %v1347 = vadd.f32 %v1326, %v1343
        %v1348 = vadd.f32 %v1327, %v1344
        %s1349 = scalar_lea.vmem %s499, 192
        %v1350 = vld [vmem:[%s1349] sm:$0xff]
        %v1351 = vld [vmem:[%s1349 + $0x8] sm:$0xff]
        %v1352 = vld [vmem:[%s1349 + $0x10] sm:$0x1f]
        %v1353 = vld [vmem:[%s1349 + $0x18] sm:$0x1f]
        %v1354 = vlaneseq
        %v1355 = vshrl.u32 %v1354, 7
        %v1356 = vsub.s32 6, %v1355
        %v1357 = vrot.slane %v1152, %v1356
        %v1358 = vlaneseq
        %v1359 = vshrl.u32 %v1358, 7
        %v1360 = vsub.s32 6, %v1359
        %v1361 = vrot.slane %v1153, %v1360
        %v1362 = vmul.f32 %v1357, %v1350
        %v1363 = vmul.f32 %v1361, %v1351
        %v1364 = vmul.f32 %v1357, %v1352
        %v1365 = vmul.f32 %v1361, %v1353
        %v1366 = vadd.f32 %v1345, %v1362
        %v1367 = vadd.f32 %v1346, %v1363
        %v1368 = vadd.f32 %v1347, %v1364
        %v1369 = vadd.f32 %v1348, %v1365
        %s1370 = scalar_lea.vmem %s499, 224
        %v1371 = vld [vmem:[%s1370] sm:$0xff]
        %v1372 = vld [vmem:[%s1370 + $0x8] sm:$0xff]
        %v1373 = vld [vmem:[%s1370 + $0x10] sm:$0x1f]
        %v1374 = vld [vmem:[%s1370 + $0x18] sm:$0x1f]
        %v1375 = vlaneseq
        %v1376 = vshrl.u32 %v1375, 7
        %v1377 = vsub.s32 7, %v1376
        %v1378 = vrot.slane %v1152, %v1377
        %v1379 = vlaneseq
        %v1380 = vshrl.u32 %v1379, 7
        %v1381 = vsub.s32 7, %v1380
        %v1382 = vrot.slane %v1153, %v1381
        %v1383 = vmul.f32 %v1378, %v1371
        %v1384 = vmul.f32 %v1382, %v1372
        %v1385 = vmul.f32 %v1378, %v1373
        %v1386 = vmul.f32 %v1382, %v1374
        %v1387 = vadd.f32 %v1366, %v1383
        %v1388 = vadd.f32 %v1367, %v1384
        %v1389 = vadd.f32 %v1368, %v1385
        %v1390 = vadd.f32 %v1369, %v1386
        %v1391 = vpack.c.bf16 %v1389, %v1387
        %v1392 = vpack.c.bf16 %v1390, %v1388
        %v1394 = vshrl.u32 %v1391, 16
        %v1396 = vrot.slane %v1394, 6
        %v1397 = vshll.u32 %v1391, 16
        %v1399 = vrot.slane %v1397, 7
        %v1400 = vor.u32 %v1396, %v1399
        %v1402 = vshrl.u32 %v1392, 16
        %v1404 = vrot.slane %v1402, 6
        %v1405 = vshll.u32 %v1392, 16
        %v1407 = vrot.slane %v1405, 7
        %v1408 = vor.u32 %v1404, %v1407
        %vm1411 = vcmask 1047553
        %vm1412 = vsmask.f32 7942
        %vm1413 = vmand %vm1411, %vm1412
        %v1414 = vld [vmem:[#allocation2] sm:$0xfe]
        %v1415 = vsel %vm1413, %v1400, %v1414
        %1416 = vst [vmem:[#allocation2] sm:$0xfe] %v1415
        %v1417 = vld [vmem:[#allocation2 + $0x8] sm:$0xfe]
        %v1418 = vsel %vm1413, %v1408, %v1417
        %1419 = vst [vmem:[#allocation2 + $0x8] sm:$0xfe] %v1418
        %s1420 = sld [smem:[#allocation11 + $0x1]]
        %v1421 = vstv %s1420
        %v1422 = vmul.f32 %v736, %v1421
        %v1423 = vmul.f32 %v737, %v1421
        %s1424 = sld [smem:[#allocation11 + $0x81]]
        %v1425 = vstv %s1424
        %v1426 = vmul.f32 %v788, %v1425
        %v1427 = vmul.f32 %v789, %v1425
        %v1428 = vadd.f32 %v1422, %v1426
        %v1429 = vadd.f32 %v1423, %v1427
        %s1430 = sld [smem:[#allocation11 + $0x101]]
        %v1431 = vstv %s1430
        %v1432 = vmul.f32 %v840, %v1431
        %v1433 = vmul.f32 %v841, %v1431
        %v1434 = vadd.f32 %v1428, %v1432
        %v1435 = vadd.f32 %v1429, %v1433
        %s1436 = sld [smem:[#allocation11 + $0x181]]
        %v1437 = vstv %s1436
        %v1438 = vmul.f32 %v892, %v1437
        %v1439 = vmul.f32 %v893, %v1437
        %v1440 = vadd.f32 %v1434, %v1438
        %v1441 = vadd.f32 %v1435, %v1439
        %s1442 = sld [smem:[#allocation11 + $0x201]]
        %v1443 = vstv %s1442
        %v1444 = vmul.f32 %v944, %v1443
        %v1445 = vmul.f32 %v945, %v1443
        %v1446 = vadd.f32 %v1440, %v1444
        %v1447 = vadd.f32 %v1441, %v1445
        %s1448 = sld [smem:[#allocation11 + $0x281]]
        %v1449 = vstv %s1448
        %v1450 = vmul.f32 %v996, %v1449
        %v1451 = vmul.f32 %v997, %v1449
        %v1452 = vadd.f32 %v1446, %v1450
        %v1453 = vadd.f32 %v1447, %v1451
        %s1454 = sld [smem:[#allocation11 + $0x301]]
        %v1455 = vstv %s1454
        %v1456 = vmul.f32 %v1048, %v1455
        %v1457 = vmul.f32 %v1049, %v1455
        %v1458 = vadd.f32 %v1452, %v1456
        %v1459 = vadd.f32 %v1453, %v1457
        %s1460 = sld [smem:[#allocation11 + $0x381]]
        %v1461 = vstv %s1460
        %v1462 = vmul.f32 %v1100, %v1461
        %v1463 = vmul.f32 %v1101, %v1461
        %v1464 = vadd.f32 %v1458, %v1462
        %v1465 = vadd.f32 %v1459, %v1463
        %s1466 = sld [smem:[#allocation12 + $0x1]]
        %v1467 = vstv %s1466
        %v1468 = vadd.f32 %v1464, %v1467
        %v1469 = vadd.f32 %v1465, %v1467
        %v1470 = vmax.f32 %v1468, 0.0
        %v1471 = vmax.f32 %v1469, 0.0
        %v1472 = vmul.f32 %v502, %v1470
        %v1473 = vmul.f32 %v503, %v1471
        %v1474 = vrot.slane %v1472, 4
        %v1475 = vadd.f32 %v1472, %v1474
        %v1476 = vrot.slane %v1475, 2
        %v1477 = vadd.f32 %v1475, %v1476
        %v1478 = vrot.slane %v1477, 1
        %v1479 = vadd.f32 %v1477, %v1478
        %v1480 = vrot.slane %v1473, 4
        %v1481 = vadd.f32 %v1473, %v1480
        %v1482 = vrot.slane %v1481, 2
        %v1483 = vadd.f32 %v1481, %v1482
        %v1484 = vrot.slane %v1483, 1
        %v1485 = vadd.f32 %v1483, %v1484
        %v1486 = vpack.c.bf16 %v1479, %v1479
        %v1487 = vpack.c.bf16 %v1485, %v1485
        %v1488 = vld [vmem:[#allocation2 + $0x10] sm:$0x1]
        %v1489 = vsel %vm1172, %v1486, %v1488
        %1490 = vst [vmem:[#allocation2 + $0x10] sm:$0x1] %v1489
        %v1491 = vld [vmem:[#allocation2 + $0x18] sm:$0x1]
        %v1492 = vsel %vm1172, %v1487, %v1491
        %1493 = vst [vmem:[#allocation2 + $0x18] sm:$0x1] %v1492
        %v1494 = vmul.f32 %v505, %v1470
        %v1495 = vmul.f32 %v506, %v1471
        %v1496 = vrot.slane %v1494, 4
        %v1497 = vadd.f32 %v1494, %v1496
        %v1498 = vrot.slane %v1497, 2
        %v1499 = vadd.f32 %v1497, %v1498
        %v1500 = vrot.slane %v1499, 1
        %v1501 = vadd.f32 %v1499, %v1500
        %v1502 = vrot.slane %v1495, 4
        %v1503 = vadd.f32 %v1495, %v1502
        %v1504 = vrot.slane %v1503, 2
        %v1505 = vadd.f32 %v1503, %v1504
        %v1506 = vrot.slane %v1505, 1
        %v1507 = vadd.f32 %v1505, %v1506
        %v1508 = vpack.c.bf16 %v1501, %v1501
        %v1509 = vpack.c.bf16 %v1507, %v1507
        %v1510 = vld [vmem:[#allocation2 + $0x10] sm:$0x1]
        %v1511 = vsel %vm1196, %v1508, %v1510
        %1512 = vst [vmem:[#allocation2 + $0x10] sm:$0x1] %v1511
        %v1513 = vld [vmem:[#allocation2 + $0x18] sm:$0x1]
        %v1514 = vsel %vm1196, %v1509, %v1513
        %1515 = vst [vmem:[#allocation2 + $0x18] sm:$0x1] %v1514
        %v1516 = vmul.f32 %v508, %v1470
        %v1517 = vmul.f32 %v509, %v1471
        %v1518 = vrot.slane %v1516, 4
        %v1519 = vadd.f32 %v1516, %v1518
        %v1520 = vrot.slane %v1519, 2
        %v1521 = vadd.f32 %v1519, %v1520
        %v1522 = vrot.slane %v1521, 1
        %v1523 = vadd.f32 %v1521, %v1522
        %v1524 = vrot.slane %v1517, 4
        %v1525 = vadd.f32 %v1517, %v1524
        %v1526 = vrot.slane %v1525, 2
        %v1527 = vadd.f32 %v1525, %v1526
        %v1528 = vrot.slane %v1527, 1
        %v1529 = vadd.f32 %v1527, %v1528
        %v1530 = vpack.c.bf16 %v1523, %v1523
        %v1531 = vpack.c.bf16 %v1529, %v1529
        %v1532 = vld [vmem:[#allocation2 + $0x10] sm:$0x2]
        %v1533 = vsel %vm1221, %v1530, %v1532
        %1534 = vst [vmem:[#allocation2 + $0x10] sm:$0x2] %v1533
        %v1535 = vld [vmem:[#allocation2 + $0x18] sm:$0x2]
        %v1536 = vsel %vm1221, %v1531, %v1535
        %1537 = vst [vmem:[#allocation2 + $0x18] sm:$0x2] %v1536
        %v1538 = vld [vmem:[%s499] sm:$0xff]
        %v1539 = vld [vmem:[%s499 + $0x8] sm:$0xff]
        %v1540 = vld [vmem:[%s499 + $0x10] sm:$0x1f]
        %v1541 = vld [vmem:[%s499 + $0x18] sm:$0x1f]
        %v1542 = vlaneseq
        %v1543 = vshrl.u32 %v1542, 7
        %v1544 = vsub.s32 0, %v1543
        %v1545 = vrot.slane %v1470, %v1544
        %v1546 = vlaneseq
        %v1547 = vshrl.u32 %v1546, 7
        %v1548 = vsub.s32 0, %v1547
        %v1549 = vrot.slane %v1471, %v1548
        %v1550 = vmul.f32 %v1545, %v1538
        %v1551 = vmul.f32 %v1549, %v1539
        %v1552 = vmul.f32 %v1545, %v1540
        %v1553 = vmul.f32 %v1549, %v1541
        %v1554 = vld [vmem:[%s1244] sm:$0xff]
        %v1555 = vld [vmem:[%s1244 + $0x8] sm:$0xff]
        %v1556 = vld [vmem:[%s1244 + $0x10] sm:$0x1f]
        %v1557 = vld [vmem:[%s1244 + $0x18] sm:$0x1f]
        %v1558 = vlaneseq
        %v1559 = vshrl.u32 %v1558, 7
        %v1560 = vsub.s32 1, %v1559
        %v1561 = vrot.slane %v1470, %v1560
        %v1562 = vlaneseq
        %v1563 = vshrl.u32 %v1562, 7
        %v1564 = vsub.s32 1, %v1563
        %v1565 = vrot.slane %v1471, %v1564
        %v1566 = vmul.f32 %v1561, %v1554
        %v1567 = vmul.f32 %v1565, %v1555
        %v1568 = vmul.f32 %v1561, %v1556
        %v1569 = vmul.f32 %v1565, %v1557
        %v1570 = vadd.f32 %v1550, %v1566
        %v1571 = vadd.f32 %v1551, %v1567
        %v1572 = vadd.f32 %v1552, %v1568
        %v1573 = vadd.f32 %v1553, %v1569
        %v1574 = vld [vmem:[%s1265] sm:$0xff]
        %v1575 = vld [vmem:[%s1265 + $0x8] sm:$0xff]
        %v1576 = vld [vmem:[%s1265 + $0x10] sm:$0x1f]
        %v1577 = vld [vmem:[%s1265 + $0x18] sm:$0x1f]
        %v1578 = vlaneseq
        %v1579 = vshrl.u32 %v1578, 7
        %v1580 = vsub.s32 2, %v1579
        %v1581 = vrot.slane %v1470, %v1580
        %v1582 = vlaneseq
        %v1583 = vshrl.u32 %v1582, 7
        %v1584 = vsub.s32 2, %v1583
        %v1585 = vrot.slane %v1471, %v1584
        %v1586 = vmul.f32 %v1581, %v1574
        %v1587 = vmul.f32 %v1585, %v1575
        %v1588 = vmul.f32 %v1581, %v1576
        %v1589 = vmul.f32 %v1585, %v1577
        %v1590 = vadd.f32 %v1570, %v1586
        %v1591 = vadd.f32 %v1571, %v1587
        %v1592 = vadd.f32 %v1572, %v1588
        %v1593 = vadd.f32 %v1573, %v1589
        %v1594 = vld [vmem:[%s1286] sm:$0xff]
        %v1595 = vld [vmem:[%s1286 + $0x8] sm:$0xff]
        %v1596 = vld [vmem:[%s1286 + $0x10] sm:$0x1f]
        %v1597 = vld [vmem:[%s1286 + $0x18] sm:$0x1f]
        %v1598 = vlaneseq
        %v1599 = vshrl.u32 %v1598, 7
        %v1600 = vsub.s32 3, %v1599
        %v1601 = vrot.slane %v1470, %v1600
        %v1602 = vlaneseq
        %v1603 = vshrl.u32 %v1602, 7
        %v1604 = vsub.s32 3, %v1603
        %v1605 = vrot.slane %v1471, %v1604
        %v1606 = vmul.f32 %v1601, %v1594
        %v1607 = vmul.f32 %v1605, %v1595
        %v1608 = vmul.f32 %v1601, %v1596
        %v1609 = vmul.f32 %v1605, %v1597
        %v1610 = vadd.f32 %v1590, %v1606
        %v1611 = vadd.f32 %v1591, %v1607
        %v1612 = vadd.f32 %v1592, %v1608
        %v1613 = vadd.f32 %v1593, %v1609
        %v1614 = vld [vmem:[%s1307] sm:$0xff]
        %v1615 = vld [vmem:[%s1307 + $0x8] sm:$0xff]
        %v1616 = vld [vmem:[%s1307 + $0x10] sm:$0x1f]
        %v1617 = vld [vmem:[%s1307 + $0x18] sm:$0x1f]
        %v1618 = vlaneseq
        %v1619 = vshrl.u32 %v1618, 7
        %v1620 = vsub.s32 4, %v1619
        %v1621 = vrot.slane %v1470, %v1620
        %v1622 = vlaneseq
        %v1623 = vshrl.u32 %v1622, 7
        %v1624 = vsub.s32 4, %v1623
        %v1625 = vrot.slane %v1471, %v1624
        %v1626 = vmul.f32 %v1621, %v1614
        %v1627 = vmul.f32 %v1625, %v1615
        %v1628 = vmul.f32 %v1621, %v1616
        %v1629 = vmul.f32 %v1625, %v1617
        %v1630 = vadd.f32 %v1610, %v1626
        %v1631 = vadd.f32 %v1611, %v1627
        %v1632 = vadd.f32 %v1612, %v1628
        %v1633 = vadd.f32 %v1613, %v1629
        %v1634 = vld [vmem:[%s1328] sm:$0xff]
        %v1635 = vld [vmem:[%s1328 + $0x8] sm:$0xff]
        %v1636 = vld [vmem:[%s1328 + $0x10] sm:$0x1f]
        %v1637 = vld [vmem:[%s1328 + $0x18] sm:$0x1f]
        %v1638 = vlaneseq
        %v1639 = vshrl.u32 %v1638, 7
        %v1640 = vsub.s32 5, %v1639
        %v1641 = vrot.slane %v1470, %v1640
        %v1642 = vlaneseq
        %v1643 = vshrl.u32 %v1642, 7
        %v1644 = vsub.s32 5, %v1643
        %v1645 = vrot.slane %v1471, %v1644
        %v1646 = vmul.f32 %v1641, %v1634
        %v1647 = vmul.f32 %v1645, %v1635
        %v1648 = vmul.f32 %v1641, %v1636
        %v1649 = vmul.f32 %v1645, %v1637
        %v1650 = vadd.f32 %v1630, %v1646
        %v1651 = vadd.f32 %v1631, %v1647
        %v1652 = vadd.f32 %v1632, %v1648
        %v1653 = vadd.f32 %v1633, %v1649
        %v1654 = vld [vmem:[%s1349] sm:$0xff]
        %v1655 = vld [vmem:[%s1349 + $0x8] sm:$0xff]
        %v1656 = vld [vmem:[%s1349 + $0x10] sm:$0x1f]
        %v1657 = vld [vmem:[%s1349 + $0x18] sm:$0x1f]
        %v1658 = vlaneseq
        %v1659 = vshrl.u32 %v1658, 7
        %v1660 = vsub.s32 6, %v1659
        %v1661 = vrot.slane %v1470, %v1660
        %v1662 = vlaneseq
        %v1663 = vshrl.u32 %v1662, 7
        %v1664 = vsub.s32 6, %v1663
        %v1665 = vrot.slane %v1471, %v1664
        %v1666 = vmul.f32 %v1661, %v1654
        %v1667 = vmul.f32 %v1665, %v1655
        %v1668 = vmul.f32 %v1661, %v1656
        %v1669 = vmul.f32 %v1665, %v1657
        %v1670 = vadd.f32 %v1650, %v1666
        %v1671 = vadd.f32 %v1651, %v1667
        %v1672 = vadd.f32 %v1652, %v1668
        %v1673 = vadd.f32 %v1653, %v1669
        %v1674 = vld [vmem:[%s1370] sm:$0xff]
        %v1675 = vld [vmem:[%s1370 + $0x8] sm:$0xff]
        %v1676 = vld [vmem:[%s1370 + $0x10] sm:$0x1f]
        %v1677 = vld [vmem:[%s1370 + $0x18] sm:$0x1f]
        %v1678 = vlaneseq
        %v1679 = vshrl.u32 %v1678, 7
        %v1680 = vsub.s32 7, %v1679
        %v1681 = vrot.slane %v1470, %v1680
        %v1682 = vlaneseq
        %v1683 = vshrl.u32 %v1682, 7
        %v1684 = vsub.s32 7, %v1683
        %v1685 = vrot.slane %v1471, %v1684
        %v1686 = vmul.f32 %v1681, %v1674
        %v1687 = vmul.f32 %v1685, %v1675
        %v1688 = vmul.f32 %v1681, %v1676
        %v1689 = vmul.f32 %v1685, %v1677
        %v1690 = vadd.f32 %v1670, %v1686
        %v1691 = vadd.f32 %v1671, %v1687
        %v1692 = vadd.f32 %v1672, %v1688
        %v1693 = vadd.f32 %v1673, %v1689
        %v1694 = vpack.c.bf16 %v1692, %v1690
        %v1695 = vpack.c.bf16 %v1693, %v1691
        %v1697 = vshrl.u32 %v1694, 16
        %v1699 = vrot.slane %v1697, 6
        %v1700 = vshll.u32 %v1694, 16
        %v1702 = vrot.slane %v1700, 7
        %v1703 = vor.u32 %v1699, %v1702
        %v1705 = vshrl.u32 %v1695, 16
        %v1707 = vrot.slane %v1705, 6
        %v1708 = vshll.u32 %v1695, 16
        %v1710 = vrot.slane %v1708, 7
        %v1711 = vor.u32 %v1707, %v1710
        %v1714 = vld [vmem:[#allocation2 + $0x10] sm:$0xfe]
        %v1715 = vsel %vm1413, %v1703, %v1714
        %1716 = vst [vmem:[#allocation2 + $0x10] sm:$0xfe] %v1715
        %v1717 = vld [vmem:[#allocation2 + $0x18] sm:$0xfe]
        %v1718 = vsel %vm1413, %v1711, %v1717
        %1719 = vst [vmem:[#allocation2 + $0x18] sm:$0xfe] %v1718
        %s1720 = sld [smem:[#allocation11 + $0x2]]
        %v1721 = vstv %s1720
        %v1722 = vmul.f32 %v736, %v1721
        %v1723 = vmul.f32 %v737, %v1721
        %s1724 = sld [smem:[#allocation11 + $0x82]]
        %v1725 = vstv %s1724
        %v1726 = vmul.f32 %v788, %v1725
        %v1727 = vmul.f32 %v789, %v1725
        %v1728 = vadd.f32 %v1722, %v1726
        %v1729 = vadd.f32 %v1723, %v1727
        %s1730 = sld [smem:[#allocation11 + $0x102]]
        %v1731 = vstv %s1730
        %v1732 = vmul.f32 %v840, %v1731
        %v1733 = vmul.f32 %v841, %v1731
        %v1734 = vadd.f32 %v1728, %v1732
        %v1735 = vadd.f32 %v1729, %v1733
        %s1736 = sld [smem:[#allocation11 + $0x182]]
        %v1737 = vstv %s1736
        %v1738 = vmul.f32 %v892, %v1737
        %v1739 = vmul.f32 %v893, %v1737
        %v1740 = vadd.f32 %v1734, %v1738
        %v1741 = vadd.f32 %v1735, %v1739
        %s1742 = sld [smem:[#allocation11 + $0x202]]
        %v1743 = vstv %s1742
        %v1744 = vmul.f32 %v944, %v1743
        %v1745 = vmul.f32 %v945, %v1743
        %v1746 = vadd.f32 %v1740, %v1744
        %v1747 = vadd.f32 %v1741, %v1745
        %s1748 = sld [smem:[#allocation11 + $0x282]]
        %v1749 = vstv %s1748
        %v1750 = vmul.f32 %v996, %v1749
        %v1751 = vmul.f32 %v997, %v1749
        %v1752 = vadd.f32 %v1746, %v1750
        %v1753 = vadd.f32 %v1747, %v1751
        %s1754 = sld [smem:[#allocation11 + $0x302]]
        %v1755 = vstv %s1754
        %v1756 = vmul.f32 %v1048, %v1755
        %v1757 = vmul.f32 %v1049, %v1755
        %v1758 = vadd.f32 %v1752, %v1756
        %v1759 = vadd.f32 %v1753, %v1757
        %s1760 = sld [smem:[#allocation11 + $0x382]]
        %v1761 = vstv %s1760
        %v1762 = vmul.f32 %v1100, %v1761
        %v1763 = vmul.f32 %v1101, %v1761
        %v1764 = vadd.f32 %v1758, %v1762
        %v1765 = vadd.f32 %v1759, %v1763
        %s1766 = sld [smem:[#allocation12 + $0x2]]
        %v1767 = vstv %s1766
        %v1768 = vadd.f32 %v1764, %v1767
        %v1769 = vadd.f32 %v1765, %v1767
        %v1770 = vmax.f32 %v1768, 0.0
        %v1771 = vmax.f32 %v1769, 0.0
        %v1772 = vmul.f32 %v502, %v1770
        %v1773 = vmul.f32 %v503, %v1771
        %v1774 = vrot.slane %v1772, 4
        %v1775 = vadd.f32 %v1772, %v1774
        %v1776 = vrot.slane %v1775, 2
        %v1777 = vadd.f32 %v1775, %v1776
        %v1778 = vrot.slane %v1777, 1
        %v1779 = vadd.f32 %v1777, %v1778
        %v1780 = vrot.slane %v1773, 4
        %v1781 = vadd.f32 %v1773, %v1780
        %v1782 = vrot.slane %v1781, 2
        %v1783 = vadd.f32 %v1781, %v1782
        %v1784 = vrot.slane %v1783, 1
        %v1785 = vadd.f32 %v1783, %v1784
        %v1786 = vpack.c.bf16 %v1779, %v1779
        %v1787 = vpack.c.bf16 %v1785, %v1785
        %v1788 = vld [vmem:[#allocation2 + $0x20] sm:$0x1]
        %v1789 = vsel %vm1172, %v1786, %v1788
        %1790 = vst [vmem:[#allocation2 + $0x20] sm:$0x1] %v1789
        %v1791 = vld [vmem:[#allocation2 + $0x28] sm:$0x1]
        %v1792 = vsel %vm1172, %v1787, %v1791
        %1793 = vst [vmem:[#allocation2 + $0x28] sm:$0x1] %v1792
        %v1794 = vmul.f32 %v505, %v1770
        %v1795 = vmul.f32 %v506, %v1771
        %v1796 = vrot.slane %v1794, 4
        %v1797 = vadd.f32 %v1794, %v1796
        %v1798 = vrot.slane %v1797, 2
        %v1799 = vadd.f32 %v1797, %v1798
        %v1800 = vrot.slane %v1799, 1
        %v1801 = vadd.f32 %v1799, %v1800
        %v1802 = vrot.slane %v1795, 4
        %v1803 = vadd.f32 %v1795, %v1802
        %v1804 = vrot.slane %v1803, 2
        %v1805 = vadd.f32 %v1803, %v1804
        %v1806 = vrot.slane %v1805, 1
        %v1807 = vadd.f32 %v1805, %v1806
        %v1808 = vpack.c.bf16 %v1801, %v1801
        %v1809 = vpack.c.bf16 %v1807, %v1807
        %v1810 = vld [vmem:[#allocation2 + $0x20] sm:$0x1]
        %v1811 = vsel %vm1196, %v1808, %v1810
        %1812 = vst [vmem:[#allocation2 + $0x20] sm:$0x1] %v1811
        %v1813 = vld [vmem:[#allocation2 + $0x28] sm:$0x1]
        %v1814 = vsel %vm1196, %v1809, %v1813
        %1815 = vst [vmem:[#allocation2 + $0x28] sm:$0x1] %v1814
        %v1816 = vmul.f32 %v508, %v1770
        %v1817 = vmul.f32 %v509, %v1771
        %v1818 = vrot.slane %v1816, 4
        %v1819 = vadd.f32 %v1816, %v1818
        %v1820 = vrot.slane %v1819, 2
        %v1821 = vadd.f32 %v1819, %v1820
        %v1822 = vrot.slane %v1821, 1
        %v1823 = vadd.f32 %v1821, %v1822
        %v1824 = vrot.slane %v1817, 4
        %v1825 = vadd.f32 %v1817, %v1824
        %v1826 = vrot.slane %v1825, 2
        %v1827 = vadd.f32 %v1825, %v1826
        %v1828 = vrot.slane %v1827, 1
        %v1829 = vadd.f32 %v1827, %v1828
        %v1830 = vpack.c.bf16 %v1823, %v1823
        %v1831 = vpack.c.bf16 %v1829, %v1829
        %v1832 = vld [vmem:[#allocation2 + $0x20] sm:$0x2]
        %v1833 = vsel %vm1221, %v1830, %v1832
        %1834 = vst [vmem:[#allocation2 + $0x20] sm:$0x2] %v1833
        %v1835 = vld [vmem:[#allocation2 + $0x28] sm:$0x2]
        %v1836 = vsel %vm1221, %v1831, %v1835
        %1837 = vst [vmem:[#allocation2 + $0x28] sm:$0x2] %v1836
        %v1838 = vld [vmem:[%s499] sm:$0xff]
        %v1839 = vld [vmem:[%s499 + $0x8] sm:$0xff]
        %v1840 = vld [vmem:[%s499 + $0x10] sm:$0x1f]
        %v1841 = vld [vmem:[%s499 + $0x18] sm:$0x1f]
        %v1842 = vlaneseq
        %v1843 = vshrl.u32 %v1842, 7
        %v1844 = vsub.s32 0, %v1843
        %v1845 = vrot.slane %v1770, %v1844
        %v1846 = vlaneseq
        %v1847 = vshrl.u32 %v1846, 7
        %v1848 = vsub.s32 0, %v1847
        %v1849 = vrot.slane %v1771, %v1848
        %v1850 = vmul.f32 %v1845, %v1838
        %v1851 = vmul.f32 %v1849, %v1839
        %v1852 = vmul.f32 %v1845, %v1840
        %v1853 = vmul.f32 %v1849, %v1841
        %v1854 = vld [vmem:[%s1244] sm:$0xff]
        %v1855 = vld [vmem:[%s1244 + $0x8] sm:$0xff]
        %v1856 = vld [vmem:[%s1244 + $0x10] sm:$0x1f]
        %v1857 = vld [vmem:[%s1244 + $0x18] sm:$0x1f]
        %v1858 = vlaneseq
        %v1859 = vshrl.u32 %v1858, 7
        %v1860 = vsub.s32 1, %v1859
        %v1861 = vrot.slane %v1770, %v1860
        %v1862 = vlaneseq
        %v1863 = vshrl.u32 %v1862, 7
        %v1864 = vsub.s32 1, %v1863
        %v1865 = vrot.slane %v1771, %v1864
        %v1866 = vmul.f32 %v1861, %v1854
        %v1867 = vmul.f32 %v1865, %v1855
        %v1868 = vmul.f32 %v1861, %v1856
        %v1869 = vmul.f32 %v1865, %v1857
        %v1870 = vadd.f32 %v1850, %v1866
        %v1871 = vadd.f32 %v1851, %v1867
        %v1872 = vadd.f32 %v1852, %v1868
        %v1873 = vadd.f32 %v1853, %v1869
        %v1874 = vld [vmem:[%s1265] sm:$0xff]
        %v1875 = vld [vmem:[%s1265 + $0x8] sm:$0xff]
        %v1876 = vld [vmem:[%s1265 + $0x10] sm:$0x1f]
        %v1877 = vld [vmem:[%s1265 + $0x18] sm:$0x1f]
        %v1878 = vlaneseq
        %v1879 = vshrl.u32 %v1878, 7
        %v1880 = vsub.s32 2, %v1879
        %v1881 = vrot.slane %v1770, %v1880
        %v1882 = vlaneseq
        %v1883 = vshrl.u32 %v1882, 7
        %v1884 = vsub.s32 2, %v1883
        %v1885 = vrot.slane %v1771, %v1884
        %v1886 = vmul.f32 %v1881, %v1874
        %v1887 = vmul.f32 %v1885, %v1875
        %v1888 = vmul.f32 %v1881, %v1876
        %v1889 = vmul.f32 %v1885, %v1877
        %v1890 = vadd.f32 %v1870, %v1886
        %v1891 = vadd.f32 %v1871, %v1887
        %v1892 = vadd.f32 %v1872, %v1888
        %v1893 = vadd.f32 %v1873, %v1889
        %v1894 = vld [vmem:[%s1286] sm:$0xff]
        %v1895 = vld [vmem:[%s1286 + $0x8] sm:$0xff]
        %v1896 = vld [vmem:[%s1286 + $0x10] sm:$0x1f]
        %v1897 = vld [vmem:[%s1286 + $0x18] sm:$0x1f]
        %v1898 = vlaneseq
        %v1899 = vshrl.u32 %v1898, 7
        %v1900 = vsub.s32 3, %v1899
        %v1901 = vrot.slane %v1770, %v1900
        %v1902 = vlaneseq
        %v1903 = vshrl.u32 %v1902, 7
        %v1904 = vsub.s32 3, %v1903
        %v1905 = vrot.slane %v1771, %v1904
        %v1906 = vmul.f32 %v1901, %v1894
        %v1907 = vmul.f32 %v1905, %v1895
        %v1908 = vmul.f32 %v1901, %v1896
        %v1909 = vmul.f32 %v1905, %v1897
        %v1910 = vadd.f32 %v1890, %v1906
        %v1911 = vadd.f32 %v1891, %v1907
        %v1912 = vadd.f32 %v1892, %v1908
        %v1913 = vadd.f32 %v1893, %v1909
        %v1914 = vld [vmem:[%s1307] sm:$0xff]
        %v1915 = vld [vmem:[%s1307 + $0x8] sm:$0xff]
        %v1916 = vld [vmem:[%s1307 + $0x10] sm:$0x1f]
        %v1917 = vld [vmem:[%s1307 + $0x18] sm:$0x1f]
        %v1918 = vlaneseq
        %v1919 = vshrl.u32 %v1918, 7
        %v1920 = vsub.s32 4, %v1919
        %v1921 = vrot.slane %v1770, %v1920
        %v1922 = vlaneseq
        %v1923 = vshrl.u32 %v1922, 7
        %v1924 = vsub.s32 4, %v1923
        %v1925 = vrot.slane %v1771, %v1924
        %v1926 = vmul.f32 %v1921, %v1914
        %v1927 = vmul.f32 %v1925, %v1915
        %v1928 = vmul.f32 %v1921, %v1916
        %v1929 = vmul.f32 %v1925, %v1917
        %v1930 = vadd.f32 %v1910, %v1926
        %v1931 = vadd.f32 %v1911, %v1927
        %v1932 = vadd.f32 %v1912, %v1928
        %v1933 = vadd.f32 %v1913, %v1929
        %v1934 = vld [vmem:[%s1328] sm:$0xff]
        %v1935 = vld [vmem:[%s1328 + $0x8] sm:$0xff]
        %v1936 = vld [vmem:[%s1328 + $0x10] sm:$0x1f]
        %v1937 = vld [vmem:[%s1328 + $0x18] sm:$0x1f]
        %v1938 = vlaneseq
        %v1939 = vshrl.u32 %v1938, 7
        %v1940 = vsub.s32 5, %v1939
        %v1941 = vrot.slane %v1770, %v1940
        %v1942 = vlaneseq
        %v1943 = vshrl.u32 %v1942, 7
        %v1944 = vsub.s32 5, %v1943
        %v1945 = vrot.slane %v1771, %v1944
        %v1946 = vmul.f32 %v1941, %v1934
        %v1947 = vmul.f32 %v1945, %v1935
        %v1948 = vmul.f32 %v1941, %v1936
        %v1949 = vmul.f32 %v1945, %v1937
        %v1950 = vadd.f32 %v1930, %v1946
        %v1951 = vadd.f32 %v1931, %v1947
        %v1952 = vadd.f32 %v1932, %v1948
        %v1953 = vadd.f32 %v1933, %v1949
        %v1954 = vld [vmem:[%s1349] sm:$0xff]
        %v1955 = vld [vmem:[%s1349 + $0x8] sm:$0xff]
        %v1956 = vld [vmem:[%s1349 + $0x10] sm:$0x1f]
        %v1957 = vld [vmem:[%s1349 + $0x18] sm:$0x1f]
        %v1958 = vlaneseq
        %v1959 = vshrl.u32 %v1958, 7
        %v1960 = vsub.s32 6, %v1959
        %v1961 = vrot.slane %v1770, %v1960
        %v1962 = vlaneseq
        %v1963 = vshrl.u32 %v1962, 7
        %v1964 = vsub.s32 6, %v1963
        %v1965 = vrot.slane %v1771, %v1964
        %v1966 = vmul.f32 %v1961, %v1954
        %v1967 = vmul.f32 %v1965, %v1955
        %v1968 = vmul.f32 %v1961, %v1956
        %v1969 = vmul.f32 %v1965, %v1957
        %v1970 = vadd.f32 %v1950, %v1966
        %v1971 = vadd.f32 %v1951, %v1967
        %v1972 = vadd.f32 %v1952, %v1968
        %v1973 = vadd.f32 %v1953, %v1969
        %v1974 = vld [vmem:[%s1370] sm:$0xff]
        %v1975 = vld [vmem:[%s1370 + $0x8] sm:$0xff]
        %v1976 = vld [vmem:[%s1370 + $0x10] sm:$0x1f]
        %v1977 = vld [vmem:[%s1370 + $0x18] sm:$0x1f]
        %v1978 = vlaneseq
        %v1979 = vshrl.u32 %v1978, 7
        %v1980 = vsub.s32 7, %v1979
        %v1981 = vrot.slane %v1770, %v1980
        %v1982 = vlaneseq
        %v1983 = vshrl.u32 %v1982, 7
        %v1984 = vsub.s32 7, %v1983
        %v1985 = vrot.slane %v1771, %v1984
        %v1986 = vmul.f32 %v1981, %v1974
        %v1987 = vmul.f32 %v1985, %v1975
        %v1988 = vmul.f32 %v1981, %v1976
        %v1989 = vmul.f32 %v1985, %v1977
        %v1990 = vadd.f32 %v1970, %v1986
        %v1991 = vadd.f32 %v1971, %v1987
        %v1992 = vadd.f32 %v1972, %v1988
        %v1993 = vadd.f32 %v1973, %v1989
        %v1994 = vpack.c.bf16 %v1992, %v1990
        %v1995 = vpack.c.bf16 %v1993, %v1991
        %v1997 = vshrl.u32 %v1994, 16
        %v1999 = vrot.slane %v1997, 6
        %v2000 = vshll.u32 %v1994, 16
        %v2002 = vrot.slane %v2000, 7
        %v2003 = vor.u32 %v1999, %v2002
        %v2005 = vshrl.u32 %v1995, 16
        %v2007 = vrot.slane %v2005, 6
        %v2008 = vshll.u32 %v1995, 16
        %v2010 = vrot.slane %v2008, 7
        %v2011 = vor.u32 %v2007, %v2010
        %v2014 = vld [vmem:[#allocation2 + $0x20] sm:$0xfe]
        %v2015 = vsel %vm1413, %v2003, %v2014
        %2016 = vst [vmem:[#allocation2 + $0x20] sm:$0xfe] %v2015
        %v2017 = vld [vmem:[#allocation2 + $0x28] sm:$0xfe]
        %v2018 = vsel %vm1413, %v2011, %v2017
        %2019 = vst [vmem:[#allocation2 + $0x28] sm:$0xfe] %v2018
        %s2020 = sld [smem:[#allocation11 + $0x3]]
        %v2021 = vstv %s2020
        %v2022 = vmul.f32 %v736, %v2021
        %v2023 = vmul.f32 %v737, %v2021
        %s2024 = sld [smem:[#allocation11 + $0x83]]
        %v2025 = vstv %s2024
        %v2026 = vmul.f32 %v788, %v2025
        %v2027 = vmul.f32 %v789, %v2025
        %v2028 = vadd.f32 %v2022, %v2026
        %v2029 = vadd.f32 %v2023, %v2027
        %s2030 = sld [smem:[#allocation11 + $0x103]]
        %v2031 = vstv %s2030
        %v2032 = vmul.f32 %v840, %v2031
        %v2033 = vmul.f32 %v841, %v2031
        %v2034 = vadd.f32 %v2028, %v2032
        %v2035 = vadd.f32 %v2029, %v2033
        %s2036 = sld [smem:[#allocation11 + $0x183]]
        %v2037 = vstv %s2036
        %v2038 = vmul.f32 %v892, %v2037
        %v2039 = vmul.f32 %v893, %v2037
        %v2040 = vadd.f32 %v2034, %v2038
        %v2041 = vadd.f32 %v2035, %v2039
        %s2042 = sld [smem:[#allocation11 + $0x203]]
        %v2043 = vstv %s2042
        %v2044 = vmul.f32 %v944, %v2043
        %v2045 = vmul.f32 %v945, %v2043
        %v2046 = vadd.f32 %v2040, %v2044
        %v2047 = vadd.f32 %v2041, %v2045
        %s2048 = sld [smem:[#allocation11 + $0x283]]
        %v2049 = vstv %s2048
        %v2050 = vmul.f32 %v996, %v2049
        %v2051 = vmul.f32 %v997, %v2049
        %v2052 = vadd.f32 %v2046, %v2050
        %v2053 = vadd.f32 %v2047, %v2051
        %s2054 = sld [smem:[#allocation11 + $0x303]]
        %v2055 = vstv %s2054
        %v2056 = vmul.f32 %v1048, %v2055
        %v2057 = vmul.f32 %v1049, %v2055
        %v2058 = vadd.f32 %v2052, %v2056
        %v2059 = vadd.f32 %v2053, %v2057
        %s2060 = sld [smem:[#allocation11 + $0x383]]
        %v2061 = vstv %s2060
        %v2062 = vmul.f32 %v1100, %v2061
        %v2063 = vmul.f32 %v1101, %v2061
        %v2064 = vadd.f32 %v2058, %v2062
        %v2065 = vadd.f32 %v2059, %v2063
        %s2066 = sld [smem:[#allocation12 + $0x3]]
        %v2067 = vstv %s2066
        %v2068 = vadd.f32 %v2064, %v2067
        %v2069 = vadd.f32 %v2065, %v2067
        %v2070 = vmax.f32 %v2068, 0.0
        %v2071 = vmax.f32 %v2069, 0.0
        %v2072 = vmul.f32 %v502, %v2070
        %v2073 = vmul.f32 %v503, %v2071
        %v2074 = vrot.slane %v2072, 4
        %v2075 = vadd.f32 %v2072, %v2074
        %v2076 = vrot.slane %v2075, 2
        %v2077 = vadd.f32 %v2075, %v2076
        %v2078 = vrot.slane %v2077, 1
        %v2079 = vadd.f32 %v2077, %v2078
        %v2080 = vrot.slane %v2073, 4
        %v2081 = vadd.f32 %v2073, %v2080
        %v2082 = vrot.slane %v2081, 2
        %v2083 = vadd.f32 %v2081, %v2082
        %v2084 = vrot.slane %v2083, 1
        %v2085 = vadd.f32 %v2083, %v2084
        %v2086 = vpack.c.bf16 %v2079, %v2079
        %v2087 = vpack.c.bf16 %v2085, %v2085
        %v2088 = vld [vmem:[#allocation2 + $0x30] sm:$0x1]
        %v2089 = vsel %vm1172, %v2086, %v2088
        %2090 = vst [vmem:[#allocation2 + $0x30] sm:$0x1] %v2089
        %v2091 = vld [vmem:[#allocation2 + $0x38] sm:$0x1]
        %v2092 = vsel %vm1172, %v2087, %v2091
        %2093 = vst [vmem:[#allocation2 + $0x38] sm:$0x1] %v2092
        %v2094 = vmul.f32 %v505, %v2070
        %v2095 = vmul.f32 %v506, %v2071
        %v2096 = vrot.slane %v2094, 4
        %v2097 = vadd.f32 %v2094, %v2096
        %v2098 = vrot.slane %v2097, 2
        %v2099 = vadd.f32 %v2097, %v2098
        %v2100 = vrot.slane %v2099, 1
        %v2101 = vadd.f32 %v2099, %v2100
        %v2102 = vrot.slane %v2095, 4
        %v2103 = vadd.f32 %v2095, %v2102
        %v2104 = vrot.slane %v2103, 2
        %v2105 = vadd.f32 %v2103, %v2104
        %v2106 = vrot.slane %v2105, 1
        %v2107 = vadd.f32 %v2105, %v2106
        %v2108 = vpack.c.bf16 %v2101, %v2101
        %v2109 = vpack.c.bf16 %v2107, %v2107
        %v2110 = vld [vmem:[#allocation2 + $0x30] sm:$0x1]
        %v2111 = vsel %vm1196, %v2108, %v2110
        %2112 = vst [vmem:[#allocation2 + $0x30] sm:$0x1] %v2111
        %v2113 = vld [vmem:[#allocation2 + $0x38] sm:$0x1]
        %v2114 = vsel %vm1196, %v2109, %v2113
        %2115 = vst [vmem:[#allocation2 + $0x38] sm:$0x1] %v2114
        %v2116 = vmul.f32 %v508, %v2070
        %v2117 = vmul.f32 %v509, %v2071
        %v2118 = vrot.slane %v2116, 4
        %v2119 = vadd.f32 %v2116, %v2118
        %v2120 = vrot.slane %v2119, 2
        %v2121 = vadd.f32 %v2119, %v2120
        %v2122 = vrot.slane %v2121, 1
        %v2123 = vadd.f32 %v2121, %v2122
        %v2124 = vrot.slane %v2117, 4
        %v2125 = vadd.f32 %v2117, %v2124
        %v2126 = vrot.slane %v2125, 2
        %v2127 = vadd.f32 %v2125, %v2126
        %v2128 = vrot.slane %v2127, 1
        %v2129 = vadd.f32 %v2127, %v2128
        %v2130 = vpack.c.bf16 %v2123, %v2123
        %v2131 = vpack.c.bf16 %v2129, %v2129
        %v2132 = vld [vmem:[#allocation2 + $0x30] sm:$0x2]
        %v2133 = vsel %vm1221, %v2130, %v2132
        %2134 = vst [vmem:[#allocation2 + $0x30] sm:$0x2] %v2133
        %v2135 = vld [vmem:[#allocation2 + $0x38] sm:$0x2]
        %v2136 = vsel %vm1221, %v2131, %v2135
        %2137 = vst [vmem:[#allocation2 + $0x38] sm:$0x2] %v2136
        %v2138 = vld [vmem:[%s499] sm:$0xff]
        %v2139 = vld [vmem:[%s499 + $0x8] sm:$0xff]
        %v2140 = vld [vmem:[%s499 + $0x10] sm:$0x1f]
        %v2141 = vld [vmem:[%s499 + $0x18] sm:$0x1f]
        %v2142 = vlaneseq
        %v2143 = vshrl.u32 %v2142, 7
        %v2144 = vsub.s32 0, %v2143
        %v2145 = vrot.slane %v2070, %v2144
        %v2146 = vlaneseq
        %v2147 = vshrl.u32 %v2146, 7
        %v2148 = vsub.s32 0, %v2147
        %v2149 = vrot.slane %v2071, %v2148
        %v2150 = vmul.f32 %v2145, %v2138
        %v2151 = vmul.f32 %v2149, %v2139
        %v2152 = vmul.f32 %v2145, %v2140
        %v2153 = vmul.f32 %v2149, %v2141
        %v2154 = vld [vmem:[%s1244] sm:$0xff]
        %v2155 = vld [vmem:[%s1244 + $0x8] sm:$0xff]
        %v2156 = vld [vmem:[%s1244 + $0x10] sm:$0x1f]
        %v2157 = vld [vmem:[%s1244 + $0x18] sm:$0x1f]
        %v2158 = vlaneseq
        %v2159 = vshrl.u32 %v2158, 7
        %v2160 = vsub.s32 1, %v2159
        %v2161 = vrot.slane %v2070, %v2160
        %v2162 = vlaneseq
        %v2163 = vshrl.u32 %v2162, 7
        %v2164 = vsub.s32 1, %v2163
        %v2165 = vrot.slane %v2071, %v2164
        %v2166 = vmul.f32 %v2161, %v2154
        %v2167 = vmul.f32 %v2165, %v2155
        %v2168 = vmul.f32 %v2161, %v2156
        %v2169 = vmul.f32 %v2165, %v2157
        %v2170 = vadd.f32 %v2150, %v2166
        %v2171 = vadd.f32 %v2151, %v2167
        %v2172 = vadd.f32 %v2152, %v2168
        %v2173 = vadd.f32 %v2153, %v2169
        %v2174 = vld [vmem:[%s1265] sm:$0xff]
        %v2175 = vld [vmem:[%s1265 + $0x8] sm:$0xff]
        %v2176 = vld [vmem:[%s1265 + $0x10] sm:$0x1f]
        %v2177 = vld [vmem:[%s1265 + $0x18] sm:$0x1f]
        %v2178 = vlaneseq
        %v2179 = vshrl.u32 %v2178, 7
        %v2180 = vsub.s32 2, %v2179
        %v2181 = vrot.slane %v2070, %v2180
        %v2182 = vlaneseq
        %v2183 = vshrl.u32 %v2182, 7
        %v2184 = vsub.s32 2, %v2183
        %v2185 = vrot.slane %v2071, %v2184
        %v2186 = vmul.f32 %v2181, %v2174
        %v2187 = vmul.f32 %v2185, %v2175
        %v2188 = vmul.f32 %v2181, %v2176
        %v2189 = vmul.f32 %v2185, %v2177
        %v2190 = vadd.f32 %v2170, %v2186
        %v2191 = vadd.f32 %v2171, %v2187
        %v2192 = vadd.f32 %v2172, %v2188
        %v2193 = vadd.f32 %v2173, %v2189
        %v2194 = vld [vmem:[%s1286] sm:$0xff]
        %v2195 = vld [vmem:[%s1286 + $0x8] sm:$0xff]
        %v2196 = vld [vmem:[%s1286 + $0x10] sm:$0x1f]
        %v2197 = vld [vmem:[%s1286 + $0x18] sm:$0x1f]
        %v2198 = vlaneseq
        %v2199 = vshrl.u32 %v2198, 7
        %v2200 = vsub.s32 3, %v2199
        %v2201 = vrot.slane %v2070, %v2200
        %v2202 = vlaneseq
        %v2203 = vshrl.u32 %v2202, 7
        %v2204 = vsub.s32 3, %v2203
        %v2205 = vrot.slane %v2071, %v2204
        %v2206 = vmul.f32 %v2201, %v2194
        %v2207 = vmul.f32 %v2205, %v2195
        %v2208 = vmul.f32 %v2201, %v2196
        %v2209 = vmul.f32 %v2205, %v2197
        %v2210 = vadd.f32 %v2190, %v2206
        %v2211 = vadd.f32 %v2191, %v2207
        %v2212 = vadd.f32 %v2192, %v2208
        %v2213 = vadd.f32 %v2193, %v2209
        %v2214 = vld [vmem:[%s1307] sm:$0xff]
        %v2215 = vld [vmem:[%s1307 + $0x8] sm:$0xff]
        %v2216 = vld [vmem:[%s1307 + $0x10] sm:$0x1f]
        %v2217 = vld [vmem:[%s1307 + $0x18] sm:$0x1f]
        %v2218 = vlaneseq
        %v2219 = vshrl.u32 %v2218, 7
        %v2220 = vsub.s32 4, %v2219
        %v2221 = vrot.slane %v2070, %v2220
        %v2222 = vlaneseq
        %v2223 = vshrl.u32 %v2222, 7
        %v2224 = vsub.s32 4, %v2223
        %v2225 = vrot.slane %v2071, %v2224
        %v2226 = vmul.f32 %v2221, %v2214
        %v2227 = vmul.f32 %v2225, %v2215
        %v2228 = vmul.f32 %v2221, %v2216
        %v2229 = vmul.f32 %v2225, %v2217
        %v2230 = vadd.f32 %v2210, %v2226
        %v2231 = vadd.f32 %v2211, %v2227
        %v2232 = vadd.f32 %v2212, %v2228
        %v2233 = vadd.f32 %v2213, %v2229
        %v2234 = vld [vmem:[%s1328] sm:$0xff]
        %v2235 = vld [vmem:[%s1328 + $0x8] sm:$0xff]
        %v2236 = vld [vmem:[%s1328 + $0x10] sm:$0x1f]
        %v2237 = vld [vmem:[%s1328 + $0x18] sm:$0x1f]
        %v2238 = vlaneseq
        %v2239 = vshrl.u32 %v2238, 7
        %v2240 = vsub.s32 5, %v2239
        %v2241 = vrot.slane %v2070, %v2240
        %v2242 = vlaneseq
        %v2243 = vshrl.u32 %v2242, 7
        %v2244 = vsub.s32 5, %v2243
        %v2245 = vrot.slane %v2071, %v2244
        %v2246 = vmul.f32 %v2241, %v2234
        %v2247 = vmul.f32 %v2245, %v2235
        %v2248 = vmul.f32 %v2241, %v2236
        %v2249 = vmul.f32 %v2245, %v2237
        %v2250 = vadd.f32 %v2230, %v2246
        %v2251 = vadd.f32 %v2231, %v2247
        %v2252 = vadd.f32 %v2232, %v2248
        %v2253 = vadd.f32 %v2233, %v2249
        %v2254 = vld [vmem:[%s1349] sm:$0xff]
        %v2255 = vld [vmem:[%s1349 + $0x8] sm:$0xff]
        %v2256 = vld [vmem:[%s1349 + $0x10] sm:$0x1f]
        %v2257 = vld [vmem:[%s1349 + $0x18] sm:$0x1f]
        %v2258 = vlaneseq
        %v2259 = vshrl.u32 %v2258, 7
        %v2260 = vsub.s32 6, %v2259
        %v2261 = vrot.slane %v2070, %v2260
        %v2262 = vlaneseq
        %v2263 = vshrl.u32 %v2262, 7
        %v2264 = vsub.s32 6, %v2263
        %v2265 = vrot.slane %v2071, %v2264
        %v2266 = vmul.f32 %v2261, %v2254
        %v2267 = vmul.f32 %v2265, %v2255
        %v2268 = vmul.f32 %v2261, %v2256
        %v2269 = vmul.f32 %v2265, %v2257
        %v2270 = vadd.f32 %v2250, %v2266
        %v2271 = vadd.f32 %v2251, %v2267
        %v2272 = vadd.f32 %v2252, %v2268
        %v2273 = vadd.f32 %v2253, %v2269
        %v2274 = vld [vmem:[%s1370] sm:$0xff]
        %v2275 = vld [vmem:[%s1370 + $0x8] sm:$0xff]
        %v2276 = vld [vmem:[%s1370 + $0x10] sm:$0x1f]
        %v2277 = vld [vmem:[%s1370 + $0x18] sm:$0x1f]
        %v2278 = vlaneseq
        %v2279 = vshrl.u32 %v2278, 7
        %v2280 = vsub.s32 7, %v2279
        %v2281 = vrot.slane %v2070, %v2280
        %v2282 = vlaneseq
        %v2283 = vshrl.u32 %v2282, 7
        %v2284 = vsub.s32 7, %v2283
        %v2285 = vrot.slane %v2071, %v2284
        %v2286 = vmul.f32 %v2281, %v2274
        %v2287 = vmul.f32 %v2285, %v2275
        %v2288 = vmul.f32 %v2281, %v2276
        %v2289 = vmul.f32 %v2285, %v2277
        %v2290 = vadd.f32 %v2270, %v2286
        %v2291 = vadd.f32 %v2271, %v2287
        %v2292 = vadd.f32 %v2272, %v2288
        %v2293 = vadd.f32 %v2273, %v2289
        %v2294 = vpack.c.bf16 %v2292, %v2290
        %v2295 = vpack.c.bf16 %v2293, %v2291
        %v2297 = vshrl.u32 %v2294, 16
        %v2299 = vrot.slane %v2297, 6
        %v2300 = vshll.u32 %v2294, 16
        %v2302 = vrot.slane %v2300, 7
        %v2303 = vor.u32 %v2299, %v2302
        %v2305 = vshrl.u32 %v2295, 16
        %v2307 = vrot.slane %v2305, 6
        %v2308 = vshll.u32 %v2295, 16
        %v2310 = vrot.slane %v2308, 7
        %v2311 = vor.u32 %v2307, %v2310
        %v2314 = vld [vmem:[#allocation2 + $0x30] sm:$0xfe]
        %v2315 = vsel %vm1413, %v2303, %v2314
        %2316 = vst [vmem:[#allocation2 + $0x30] sm:$0xfe] %v2315
        %v2317 = vld [vmem:[#allocation2 + $0x38] sm:$0xfe]
        %v2318 = vsel %vm1413, %v2311, %v2317
        %2319 = vst [vmem:[#allocation2 + $0x38] sm:$0xfe] %v2318
        %s2320 = sld [smem:[#allocation11 + $0x4]]
        %v2321 = vstv %s2320
        %v2322 = vmul.f32 %v736, %v2321
        %v2323 = vmul.f32 %v737, %v2321
        %s2324 = sld [smem:[#allocation11 + $0x84]]
        %v2325 = vstv %s2324
        %v2326 = vmul.f32 %v788, %v2325
        %v2327 = vmul.f32 %v789, %v2325
        %v2328 = vadd.f32 %v2322, %v2326
        %v2329 = vadd.f32 %v2323, %v2327
        %s2330 = sld [smem:[#allocation11 + $0x104]]
        %v2331 = vstv %s2330
        %v2332 = vmul.f32 %v840, %v2331
        %v2333 = vmul.f32 %v841, %v2331
        %v2334 = vadd.f32 %v2328, %v2332
        %v2335 = vadd.f32 %v2329, %v2333
        %s2336 = sld [smem:[#allocation11 + $0x184]]
        %v2337 = vstv %s2336
        %v2338 = vmul.f32 %v892, %v2337
        %v2339 = vmul.f32 %v893, %v2337
        %v2340 = vadd.f32 %v2334, %v2338
        %v2341 = vadd.f32 %v2335, %v2339
        %s2342 = sld [smem:[#allocation11 + $0x204]]
        %v2343 = vstv %s2342
        %v2344 = vmul.f32 %v944, %v2343
        %v2345 = vmul.f32 %v945, %v2343
        %v2346 = vadd.f32 %v2340, %v2344
        %v2347 = vadd.f32 %v2341, %v2345
        %s2348 = sld [smem:[#allocation11 + $0x284]]
        %v2349 = vstv %s2348
        %v2350 = vmul.f32 %v996, %v2349
        %v2351 = vmul.f32 %v997, %v2349
        %v2352 = vadd.f32 %v2346, %v2350
        %v2353 = vadd.f32 %v2347, %v2351
        %s2354 = sld [smem:[#allocation11 + $0x304]]
        %v2355 = vstv %s2354
        %v2356 = vmul.f32 %v1048, %v2355
        %v2357 = vmul.f32 %v1049, %v2355
        %v2358 = vadd.f32 %v2352, %v2356
        %v2359 = vadd.f32 %v2353, %v2357
        %s2360 = sld [smem:[#allocation11 + $0x384]]
        %v2361 = vstv %s2360
        %v2362 = vmul.f32 %v1100, %v2361
        %v2363 = vmul.f32 %v1101, %v2361
        %v2364 = vadd.f32 %v2358, %v2362
        %v2365 = vadd.f32 %v2359, %v2363
        %s2366 = sld [smem:[#allocation12 + $0x4]]
        %v2367 = vstv %s2366
        %v2368 = vadd.f32 %v2364, %v2367
        %v2369 = vadd.f32 %v2365, %v2367
        %v2370 = vmax.f32 %v2368, 0.0
        %v2371 = vmax.f32 %v2369, 0.0
        %v2372 = vmul.f32 %v502, %v2370
        %v2373 = vmul.f32 %v503, %v2371
        %v2374 = vrot.slane %v2372, 4
        %v2375 = vadd.f32 %v2372, %v2374
        %v2376 = vrot.slane %v2375, 2
        %v2377 = vadd.f32 %v2375, %v2376
        %v2378 = vrot.slane %v2377, 1
        %v2379 = vadd.f32 %v2377, %v2378
        %v2380 = vrot.slane %v2373, 4
        %v2381 = vadd.f32 %v2373, %v2380
        %v2382 = vrot.slane %v2381, 2
        %v2383 = vadd.f32 %v2381, %v2382
        %v2384 = vrot.slane %v2383, 1
        %v2385 = vadd.f32 %v2383, %v2384
        %v2386 = vpack.c.bf16 %v2379, %v2379
        %v2387 = vpack.c.bf16 %v2385, %v2385
        %v2388 = vld [vmem:[#allocation2 + $0x40] sm:$0x1]
        %v2389 = vsel %vm1172, %v2386, %v2388
        %2390 = vst [vmem:[#allocation2 + $0x40] sm:$0x1] %v2389
        %v2391 = vld [vmem:[#allocation2 + $0x48] sm:$0x1]
        %v2392 = vsel %vm1172, %v2387, %v2391
        %2393 = vst [vmem:[#allocation2 + $0x48] sm:$0x1] %v2392
        %v2394 = vmul.f32 %v505, %v2370
        %v2395 = vmul.f32 %v506, %v2371
        %v2396 = vrot.slane %v2394, 4
        %v2397 = vadd.f32 %v2394, %v2396
        %v2398 = vrot.slane %v2397, 2
        %v2399 = vadd.f32 %v2397, %v2398
        %v2400 = vrot.slane %v2399, 1
        %v2401 = vadd.f32 %v2399, %v2400
        %v2402 = vrot.slane %v2395, 4
        %v2403 = vadd.f32 %v2395, %v2402
        %v2404 = vrot.slane %v2403, 2
        %v2405 = vadd.f32 %v2403, %v2404
        %v2406 = vrot.slane %v2405, 1
        %v2407 = vadd.f32 %v2405, %v2406
        %v2408 = vpack.c.bf16 %v2401, %v2401
        %v2409 = vpack.c.bf16 %v2407, %v2407
        %v2410 = vld [vmem:[#allocation2 + $0x40] sm:$0x1]
        %v2411 = vsel %vm1196, %v2408, %v2410
        %2412 = vst [vmem:[#allocation2 + $0x40] sm:$0x1] %v2411
        %v2413 = vld [vmem:[#allocation2 + $0x48] sm:$0x1]
        %v2414 = vsel %vm1196, %v2409, %v2413
        %2415 = vst [vmem:[#allocation2 + $0x48] sm:$0x1] %v2414
        %v2416 = vmul.f32 %v508, %v2370
        %v2417 = vmul.f32 %v509, %v2371
        %v2418 = vrot.slane %v2416, 4
        %v2419 = vadd.f32 %v2416, %v2418
        %v2420 = vrot.slane %v2419, 2
        %v2421 = vadd.f32 %v2419, %v2420
        %v2422 = vrot.slane %v2421, 1
        %v2423 = vadd.f32 %v2421, %v2422
        %v2424 = vrot.slane %v2417, 4
        %v2425 = vadd.f32 %v2417, %v2424
        %v2426 = vrot.slane %v2425, 2
        %v2427 = vadd.f32 %v2425, %v2426
        %v2428 = vrot.slane %v2427, 1
        %v2429 = vadd.f32 %v2427, %v2428
        %v2430 = vpack.c.bf16 %v2423, %v2423
        %v2431 = vpack.c.bf16 %v2429, %v2429
        %v2432 = vld [vmem:[#allocation2 + $0x40] sm:$0x2]
        %v2433 = vsel %vm1221, %v2430, %v2432
        %2434 = vst [vmem:[#allocation2 + $0x40] sm:$0x2] %v2433
        %v2435 = vld [vmem:[#allocation2 + $0x48] sm:$0x2]
        %v2436 = vsel %vm1221, %v2431, %v2435
        %2437 = vst [vmem:[#allocation2 + $0x48] sm:$0x2] %v2436
        %v2438 = vld [vmem:[%s499] sm:$0xff]
        %v2439 = vld [vmem:[%s499 + $0x8] sm:$0xff]
        %v2440 = vld [vmem:[%s499 + $0x10] sm:$0x1f]
        %v2441 = vld [vmem:[%s499 + $0x18] sm:$0x1f]
        %v2442 = vlaneseq
        %v2443 = vshrl.u32 %v2442, 7
        %v2444 = vsub.s32 0, %v2443
        %v2445 = vrot.slane %v2370, %v2444
        %v2446 = vlaneseq
        %v2447 = vshrl.u32 %v2446, 7
        %v2448 = vsub.s32 0, %v2447
        %v2449 = vrot.slane %v2371, %v2448
        %v2450 = vmul.f32 %v2445, %v2438
        %v2451 = vmul.f32 %v2449, %v2439
        %v2452 = vmul.f32 %v2445, %v2440
        %v2453 = vmul.f32 %v2449, %v2441
        %v2454 = vld [vmem:[%s1244] sm:$0xff]
        %v2455 = vld [vmem:[%s1244 + $0x8] sm:$0xff]
        %v2456 = vld [vmem:[%s1244 + $0x10] sm:$0x1f]
        %v2457 = vld [vmem:[%s1244 + $0x18] sm:$0x1f]
        %v2458 = vlaneseq
        %v2459 = vshrl.u32 %v2458, 7
        %v2460 = vsub.s32 1, %v2459
        %v2461 = vrot.slane %v2370, %v2460
        %v2462 = vlaneseq
        %v2463 = vshrl.u32 %v2462, 7
        %v2464 = vsub.s32 1, %v2463
        %v2465 = vrot.slane %v2371, %v2464
        %v2466 = vmul.f32 %v2461, %v2454
        %v2467 = vmul.f32 %v2465, %v2455
        %v2468 = vmul.f32 %v2461, %v2456
        %v2469 = vmul.f32 %v2465, %v2457
        %v2470 = vadd.f32 %v2450, %v2466
        %v2471 = vadd.f32 %v2451, %v2467
        %v2472 = vadd.f32 %v2452, %v2468
        %v2473 = vadd.f32 %v2453, %v2469
        %v2474 = vld [vmem:[%s1265] sm:$0xff]
        %v2475 = vld [vmem:[%s1265 + $0x8] sm:$0xff]
        %v2476 = vld [vmem:[%s1265 + $0x10] sm:$0x1f]
        %v2477 = vld [vmem:[%s1265 + $0x18] sm:$0x1f]
        %v2478 = vlaneseq
        %v2479 = vshrl.u32 %v2478, 7
        %v2480 = vsub.s32 2, %v2479
        %v2481 = vrot.slane %v2370, %v2480
        %v2482 = vlaneseq
        %v2483 = vshrl.u32 %v2482, 7
        %v2484 = vsub.s32 2, %v2483
        %v2485 = vrot.slane %v2371, %v2484
        %v2486 = vmul.f32 %v2481, %v2474
        %v2487 = vmul.f32 %v2485, %v2475
        %v2488 = vmul.f32 %v2481, %v2476
        %v2489 = vmul.f32 %v2485, %v2477
        %v2490 = vadd.f32 %v2470, %v2486
        %v2491 = vadd.f32 %v2471, %v2487
        %v2492 = vadd.f32 %v2472, %v2488
        %v2493 = vadd.f32 %v2473, %v2489
        %v2494 = vld [vmem:[%s1286] sm:$0xff]
        %v2495 = vld [vmem:[%s1286 + $0x8] sm:$0xff]
        %v2496 = vld [vmem:[%s1286 + $0x10] sm:$0x1f]
        %v2497 = vld [vmem:[%s1286 + $0x18] sm:$0x1f]
        %v2498 = vlaneseq
        %v2499 = vshrl.u32 %v2498, 7
        %v2500 = vsub.s32 3, %v2499
        %v2501 = vrot.slane %v2370, %v2500
        %v2502 = vlaneseq
        %v2503 = vshrl.u32 %v2502, 7
        %v2504 = vsub.s32 3, %v2503
        %v2505 = vrot.slane %v2371, %v2504
        %v2506 = vmul.f32 %v2501, %v2494
        %v2507 = vmul.f32 %v2505, %v2495
        %v2508 = vmul.f32 %v2501, %v2496
        %v2509 = vmul.f32 %v2505, %v2497
        %v2510 = vadd.f32 %v2490, %v2506
        %v2511 = vadd.f32 %v2491, %v2507
        %v2512 = vadd.f32 %v2492, %v2508
        %v2513 = vadd.f32 %v2493, %v2509
        %v2514 = vld [vmem:[%s1307] sm:$0xff]
        %v2515 = vld [vmem:[%s1307 + $0x8] sm:$0xff]
        %v2516 = vld [vmem:[%s1307 + $0x10] sm:$0x1f]
        %v2517 = vld [vmem:[%s1307 + $0x18] sm:$0x1f]
        %v2518 = vlaneseq
        %v2519 = vshrl.u32 %v2518, 7
        %v2520 = vsub.s32 4, %v2519
        %v2521 = vrot.slane %v2370, %v2520
        %v2522 = vlaneseq
        %v2523 = vshrl.u32 %v2522, 7
        %v2524 = vsub.s32 4, %v2523
        %v2525 = vrot.slane %v2371, %v2524
        %v2526 = vmul.f32 %v2521, %v2514
        %v2527 = vmul.f32 %v2525, %v2515
        %v2528 = vmul.f32 %v2521, %v2516
        %v2529 = vmul.f32 %v2525, %v2517
        %v2530 = vadd.f32 %v2510, %v2526
        %v2531 = vadd.f32 %v2511, %v2527
        %v2532 = vadd.f32 %v2512, %v2528
        %v2533 = vadd.f32 %v2513, %v2529
        %v2534 = vld [vmem:[%s1328] sm:$0xff]
        %v2535 = vld [vmem:[%s1328 + $0x8] sm:$0xff]
        %v2536 = vld [vmem:[%s1328 + $0x10] sm:$0x1f]
        %v2537 = vld [vmem:[%s1328 + $0x18] sm:$0x1f]
        %v2538 = vlaneseq
        %v2539 = vshrl.u32 %v2538, 7
        %v2540 = vsub.s32 5, %v2539
        %v2541 = vrot.slane %v2370, %v2540
        %v2542 = vlaneseq
        %v2543 = vshrl.u32 %v2542, 7
        %v2544 = vsub.s32 5, %v2543
        %v2545 = vrot.slane %v2371, %v2544
        %v2546 = vmul.f32 %v2541, %v2534
        %v2547 = vmul.f32 %v2545, %v2535
        %v2548 = vmul.f32 %v2541, %v2536
        %v2549 = vmul.f32 %v2545, %v2537
        %v2550 = vadd.f32 %v2530, %v2546
        %v2551 = vadd.f32 %v2531, %v2547
        %v2552 = vadd.f32 %v2532, %v2548
        %v2553 = vadd.f32 %v2533, %v2549
        %v2554 = vld [vmem:[%s1349] sm:$0xff]
        %v2555 = vld [vmem:[%s1349 + $0x8] sm:$0xff]
        %v2556 = vld [vmem:[%s1349 + $0x10] sm:$0x1f]
        %v2557 = vld [vmem:[%s1349 + $0x18] sm:$0x1f]
        %v2558 = vlaneseq
        %v2559 = vshrl.u32 %v2558, 7
        %v2560 = vsub.s32 6, %v2559
        %v2561 = vrot.slane %v2370, %v2560
        %v2562 = vlaneseq
        %v2563 = vshrl.u32 %v2562, 7
        %v2564 = vsub.s32 6, %v2563
        %v2565 = vrot.slane %v2371, %v2564
        %v2566 = vmul.f32 %v2561, %v2554
        %v2567 = vmul.f32 %v2565, %v2555
        %v2568 = vmul.f32 %v2561, %v2556
        %v2569 = vmul.f32 %v2565, %v2557
        %v2570 = vadd.f32 %v2550, %v2566
        %v2571 = vadd.f32 %v2551, %v2567
        %v2572 = vadd.f32 %v2552, %v2568
        %v2573 = vadd.f32 %v2553, %v2569
        %v2574 = vld [vmem:[%s1370] sm:$0xff]
        %v2575 = vld [vmem:[%s1370 + $0x8] sm:$0xff]
        %v2576 = vld [vmem:[%s1370 + $0x10] sm:$0x1f]
        %v2577 = vld [vmem:[%s1370 + $0x18] sm:$0x1f]
        %v2578 = vlaneseq
        %v2579 = vshrl.u32 %v2578, 7
        %v2580 = vsub.s32 7, %v2579
        %v2581 = vrot.slane %v2370, %v2580
        %v2582 = vlaneseq
        %v2583 = vshrl.u32 %v2582, 7
        %v2584 = vsub.s32 7, %v2583
        %v2585 = vrot.slane %v2371, %v2584
        %v2586 = vmul.f32 %v2581, %v2574
        %v2587 = vmul.f32 %v2585, %v2575
        %v2588 = vmul.f32 %v2581, %v2576
        %v2589 = vmul.f32 %v2585, %v2577
        %v2590 = vadd.f32 %v2570, %v2586
        %v2591 = vadd.f32 %v2571, %v2587
        %v2592 = vadd.f32 %v2572, %v2588
        %v2593 = vadd.f32 %v2573, %v2589
        %v2594 = vpack.c.bf16 %v2592, %v2590
        %v2595 = vpack.c.bf16 %v2593, %v2591
        %v2597 = vshrl.u32 %v2594, 16
        %v2599 = vrot.slane %v2597, 6
        %v2600 = vshll.u32 %v2594, 16
        %v2602 = vrot.slane %v2600, 7
        %v2603 = vor.u32 %v2599, %v2602
        %v2605 = vshrl.u32 %v2595, 16
        %v2607 = vrot.slane %v2605, 6
        %v2608 = vshll.u32 %v2595, 16
        %v2610 = vrot.slane %v2608, 7
        %v2611 = vor.u32 %v2607, %v2610
        %v2614 = vld [vmem:[#allocation2 + $0x40] sm:$0xfe]
        %v2615 = vsel %vm1413, %v2603, %v2614
        %2616 = vst [vmem:[#allocation2 + $0x40] sm:$0xfe] %v2615
        %v2617 = vld [vmem:[#allocation2 + $0x48] sm:$0xfe]
        %v2618 = vsel %vm1413, %v2611, %v2617
        %2619 = vst [vmem:[#allocation2 + $0x48] sm:$0xfe] %v2618
        %s2620 = sld [smem:[#allocation11 + $0x5]]
        %v2621 = vstv %s2620
        %v2622 = vmul.f32 %v736, %v2621
        %v2623 = vmul.f32 %v737, %v2621
        %s2624 = sld [smem:[#allocation11 + $0x85]]
        %v2625 = vstv %s2624
        %v2626 = vmul.f32 %v788, %v2625
        %v2627 = vmul.f32 %v789, %v2625
        %v2628 = vadd.f32 %v2622, %v2626
        %v2629 = vadd.f32 %v2623, %v2627
        %s2630 = sld [smem:[#allocation11 + $0x105]]
        %v2631 = vstv %s2630
        %v2632 = vmul.f32 %v840, %v2631
        %v2633 = vmul.f32 %v841, %v2631
        %v2634 = vadd.f32 %v2628, %v2632
        %v2635 = vadd.f32 %v2629, %v2633
        %s2636 = sld [smem:[#allocation11 + $0x185]]
        %v2637 = vstv %s2636
        %v2638 = vmul.f32 %v892, %v2637
        %v2639 = vmul.f32 %v893, %v2637
        %v2640 = vadd.f32 %v2634, %v2638
        %v2641 = vadd.f32 %v2635, %v2639
        %s2642 = sld [smem:[#allocation11 + $0x205]]
        %v2643 = vstv %s2642
        %v2644 = vmul.f32 %v944, %v2643
        %v2645 = vmul.f32 %v945, %v2643
        %v2646 = vadd.f32 %v2640, %v2644
        %v2647 = vadd.f32 %v2641, %v2645
        %s2648 = sld [smem:[#allocation11 + $0x285]]
        %v2649 = vstv %s2648
        %v2650 = vmul.f32 %v996, %v2649
        %v2651 = vmul.f32 %v997, %v2649
        %v2652 = vadd.f32 %v2646, %v2650
        %v2653 = vadd.f32 %v2647, %v2651
        %s2654 = sld [smem:[#allocation11 + $0x305]]
        %v2655 = vstv %s2654
        %v2656 = vmul.f32 %v1048, %v2655
        %v2657 = vmul.f32 %v1049, %v2655
        %v2658 = vadd.f32 %v2652, %v2656
        %v2659 = vadd.f32 %v2653, %v2657
        %s2660 = sld [smem:[#allocation11 + $0x385]]
        %v2661 = vstv %s2660
        %v2662 = vmul.f32 %v1100, %v2661
        %v2663 = vmul.f32 %v1101, %v2661
        %v2664 = vadd.f32 %v2658, %v2662
        %v2665 = vadd.f32 %v2659, %v2663
        %s2666 = sld [smem:[#allocation12 + $0x5]]
        %v2667 = vstv %s2666
        %v2668 = vadd.f32 %v2664, %v2667
        %v2669 = vadd.f32 %v2665, %v2667
        %v2670 = vmax.f32 %v2668, 0.0
        %v2671 = vmax.f32 %v2669, 0.0
        %v2672 = vmul.f32 %v502, %v2670
        %v2673 = vmul.f32 %v503, %v2671
        %v2674 = vrot.slane %v2672, 4
        %v2675 = vadd.f32 %v2672, %v2674
        %v2676 = vrot.slane %v2675, 2
        %v2677 = vadd.f32 %v2675, %v2676
        %v2678 = vrot.slane %v2677, 1
        %v2679 = vadd.f32 %v2677, %v2678
        %v2680 = vrot.slane %v2673, 4
        %v2681 = vadd.f32 %v2673, %v2680
        %v2682 = vrot.slane %v2681, 2
        %v2683 = vadd.f32 %v2681, %v2682
        %v2684 = vrot.slane %v2683, 1
        %v2685 = vadd.f32 %v2683, %v2684
        %v2686 = vpack.c.bf16 %v2679, %v2679
        %v2687 = vpack.c.bf16 %v2685, %v2685
        %v2688 = vld [vmem:[#allocation2 + $0x50] sm:$0x1]
        %v2689 = vsel %vm1172, %v2686, %v2688
        %2690 = vst [vmem:[#allocation2 + $0x50] sm:$0x1] %v2689
        %v2691 = vld [vmem:[#allocation2 + $0x58] sm:$0x1]
        %v2692 = vsel %vm1172, %v2687, %v2691
        %2693 = vst [vmem:[#allocation2 + $0x58] sm:$0x1] %v2692
        %v2694 = vmul.f32 %v505, %v2670
        %v2695 = vmul.f32 %v506, %v2671
        %v2696 = vrot.slane %v2694, 4
        %v2697 = vadd.f32 %v2694, %v2696
        %v2698 = vrot.slane %v2697, 2
        %v2699 = vadd.f32 %v2697, %v2698
        %v2700 = vrot.slane %v2699, 1
        %v2701 = vadd.f32 %v2699, %v2700
        %v2702 = vrot.slane %v2695, 4
        %v2703 = vadd.f32 %v2695, %v2702
        %v2704 = vrot.slane %v2703, 2
        %v2705 = vadd.f32 %v2703, %v2704
        %v2706 = vrot.slane %v2705, 1
        %v2707 = vadd.f32 %v2705, %v2706
        %v2708 = vpack.c.bf16 %v2701, %v2701
        %v2709 = vpack.c.bf16 %v2707, %v2707
        %v2710 = vld [vmem:[#allocation2 + $0x50] sm:$0x1]
        %v2711 = vsel %vm1196, %v2708, %v2710
        %2712 = vst [vmem:[#allocation2 + $0x50] sm:$0x1] %v2711
        %v2713 = vld [vmem:[#allocation2 + $0x58] sm:$0x1]
        %v2714 = vsel %vm1196, %v2709, %v2713
        %2715 = vst [vmem:[#allocation2 + $0x58] sm:$0x1] %v2714
        %v2716 = vmul.f32 %v508, %v2670
        %v2717 = vmul.f32 %v509, %v2671
        %v2718 = vrot.slane %v2716, 4
        %v2719 = vadd.f32 %v2716, %v2718
        %v2720 = vrot.slane %v2719, 2
        %v2721 = vadd.f32 %v2719, %v2720
        %v2722 = vrot.slane %v2721, 1
        %v2723 = vadd.f32 %v2721, %v2722
        %v2724 = vrot.slane %v2717, 4
        %v2725 = vadd.f32 %v2717, %v2724
        %v2726 = vrot.slane %v2725, 2
        %v2727 = vadd.f32 %v2725, %v2726
        %v2728 = vrot.slane %v2727, 1
        %v2729 = vadd.f32 %v2727, %v2728
        %v2730 = vpack.c.bf16 %v2723, %v2723
        %v2731 = vpack.c.bf16 %v2729, %v2729
        %v2732 = vld [vmem:[#allocation2 + $0x50] sm:$0x2]
        %v2733 = vsel %vm1221, %v2730, %v2732
        %2734 = vst [vmem:[#allocation2 + $0x50] sm:$0x2] %v2733
        %v2735 = vld [vmem:[#allocation2 + $0x58] sm:$0x2]
        %v2736 = vsel %vm1221, %v2731, %v2735
        %2737 = vst [vmem:[#allocation2 + $0x58] sm:$0x2] %v2736
        %v2738 = vld [vmem:[%s499] sm:$0xff]
        %v2739 = vld [vmem:[%s499 + $0x8] sm:$0xff]
        %v2740 = vld [vmem:[%s499 + $0x10] sm:$0x1f]
        %v2741 = vld [vmem:[%s499 + $0x18] sm:$0x1f]
        %v2742 = vlaneseq
        %v2743 = vshrl.u32 %v2742, 7
        %v2744 = vsub.s32 0, %v2743
        %v2745 = vrot.slane %v2670, %v2744
        %v2746 = vlaneseq
        %v2747 = vshrl.u32 %v2746, 7
        %v2748 = vsub.s32 0, %v2747
        %v2749 = vrot.slane %v2671, %v2748
        %v2750 = vmul.f32 %v2745, %v2738
        %v2751 = vmul.f32 %v2749, %v2739
        %v2752 = vmul.f32 %v2745, %v2740
        %v2753 = vmul.f32 %v2749, %v2741
        %v2754 = vld [vmem:[%s1244] sm:$0xff]
        %v2755 = vld [vmem:[%s1244 + $0x8] sm:$0xff]
        %v2756 = vld [vmem:[%s1244 + $0x10] sm:$0x1f]
        %v2757 = vld [vmem:[%s1244 + $0x18] sm:$0x1f]
        %v2758 = vlaneseq
        %v2759 = vshrl.u32 %v2758, 7
        %v2760 = vsub.s32 1, %v2759
        %v2761 = vrot.slane %v2670, %v2760
        %v2762 = vlaneseq
        %v2763 = vshrl.u32 %v2762, 7
        %v2764 = vsub.s32 1, %v2763
        %v2765 = vrot.slane %v2671, %v2764
        %v2766 = vmul.f32 %v2761, %v2754
        %v2767 = vmul.f32 %v2765, %v2755
        %v2768 = vmul.f32 %v2761, %v2756
        %v2769 = vmul.f32 %v2765, %v2757
        %v2770 = vadd.f32 %v2750, %v2766
        %v2771 = vadd.f32 %v2751, %v2767
        %v2772 = vadd.f32 %v2752, %v2768
        %v2773 = vadd.f32 %v2753, %v2769
        %v2774 = vld [vmem:[%s1265] sm:$0xff]
        %v2775 = vld [vmem:[%s1265 + $0x8] sm:$0xff]
        %v2776 = vld [vmem:[%s1265 + $0x10] sm:$0x1f]
        %v2777 = vld [vmem:[%s1265 + $0x18] sm:$0x1f]
        %v2778 = vlaneseq
        %v2779 = vshrl.u32 %v2778, 7
        %v2780 = vsub.s32 2, %v2779
        %v2781 = vrot.slane %v2670, %v2780
        %v2782 = vlaneseq
        %v2783 = vshrl.u32 %v2782, 7
        %v2784 = vsub.s32 2, %v2783
        %v2785 = vrot.slane %v2671, %v2784
        %v2786 = vmul.f32 %v2781, %v2774
        %v2787 = vmul.f32 %v2785, %v2775
        %v2788 = vmul.f32 %v2781, %v2776
        %v2789 = vmul.f32 %v2785, %v2777
        %v2790 = vadd.f32 %v2770, %v2786
        %v2791 = vadd.f32 %v2771, %v2787
        %v2792 = vadd.f32 %v2772, %v2788
        %v2793 = vadd.f32 %v2773, %v2789
        %v2794 = vld [vmem:[%s1286] sm:$0xff]
        %v2795 = vld [vmem:[%s1286 + $0x8] sm:$0xff]
        %v2796 = vld [vmem:[%s1286 + $0x10] sm:$0x1f]
        %v2797 = vld [vmem:[%s1286 + $0x18] sm:$0x1f]
        %v2798 = vlaneseq
        %v2799 = vshrl.u32 %v2798, 7
        %v2800 = vsub.s32 3, %v2799
        %v2801 = vrot.slane %v2670, %v2800
        %v2802 = vlaneseq
        %v2803 = vshrl.u32 %v2802, 7
        %v2804 = vsub.s32 3, %v2803
        %v2805 = vrot.slane %v2671, %v2804
        %v2806 = vmul.f32 %v2801, %v2794
        %v2807 = vmul.f32 %v2805, %v2795
        %v2808 = vmul.f32 %v2801, %v2796
        %v2809 = vmul.f32 %v2805, %v2797
        %v2810 = vadd.f32 %v2790, %v2806
        %v2811 = vadd.f32 %v2791, %v2807
        %v2812 = vadd.f32 %v2792, %v2808
        %v2813 = vadd.f32 %v2793, %v2809
        %v2814 = vld [vmem:[%s1307] sm:$0xff]
        %v2815 = vld [vmem:[%s1307 + $0x8] sm:$0xff]
        %v2816 = vld [vmem:[%s1307 + $0x10] sm:$0x1f]
        %v2817 = vld [vmem:[%s1307 + $0x18] sm:$0x1f]
        %v2818 = vlaneseq
        %v2819 = vshrl.u32 %v2818, 7
        %v2820 = vsub.s32 4, %v2819
        %v2821 = vrot.slane %v2670, %v2820
        %v2822 = vlaneseq
        %v2823 = vshrl.u32 %v2822, 7
        %v2824 = vsub.s32 4, %v2823
        %v2825 = vrot.slane %v2671, %v2824
        %v2826 = vmul.f32 %v2821, %v2814
        %v2827 = vmul.f32 %v2825, %v2815
        %v2828 = vmul.f32 %v2821, %v2816
        %v2829 = vmul.f32 %v2825, %v2817
        %v2830 = vadd.f32 %v2810, %v2826
        %v2831 = vadd.f32 %v2811, %v2827
        %v2832 = vadd.f32 %v2812, %v2828
        %v2833 = vadd.f32 %v2813, %v2829
        %v2834 = vld [vmem:[%s1328] sm:$0xff]
        %v2835 = vld [vmem:[%s1328 + $0x8] sm:$0xff]
        %v2836 = vld [vmem:[%s1328 + $0x10] sm:$0x1f]
        %v2837 = vld [vmem:[%s1328 + $0x18] sm:$0x1f]
        %v2838 = vlaneseq
        %v2839 = vshrl.u32 %v2838, 7
        %v2840 = vsub.s32 5, %v2839
        %v2841 = vrot.slane %v2670, %v2840
        %v2842 = vlaneseq
        %v2843 = vshrl.u32 %v2842, 7
        %v2844 = vsub.s32 5, %v2843
        %v2845 = vrot.slane %v2671, %v2844
        %v2846 = vmul.f32 %v2841, %v2834
        %v2847 = vmul.f32 %v2845, %v2835
        %v2848 = vmul.f32 %v2841, %v2836
        %v2849 = vmul.f32 %v2845, %v2837
        %v2850 = vadd.f32 %v2830, %v2846
        %v2851 = vadd.f32 %v2831, %v2847
        %v2852 = vadd.f32 %v2832, %v2848
        %v2853 = vadd.f32 %v2833, %v2849
        %v2854 = vld [vmem:[%s1349] sm:$0xff]
        %v2855 = vld [vmem:[%s1349 + $0x8] sm:$0xff]
        %v2856 = vld [vmem:[%s1349 + $0x10] sm:$0x1f]
        %v2857 = vld [vmem:[%s1349 + $0x18] sm:$0x1f]
        %v2858 = vlaneseq
        %v2859 = vshrl.u32 %v2858, 7
        %v2860 = vsub.s32 6, %v2859
        %v2861 = vrot.slane %v2670, %v2860
        %v2862 = vlaneseq
        %v2863 = vshrl.u32 %v2862, 7
        %v2864 = vsub.s32 6, %v2863
        %v2865 = vrot.slane %v2671, %v2864
        %v2866 = vmul.f32 %v2861, %v2854
        %v2867 = vmul.f32 %v2865, %v2855
        %v2868 = vmul.f32 %v2861, %v2856
        %v2869 = vmul.f32 %v2865, %v2857
        %v2870 = vadd.f32 %v2850, %v2866
        %v2871 = vadd.f32 %v2851, %v2867
        %v2872 = vadd.f32 %v2852, %v2868
        %v2873 = vadd.f32 %v2853, %v2869
        %v2874 = vld [vmem:[%s1370] sm:$0xff]
        %v2875 = vld [vmem:[%s1370 + $0x8] sm:$0xff]
        %v2876 = vld [vmem:[%s1370 + $0x10] sm:$0x1f]
        %v2877 = vld [vmem:[%s1370 + $0x18] sm:$0x1f]
        %v2878 = vlaneseq
        %v2879 = vshrl.u32 %v2878, 7
        %v2880 = vsub.s32 7, %v2879
        %v2881 = vrot.slane %v2670, %v2880
        %v2882 = vlaneseq
        %v2883 = vshrl.u32 %v2882, 7
        %v2884 = vsub.s32 7, %v2883
        %v2885 = vrot.slane %v2671, %v2884
        %v2886 = vmul.f32 %v2881, %v2874
        %v2887 = vmul.f32 %v2885, %v2875
        %v2888 = vmul.f32 %v2881, %v2876
        %v2889 = vmul.f32 %v2885, %v2877
        %v2890 = vadd.f32 %v2870, %v2886
        %v2891 = vadd.f32 %v2871, %v2887
        %v2892 = vadd.f32 %v2872, %v2888
        %v2893 = vadd.f32 %v2873, %v2889
        %v2894 = vpack.c.bf16 %v2892, %v2890
        %v2895 = vpack.c.bf16 %v2893, %v2891
        %v2897 = vshrl.u32 %v2894, 16
        %v2899 = vrot.slane %v2897, 6
        %v2900 = vshll.u32 %v2894, 16
        %v2902 = vrot.slane %v2900, 7
        %v2903 = vor.u32 %v2899, %v2902
        %v2905 = vshrl.u32 %v2895, 16
        %v2907 = vrot.slane %v2905, 6
        %v2908 = vshll.u32 %v2895, 16
        %v2910 = vrot.slane %v2908, 7
        %v2911 = vor.u32 %v2907, %v2910
        %v2914 = vld [vmem:[#allocation2 + $0x50] sm:$0xfe]
        %v2915 = vsel %vm1413, %v2903, %v2914
        %2916 = vst [vmem:[#allocation2 + $0x50] sm:$0xfe] %v2915
        %v2917 = vld [vmem:[#allocation2 + $0x58] sm:$0xfe]
        %v2918 = vsel %vm1413, %v2911, %v2917
        %2919 = vst [vmem:[#allocation2 + $0x58] sm:$0xfe] %v2918
        %s2920 = sld [smem:[#allocation11 + $0x6]]
        %v2921 = vstv %s2920
        %v2922 = vmul.f32 %v736, %v2921
        %v2923 = vmul.f32 %v737, %v2921
        %s2924 = sld [smem:[#allocation11 + $0x86]]
        %v2925 = vstv %s2924
        %v2926 = vmul.f32 %v788, %v2925
        %v2927 = vmul.f32 %v789, %v2925
        %v2928 = vadd.f32 %v2922, %v2926
        %v2929 = vadd.f32 %v2923, %v2927
        %s2930 = sld [smem:[#allocation11 + $0x106]]
        %v2931 = vstv %s2930
        %v2932 = vmul.f32 %v840, %v2931
        %v2933 = vmul.f32 %v841, %v2931
        %v2934 = vadd.f32 %v2928, %v2932
        %v2935 = vadd.f32 %v2929, %v2933
        %s2936 = sld [smem:[#allocation11 + $0x186]]
        %v2937 = vstv %s2936
        %v2938 = vmul.f32 %v892, %v2937
        %v2939 = vmul.f32 %v893, %v2937
        %v2940 = vadd.f32 %v2934, %v2938
        %v2941 = vadd.f32 %v2935, %v2939
        %s2942 = sld [smem:[#allocation11 + $0x206]]
        %v2943 = vstv %s2942
        %v2944 = vmul.f32 %v944, %v2943
        %v2945 = vmul.f32 %v945, %v2943
        %v2946 = vadd.f32 %v2940, %v2944
        %v2947 = vadd.f32 %v2941, %v2945
        %s2948 = sld [smem:[#allocation11 + $0x286]]
        %v2949 = vstv %s2948
        %v2950 = vmul.f32 %v996, %v2949
        %v2951 = vmul.f32 %v997, %v2949
        %v2952 = vadd.f32 %v2946, %v2950
        %v2953 = vadd.f32 %v2947, %v2951
        %s2954 = sld [smem:[#allocation11 + $0x306]]
        %v2955 = vstv %s2954
        %v2956 = vmul.f32 %v1048, %v2955
        %v2957 = vmul.f32 %v1049, %v2955
        %v2958 = vadd.f32 %v2952, %v2956
        %v2959 = vadd.f32 %v2953, %v2957
        %s2960 = sld [smem:[#allocation11 + $0x386]]
        %v2961 = vstv %s2960
        %v2962 = vmul.f32 %v1100, %v2961
        %v2963 = vmul.f32 %v1101, %v2961
        %v2964 = vadd.f32 %v2958, %v2962
        %v2965 = vadd.f32 %v2959, %v2963
        %s2966 = sld [smem:[#allocation12 + $0x6]]
        %v2967 = vstv %s2966
        %v2968 = vadd.f32 %v2964, %v2967
        %v2969 = vadd.f32 %v2965, %v2967
        %v2970 = vmax.f32 %v2968, 0.0
        %v2971 = vmax.f32 %v2969, 0.0
        %v2972 = vmul.f32 %v502, %v2970
        %v2973 = vmul.f32 %v503, %v2971
        %v2974 = vrot.slane %v2972, 4
        %v2975 = vadd.f32 %v2972, %v2974
        %v2976 = vrot.slane %v2975, 2
        %v2977 = vadd.f32 %v2975, %v2976
        %v2978 = vrot.slane %v2977, 1
        %v2979 = vadd.f32 %v2977, %v2978
        %v2980 = vrot.slane %v2973, 4
        %v2981 = vadd.f32 %v2973, %v2980
        %v2982 = vrot.slane %v2981, 2
        %v2983 = vadd.f32 %v2981, %v2982
        %v2984 = vrot.slane %v2983, 1
        %v2985 = vadd.f32 %v2983, %v2984
        %v2986 = vpack.c.bf16 %v2979, %v2979
        %v2987 = vpack.c.bf16 %v2985, %v2985
        %v2988 = vld [vmem:[#allocation2 + $0x60] sm:$0x1]
        %v2989 = vsel %vm1172, %v2986, %v2988
        %2990 = vst [vmem:[#allocation2 + $0x60] sm:$0x1] %v2989
        %v2991 = vld [vmem:[#allocation2 + $0x68] sm:$0x1]
        %v2992 = vsel %vm1172, %v2987, %v2991
        %2993 = vst [vmem:[#allocation2 + $0x68] sm:$0x1] %v2992
        %v2994 = vmul.f32 %v505, %v2970
        %v2995 = vmul.f32 %v506, %v2971
        %v2996 = vrot.slane %v2994, 4
        %v2997 = vadd.f32 %v2994, %v2996
        %v2998 = vrot.slane %v2997, 2
        %v2999 = vadd.f32 %v2997, %v2998
        %v3000 = vrot.slane %v2999, 1
        %v3001 = vadd.f32 %v2999, %v3000
        %v3002 = vrot.slane %v2995, 4
        %v3003 = vadd.f32 %v2995, %v3002
        %v3004 = vrot.slane %v3003, 2
        %v3005 = vadd.f32 %v3003, %v3004
        %v3006 = vrot.slane %v3005, 1
        %v3007 = vadd.f32 %v3005, %v3006
        %v3008 = vpack.c.bf16 %v3001, %v3001
        %v3009 = vpack.c.bf16 %v3007, %v3007
        %v3010 = vld [vmem:[#allocation2 + $0x60] sm:$0x1]
        %v3011 = vsel %vm1196, %v3008, %v3010
        %3012 = vst [vmem:[#allocation2 + $0x60] sm:$0x1] %v3011
        %v3013 = vld [vmem:[#allocation2 + $0x68] sm:$0x1]
        %v3014 = vsel %vm1196, %v3009, %v3013
        %3015 = vst [vmem:[#allocation2 + $0x68] sm:$0x1] %v3014
        %v3016 = vmul.f32 %v508, %v2970
        %v3017 = vmul.f32 %v509, %v2971
        %v3018 = vrot.slane %v3016, 4
        %v3019 = vadd.f32 %v3016, %v3018
        %v3020 = vrot.slane %v3019, 2
        %v3021 = vadd.f32 %v3019, %v3020
        %v3022 = vrot.slane %v3021, 1
        %v3023 = vadd.f32 %v3021, %v3022
        %v3024 = vrot.slane %v3017, 4
        %v3025 = vadd.f32 %v3017, %v3024
        %v3026 = vrot.slane %v3025, 2
        %v3027 = vadd.f32 %v3025, %v3026
        %v3028 = vrot.slane %v3027, 1
        %v3029 = vadd.f32 %v3027, %v3028
        %v3030 = vpack.c.bf16 %v3023, %v3023
        %v3031 = vpack.c.bf16 %v3029, %v3029
        %v3032 = vld [vmem:[#allocation2 + $0x60] sm:$0x2]
        %v3033 = vsel %vm1221, %v3030, %v3032
        %3034 = vst [vmem:[#allocation2 + $0x60] sm:$0x2] %v3033
        %v3035 = vld [vmem:[#allocation2 + $0x68] sm:$0x2]
        %v3036 = vsel %vm1221, %v3031, %v3035
        %3037 = vst [vmem:[#allocation2 + $0x68] sm:$0x2] %v3036
        %v3038 = vld [vmem:[%s499] sm:$0xff]
        %v3039 = vld [vmem:[%s499 + $0x8] sm:$0xff]
        %v3040 = vld [vmem:[%s499 + $0x10] sm:$0x1f]
        %v3041 = vld [vmem:[%s499 + $0x18] sm:$0x1f]
        %v3042 = vlaneseq
        %v3043 = vshrl.u32 %v3042, 7
        %v3044 = vsub.s32 0, %v3043
        %v3045 = vrot.slane %v2970, %v3044
        %v3046 = vlaneseq
        %v3047 = vshrl.u32 %v3046, 7
        %v3048 = vsub.s32 0, %v3047
        %v3049 = vrot.slane %v2971, %v3048
        %v3050 = vmul.f32 %v3045, %v3038
        %v3051 = vmul.f32 %v3049, %v3039
        %v3052 = vmul.f32 %v3045, %v3040
        %v3053 = vmul.f32 %v3049, %v3041
        %v3054 = vld [vmem:[%s1244] sm:$0xff]
        %v3055 = vld [vmem:[%s1244 + $0x8] sm:$0xff]
        %v3056 = vld [vmem:[%s1244 + $0x10] sm:$0x1f]
        %v3057 = vld [vmem:[%s1244 + $0x18] sm:$0x1f]
        %v3058 = vlaneseq
        %v3059 = vshrl.u32 %v3058, 7
        %v3060 = vsub.s32 1, %v3059
        %v3061 = vrot.slane %v2970, %v3060
        %v3062 = vlaneseq
        %v3063 = vshrl.u32 %v3062, 7
        %v3064 = vsub.s32 1, %v3063
        %v3065 = vrot.slane %v2971, %v3064
        %v3066 = vmul.f32 %v3061, %v3054
        %v3067 = vmul.f32 %v3065, %v3055
        %v3068 = vmul.f32 %v3061, %v3056
        %v3069 = vmul.f32 %v3065, %v3057
        %v3070 = vadd.f32 %v3050, %v3066
        %v3071 = vadd.f32 %v3051, %v3067
        %v3072 = vadd.f32 %v3052, %v3068
        %v3073 = vadd.f32 %v3053, %v3069
        %v3074 = vld [vmem:[%s1265] sm:$0xff]
        %v3075 = vld [vmem:[%s1265 + $0x8] sm:$0xff]
        %v3076 = vld [vmem:[%s1265 + $0x10] sm:$0x1f]
        %v3077 = vld [vmem:[%s1265 + $0x18] sm:$0x1f]
        %v3078 = vlaneseq
        %v3079 = vshrl.u32 %v3078, 7
        %v3080 = vsub.s32 2, %v3079
        %v3081 = vrot.slane %v2970, %v3080
        %v3082 = vlaneseq
        %v3083 = vshrl.u32 %v3082, 7
        %v3084 = vsub.s32 2, %v3083
        %v3085 = vrot.slane %v2971, %v3084
        %v3086 = vmul.f32 %v3081, %v3074
        %v3087 = vmul.f32 %v3085, %v3075
        %v3088 = vmul.f32 %v3081, %v3076
        %v3089 = vmul.f32 %v3085, %v3077
        %v3090 = vadd.f32 %v3070, %v3086
        %v3091 = vadd.f32 %v3071, %v3087
        %v3092 = vadd.f32 %v3072, %v3088
        %v3093 = vadd.f32 %v3073, %v3089
        %v3094 = vld [vmem:[%s1286] sm:$0xff]
        %v3095 = vld [vmem:[%s1286 + $0x8] sm:$0xff]
        %v3096 = vld [vmem:[%s1286 + $0x10] sm:$0x1f]
        %v3097 = vld [vmem:[%s1286 + $0x18] sm:$0x1f]
        %v3098 = vlaneseq
        %v3099 = vshrl.u32 %v3098, 7
        %v3100 = vsub.s32 3, %v3099
        %v3101 = vrot.slane %v2970, %v3100
        %v3102 = vlaneseq
        %v3103 = vshrl.u32 %v3102, 7
        %v3104 = vsub.s32 3, %v3103
        %v3105 = vrot.slane %v2971, %v3104
        %v3106 = vmul.f32 %v3101, %v3094
        %v3107 = vmul.f32 %v3105, %v3095
        %v3108 = vmul.f32 %v3101, %v3096
        %v3109 = vmul.f32 %v3105, %v3097
        %v3110 = vadd.f32 %v3090, %v3106
        %v3111 = vadd.f32 %v3091, %v3107
        %v3112 = vadd.f32 %v3092, %v3108
        %v3113 = vadd.f32 %v3093, %v3109
        %v3114 = vld [vmem:[%s1307] sm:$0xff]
        %v3115 = vld [vmem:[%s1307 + $0x8] sm:$0xff]
        %v3116 = vld [vmem:[%s1307 + $0x10] sm:$0x1f]
        %v3117 = vld [vmem:[%s1307 + $0x18] sm:$0x1f]
        %v3118 = vlaneseq
        %v3119 = vshrl.u32 %v3118, 7
        %v3120 = vsub.s32 4, %v3119
        %v3121 = vrot.slane %v2970, %v3120
        %v3122 = vlaneseq
        %v3123 = vshrl.u32 %v3122, 7
        %v3124 = vsub.s32 4, %v3123
        %v3125 = vrot.slane %v2971, %v3124
        %v3126 = vmul.f32 %v3121, %v3114
        %v3127 = vmul.f32 %v3125, %v3115
        %v3128 = vmul.f32 %v3121, %v3116
        %v3129 = vmul.f32 %v3125, %v3117
        %v3130 = vadd.f32 %v3110, %v3126
        %v3131 = vadd.f32 %v3111, %v3127
        %v3132 = vadd.f32 %v3112, %v3128
        %v3133 = vadd.f32 %v3113, %v3129
        %v3134 = vld [vmem:[%s1328] sm:$0xff]
        %v3135 = vld [vmem:[%s1328 + $0x8] sm:$0xff]
        %v3136 = vld [vmem:[%s1328 + $0x10] sm:$0x1f]
        %v3137 = vld [vmem:[%s1328 + $0x18] sm:$0x1f]
        %v3138 = vlaneseq
        %v3139 = vshrl.u32 %v3138, 7
        %v3140 = vsub.s32 5, %v3139
        %v3141 = vrot.slane %v2970, %v3140
        %v3142 = vlaneseq
        %v3143 = vshrl.u32 %v3142, 7
        %v3144 = vsub.s32 5, %v3143
        %v3145 = vrot.slane %v2971, %v3144
        %v3146 = vmul.f32 %v3141, %v3134
        %v3147 = vmul.f32 %v3145, %v3135
        %v3148 = vmul.f32 %v3141, %v3136
        %v3149 = vmul.f32 %v3145, %v3137
        %v3150 = vadd.f32 %v3130, %v3146
        %v3151 = vadd.f32 %v3131, %v3147
        %v3152 = vadd.f32 %v3132, %v3148
        %v3153 = vadd.f32 %v3133, %v3149
        %v3154 = vld [vmem:[%s1349] sm:$0xff]
        %v3155 = vld [vmem:[%s1349 + $0x8] sm:$0xff]
        %v3156 = vld [vmem:[%s1349 + $0x10] sm:$0x1f]
        %v3157 = vld [vmem:[%s1349 + $0x18] sm:$0x1f]
        %v3158 = vlaneseq
        %v3159 = vshrl.u32 %v3158, 7
        %v3160 = vsub.s32 6, %v3159
        %v3161 = vrot.slane %v2970, %v3160
        %v3162 = vlaneseq
        %v3163 = vshrl.u32 %v3162, 7
        %v3164 = vsub.s32 6, %v3163
        %v3165 = vrot.slane %v2971, %v3164
        %v3166 = vmul.f32 %v3161, %v3154
        %v3167 = vmul.f32 %v3165, %v3155
        %v3168 = vmul.f32 %v3161, %v3156
        %v3169 = vmul.f32 %v3165, %v3157
        %v3170 = vadd.f32 %v3150, %v3166
        %v3171 = vadd.f32 %v3151, %v3167
        %v3172 = vadd.f32 %v3152, %v3168
        %v3173 = vadd.f32 %v3153, %v3169
        %v3174 = vld [vmem:[%s1370] sm:$0xff]
        %v3175 = vld [vmem:[%s1370 + $0x8] sm:$0xff]
        %v3176 = vld [vmem:[%s1370 + $0x10] sm:$0x1f]
        %v3177 = vld [vmem:[%s1370 + $0x18] sm:$0x1f]
        %v3178 = vlaneseq
        %v3179 = vshrl.u32 %v3178, 7
        %v3180 = vsub.s32 7, %v3179
        %v3181 = vrot.slane %v2970, %v3180
        %v3182 = vlaneseq
        %v3183 = vshrl.u32 %v3182, 7
        %v3184 = vsub.s32 7, %v3183
        %v3185 = vrot.slane %v2971, %v3184
        %v3186 = vmul.f32 %v3181, %v3174
        %v3187 = vmul.f32 %v3185, %v3175
        %v3188 = vmul.f32 %v3181, %v3176
        %v3189 = vmul.f32 %v3185, %v3177
        %v3190 = vadd.f32 %v3170, %v3186
        %v3191 = vadd.f32 %v3171, %v3187
        %v3192 = vadd.f32 %v3172, %v3188
        %v3193 = vadd.f32 %v3173, %v3189
        %v3194 = vpack.c.bf16 %v3192, %v3190
        %v3195 = vpack.c.bf16 %v3193, %v3191
        %v3197 = vshrl.u32 %v3194, 16
        %v3199 = vrot.slane %v3197, 6
        %v3200 = vshll.u32 %v3194, 16
        %v3202 = vrot.slane %v3200, 7
        %v3203 = vor.u32 %v3199, %v3202
        %v3205 = vshrl.u32 %v3195, 16
        %v3207 = vrot.slane %v3205, 6
        %v3208 = vshll.u32 %v3195, 16
        %v3210 = vrot.slane %v3208, 7
        %v3211 = vor.u32 %v3207, %v3210
        %v3214 = vld [vmem:[#allocation2 + $0x60] sm:$0xfe]
        %v3215 = vsel %vm1413, %v3203, %v3214
        %3216 = vst [vmem:[#allocation2 + $0x60] sm:$0xfe] %v3215
        %v3217 = vld [vmem:[#allocation2 + $0x68] sm:$0xfe]
        %v3218 = vsel %vm1413, %v3211, %v3217
        %3219 = vst [vmem:[#allocation2 + $0x68] sm:$0xfe] %v3218
        %s3220 = sld [smem:[#allocation11 + $0x7]]
        %v3221 = vstv %s3220
        %v3222 = vmul.f32 %v736, %v3221
        %v3223 = vmul.f32 %v737, %v3221
        %s3224 = sld [smem:[#allocation11 + $0x87]]
        %v3225 = vstv %s3224
        %v3226 = vmul.f32 %v788, %v3225
        %v3227 = vmul.f32 %v789, %v3225
        %v3228 = vadd.f32 %v3222, %v3226
        %v3229 = vadd.f32 %v3223, %v3227
        %s3230 = sld [smem:[#allocation11 + $0x107]]
        %v3231 = vstv %s3230
        %v3232 = vmul.f32 %v840, %v3231
        %v3233 = vmul.f32 %v841, %v3231
        %v3234 = vadd.f32 %v3228, %v3232
        %v3235 = vadd.f32 %v3229, %v3233
        %s3236 = sld [smem:[#allocation11 + $0x187]]
        %v3237 = vstv %s3236
        %v3238 = vmul.f32 %v892, %v3237
        %v3239 = vmul.f32 %v893, %v3237
        %v3240 = vadd.f32 %v3234, %v3238
        %v3241 = vadd.f32 %v3235, %v3239
        %s3242 = sld [smem:[#allocation11 + $0x207]]
        %v3243 = vstv %s3242
        %v3244 = vmul.f32 %v944, %v3243
        %v3245 = vmul.f32 %v945, %v3243
        %v3246 = vadd.f32 %v3240, %v3244
        %v3247 = vadd.f32 %v3241, %v3245
        %s3248 = sld [smem:[#allocation11 + $0x287]]
        %v3249 = vstv %s3248
        %v3250 = vmul.f32 %v996, %v3249
        %v3251 = vmul.f32 %v997, %v3249
        %v3252 = vadd.f32 %v3246, %v3250
        %v3253 = vadd.f32 %v3247, %v3251
        %s3254 = sld [smem:[#allocation11 + $0x307]]
        %v3255 = vstv %s3254
        %v3256 = vmul.f32 %v1048, %v3255
        %v3257 = vmul.f32 %v1049, %v3255
        %v3258 = vadd.f32 %v3252, %v3256
        %v3259 = vadd.f32 %v3253, %v3257
        %s3260 = sld [smem:[#allocation11 + $0x387]]
        %v3261 = vstv %s3260
        %v3262 = vmul.f32 %v1100, %v3261
        %v3263 = vmul.f32 %v1101, %v3261
        %v3264 = vadd.f32 %v3258, %v3262
        %v3265 = vadd.f32 %v3259, %v3263
        %s3266 = sld [smem:[#allocation12 + $0x7]]
        %v3267 = vstv %s3266
        %v3268 = vadd.f32 %v3264, %v3267
        %v3269 = vadd.f32 %v3265, %v3267
        %v3270 = vmax.f32 %v3268, 0.0
        %v3271 = vmax.f32 %v3269, 0.0
        %v3272 = vmul.f32 %v502, %v3270
        %v3273 = vmul.f32 %v503, %v3271
        %v3274 = vrot.slane %v3272, 4
        %v3275 = vadd.f32 %v3272, %v3274
        %v3276 = vrot.slane %v3275, 2
        %v3277 = vadd.f32 %v3275, %v3276
        %v3278 = vrot.slane %v3277, 1
        %v3279 = vadd.f32 %v3277, %v3278
        %v3280 = vrot.slane %v3273, 4
        %v3281 = vadd.f32 %v3273, %v3280
        %v3282 = vrot.slane %v3281, 2
        %v3283 = vadd.f32 %v3281, %v3282
        %v3284 = vrot.slane %v3283, 1
        %v3285 = vadd.f32 %v3283, %v3284
        %v3286 = vpack.c.bf16 %v3279, %v3279
        %v3287 = vpack.c.bf16 %v3285, %v3285
        %v3288 = vld [vmem:[#allocation2 + $0x70] sm:$0x1]
        %v3289 = vsel %vm1172, %v3286, %v3288
        %3290 = vst [vmem:[#allocation2 + $0x70] sm:$0x1] %v3289
        %v3291 = vld [vmem:[#allocation2 + $0x78] sm:$0x1]
        %v3292 = vsel %vm1172, %v3287, %v3291
        %3293 = vst [vmem:[#allocation2 + $0x78] sm:$0x1] %v3292
        %v3294 = vmul.f32 %v505, %v3270
        %v3295 = vmul.f32 %v506, %v3271
        %v3296 = vrot.slane %v3294, 4
        %v3297 = vadd.f32 %v3294, %v3296
        %v3298 = vrot.slane %v3297, 2
        %v3299 = vadd.f32 %v3297, %v3298
        %v3300 = vrot.slane %v3299, 1
        %v3301 = vadd.f32 %v3299, %v3300
        %v3302 = vrot.slane %v3295, 4
        %v3303 = vadd.f32 %v3295, %v3302
        %v3304 = vrot.slane %v3303, 2
        %v3305 = vadd.f32 %v3303, %v3304
        %v3306 = vrot.slane %v3305, 1
        %v3307 = vadd.f32 %v3305, %v3306
        %v3308 = vpack.c.bf16 %v3301, %v3301
        %v3309 = vpack.c.bf16 %v3307, %v3307
        %v3310 = vld [vmem:[#allocation2 + $0x70] sm:$0x1]
        %v3311 = vsel %vm1196, %v3308, %v3310
        %3312 = vst [vmem:[#allocation2 + $0x70] sm:$0x1] %v3311
        %v3313 = vld [vmem:[#allocation2 + $0x78] sm:$0x1]
        %v3314 = vsel %vm1196, %v3309, %v3313
        %3315 = vst [vmem:[#allocation2 + $0x78] sm:$0x1] %v3314
        %v3316 = vmul.f32 %v508, %v3270
        %v3317 = vmul.f32 %v509, %v3271
        %v3318 = vrot.slane %v3316, 4
        %v3319 = vadd.f32 %v3316, %v3318
        %v3320 = vrot.slane %v3319, 2
        %v3321 = vadd.f32 %v3319, %v3320
        %v3322 = vrot.slane %v3321, 1
        %v3323 = vadd.f32 %v3321, %v3322
        %v3324 = vrot.slane %v3317, 4
        %v3325 = vadd.f32 %v3317, %v3324
        %v3326 = vrot.slane %v3325, 2
        %v3327 = vadd.f32 %v3325, %v3326
        %v3328 = vrot.slane %v3327, 1
        %v3329 = vadd.f32 %v3327, %v3328
        %v3330 = vpack.c.bf16 %v3323, %v3323
        %v3331 = vpack.c.bf16 %v3329, %v3329
        %v3332 = vld [vmem:[#allocation2 + $0x70] sm:$0x2]
        %v3333 = vsel %vm1221, %v3330, %v3332
        %3334 = vst [vmem:[#allocation2 + $0x70] sm:$0x2] %v3333
        %v3335 = vld [vmem:[#allocation2 + $0x78] sm:$0x2]
        %v3336 = vsel %vm1221, %v3331, %v3335
        %3337 = vst [vmem:[#allocation2 + $0x78] sm:$0x2] %v3336
        %v3338 = vld [vmem:[%s499] sm:$0xff]
        %v3339 = vld [vmem:[%s499 + $0x8] sm:$0xff]
        %v3340 = vld [vmem:[%s499 + $0x10] sm:$0x1f]
        %v3341 = vld [vmem:[%s499 + $0x18] sm:$0x1f]
        %v3342 = vlaneseq
        %v3343 = vshrl.u32 %v3342, 7
        %v3344 = vsub.s32 0, %v3343
        %v3345 = vrot.slane %v3270, %v3344
        %v3346 = vlaneseq
        %v3347 = vshrl.u32 %v3346, 7
        %v3348 = vsub.s32 0, %v3347
        %v3349 = vrot.slane %v3271, %v3348
        %v3350 = vmul.f32 %v3345, %v3338
        %v3351 = vmul.f32 %v3349, %v3339
        %v3352 = vmul.f32 %v3345, %v3340
        %v3353 = vmul.f32 %v3349, %v3341
        %v3354 = vld [vmem:[%s1244] sm:$0xff]
        %v3355 = vld [vmem:[%s1244 + $0x8] sm:$0xff]
        %v3356 = vld [vmem:[%s1244 + $0x10] sm:$0x1f]
        %v3357 = vld [vmem:[%s1244 + $0x18] sm:$0x1f]
        %v3358 = vlaneseq
        %v3359 = vshrl.u32 %v3358, 7
        %v3360 = vsub.s32 1, %v3359
        %v3361 = vrot.slane %v3270, %v3360
        %v3362 = vlaneseq
        %v3363 = vshrl.u32 %v3362, 7
        %v3364 = vsub.s32 1, %v3363
        %v3365 = vrot.slane %v3271, %v3364
        %v3366 = vmul.f32 %v3361, %v3354
        %v3367 = vmul.f32 %v3365, %v3355
        %v3368 = vmul.f32 %v3361, %v3356
        %v3369 = vmul.f32 %v3365, %v3357
        %v3370 = vadd.f32 %v3350, %v3366
        %v3371 = vadd.f32 %v3351, %v3367
        %v3372 = vadd.f32 %v3352, %v3368
        %v3373 = vadd.f32 %v3353, %v3369
        %v3374 = vld [vmem:[%s1265] sm:$0xff]
        %v3375 = vld [vmem:[%s1265 + $0x8] sm:$0xff]
        %v3376 = vld [vmem:[%s1265 + $0x10] sm:$0x1f]
        %v3377 = vld [vmem:[%s1265 + $0x18] sm:$0x1f]
        %v3378 = vlaneseq
        %v3379 = vshrl.u32 %v3378, 7
        %v3380 = vsub.s32 2, %v3379
        %v3381 = vrot.slane %v3270, %v3380
        %v3382 = vlaneseq
        %v3383 = vshrl.u32 %v3382, 7
        %v3384 = vsub.s32 2, %v3383
        %v3385 = vrot.slane %v3271, %v3384
        %v3386 = vmul.f32 %v3381, %v3374
        %v3387 = vmul.f32 %v3385, %v3375
        %v3388 = vmul.f32 %v3381, %v3376
        %v3389 = vmul.f32 %v3385, %v3377
        %v3390 = vadd.f32 %v3370, %v3386
        %v3391 = vadd.f32 %v3371, %v3387
        %v3392 = vadd.f32 %v3372, %v3388
        %v3393 = vadd.f32 %v3373, %v3389
        %v3394 = vld [vmem:[%s1286] sm:$0xff]
        %v3395 = vld [vmem:[%s1286 + $0x8] sm:$0xff]
        %v3396 = vld [vmem:[%s1286 + $0x10] sm:$0x1f]
        %v3397 = vld [vmem:[%s1286 + $0x18] sm:$0x1f]
        %v3398 = vlaneseq
        %v3399 = vshrl.u32 %v3398, 7
        %v3400 = vsub.s32 3, %v3399
        %v3401 = vrot.slane %v3270, %v3400
        %v3402 = vlaneseq
        %v3403 = vshrl.u32 %v3402, 7
        %v3404 = vsub.s32 3, %v3403
        %v3405 = vrot.slane %v3271, %v3404
        %v3406 = vmul.f32 %v3401, %v3394
        %v3407 = vmul.f32 %v3405, %v3395
        %v3408 = vmul.f32 %v3401, %v3396
        %v3409 = vmul.f32 %v3405, %v3397
        %v3410 = vadd.f32 %v3390, %v3406
        %v3411 = vadd.f32 %v3391, %v3407
        %v3412 = vadd.f32 %v3392, %v3408
        %v3413 = vadd.f32 %v3393, %v3409
        %v3414 = vld [vmem:[%s1307] sm:$0xff]
        %v3415 = vld [vmem:[%s1307 + $0x8] sm:$0xff]
        %v3416 = vld [vmem:[%s1307 + $0x10] sm:$0x1f]
        %v3417 = vld [vmem:[%s1307 + $0x18] sm:$0x1f]
        %v3418 = vlaneseq
        %v3419 = vshrl.u32 %v3418, 7
        %v3420 = vsub.s32 4, %v3419
        %v3421 = vrot.slane %v3270, %v3420
        %v3422 = vlaneseq
        %v3423 = vshrl.u32 %v3422, 7
        %v3424 = vsub.s32 4, %v3423
        %v3425 = vrot.slane %v3271, %v3424
        %v3426 = vmul.f32 %v3421, %v3414
        %v3427 = vmul.f32 %v3425, %v3415
        %v3428 = vmul.f32 %v3421, %v3416
        %v3429 = vmul.f32 %v3425, %v3417
        %v3430 = vadd.f32 %v3410, %v3426
        %v3431 = vadd.f32 %v3411, %v3427
        %v3432 = vadd.f32 %v3412, %v3428
        %v3433 = vadd.f32 %v3413, %v3429
        %v3434 = vld [vmem:[%s1328] sm:$0xff]
        %v3435 = vld [vmem:[%s1328 + $0x8] sm:$0xff]
        %v3436 = vld [vmem:[%s1328 + $0x10] sm:$0x1f]
        %v3437 = vld [vmem:[%s1328 + $0x18] sm:$0x1f]
        %v3438 = vlaneseq
        %v3439 = vshrl.u32 %v3438, 7
        %v3440 = vsub.s32 5, %v3439
        %v3441 = vrot.slane %v3270, %v3440
        %v3442 = vlaneseq
        %v3443 = vshrl.u32 %v3442, 7
        %v3444 = vsub.s32 5, %v3443
        %v3445 = vrot.slane %v3271, %v3444
        %v3446 = vmul.f32 %v3441, %v3434
        %v3447 = vmul.f32 %v3445, %v3435
        %v3448 = vmul.f32 %v3441, %v3436
        %v3449 = vmul.f32 %v3445, %v3437
        %v3450 = vadd.f32 %v3430, %v3446
        %v3451 = vadd.f32 %v3431, %v3447
        %v3452 = vadd.f32 %v3432, %v3448
        %v3453 = vadd.f32 %v3433, %v3449
        %v3454 = vld [vmem:[%s1349] sm:$0xff]
        %v3455 = vld [vmem:[%s1349 + $0x8] sm:$0xff]
        %v3456 = vld [vmem:[%s1349 + $0x10] sm:$0x1f]
        %v3457 = vld [vmem:[%s1349 + $0x18] sm:$0x1f]
        %v3458 = vlaneseq
        %v3459 = vshrl.u32 %v3458, 7
        %v3460 = vsub.s32 6, %v3459
        %v3461 = vrot.slane %v3270, %v3460
        %v3462 = vlaneseq
        %v3463 = vshrl.u32 %v3462, 7
        %v3464 = vsub.s32 6, %v3463
        %v3465 = vrot.slane %v3271, %v3464
        %v3466 = vmul.f32 %v3461, %v3454
        %v3467 = vmul.f32 %v3465, %v3455
        %v3468 = vmul.f32 %v3461, %v3456
        %v3469 = vmul.f32 %v3465, %v3457
        %v3470 = vadd.f32 %v3450, %v3466
        %v3471 = vadd.f32 %v3451, %v3467
        %v3472 = vadd.f32 %v3452, %v3468
        %v3473 = vadd.f32 %v3453, %v3469
        %v3474 = vld [vmem:[%s1370] sm:$0xff]
        %v3475 = vld [vmem:[%s1370 + $0x8] sm:$0xff]
        %v3476 = vld [vmem:[%s1370 + $0x10] sm:$0x1f]
        %v3477 = vld [vmem:[%s1370 + $0x18] sm:$0x1f]
        %v3478 = vlaneseq
        %v3479 = vshrl.u32 %v3478, 7
        %v3480 = vsub.s32 7, %v3479
        %v3481 = vrot.slane %v3270, %v3480
        %v3482 = vlaneseq
        %v3483 = vshrl.u32 %v3482, 7
        %v3484 = vsub.s32 7, %v3483
        %v3485 = vrot.slane %v3271, %v3484
        %v3486 = vmul.f32 %v3481, %v3474
        %v3487 = vmul.f32 %v3485, %v3475
        %v3488 = vmul.f32 %v3481, %v3476
        %v3489 = vmul.f32 %v3485, %v3477
        %v3490 = vadd.f32 %v3470, %v3486
        %v3491 = vadd.f32 %v3471, %v3487
        %v3492 = vadd.f32 %v3472, %v3488
        %v3493 = vadd.f32 %v3473, %v3489
        %v3494 = vpack.c.bf16 %v3492, %v3490
        %v3495 = vpack.c.bf16 %v3493, %v3491
        %v3497 = vshrl.u32 %v3494, 16
        %v3499 = vrot.slane %v3497, 6
        %v3500 = vshll.u32 %v3494, 16
        %v3502 = vrot.slane %v3500, 7
        %v3503 = vor.u32 %v3499, %v3502
        %v3505 = vshrl.u32 %v3495, 16
        %v3507 = vrot.slane %v3505, 6
        %v3508 = vshll.u32 %v3495, 16
        %v3510 = vrot.slane %v3508, 7
        %v3511 = vor.u32 %v3507, %v3510
        %v3514 = vld [vmem:[#allocation2 + $0x70] sm:$0xfe]
        %v3515 = vsel %vm1413, %v3503, %v3514
        %3516 = vst [vmem:[#allocation2 + $0x70] sm:$0xfe] %v3515
        %v3517 = vld [vmem:[#allocation2 + $0x78] sm:$0xfe]
        %v3518 = vsel %vm1413, %v3511, %v3517
        %3519 = vst [vmem:[#allocation2 + $0x78] sm:$0xfe] %v3518
        %s3520 = sld [smem:[#allocation11 + $0x8]]
        %v3521 = vstv %s3520
        %v3522 = vmul.f32 %v736, %v3521
        %v3523 = vmul.f32 %v737, %v3521
        %s3524 = sld [smem:[#allocation11 + $0x88]]
        %v3525 = vstv %s3524
        %v3526 = vmul.f32 %v788, %v3525
        %v3527 = vmul.f32 %v789, %v3525
        %v3528 = vadd.f32 %v3522, %v3526
        %v3529 = vadd.f32 %v3523, %v3527
        %s3530 = sld [smem:[#allocation11 + $0x108]]
        %v3531 = vstv %s3530
        %v3532 = vmul.f32 %v840, %v3531
        %v3533 = vmul.f32 %v841, %v3531
        %v3534 = vadd.f32 %v3528, %v3532
        %v3535 = vadd.f32 %v3529, %v3533
        %s3536 = sld [smem:[#allocation11 + $0x188]]
        %v3537 = vstv %s3536
        %v3538 = vmul.f32 %v892, %v3537
        %v3539 = vmul.f32 %v893, %v3537
        %v3540 = vadd.f32 %v3534, %v3538
        %v3541 = vadd.f32 %v3535, %v3539
        %s3542 = sld [smem:[#allocation11 + $0x208]]
        %v3543 = vstv %s3542
        %v3544 = vmul.f32 %v944, %v3543
        %v3545 = vmul.f32 %v945, %v3543
        %v3546 = vadd.f32 %v3540, %v3544
        %v3547 = vadd.f32 %v3541, %v3545
        %s3548 = sld [smem:[#allocation11 + $0x288]]
        %v3549 = vstv %s3548
        %v3550 = vmul.f32 %v996, %v3549
        %v3551 = vmul.f32 %v997, %v3549
        %v3552 = vadd.f32 %v3546, %v3550
        %v3553 = vadd.f32 %v3547, %v3551
        %s3554 = sld [smem:[#allocation11 + $0x308]]
        %v3555 = vstv %s3554
        %v3556 = vmul.f32 %v1048, %v3555
        %v3557 = vmul.f32 %v1049, %v3555
        %v3558 = vadd.f32 %v3552, %v3556
        %v3559 = vadd.f32 %v3553, %v3557
        %s3560 = sld [smem:[#allocation11 + $0x388]]
        %v3561 = vstv %s3560
        %v3562 = vmul.f32 %v1100, %v3561
        %v3563 = vmul.f32 %v1101, %v3561
        %v3564 = vadd.f32 %v3558, %v3562
        %v3565 = vadd.f32 %v3559, %v3563
        %s3566 = sld [smem:[#allocation12 + $0x8]]
        %v3567 = vstv %s3566
        %v3568 = vadd.f32 %v3564, %v3567
        %v3569 = vadd.f32 %v3565, %v3567
        %v3570 = vmax.f32 %v3568, 0.0
        %v3571 = vmax.f32 %v3569, 0.0
        %v3572 = vmul.f32 %v502, %v3570
        %v3573 = vmul.f32 %v503, %v3571
        %v3574 = vrot.slane %v3572, 4
        %v3575 = vadd.f32 %v3572, %v3574
        %v3576 = vrot.slane %v3575, 2
        %v3577 = vadd.f32 %v3575, %v3576
        %v3578 = vrot.slane %v3577, 1
        %v3579 = vadd.f32 %v3577, %v3578
        %v3580 = vrot.slane %v3573, 4
        %v3581 = vadd.f32 %v3573, %v3580
        %v3582 = vrot.slane %v3581, 2
        %v3583 = vadd.f32 %v3581, %v3582
        %v3584 = vrot.slane %v3583, 1
        %v3585 = vadd.f32 %v3583, %v3584
        %v3586 = vpack.c.bf16 %v3579, %v3579
        %v3587 = vpack.c.bf16 %v3585, %v3585
        %v3588 = vld [vmem:[#allocation2 + $0x80] sm:$0x1]
        %v3589 = vsel %vm1172, %v3586, %v3588
        %3590 = vst [vmem:[#allocation2 + $0x80] sm:$0x1] %v3589
        %v3591 = vld [vmem:[#allocation2 + $0x88] sm:$0x1]
        %v3592 = vsel %vm1172, %v3587, %v3591
        %3593 = vst [vmem:[#allocation2 + $0x88] sm:$0x1] %v3592
        %v3594 = vmul.f32 %v505, %v3570
        %v3595 = vmul.f32 %v506, %v3571
        %v3596 = vrot.slane %v3594, 4
        %v3597 = vadd.f32 %v3594, %v3596
        %v3598 = vrot.slane %v3597, 2
        %v3599 = vadd.f32 %v3597, %v3598
        %v3600 = vrot.slane %v3599, 1
        %v3601 = vadd.f32 %v3599, %v3600
        %v3602 = vrot.slane %v3595, 4
        %v3603 = vadd.f32 %v3595, %v3602
        %v3604 = vrot.slane %v3603, 2
        %v3605 = vadd.f32 %v3603, %v3604
        %v3606 = vrot.slane %v3605, 1
        %v3607 = vadd.f32 %v3605, %v3606
        %v3608 = vpack.c.bf16 %v3601, %v3601
        %v3609 = vpack.c.bf16 %v3607, %v3607
        %v3610 = vld [vmem:[#allocation2 + $0x80] sm:$0x1]
        %v3611 = vsel %vm1196, %v3608, %v3610
        %3612 = vst [vmem:[#allocation2 + $0x80] sm:$0x1] %v3611
        %v3613 = vld [vmem:[#allocation2 + $0x88] sm:$0x1]
        %v3614 = vsel %vm1196, %v3609, %v3613
        %3615 = vst [vmem:[#allocation2 + $0x88] sm:$0x1] %v3614
        %v3616 = vmul.f32 %v508, %v3570
        %v3617 = vmul.f32 %v509, %v3571
        %v3618 = vrot.slane %v3616, 4
        %v3619 = vadd.f32 %v3616, %v3618
        %v3620 = vrot.slane %v3619, 2
        %v3621 = vadd.f32 %v3619, %v3620
        %v3622 = vrot.slane %v3621, 1
        %v3623 = vadd.f32 %v3621, %v3622
        %v3624 = vrot.slane %v3617, 4
        %v3625 = vadd.f32 %v3617, %v3624
        %v3626 = vrot.slane %v3625, 2
        %v3627 = vadd.f32 %v3625, %v3626
        %v3628 = vrot.slane %v3627, 1
        %v3629 = vadd.f32 %v3627, %v3628
        %v3630 = vpack.c.bf16 %v3623, %v3623
        %v3631 = vpack.c.bf16 %v3629, %v3629
        %v3632 = vld [vmem:[#allocation2 + $0x80] sm:$0x2]
        %v3633 = vsel %vm1221, %v3630, %v3632
        %3634 = vst [vmem:[#allocation2 + $0x80] sm:$0x2] %v3633
        %v3635 = vld [vmem:[#allocation2 + $0x88] sm:$0x2]
        %v3636 = vsel %vm1221, %v3631, %v3635
        %3637 = vst [vmem:[#allocation2 + $0x88] sm:$0x2] %v3636
        %v3638 = vld [vmem:[%s499] sm:$0xff]
        %v3639 = vld [vmem:[%s499 + $0x8] sm:$0xff]
        %v3640 = vld [vmem:[%s499 + $0x10] sm:$0x1f]
        %v3641 = vld [vmem:[%s499 + $0x18] sm:$0x1f]
        %v3642 = vlaneseq
        %v3643 = vshrl.u32 %v3642, 7
        %v3644 = vsub.s32 0, %v3643
        %v3645 = vrot.slane %v3570, %v3644
        %v3646 = vlaneseq
        %v3647 = vshrl.u32 %v3646, 7
        %v3648 = vsub.s32 0, %v3647
        %v3649 = vrot.slane %v3571, %v3648
        %v3650 = vmul.f32 %v3645, %v3638
        %v3651 = vmul.f32 %v3649, %v3639
        %v3652 = vmul.f32 %v3645, %v3640
        %v3653 = vmul.f32 %v3649, %v3641
        %v3654 = vld [vmem:[%s1244] sm:$0xff]
        %v3655 = vld [vmem:[%s1244 + $0x8] sm:$0xff]
        %v3656 = vld [vmem:[%s1244 + $0x10] sm:$0x1f]
        %v3657 = vld [vmem:[%s1244 + $0x18] sm:$0x1f]
        %v3658 = vlaneseq
        %v3659 = vshrl.u32 %v3658, 7
        %v3660 = vsub.s32 1, %v3659
        %v3661 = vrot.slane %v3570, %v3660
        %v3662 = vlaneseq
        %v3663 = vshrl.u32 %v3662, 7
        %v3664 = vsub.s32 1, %v3663
        %v3665 = vrot.slane %v3571, %v3664
        %v3666 = vmul.f32 %v3661, %v3654
        %v3667 = vmul.f32 %v3665, %v3655
        %v3668 = vmul.f32 %v3661, %v3656
        %v3669 = vmul.f32 %v3665, %v3657
        %v3670 = vadd.f32 %v3650, %v3666
        %v3671 = vadd.f32 %v3651, %v3667
        %v3672 = vadd.f32 %v3652, %v3668
        %v3673 = vadd.f32 %v3653, %v3669
        %v3674 = vld [vmem:[%s1265] sm:$0xff]
        %v3675 = vld [vmem:[%s1265 + $0x8] sm:$0xff]
        %v3676 = vld [vmem:[%s1265 + $0x10] sm:$0x1f]
        %v3677 = vld [vmem:[%s1265 + $0x18] sm:$0x1f]
        %v3678 = vlaneseq
        %v3679 = vshrl.u32 %v3678, 7
        %v3680 = vsub.s32 2, %v3679
        %v3681 = vrot.slane %v3570, %v3680
        %v3682 = vlaneseq
        %v3683 = vshrl.u32 %v3682, 7
        %v3684 = vsub.s32 2, %v3683
        %v3685 = vrot.slane %v3571, %v3684
        %v3686 = vmul.f32 %v3681, %v3674
        %v3687 = vmul.f32 %v3685, %v3675
        %v3688 = vmul.f32 %v3681, %v3676
        %v3689 = vmul.f32 %v3685, %v3677
        %v3690 = vadd.f32 %v3670, %v3686
        %v3691 = vadd.f32 %v3671, %v3687
        %v3692 = vadd.f32 %v3672, %v3688
        %v3693 = vadd.f32 %v3673, %v3689
        %v3694 = vld [vmem:[%s1286] sm:$0xff]
        %v3695 = vld [vmem:[%s1286 + $0x8] sm:$0xff]
        %v3696 = vld [vmem:[%s1286 + $0x10] sm:$0x1f]
        %v3697 = vld [vmem:[%s1286 + $0x18] sm:$0x1f]
        %v3698 = vlaneseq
        %v3699 = vshrl.u32 %v3698, 7
        %v3700 = vsub.s32 3, %v3699
        %v3701 = vrot.slane %v3570, %v3700
        %v3702 = vlaneseq
        %v3703 = vshrl.u32 %v3702, 7
        %v3704 = vsub.s32 3, %v3703
        %v3705 = vrot.slane %v3571, %v3704
        %v3706 = vmul.f32 %v3701, %v3694
        %v3707 = vmul.f32 %v3705, %v3695
        %v3708 = vmul.f32 %v3701, %v3696
        %v3709 = vmul.f32 %v3705, %v3697
        %v3710 = vadd.f32 %v3690, %v3706
        %v3711 = vadd.f32 %v3691, %v3707
        %v3712 = vadd.f32 %v3692, %v3708
        %v3713 = vadd.f32 %v3693, %v3709
        %v3714 = vld [vmem:[%s1307] sm:$0xff]
        %v3715 = vld [vmem:[%s1307 + $0x8] sm:$0xff]
        %v3716 = vld [vmem:[%s1307 + $0x10] sm:$0x1f]
        %v3717 = vld [vmem:[%s1307 + $0x18] sm:$0x1f]
        %v3718 = vlaneseq
        %v3719 = vshrl.u32 %v3718, 7
        %v3720 = vsub.s32 4, %v3719
        %v3721 = vrot.slane %v3570, %v3720
        %v3722 = vlaneseq
        %v3723 = vshrl.u32 %v3722, 7
        %v3724 = vsub.s32 4, %v3723
        %v3725 = vrot.slane %v3571, %v3724
        %v3726 = vmul.f32 %v3721, %v3714
        %v3727 = vmul.f32 %v3725, %v3715
        %v3728 = vmul.f32 %v3721, %v3716
        %v3729 = vmul.f32 %v3725, %v3717
        %v3730 = vadd.f32 %v3710, %v3726
        %v3731 = vadd.f32 %v3711, %v3727
        %v3732 = vadd.f32 %v3712, %v3728
        %v3733 = vadd.f32 %v3713, %v3729
        %v3734 = vld [vmem:[%s1328] sm:$0xff]
        %v3735 = vld [vmem:[%s1328 + $0x8] sm:$0xff]
        %v3736 = vld [vmem:[%s1328 + $0x10] sm:$0x1f]
        %v3737 = vld [vmem:[%s1328 + $0x18] sm:$0x1f]
        %v3738 = vlaneseq
        %v3739 = vshrl.u32 %v3738, 7
        %v3740 = vsub.s32 5, %v3739
        %v3741 = vrot.slane %v3570, %v3740
        %v3742 = vlaneseq
        %v3743 = vshrl.u32 %v3742, 7
        %v3744 = vsub.s32 5, %v3743
        %v3745 = vrot.slane %v3571, %v3744
        %v3746 = vmul.f32 %v3741, %v3734
        %v3747 = vmul.f32 %v3745, %v3735
        %v3748 = vmul.f32 %v3741, %v3736
        %v3749 = vmul.f32 %v3745, %v3737
        %v3750 = vadd.f32 %v3730, %v3746
        %v3751 = vadd.f32 %v3731, %v3747
        %v3752 = vadd.f32 %v3732, %v3748
        %v3753 = vadd.f32 %v3733, %v3749
        %v3754 = vld [vmem:[%s1349] sm:$0xff]
        %v3755 = vld [vmem:[%s1349 + $0x8] sm:$0xff]
        %v3756 = vld [vmem:[%s1349 + $0x10] sm:$0x1f]
        %v3757 = vld [vmem:[%s1349 + $0x18] sm:$0x1f]
        %v3758 = vlaneseq
        %v3759 = vshrl.u32 %v3758, 7
        %v3760 = vsub.s32 6, %v3759
        %v3761 = vrot.slane %v3570, %v3760
        %v3762 = vlaneseq
        %v3763 = vshrl.u32 %v3762, 7
        %v3764 = vsub.s32 6, %v3763
        %v3765 = vrot.slane %v3571, %v3764
        %v3766 = vmul.f32 %v3761, %v3754
        %v3767 = vmul.f32 %v3765, %v3755
        %v3768 = vmul.f32 %v3761, %v3756
        %v3769 = vmul.f32 %v3765, %v3757
        %v3770 = vadd.f32 %v3750, %v3766
        %v3771 = vadd.f32 %v3751, %v3767
        %v3772 = vadd.f32 %v3752, %v3768
        %v3773 = vadd.f32 %v3753, %v3769
        %v3774 = vld [vmem:[%s1370] sm:$0xff]
        %v3775 = vld [vmem:[%s1370 + $0x8] sm:$0xff]
        %v3776 = vld [vmem:[%s1370 + $0x10] sm:$0x1f]
        %v3777 = vld [vmem:[%s1370 + $0x18] sm:$0x1f]
        %v3778 = vlaneseq
        %v3779 = vshrl.u32 %v3778, 7
        %v3780 = vsub.s32 7, %v3779
        %v3781 = vrot.slane %v3570, %v3780
        %v3782 = vlaneseq
        %v3783 = vshrl.u32 %v3782, 7
        %v3784 = vsub.s32 7, %v3783
        %v3785 = vrot.slane %v3571, %v3784
        %v3786 = vmul.f32 %v3781, %v3774
        %v3787 = vmul.f32 %v3785, %v3775
        %v3788 = vmul.f32 %v3781, %v3776
        %v3789 = vmul.f32 %v3785, %v3777
        %v3790 = vadd.f32 %v3770, %v3786
        %v3791 = vadd.f32 %v3771, %v3787
        %v3792 = vadd.f32 %v3772, %v3788
        %v3793 = vadd.f32 %v3773, %v3789
        %v3794 = vpack.c.bf16 %v3792, %v3790
        %v3795 = vpack.c.bf16 %v3793, %v3791
        %v3797 = vshrl.u32 %v3794, 16
        %v3799 = vrot.slane %v3797, 6
        %v3800 = vshll.u32 %v3794, 16
        %v3802 = vrot.slane %v3800, 7
        %v3803 = vor.u32 %v3799, %v3802
        %v3805 = vshrl.u32 %v3795, 16
        %v3807 = vrot.slane %v3805, 6
        %v3808 = vshll.u32 %v3795, 16
        %v3810 = vrot.slane %v3808, 7
        %v3811 = vor.u32 %v3807, %v3810
        %v3814 = vld [vmem:[#allocation2 + $0x80] sm:$0xfe]
        %v3815 = vsel %vm1413, %v3803, %v3814
        %3816 = vst [vmem:[#allocation2 + $0x80] sm:$0xfe] %v3815
        %v3817 = vld [vmem:[#allocation2 + $0x88] sm:$0xfe]
        %v3818 = vsel %vm1413, %v3811, %v3817
        %3819 = vst [vmem:[#allocation2 + $0x88] sm:$0xfe] %v3818
        %s3820 = sld [smem:[#allocation11 + $0x9]]
        %v3821 = vstv %s3820
        %v3822 = vmul.f32 %v736, %v3821
        %v3823 = vmul.f32 %v737, %v3821
        %s3824 = sld [smem:[#allocation11 + $0x89]]
        %v3825 = vstv %s3824
        %v3826 = vmul.f32 %v788, %v3825
        %v3827 = vmul.f32 %v789, %v3825
        %v3828 = vadd.f32 %v3822, %v3826
        %v3829 = vadd.f32 %v3823, %v3827
        %s3830 = sld [smem:[#allocation11 + $0x109]]
        %v3831 = vstv %s3830
        %v3832 = vmul.f32 %v840, %v3831
        %v3833 = vmul.f32 %v841, %v3831
        %v3834 = vadd.f32 %v3828, %v3832
        %v3835 = vadd.f32 %v3829, %v3833
        %s3836 = sld [smem:[#allocation11 + $0x189]]
        %v3837 = vstv %s3836
        %v3838 = vmul.f32 %v892, %v3837
        %v3839 = vmul.f32 %v893, %v3837
        %v3840 = vadd.f32 %v3834, %v3838
        %v3841 = vadd.f32 %v3835, %v3839
        %s3842 = sld [smem:[#allocation11 + $0x209]]
        %v3843 = vstv %s3842
        %v3844 = vmul.f32 %v944, %v3843
        %v3845 = vmul.f32 %v945, %v3843
        %v3846 = vadd.f32 %v3840, %v3844
        %v3847 = vadd.f32 %v3841, %v3845
        %s3848 = sld [smem:[#allocation11 + $0x289]]
        %v3849 = vstv %s3848
        %v3850 = vmul.f32 %v996, %v3849
        %v3851 = vmul.f32 %v997, %v3849
        %v3852 = vadd.f32 %v3846, %v3850
        %v3853 = vadd.f32 %v3847, %v3851
        %s3854 = sld [smem:[#allocation11 + $0x309]]
        %v3855 = vstv %s3854
        %v3856 = vmul.f32 %v1048, %v3855
        %v3857 = vmul.f32 %v1049, %v3855
        %v3858 = vadd.f32 %v3852, %v3856
        %v3859 = vadd.f32 %v3853, %v3857
        %s3860 = sld [smem:[#allocation11 + $0x389]]
        %v3861 = vstv %s3860
        %v3862 = vmul.f32 %v1100, %v3861
        %v3863 = vmul.f32 %v1101, %v3861
        %v3864 = vadd.f32 %v3858, %v3862
        %v3865 = vadd.f32 %v3859, %v3863
        %s3866 = sld [smem:[#allocation12 + $0x9]]
        %v3867 = vstv %s3866
        %v3868 = vadd.f32 %v3864, %v3867
        %v3869 = vadd.f32 %v3865, %v3867
        %v3870 = vmax.f32 %v3868, 0.0
        %v3871 = vmax.f32 %v3869, 0.0
        %v3872 = vmul.f32 %v502, %v3870
        %v3873 = vmul.f32 %v503, %v3871
        %v3874 = vrot.slane %v3872, 4
        %v3875 = vadd.f32 %v3872, %v3874
        %v3876 = vrot.slane %v3875, 2
        %v3877 = vadd.f32 %v3875, %v3876
        %v3878 = vrot.slane %v3877, 1
        %v3879 = vadd.f32 %v3877, %v3878
        %v3880 = vrot.slane %v3873, 4
        %v3881 = vadd.f32 %v3873, %v3880
        %v3882 = vrot.slane %v3881, 2
        %v3883 = vadd.f32 %v3881, %v3882
        %v3884 = vrot.slane %v3883, 1
        %v3885 = vadd.f32 %v3883, %v3884
        %v3886 = vpack.c.bf16 %v3879, %v3879
        %v3887 = vpack.c.bf16 %v3885, %v3885
        %v3888 = vld [vmem:[#allocation2 + $0x90] sm:$0x1]
        %v3889 = vsel %vm1172, %v3886, %v3888
        %3890 = vst [vmem:[#allocation2 + $0x90] sm:$0x1] %v3889
        %v3891 = vld [vmem:[#allocation2 + $0x98] sm:$0x1]
        %v3892 = vsel %vm1172, %v3887, %v3891
        %3893 = vst [vmem:[#allocation2 + $0x98] sm:$0x1] %v3892
        %v3894 = vmul.f32 %v505, %v3870
        %v3895 = vmul.f32 %v506, %v3871
        %v3896 = vrot.slane %v3894, 4
        %v3897 = vadd.f32 %v3894, %v3896
        %v3898 = vrot.slane %v3897, 2
        %v3899 = vadd.f32 %v3897, %v3898
        %v3900 = vrot.slane %v3899, 1
        %v3901 = vadd.f32 %v3899, %v3900
        %v3902 = vrot.slane %v3895, 4
        %v3903 = vadd.f32 %v3895, %v3902
        %v3904 = vrot.slane %v3903, 2
        %v3905 = vadd.f32 %v3903, %v3904
        %v3906 = vrot.slane %v3905, 1
        %v3907 = vadd.f32 %v3905, %v3906
        %v3908 = vpack.c.bf16 %v3901, %v3901
        %v3909 = vpack.c.bf16 %v3907, %v3907
        %v3910 = vld [vmem:[#allocation2 + $0x90] sm:$0x1]
        %v3911 = vsel %vm1196, %v3908, %v3910
        %3912 = vst [vmem:[#allocation2 + $0x90] sm:$0x1] %v3911
        %v3913 = vld [vmem:[#allocation2 + $0x98] sm:$0x1]
        %v3914 = vsel %vm1196, %v3909, %v3913
        %3915 = vst [vmem:[#allocation2 + $0x98] sm:$0x1] %v3914
        %v3916 = vmul.f32 %v508, %v3870
        %v3917 = vmul.f32 %v509, %v3871
        %v3918 = vrot.slane %v3916, 4
        %v3919 = vadd.f32 %v3916, %v3918
        %v3920 = vrot.slane %v3919, 2
        %v3921 = vadd.f32 %v3919, %v3920
        %v3922 = vrot.slane %v3921, 1
        %v3923 = vadd.f32 %v3921, %v3922
        %v3924 = vrot.slane %v3917, 4
        %v3925 = vadd.f32 %v3917, %v3924
        %v3926 = vrot.slane %v3925, 2
        %v3927 = vadd.f32 %v3925, %v3926
        %v3928 = vrot.slane %v3927, 1
        %v3929 = vadd.f32 %v3927, %v3928
        %v3930 = vpack.c.bf16 %v3923, %v3923
        %v3931 = vpack.c.bf16 %v3929, %v3929
        %v3932 = vld [vmem:[#allocation2 + $0x90] sm:$0x2]
        %v3933 = vsel %vm1221, %v3930, %v3932
        %3934 = vst [vmem:[#allocation2 + $0x90] sm:$0x2] %v3933
        %v3935 = vld [vmem:[#allocation2 + $0x98] sm:$0x2]
        %v3936 = vsel %vm1221, %v3931, %v3935
        %3937 = vst [vmem:[#allocation2 + $0x98] sm:$0x2] %v3936
        %v3938 = vld [vmem:[%s499] sm:$0xff]
        %v3939 = vld [vmem:[%s499 + $0x8] sm:$0xff]
        %v3940 = vld [vmem:[%s499 + $0x10] sm:$0x1f]
        %v3941 = vld [vmem:[%s499 + $0x18] sm:$0x1f]
        %v3942 = vlaneseq
        %v3943 = vshrl.u32 %v3942, 7
        %v3944 = vsub.s32 0, %v3943
        %v3945 = vrot.slane %v3870, %v3944
        %v3946 = vlaneseq
        %v3947 = vshrl.u32 %v3946, 7
        %v3948 = vsub.s32 0, %v3947
        %v3949 = vrot.slane %v3871, %v3948
        %v3950 = vmul.f32 %v3945, %v3938
        %v3951 = vmul.f32 %v3949, %v3939
        %v3952 = vmul.f32 %v3945, %v3940
        %v3953 = vmul.f32 %v3949, %v3941
        %v3954 = vld [vmem:[%s1244] sm:$0xff]
        %v3955 = vld [vmem:[%s1244 + $0x8] sm:$0xff]
        %v3956 = vld [vmem:[%s1244 + $0x10] sm:$0x1f]
        %v3957 = vld [vmem:[%s1244 + $0x18] sm:$0x1f]
        %v3958 = vlaneseq
        %v3959 = vshrl.u32 %v3958, 7
        %v3960 = vsub.s32 1, %v3959
        %v3961 = vrot.slane %v3870, %v3960
        %v3962 = vlaneseq
        %v3963 = vshrl.u32 %v3962, 7
        %v3964 = vsub.s32 1, %v3963
        %v3965 = vrot.slane %v3871, %v3964
        %v3966 = vmul.f32 %v3961, %v3954
        %v3967 = vmul.f32 %v3965, %v3955
        %v3968 = vmul.f32 %v3961, %v3956
        %v3969 = vmul.f32 %v3965, %v3957
        %v3970 = vadd.f32 %v3950, %v3966
        %v3971 = vadd.f32 %v3951, %v3967
        %v3972 = vadd.f32 %v3952, %v3968
        %v3973 = vadd.f32 %v3953, %v3969
        %v3974 = vld [vmem:[%s1265] sm:$0xff]
        %v3975 = vld [vmem:[%s1265 + $0x8] sm:$0xff]
        %v3976 = vld [vmem:[%s1265 + $0x10] sm:$0x1f]
        %v3977 = vld [vmem:[%s1265 + $0x18] sm:$0x1f]
        %v3978 = vlaneseq
        %v3979 = vshrl.u32 %v3978, 7
        %v3980 = vsub.s32 2, %v3979
        %v3981 = vrot.slane %v3870, %v3980
        %v3982 = vlaneseq
        %v3983 = vshrl.u32 %v3982, 7
        %v3984 = vsub.s32 2, %v3983
        %v3985 = vrot.slane %v3871, %v3984
        %v3986 = vmul.f32 %v3981, %v3974
        %v3987 = vmul.f32 %v3985, %v3975
        %v3988 = vmul.f32 %v3981, %v3976
        %v3989 = vmul.f32 %v3985, %v3977
        %v3990 = vadd.f32 %v3970, %v3986
        %v3991 = vadd.f32 %v3971, %v3987
        %v3992 = vadd.f32 %v3972, %v3988
        %v3993 = vadd.f32 %v3973, %v3989
        %v3994 = vld [vmem:[%s1286] sm:$0xff]
        %v3995 = vld [vmem:[%s1286 + $0x8] sm:$0xff]
        %v3996 = vld [vmem:[%s1286 + $0x10] sm:$0x1f]
        %v3997 = vld [vmem:[%s1286 + $0x18] sm:$0x1f]
        %v3998 = vlaneseq
        %v3999 = vshrl.u32 %v3998, 7
        %v4000 = vsub.s32 3, %v3999
        %v4001 = vrot.slane %v3870, %v4000
        %v4002 = vlaneseq
        %v4003 = vshrl.u32 %v4002, 7
        %v4004 = vsub.s32 3, %v4003
        %v4005 = vrot.slane %v3871, %v4004
        %v4006 = vmul.f32 %v4001, %v3994
        %v4007 = vmul.f32 %v4005, %v3995
        %v4008 = vmul.f32 %v4001, %v3996
        %v4009 = vmul.f32 %v4005, %v3997
        %v4010 = vadd.f32 %v3990, %v4006
        %v4011 = vadd.f32 %v3991, %v4007
        %v4012 = vadd.f32 %v3992, %v4008
        %v4013 = vadd.f32 %v3993, %v4009
        %v4014 = vld [vmem:[%s1307] sm:$0xff]
        %v4015 = vld [vmem:[%s1307 + $0x8] sm:$0xff]
        %v4016 = vld [vmem:[%s1307 + $0x10] sm:$0x1f]
        %v4017 = vld [vmem:[%s1307 + $0x18] sm:$0x1f]
        %v4018 = vlaneseq
        %v4019 = vshrl.u32 %v4018, 7
        %v4020 = vsub.s32 4, %v4019
        %v4021 = vrot.slane %v3870, %v4020
        %v4022 = vlaneseq
        %v4023 = vshrl.u32 %v4022, 7
        %v4024 = vsub.s32 4, %v4023
        %v4025 = vrot.slane %v3871, %v4024
        %v4026 = vmul.f32 %v4021, %v4014
        %v4027 = vmul.f32 %v4025, %v4015
        %v4028 = vmul.f32 %v4021, %v4016
        %v4029 = vmul.f32 %v4025, %v4017
        %v4030 = vadd.f32 %v4010, %v4026
        %v4031 = vadd.f32 %v4011, %v4027
        %v4032 = vadd.f32 %v4012, %v4028
        %v4033 = vadd.f32 %v4013, %v4029
        %v4034 = vld [vmem:[%s1328] sm:$0xff]
        %v4035 = vld [vmem:[%s1328 + $0x8] sm:$0xff]
        %v4036 = vld [vmem:[%s1328 + $0x10] sm:$0x1f]
        %v4037 = vld [vmem:[%s1328 + $0x18] sm:$0x1f]
        %v4038 = vlaneseq
        %v4039 = vshrl.u32 %v4038, 7
        %v4040 = vsub.s32 5, %v4039
        %v4041 = vrot.slane %v3870, %v4040
        %v4042 = vlaneseq
        %v4043 = vshrl.u32 %v4042, 7
        %v4044 = vsub.s32 5, %v4043
        %v4045 = vrot.slane %v3871, %v4044
        %v4046 = vmul.f32 %v4041, %v4034
        %v4047 = vmul.f32 %v4045, %v4035
        %v4048 = vmul.f32 %v4041, %v4036
        %v4049 = vmul.f32 %v4045, %v4037
        %v4050 = vadd.f32 %v4030, %v4046
        %v4051 = vadd.f32 %v4031, %v4047
        %v4052 = vadd.f32 %v4032, %v4048
        %v4053 = vadd.f32 %v4033, %v4049
        %v4054 = vld [vmem:[%s1349] sm:$0xff]
        %v4055 = vld [vmem:[%s1349 + $0x8] sm:$0xff]
        %v4056 = vld [vmem:[%s1349 + $0x10] sm:$0x1f]
        %v4057 = vld [vmem:[%s1349 + $0x18] sm:$0x1f]
        %v4058 = vlaneseq
        %v4059 = vshrl.u32 %v4058, 7
        %v4060 = vsub.s32 6, %v4059
        %v4061 = vrot.slane %v3870, %v4060
        %v4062 = vlaneseq
        %v4063 = vshrl.u32 %v4062, 7
        %v4064 = vsub.s32 6, %v4063
        %v4065 = vrot.slane %v3871, %v4064
        %v4066 = vmul.f32 %v4061, %v4054
        %v4067 = vmul.f32 %v4065, %v4055
        %v4068 = vmul.f32 %v4061, %v4056
        %v4069 = vmul.f32 %v4065, %v4057
        %v4070 = vadd.f32 %v4050, %v4066
        %v4071 = vadd.f32 %v4051, %v4067
        %v4072 = vadd.f32 %v4052, %v4068
        %v4073 = vadd.f32 %v4053, %v4069
        %v4074 = vld [vmem:[%s1370] sm:$0xff]
        %v4075 = vld [vmem:[%s1370 + $0x8] sm:$0xff]
        %v4076 = vld [vmem:[%s1370 + $0x10] sm:$0x1f]
        %v4077 = vld [vmem:[%s1370 + $0x18] sm:$0x1f]
        %v4078 = vlaneseq
        %v4079 = vshrl.u32 %v4078, 7
        %v4080 = vsub.s32 7, %v4079
        %v4081 = vrot.slane %v3870, %v4080
        %v4082 = vlaneseq
        %v4083 = vshrl.u32 %v4082, 7
        %v4084 = vsub.s32 7, %v4083
        %v4085 = vrot.slane %v3871, %v4084
        %v4086 = vmul.f32 %v4081, %v4074
        %v4087 = vmul.f32 %v4085, %v4075
        %v4088 = vmul.f32 %v4081, %v4076
        %v4089 = vmul.f32 %v4085, %v4077
        %v4090 = vadd.f32 %v4070, %v4086
        %v4091 = vadd.f32 %v4071, %v4087
        %v4092 = vadd.f32 %v4072, %v4088
        %v4093 = vadd.f32 %v4073, %v4089
        %v4094 = vpack.c.bf16 %v4092, %v4090
        %v4095 = vpack.c.bf16 %v4093, %v4091
        %v4097 = vshrl.u32 %v4094, 16
        %v4099 = vrot.slane %v4097, 6
        %v4100 = vshll.u32 %v4094, 16
        %v4102 = vrot.slane %v4100, 7
        %v4103 = vor.u32 %v4099, %v4102
        %v4105 = vshrl.u32 %v4095, 16
        %v4107 = vrot.slane %v4105, 6
        %v4108 = vshll.u32 %v4095, 16
        %v4110 = vrot.slane %v4108, 7
        %v4111 = vor.u32 %v4107, %v4110
        %v4114 = vld [vmem:[#allocation2 + $0x90] sm:$0xfe]
        %v4115 = vsel %vm1413, %v4103, %v4114
        %4116 = vst [vmem:[#allocation2 + $0x90] sm:$0xfe] %v4115
        %v4117 = vld [vmem:[#allocation2 + $0x98] sm:$0xfe]
        %v4118 = vsel %vm1413, %v4111, %v4117
        %4119 = vst [vmem:[#allocation2 + $0x98] sm:$0xfe] %v4118
        %s4120 = sld [smem:[#allocation11 + $0xa]]
        %v4121 = vstv %s4120
        %v4122 = vmul.f32 %v736, %v4121
        %v4123 = vmul.f32 %v737, %v4121
        %s4124 = sld [smem:[#allocation11 + $0x8a]]
        %v4125 = vstv %s4124
        %v4126 = vmul.f32 %v788, %v4125
        %v4127 = vmul.f32 %v789, %v4125
        %v4128 = vadd.f32 %v4122, %v4126
        %v4129 = vadd.f32 %v4123, %v4127
        %s4130 = sld [smem:[#allocation11 + $0x10a]]
        %v4131 = vstv %s4130
        %v4132 = vmul.f32 %v840, %v4131
        %v4133 = vmul.f32 %v841, %v4131
        %v4134 = vadd.f32 %v4128, %v4132
        %v4135 = vadd.f32 %v4129, %v4133
        %s4136 = sld [smem:[#allocation11 + $0x18a]]
        %v4137 = vstv %s4136
        %v4138 = vmul.f32 %v892, %v4137
        %v4139 = vmul.f32 %v893, %v4137
        %v4140 = vadd.f32 %v4134, %v4138
        %v4141 = vadd.f32 %v4135, %v4139
        %s4142 = sld [smem:[#allocation11 + $0x20a]]
        %v4143 = vstv %s4142
        %v4144 = vmul.f32 %v944, %v4143
        %v4145 = vmul.f32 %v945, %v4143
        %v4146 = vadd.f32 %v4140, %v4144
        %v4147 = vadd.f32 %v4141, %v4145
        %s4148 = sld [smem:[#allocation11 + $0x28a]]
        %v4149 = vstv %s4148
        %v4150 = vmul.f32 %v996, %v4149
        %v4151 = vmul.f32 %v997, %v4149
        %v4152 = vadd.f32 %v4146, %v4150
        %v4153 = vadd.f32 %v4147, %v4151
        %s4154 = sld [smem:[#allocation11 + $0x30a]]
        %v4155 = vstv %s4154
        %v4156 = vmul.f32 %v1048, %v4155
        %v4157 = vmul.f32 %v1049, %v4155
        %v4158 = vadd.f32 %v4152, %v4156
        %v4159 = vadd.f32 %v4153, %v4157
        %s4160 = sld [smem:[#allocation11 + $0x38a]]
        %v4161 = vstv %s4160
        %v4162 = vmul.f32 %v1100, %v4161
        %v4163 = vmul.f32 %v1101, %v4161
        %v4164 = vadd.f32 %v4158, %v4162
        %v4165 = vadd.f32 %v4159, %v4163
        %s4166 = sld [smem:[#allocation12 + $0xa]]
        %v4167 = vstv %s4166
        %v4168 = vadd.f32 %v4164, %v4167
        %v4169 = vadd.f32 %v4165, %v4167
        %v4170 = vmax.f32 %v4168, 0.0
        %v4171 = vmax.f32 %v4169, 0.0
        %v4172 = vmul.f32 %v502, %v4170
        %v4173 = vmul.f32 %v503, %v4171
        %v4174 = vrot.slane %v4172, 4
        %v4175 = vadd.f32 %v4172, %v4174
        %v4176 = vrot.slane %v4175, 2
        %v4177 = vadd.f32 %v4175, %v4176
        %v4178 = vrot.slane %v4177, 1
        %v4179 = vadd.f32 %v4177, %v4178
        %v4180 = vrot.slane %v4173, 4
        %v4181 = vadd.f32 %v4173, %v4180
        %v4182 = vrot.slane %v4181, 2
        %v4183 = vadd.f32 %v4181, %v4182
        %v4184 = vrot.slane %v4183, 1
        %v4185 = vadd.f32 %v4183, %v4184
        %v4186 = vpack.c.bf16 %v4179, %v4179
        %v4187 = vpack.c.bf16 %v4185, %v4185
        %v4188 = vld [vmem:[#allocation2 + $0xa0] sm:$0x1]
        %v4189 = vsel %vm1172, %v4186, %v4188
        %4190 = vst [vmem:[#allocation2 + $0xa0] sm:$0x1] %v4189
        %v4191 = vld [vmem:[#allocation2 + $0xa8] sm:$0x1]
        %v4192 = vsel %vm1172, %v4187, %v4191
        %4193 = vst [vmem:[#allocation2 + $0xa8] sm:$0x1] %v4192
        %v4194 = vmul.f32 %v505, %v4170
        %v4195 = vmul.f32 %v506, %v4171
        %v4196 = vrot.slane %v4194, 4
        %v4197 = vadd.f32 %v4194, %v4196
        %v4198 = vrot.slane %v4197, 2
        %v4199 = vadd.f32 %v4197, %v4198
        %v4200 = vrot.slane %v4199, 1
        %v4201 = vadd.f32 %v4199, %v4200
        %v4202 = vrot.slane %v4195, 4
        %v4203 = vadd.f32 %v4195, %v4202
        %v4204 = vrot.slane %v4203, 2
        %v4205 = vadd.f32 %v4203, %v4204
        %v4206 = vrot.slane %v4205, 1
        %v4207 = vadd.f32 %v4205, %v4206
        %v4208 = vpack.c.bf16 %v4201, %v4201
        %v4209 = vpack.c.bf16 %v4207, %v4207
        %v4210 = vld [vmem:[#allocation2 + $0xa0] sm:$0x1]
        %v4211 = vsel %vm1196, %v4208, %v4210
        %4212 = vst [vmem:[#allocation2 + $0xa0] sm:$0x1] %v4211
        %v4213 = vld [vmem:[#allocation2 + $0xa8] sm:$0x1]
        %v4214 = vsel %vm1196, %v4209, %v4213
        %4215 = vst [vmem:[#allocation2 + $0xa8] sm:$0x1] %v4214
        %v4216 = vmul.f32 %v508, %v4170
        %v4217 = vmul.f32 %v509, %v4171
        %v4218 = vrot.slane %v4216, 4
        %v4219 = vadd.f32 %v4216, %v4218
        %v4220 = vrot.slane %v4219, 2
        %v4221 = vadd.f32 %v4219, %v4220
        %v4222 = vrot.slane %v4221, 1
        %v4223 = vadd.f32 %v4221, %v4222
        %v4224 = vrot.slane %v4217, 4
        %v4225 = vadd.f32 %v4217, %v4224
        %v4226 = vrot.slane %v4225, 2
        %v4227 = vadd.f32 %v4225, %v4226
        %v4228 = vrot.slane %v4227, 1
        %v4229 = vadd.f32 %v4227, %v4228
        %v4230 = vpack.c.bf16 %v4223, %v4223
        %v4231 = vpack.c.bf16 %v4229, %v4229
        %v4232 = vld [vmem:[#allocation2 + $0xa0] sm:$0x2]
        %v4233 = vsel %vm1221, %v4230, %v4232
        %4234 = vst [vmem:[#allocation2 + $0xa0] sm:$0x2] %v4233
        %v4235 = vld [vmem:[#allocation2 + $0xa8] sm:$0x2]
        %v4236 = vsel %vm1221, %v4231, %v4235
        %4237 = vst [vmem:[#allocation2 + $0xa8] sm:$0x2] %v4236
        %v4238 = vld [vmem:[%s499] sm:$0xff]
        %v4239 = vld [vmem:[%s499 + $0x8] sm:$0xff]
        %v4240 = vld [vmem:[%s499 + $0x10] sm:$0x1f]
        %v4241 = vld [vmem:[%s499 + $0x18] sm:$0x1f]
        %v4242 = vlaneseq
        %v4243 = vshrl.u32 %v4242, 7
        %v4244 = vsub.s32 0, %v4243
        %v4245 = vrot.slane %v4170, %v4244
        %v4246 = vlaneseq
        %v4247 = vshrl.u32 %v4246, 7
        %v4248 = vsub.s32 0, %v4247
        %v4249 = vrot.slane %v4171, %v4248
        %v4250 = vmul.f32 %v4245, %v4238
        %v4251 = vmul.f32 %v4249, %v4239
        %v4252 = vmul.f32 %v4245, %v4240
        %v4253 = vmul.f32 %v4249, %v4241
        %v4254 = vld [vmem:[%s1244] sm:$0xff]
        %v4255 = vld [vmem:[%s1244 + $0x8] sm:$0xff]
        %v4256 = vld [vmem:[%s1244 + $0x10] sm:$0x1f]
        %v4257 = vld [vmem:[%s1244 + $0x18] sm:$0x1f]
        %v4258 = vlaneseq
        %v4259 = vshrl.u32 %v4258, 7
        %v4260 = vsub.s32 1, %v4259
        %v4261 = vrot.slane %v4170, %v4260
        %v4262 = vlaneseq
        %v4263 = vshrl.u32 %v4262, 7
        %v4264 = vsub.s32 1, %v4263
        %v4265 = vrot.slane %v4171, %v4264
        %v4266 = vmul.f32 %v4261, %v4254
        %v4267 = vmul.f32 %v4265, %v4255
        %v4268 = vmul.f32 %v4261, %v4256
        %v4269 = vmul.f32 %v4265, %v4257
        %v4270 = vadd.f32 %v4250, %v4266
        %v4271 = vadd.f32 %v4251, %v4267
        %v4272 = vadd.f32 %v4252, %v4268
        %v4273 = vadd.f32 %v4253, %v4269
        %v4274 = vld [vmem:[%s1265] sm:$0xff]
        %v4275 = vld [vmem:[%s1265 + $0x8] sm:$0xff]
        %v4276 = vld [vmem:[%s1265 + $0x10] sm:$0x1f]
        %v4277 = vld [vmem:[%s1265 + $0x18] sm:$0x1f]
        %v4278 = vlaneseq
        %v4279 = vshrl.u32 %v4278, 7
        %v4280 = vsub.s32 2, %v4279
        %v4281 = vrot.slane %v4170, %v4280
        %v4282 = vlaneseq
        %v4283 = vshrl.u32 %v4282, 7
        %v4284 = vsub.s32 2, %v4283
        %v4285 = vrot.slane %v4171, %v4284
        %v4286 = vmul.f32 %v4281, %v4274
        %v4287 = vmul.f32 %v4285, %v4275
        %v4288 = vmul.f32 %v4281, %v4276
        %v4289 = vmul.f32 %v4285, %v4277
        %v4290 = vadd.f32 %v4270, %v4286
        %v4291 = vadd.f32 %v4271, %v4287
        %v4292 = vadd.f32 %v4272, %v4288
        %v4293 = vadd.f32 %v4273, %v4289
        %v4294 = vld [vmem:[%s1286] sm:$0xff]
        %v4295 = vld [vmem:[%s1286 + $0x8] sm:$0xff]
        %v4296 = vld [vmem:[%s1286 + $0x10] sm:$0x1f]
        %v4297 = vld [vmem:[%s1286 + $0x18] sm:$0x1f]
        %v4298 = vlaneseq
        %v4299 = vshrl.u32 %v4298, 7
        %v4300 = vsub.s32 3, %v4299
        %v4301 = vrot.slane %v4170, %v4300
        %v4302 = vlaneseq
        %v4303 = vshrl.u32 %v4302, 7
        %v4304 = vsub.s32 3, %v4303
        %v4305 = vrot.slane %v4171, %v4304
        %v4306 = vmul.f32 %v4301, %v4294
        %v4307 = vmul.f32 %v4305, %v4295
        %v4308 = vmul.f32 %v4301, %v4296
        %v4309 = vmul.f32 %v4305, %v4297
        %v4310 = vadd.f32 %v4290, %v4306
        %v4311 = vadd.f32 %v4291, %v4307
        %v4312 = vadd.f32 %v4292, %v4308
        %v4313 = vadd.f32 %v4293, %v4309
        %v4314 = vld [vmem:[%s1307] sm:$0xff]
        %v4315 = vld [vmem:[%s1307 + $0x8] sm:$0xff]
        %v4316 = vld [vmem:[%s1307 + $0x10] sm:$0x1f]
        %v4317 = vld [vmem:[%s1307 + $0x18] sm:$0x1f]
        %v4318 = vlaneseq
        %v4319 = vshrl.u32 %v4318, 7
        %v4320 = vsub.s32 4, %v4319
        %v4321 = vrot.slane %v4170, %v4320
        %v4322 = vlaneseq
        %v4323 = vshrl.u32 %v4322, 7
        %v4324 = vsub.s32 4, %v4323
        %v4325 = vrot.slane %v4171, %v4324
        %v4326 = vmul.f32 %v4321, %v4314
        %v4327 = vmul.f32 %v4325, %v4315
        %v4328 = vmul.f32 %v4321, %v4316
        %v4329 = vmul.f32 %v4325, %v4317
        %v4330 = vadd.f32 %v4310, %v4326
        %v4331 = vadd.f32 %v4311, %v4327
        %v4332 = vadd.f32 %v4312, %v4328
        %v4333 = vadd.f32 %v4313, %v4329
        %v4334 = vld [vmem:[%s1328] sm:$0xff]
        %v4335 = vld [vmem:[%s1328 + $0x8] sm:$0xff]
        %v4336 = vld [vmem:[%s1328 + $0x10] sm:$0x1f]
        %v4337 = vld [vmem:[%s1328 + $0x18] sm:$0x1f]
        %v4338 = vlaneseq
        %v4339 = vshrl.u32 %v4338, 7
        %v4340 = vsub.s32 5, %v4339
        %v4341 = vrot.slane %v4170, %v4340
        %v4342 = vlaneseq
        %v4343 = vshrl.u32 %v4342, 7
        %v4344 = vsub.s32 5, %v4343
        %v4345 = vrot.slane %v4171, %v4344
        %v4346 = vmul.f32 %v4341, %v4334
        %v4347 = vmul.f32 %v4345, %v4335
        %v4348 = vmul.f32 %v4341, %v4336
        %v4349 = vmul.f32 %v4345, %v4337
        %v4350 = vadd.f32 %v4330, %v4346
        %v4351 = vadd.f32 %v4331, %v4347
        %v4352 = vadd.f32 %v4332, %v4348
        %v4353 = vadd.f32 %v4333, %v4349
        %v4354 = vld [vmem:[%s1349] sm:$0xff]
        %v4355 = vld [vmem:[%s1349 + $0x8] sm:$0xff]
        %v4356 = vld [vmem:[%s1349 + $0x10] sm:$0x1f]
        %v4357 = vld [vmem:[%s1349 + $0x18] sm:$0x1f]
        %v4358 = vlaneseq
        %v4359 = vshrl.u32 %v4358, 7
        %v4360 = vsub.s32 6, %v4359
        %v4361 = vrot.slane %v4170, %v4360
        %v4362 = vlaneseq
        %v4363 = vshrl.u32 %v4362, 7
        %v4364 = vsub.s32 6, %v4363
        %v4365 = vrot.slane %v4171, %v4364
        %v4366 = vmul.f32 %v4361, %v4354
        %v4367 = vmul.f32 %v4365, %v4355
        %v4368 = vmul.f32 %v4361, %v4356
        %v4369 = vmul.f32 %v4365, %v4357
        %v4370 = vadd.f32 %v4350, %v4366
        %v4371 = vadd.f32 %v4351, %v4367
        %v4372 = vadd.f32 %v4352, %v4368
        %v4373 = vadd.f32 %v4353, %v4369
        %v4374 = vld [vmem:[%s1370] sm:$0xff]
        %v4375 = vld [vmem:[%s1370 + $0x8] sm:$0xff]
        %v4376 = vld [vmem:[%s1370 + $0x10] sm:$0x1f]
        %v4377 = vld [vmem:[%s1370 + $0x18] sm:$0x1f]
        %v4378 = vlaneseq
        %v4379 = vshrl.u32 %v4378, 7
        %v4380 = vsub.s32 7, %v4379
        %v4381 = vrot.slane %v4170, %v4380
        %v4382 = vlaneseq
        %v4383 = vshrl.u32 %v4382, 7
        %v4384 = vsub.s32 7, %v4383
        %v4385 = vrot.slane %v4171, %v4384
        %v4386 = vmul.f32 %v4381, %v4374
        %v4387 = vmul.f32 %v4385, %v4375
        %v4388 = vmul.f32 %v4381, %v4376
        %v4389 = vmul.f32 %v4385, %v4377
        %v4390 = vadd.f32 %v4370, %v4386
        %v4391 = vadd.f32 %v4371, %v4387
        %v4392 = vadd.f32 %v4372, %v4388
        %v4393 = vadd.f32 %v4373, %v4389
        %v4394 = vpack.c.bf16 %v4392, %v4390
        %v4395 = vpack.c.bf16 %v4393, %v4391
        %v4397 = vshrl.u32 %v4394, 16
        %v4399 = vrot.slane %v4397, 6
        %v4400 = vshll.u32 %v4394, 16
        %v4402 = vrot.slane %v4400, 7
        %v4403 = vor.u32 %v4399, %v4402
        %v4405 = vshrl.u32 %v4395, 16
        %v4407 = vrot.slane %v4405, 6
        %v4408 = vshll.u32 %v4395, 16
        %v4410 = vrot.slane %v4408, 7
        %v4411 = vor.u32 %v4407, %v4410
        %v4414 = vld [vmem:[#allocation2 + $0xa0] sm:$0xfe]
        %v4415 = vsel %vm1413, %v4403, %v4414
        %4416 = vst [vmem:[#allocation2 + $0xa0] sm:$0xfe] %v4415
        %v4417 = vld [vmem:[#allocation2 + $0xa8] sm:$0xfe]
        %v4418 = vsel %vm1413, %v4411, %v4417
        %4419 = vst [vmem:[#allocation2 + $0xa8] sm:$0xfe] %v4418
        %s4420 = sld [smem:[#allocation11 + $0xb]]
        %v4421 = vstv %s4420
        %v4422 = vmul.f32 %v736, %v4421
        %v4423 = vmul.f32 %v737, %v4421
        %s4424 = sld [smem:[#allocation11 + $0x8b]]
        %v4425 = vstv %s4424
        %v4426 = vmul.f32 %v788, %v4425
        %v4427 = vmul.f32 %v789, %v4425
        %v4428 = vadd.f32 %v4422, %v4426
        %v4429 = vadd.f32 %v4423, %v4427
        %s4430 = sld [smem:[#allocation11 + $0x10b]]
        %v4431 = vstv %s4430
        %v4432 = vmul.f32 %v840, %v4431
        %v4433 = vmul.f32 %v841, %v4431
        %v4434 = vadd.f32 %v4428, %v4432
        %v4435 = vadd.f32 %v4429, %v4433
        %s4436 = sld [smem:[#allocation11 + $0x18b]]
        %v4437 = vstv %s4436
        %v4438 = vmul.f32 %v892, %v4437
        %v4439 = vmul.f32 %v893, %v4437
        %v4440 = vadd.f32 %v4434, %v4438
        %v4441 = vadd.f32 %v4435, %v4439
        %s4442 = sld [smem:[#allocation11 + $0x20b]]
        %v4443 = vstv %s4442
        %v4444 = vmul.f32 %v944, %v4443
        %v4445 = vmul.f32 %v945, %v4443
        %v4446 = vadd.f32 %v4440, %v4444
        %v4447 = vadd.f32 %v4441, %v4445
        %s4448 = sld [smem:[#allocation11 + $0x28b]]
        %v4449 = vstv %s4448
        %v4450 = vmul.f32 %v996, %v4449
        %v4451 = vmul.f32 %v997, %v4449
        %v4452 = vadd.f32 %v4446, %v4450
        %v4453 = vadd.f32 %v4447, %v4451
        %s4454 = sld [smem:[#allocation11 + $0x30b]]
        %v4455 = vstv %s4454
        %v4456 = vmul.f32 %v1048, %v4455
        %v4457 = vmul.f32 %v1049, %v4455
        %v4458 = vadd.f32 %v4452, %v4456
        %v4459 = vadd.f32 %v4453, %v4457
        %s4460 = sld [smem:[#allocation11 + $0x38b]]
        %v4461 = vstv %s4460
        %v4462 = vmul.f32 %v1100, %v4461
        %v4463 = vmul.f32 %v1101, %v4461
        %v4464 = vadd.f32 %v4458, %v4462
        %v4465 = vadd.f32 %v4459, %v4463
        %s4466 = sld [smem:[#allocation12 + $0xb]]
        %v4467 = vstv %s4466
        %v4468 = vadd.f32 %v4464, %v4467
        %v4469 = vadd.f32 %v4465, %v4467
        %v4470 = vmax.f32 %v4468, 0.0
        %v4471 = vmax.f32 %v4469, 0.0
        %v4472 = vmul.f32 %v502, %v4470
        %v4473 = vmul.f32 %v503, %v4471
        %v4474 = vrot.slane %v4472, 4
        %v4475 = vadd.f32 %v4472, %v4474
        %v4476 = vrot.slane %v4475, 2
        %v4477 = vadd.f32 %v4475, %v4476
        %v4478 = vrot.slane %v4477, 1
        %v4479 = vadd.f32 %v4477, %v4478
        %v4480 = vrot.slane %v4473, 4
        %v4481 = vadd.f32 %v4473, %v4480
        %v4482 = vrot.slane %v4481, 2
        %v4483 = vadd.f32 %v4481, %v4482
        %v4484 = vrot.slane %v4483, 1
        %v4485 = vadd.f32 %v4483, %v4484
        %v4486 = vpack.c.bf16 %v4479, %v4479
        %v4487 = vpack.c.bf16 %v4485, %v4485
        %v4488 = vld [vmem:[#allocation2 + $0xb0] sm:$0x1]
        %v4489 = vsel %vm1172, %v4486, %v4488
        %4490 = vst [vmem:[#allocation2 + $0xb0] sm:$0x1] %v4489
        %v4491 = vld [vmem:[#allocation2 + $0xb8] sm:$0x1]
        %v4492 = vsel %vm1172, %v4487, %v4491
        %4493 = vst [vmem:[#allocation2 + $0xb8] sm:$0x1] %v4492
        %v4494 = vmul.f32 %v505, %v4470
        %v4495 = vmul.f32 %v506, %v4471
        %v4496 = vrot.slane %v4494, 4
        %v4497 = vadd.f32 %v4494, %v4496
        %v4498 = vrot.slane %v4497, 2
        %v4499 = vadd.f32 %v4497, %v4498
        %v4500 = vrot.slane %v4499, 1
        %v4501 = vadd.f32 %v4499, %v4500
        %v4502 = vrot.slane %v4495, 4
        %v4503 = vadd.f32 %v4495, %v4502
        %v4504 = vrot.slane %v4503, 2
        %v4505 = vadd.f32 %v4503, %v4504
        %v4506 = vrot.slane %v4505, 1
        %v4507 = vadd.f32 %v4505, %v4506
        %v4508 = vpack.c.bf16 %v4501, %v4501
        %v4509 = vpack.c.bf16 %v4507, %v4507
        %v4510 = vld [vmem:[#allocation2 + $0xb0] sm:$0x1]
        %v4511 = vsel %vm1196, %v4508, %v4510
        %4512 = vst [vmem:[#allocation2 + $0xb0] sm:$0x1] %v4511
        %v4513 = vld [vmem:[#allocation2 + $0xb8] sm:$0x1]
        %v4514 = vsel %vm1196, %v4509, %v4513
        %4515 = vst [vmem:[#allocation2 + $0xb8] sm:$0x1] %v4514
        %v4516 = vmul.f32 %v508, %v4470
        %v4517 = vmul.f32 %v509, %v4471
        %v4518 = vrot.slane %v4516, 4
        %v4519 = vadd.f32 %v4516, %v4518
        %v4520 = vrot.slane %v4519, 2
        %v4521 = vadd.f32 %v4519, %v4520
        %v4522 = vrot.slane %v4521, 1
        %v4523 = vadd.f32 %v4521, %v4522
        %v4524 = vrot.slane %v4517, 4
        %v4525 = vadd.f32 %v4517, %v4524
        %v4526 = vrot.slane %v4525, 2
        %v4527 = vadd.f32 %v4525, %v4526
        %v4528 = vrot.slane %v4527, 1
        %v4529 = vadd.f32 %v4527, %v4528
        %v4530 = vpack.c.bf16 %v4523, %v4523
        %v4531 = vpack.c.bf16 %v4529, %v4529
        %v4532 = vld [vmem:[#allocation2 + $0xb0] sm:$0x2]
        %v4533 = vsel %vm1221, %v4530, %v4532
        %4534 = vst [vmem:[#allocation2 + $0xb0] sm:$0x2] %v4533
        %v4535 = vld [vmem:[#allocation2 + $0xb8] sm:$0x2]
        %v4536 = vsel %vm1221, %v4531, %v4535
        %4537 = vst [vmem:[#allocation2 + $0xb8] sm:$0x2] %v4536
        %v4538 = vld [vmem:[%s499] sm:$0xff]
        %v4539 = vld [vmem:[%s499 + $0x8] sm:$0xff]
        %v4540 = vld [vmem:[%s499 + $0x10] sm:$0x1f]
        %v4541 = vld [vmem:[%s499 + $0x18] sm:$0x1f]
        %v4542 = vlaneseq
        %v4543 = vshrl.u32 %v4542, 7
        %v4544 = vsub.s32 0, %v4543
        %v4545 = vrot.slane %v4470, %v4544
        %v4546 = vlaneseq
        %v4547 = vshrl.u32 %v4546, 7
        %v4548 = vsub.s32 0, %v4547
        %v4549 = vrot.slane %v4471, %v4548
        %v4550 = vmul.f32 %v4545, %v4538
        %v4551 = vmul.f32 %v4549, %v4539
        %v4552 = vmul.f32 %v4545, %v4540
        %v4553 = vmul.f32 %v4549, %v4541
        %v4554 = vld [vmem:[%s1244] sm:$0xff]
        %v4555 = vld [vmem:[%s1244 + $0x8] sm:$0xff]
        %v4556 = vld [vmem:[%s1244 + $0x10] sm:$0x1f]
        %v4557 = vld [vmem:[%s1244 + $0x18] sm:$0x1f]
        %v4558 = vlaneseq
        %v4559 = vshrl.u32 %v4558, 7
        %v4560 = vsub.s32 1, %v4559
        %v4561 = vrot.slane %v4470, %v4560
        %v4562 = vlaneseq
        %v4563 = vshrl.u32 %v4562, 7
        %v4564 = vsub.s32 1, %v4563
        %v4565 = vrot.slane %v4471, %v4564
        %v4566 = vmul.f32 %v4561, %v4554
        %v4567 = vmul.f32 %v4565, %v4555
        %v4568 = vmul.f32 %v4561, %v4556
        %v4569 = vmul.f32 %v4565, %v4557
        %v4570 = vadd.f32 %v4550, %v4566
        %v4571 = vadd.f32 %v4551, %v4567
        %v4572 = vadd.f32 %v4552, %v4568
        %v4573 = vadd.f32 %v4553, %v4569
        %v4574 = vld [vmem:[%s1265] sm:$0xff]
        %v4575 = vld [vmem:[%s1265 + $0x8] sm:$0xff]
        %v4576 = vld [vmem:[%s1265 + $0x10] sm:$0x1f]
        %v4577 = vld [vmem:[%s1265 + $0x18] sm:$0x1f]
        %v4578 = vlaneseq
        %v4579 = vshrl.u32 %v4578, 7
        %v4580 = vsub.s32 2, %v4579
        %v4581 = vrot.slane %v4470, %v4580
        %v4582 = vlaneseq
        %v4583 = vshrl.u32 %v4582, 7
        %v4584 = vsub.s32 2, %v4583
        %v4585 = vrot.slane %v4471, %v4584
        %v4586 = vmul.f32 %v4581, %v4574
        %v4587 = vmul.f32 %v4585, %v4575
        %v4588 = vmul.f32 %v4581, %v4576
        %v4589 = vmul.f32 %v4585, %v4577
        %v4590 = vadd.f32 %v4570, %v4586
        %v4591 = vadd.f32 %v4571, %v4587
        %v4592 = vadd.f32 %v4572, %v4588
        %v4593 = vadd.f32 %v4573, %v4589
        %v4594 = vld [vmem:[%s1286] sm:$0xff]
        %v4595 = vld [vmem:[%s1286 + $0x8] sm:$0xff]
        %v4596 = vld [vmem:[%s1286 + $0x10] sm:$0x1f]
        %v4597 = vld [vmem:[%s1286 + $0x18] sm:$0x1f]
        %v4598 = vlaneseq
        %v4599 = vshrl.u32 %v4598, 7
        %v4600 = vsub.s32 3, %v4599
        %v4601 = vrot.slane %v4470, %v4600
        %v4602 = vlaneseq
        %v4603 = vshrl.u32 %v4602, 7
        %v4604 = vsub.s32 3, %v4603
        %v4605 = vrot.slane %v4471, %v4604
        %v4606 = vmul.f32 %v4601, %v4594
        %v4607 = vmul.f32 %v4605, %v4595
        %v4608 = vmul.f32 %v4601, %v4596
        %v4609 = vmul.f32 %v4605, %v4597
        %v4610 = vadd.f32 %v4590, %v4606
        %v4611 = vadd.f32 %v4591, %v4607
        %v4612 = vadd.f32 %v4592, %v4608
        %v4613 = vadd.f32 %v4593, %v4609
        %v4614 = vld [vmem:[%s1307] sm:$0xff]
        %v4615 = vld [vmem:[%s1307 + $0x8] sm:$0xff]
        %v4616 = vld [vmem:[%s1307 + $0x10] sm:$0x1f]
        %v4617 = vld [vmem:[%s1307 + $0x18] sm:$0x1f]
        %v4618 = vlaneseq
        %v4619 = vshrl.u32 %v4618, 7
        %v4620 = vsub.s32 4, %v4619
        %v4621 = vrot.slane %v4470, %v4620
        %v4622 = vlaneseq
        %v4623 = vshrl.u32 %v4622, 7
        %v4624 = vsub.s32 4, %v4623
        %v4625 = vrot.slane %v4471, %v4624
        %v4626 = vmul.f32 %v4621, %v4614
        %v4627 = vmul.f32 %v4625, %v4615
        %v4628 = vmul.f32 %v4621, %v4616
        %v4629 = vmul.f32 %v4625, %v4617
        %v4630 = vadd.f32 %v4610, %v4626
        %v4631 = vadd.f32 %v4611, %v4627
        %v4632 = vadd.f32 %v4612, %v4628
        %v4633 = vadd.f32 %v4613, %v4629
        %v4634 = vld [vmem:[%s1328] sm:$0xff]
        %v4635 = vld [vmem:[%s1328 + $0x8] sm:$0xff]
        %v4636 = vld [vmem:[%s1328 + $0x10] sm:$0x1f]
        %v4637 = vld [vmem:[%s1328 + $0x18] sm:$0x1f]
        %v4638 = vlaneseq
        %v4639 = vshrl.u32 %v4638, 7
        %v4640 = vsub.s32 5, %v4639
        %v4641 = vrot.slane %v4470, %v4640
        %v4642 = vlaneseq
        %v4643 = vshrl.u32 %v4642, 7
        %v4644 = vsub.s32 5, %v4643
        %v4645 = vrot.slane %v4471, %v4644
        %v4646 = vmul.f32 %v4641, %v4634
        %v4647 = vmul.f32 %v4645, %v4635
        %v4648 = vmul.f32 %v4641, %v4636
        %v4649 = vmul.f32 %v4645, %v4637
        %v4650 = vadd.f32 %v4630, %v4646
        %v4651 = vadd.f32 %v4631, %v4647
        %v4652 = vadd.f32 %v4632, %v4648
        %v4653 = vadd.f32 %v4633, %v4649
        %v4654 = vld [vmem:[%s1349] sm:$0xff]
        %v4655 = vld [vmem:[%s1349 + $0x8] sm:$0xff]
        %v4656 = vld [vmem:[%s1349 + $0x10] sm:$0x1f]
        %v4657 = vld [vmem:[%s1349 + $0x18] sm:$0x1f]
        %v4658 = vlaneseq
        %v4659 = vshrl.u32 %v4658, 7
        %v4660 = vsub.s32 6, %v4659
        %v4661 = vrot.slane %v4470, %v4660
        %v4662 = vlaneseq
        %v4663 = vshrl.u32 %v4662, 7
        %v4664 = vsub.s32 6, %v4663
        %v4665 = vrot.slane %v4471, %v4664
        %v4666 = vmul.f32 %v4661, %v4654
        %v4667 = vmul.f32 %v4665, %v4655
        %v4668 = vmul.f32 %v4661, %v4656
        %v4669 = vmul.f32 %v4665, %v4657
        %v4670 = vadd.f32 %v4650, %v4666
        %v4671 = vadd.f32 %v4651, %v4667
        %v4672 = vadd.f32 %v4652, %v4668
        %v4673 = vadd.f32 %v4653, %v4669
        %v4674 = vld [vmem:[%s1370] sm:$0xff]
        %v4675 = vld [vmem:[%s1370 + $0x8] sm:$0xff]
        %v4676 = vld [vmem:[%s1370 + $0x10] sm:$0x1f]
        %v4677 = vld [vmem:[%s1370 + $0x18] sm:$0x1f]
        %v4678 = vlaneseq
        %v4679 = vshrl.u32 %v4678, 7
        %v4680 = vsub.s32 7, %v4679
        %v4681 = vrot.slane %v4470, %v4680
        %v4682 = vlaneseq
        %v4683 = vshrl.u32 %v4682, 7
        %v4684 = vsub.s32 7, %v4683
        %v4685 = vrot.slane %v4471, %v4684
        %v4686 = vmul.f32 %v4681, %v4674
        %v4687 = vmul.f32 %v4685, %v4675
        %v4688 = vmul.f32 %v4681, %v4676
        %v4689 = vmul.f32 %v4685, %v4677
        %v4690 = vadd.f32 %v4670, %v4686
        %v4691 = vadd.f32 %v4671, %v4687
        %v4692 = vadd.f32 %v4672, %v4688
        %v4693 = vadd.f32 %v4673, %v4689
        %v4694 = vpack.c.bf16 %v4692, %v4690
        %v4695 = vpack.c.bf16 %v4693, %v4691
        %v4697 = vshrl.u32 %v4694, 16
        %v4699 = vrot.slane %v4697, 6
        %v4700 = vshll.u32 %v4694, 16
        %v4702 = vrot.slane %v4700, 7
        %v4703 = vor.u32 %v4699, %v4702
        %v4705 = vshrl.u32 %v4695, 16
        %v4707 = vrot.slane %v4705, 6
        %v4708 = vshll.u32 %v4695, 16
        %v4710 = vrot.slane %v4708, 7
        %v4711 = vor.u32 %v4707, %v4710
        %v4714 = vld [vmem:[#allocation2 + $0xb0] sm:$0xfe]
        %v4715 = vsel %vm1413, %v4703, %v4714
        %4716 = vst [vmem:[#allocation2 + $0xb0] sm:$0xfe] %v4715
        %v4717 = vld [vmem:[#allocation2 + $0xb8] sm:$0xfe]
        %v4718 = vsel %vm1413, %v4711, %v4717
        %4719 = vst [vmem:[#allocation2 + $0xb8] sm:$0xfe] %v4718
        %s4720 = sld [smem:[#allocation11 + $0xc]]
        %v4721 = vstv %s4720
        %v4722 = vmul.f32 %v736, %v4721
        %v4723 = vmul.f32 %v737, %v4721
        %s4724 = sld [smem:[#allocation11 + $0x8c]]
        %v4725 = vstv %s4724
        %v4726 = vmul.f32 %v788, %v4725
        %v4727 = vmul.f32 %v789, %v4725
        %v4728 = vadd.f32 %v4722, %v4726
        %v4729 = vadd.f32 %v4723, %v4727
        %s4730 = sld [smem:[#allocation11 + $0x10c]]
        %v4731 = vstv %s4730
        %v4732 = vmul.f32 %v840, %v4731
        %v4733 = vmul.f32 %v841, %v4731
        %v4734 = vadd.f32 %v4728, %v4732
        %v4735 = vadd.f32 %v4729, %v4733
        %s4736 = sld [smem:[#allocation11 + $0x18c]]
        %v4737 = vstv %s4736
        %v4738 = vmul.f32 %v892, %v4737
        %v4739 = vmul.f32 %v893, %v4737
        %v4740 = vadd.f32 %v4734, %v4738
        %v4741 = vadd.f32 %v4735, %v4739
        %s4742 = sld [smem:[#allocation11 + $0x20c]]
        %v4743 = vstv %s4742
        %v4744 = vmul.f32 %v944, %v4743
        %v4745 = vmul.f32 %v945, %v4743
        %v4746 = vadd.f32 %v4740, %v4744
        %v4747 = vadd.f32 %v4741, %v4745
        %s4748 = sld [smem:[#allocation11 + $0x28c]]
        %v4749 = vstv %s4748
        %v4750 = vmul.f32 %v996, %v4749
        %v4751 = vmul.f32 %v997, %v4749
        %v4752 = vadd.f32 %v4746, %v4750
        %v4753 = vadd.f32 %v4747, %v4751
        %s4754 = sld [smem:[#allocation11 + $0x30c]]
        %v4755 = vstv %s4754
        %v4756 = vmul.f32 %v1048, %v4755
        %v4757 = vmul.f32 %v1049, %v4755
        %v4758 = vadd.f32 %v4752, %v4756
        %v4759 = vadd.f32 %v4753, %v4757
        %s4760 = sld [smem:[#allocation11 + $0x38c]]
        %v4761 = vstv %s4760
        %v4762 = vmul.f32 %v1100, %v4761
        %v4763 = vmul.f32 %v1101, %v4761
        %v4764 = vadd.f32 %v4758, %v4762
        %v4765 = vadd.f32 %v4759, %v4763
        %s4766 = sld [smem:[#allocation12 + $0xc]]
        %v4767 = vstv %s4766
        %v4768 = vadd.f32 %v4764, %v4767
        %v4769 = vadd.f32 %v4765, %v4767
        %v4770 = vmax.f32 %v4768, 0.0
        %v4771 = vmax.f32 %v4769, 0.0
        %v4772 = vmul.f32 %v502, %v4770
        %v4773 = vmul.f32 %v503, %v4771
        %v4774 = vrot.slane %v4772, 4
        %v4775 = vadd.f32 %v4772, %v4774
        %v4776 = vrot.slane %v4775, 2
        %v4777 = vadd.f32 %v4775, %v4776
        %v4778 = vrot.slane %v4777, 1
        %v4779 = vadd.f32 %v4777, %v4778
        %v4780 = vrot.slane %v4773, 4
        %v4781 = vadd.f32 %v4773, %v4780
        %v4782 = vrot.slane %v4781, 2
        %v4783 = vadd.f32 %v4781, %v4782
        %v4784 = vrot.slane %v4783, 1
        %v4785 = vadd.f32 %v4783, %v4784
        %v4786 = vpack.c.bf16 %v4779, %v4779
        %v4787 = vpack.c.bf16 %v4785, %v4785
        %v4788 = vld [vmem:[#allocation2 + $0xc0] sm:$0x1]
        %v4789 = vsel %vm1172, %v4786, %v4788
        %4790 = vst [vmem:[#allocation2 + $0xc0] sm:$0x1] %v4789
        %v4791 = vld [vmem:[#allocation2 + $0xc8] sm:$0x1]
        %v4792 = vsel %vm1172, %v4787, %v4791
        %4793 = vst [vmem:[#allocation2 + $0xc8] sm:$0x1] %v4792
        %v4794 = vmul.f32 %v505, %v4770
        %v4795 = vmul.f32 %v506, %v4771
        %v4796 = vrot.slane %v4794, 4
        %v4797 = vadd.f32 %v4794, %v4796
        %v4798 = vrot.slane %v4797, 2
        %v4799 = vadd.f32 %v4797, %v4798
        %v4800 = vrot.slane %v4799, 1
        %v4801 = vadd.f32 %v4799, %v4800
        %v4802 = vrot.slane %v4795, 4
        %v4803 = vadd.f32 %v4795, %v4802
        %v4804 = vrot.slane %v4803, 2
        %v4805 = vadd.f32 %v4803, %v4804
        %v4806 = vrot.slane %v4805, 1
        %v4807 = vadd.f32 %v4805, %v4806
        %v4808 = vpack.c.bf16 %v4801, %v4801
        %v4809 = vpack.c.bf16 %v4807, %v4807
        %v4810 = vld [vmem:[#allocation2 + $0xc0] sm:$0x1]
        %v4811 = vsel %vm1196, %v4808, %v4810
        %4812 = vst [vmem:[#allocation2 + $0xc0] sm:$0x1] %v4811
        %v4813 = vld [vmem:[#allocation2 + $0xc8] sm:$0x1]
        %v4814 = vsel %vm1196, %v4809, %v4813
        %4815 = vst [vmem:[#allocation2 + $0xc8] sm:$0x1] %v4814
        %v4816 = vmul.f32 %v508, %v4770
        %v4817 = vmul.f32 %v509, %v4771
        %v4818 = vrot.slane %v4816, 4
        %v4819 = vadd.f32 %v4816, %v4818
        %v4820 = vrot.slane %v4819, 2
        %v4821 = vadd.f32 %v4819, %v4820
        %v4822 = vrot.slane %v4821, 1
        %v4823 = vadd.f32 %v4821, %v4822
        %v4824 = vrot.slane %v4817, 4
        %v4825 = vadd.f32 %v4817, %v4824
        %v4826 = vrot.slane %v4825, 2
        %v4827 = vadd.f32 %v4825, %v4826
        %v4828 = vrot.slane %v4827, 1
        %v4829 = vadd.f32 %v4827, %v4828
        %v4830 = vpack.c.bf16 %v4823, %v4823
        %v4831 = vpack.c.bf16 %v4829, %v4829
        %v4832 = vld [vmem:[#allocation2 + $0xc0] sm:$0x2]
        %v4833 = vsel %vm1221, %v4830, %v4832
        %4834 = vst [vmem:[#allocation2 + $0xc0] sm:$0x2] %v4833
        %v4835 = vld [vmem:[#allocation2 + $0xc8] sm:$0x2]
        %v4836 = vsel %vm1221, %v4831, %v4835
        %4837 = vst [vmem:[#allocation2 + $0xc8] sm:$0x2] %v4836
        %v4838 = vld [vmem:[%s499] sm:$0xff]
        %v4839 = vld [vmem:[%s499 + $0x8] sm:$0xff]
        %v4840 = vld [vmem:[%s499 + $0x10] sm:$0x1f]
        %v4841 = vld [vmem:[%s499 + $0x18] sm:$0x1f]
        %v4842 = vlaneseq
        %v4843 = vshrl.u32 %v4842, 7
        %v4844 = vsub.s32 0, %v4843
        %v4845 = vrot.slane %v4770, %v4844
        %v4846 = vlaneseq
        %v4847 = vshrl.u32 %v4846, 7
        %v4848 = vsub.s32 0, %v4847
        %v4849 = vrot.slane %v4771, %v4848
        %v4850 = vmul.f32 %v4845, %v4838
        %v4851 = vmul.f32 %v4849, %v4839
        %v4852 = vmul.f32 %v4845, %v4840
        %v4853 = vmul.f32 %v4849, %v4841
        %v4854 = vld [vmem:[%s1244] sm:$0xff]
        %v4855 = vld [vmem:[%s1244 + $0x8] sm:$0xff]
        %v4856 = vld [vmem:[%s1244 + $0x10] sm:$0x1f]
        %v4857 = vld [vmem:[%s1244 + $0x18] sm:$0x1f]
        %v4858 = vlaneseq
        %v4859 = vshrl.u32 %v4858, 7
        %v4860 = vsub.s32 1, %v4859
        %v4861 = vrot.slane %v4770, %v4860
        %v4862 = vlaneseq
        %v4863 = vshrl.u32 %v4862, 7
        %v4864 = vsub.s32 1, %v4863
        %v4865 = vrot.slane %v4771, %v4864
        %v4866 = vmul.f32 %v4861, %v4854
        %v4867 = vmul.f32 %v4865, %v4855
        %v4868 = vmul.f32 %v4861, %v4856
        %v4869 = vmul.f32 %v4865, %v4857
        %v4870 = vadd.f32 %v4850, %v4866
        %v4871 = vadd.f32 %v4851, %v4867
        %v4872 = vadd.f32 %v4852, %v4868
        %v4873 = vadd.f32 %v4853, %v4869
        %v4874 = vld [vmem:[%s1265] sm:$0xff]
        %v4875 = vld [vmem:[%s1265 + $0x8] sm:$0xff]
        %v4876 = vld [vmem:[%s1265 + $0x10] sm:$0x1f]
        %v4877 = vld [vmem:[%s1265 + $0x18] sm:$0x1f]
        %v4878 = vlaneseq
        %v4879 = vshrl.u32 %v4878, 7
        %v4880 = vsub.s32 2, %v4879
        %v4881 = vrot.slane %v4770, %v4880
        %v4882 = vlaneseq
        %v4883 = vshrl.u32 %v4882, 7
        %v4884 = vsub.s32 2, %v4883
        %v4885 = vrot.slane %v4771, %v4884
        %v4886 = vmul.f32 %v4881, %v4874
        %v4887 = vmul.f32 %v4885, %v4875
        %v4888 = vmul.f32 %v4881, %v4876
        %v4889 = vmul.f32 %v4885, %v4877
        %v4890 = vadd.f32 %v4870, %v4886
        %v4891 = vadd.f32 %v4871, %v4887
        %v4892 = vadd.f32 %v4872, %v4888
        %v4893 = vadd.f32 %v4873, %v4889
        %v4894 = vld [vmem:[%s1286] sm:$0xff]
        %v4895 = vld [vmem:[%s1286 + $0x8] sm:$0xff]
        %v4896 = vld [vmem:[%s1286 + $0x10] sm:$0x1f]
        %v4897 = vld [vmem:[%s1286 + $0x18] sm:$0x1f]
        %v4898 = vlaneseq
        %v4899 = vshrl.u32 %v4898, 7
        %v4900 = vsub.s32 3, %v4899
        %v4901 = vrot.slane %v4770, %v4900
        %v4902 = vlaneseq
        %v4903 = vshrl.u32 %v4902, 7
        %v4904 = vsub.s32 3, %v4903
        %v4905 = vrot.slane %v4771, %v4904
        %v4906 = vmul.f32 %v4901, %v4894
        %v4907 = vmul.f32 %v4905, %v4895
        %v4908 = vmul.f32 %v4901, %v4896
        %v4909 = vmul.f32 %v4905, %v4897
        %v4910 = vadd.f32 %v4890, %v4906
        %v4911 = vadd.f32 %v4891, %v4907
        %v4912 = vadd.f32 %v4892, %v4908
        %v4913 = vadd.f32 %v4893, %v4909
        %v4914 = vld [vmem:[%s1307] sm:$0xff]
        %v4915 = vld [vmem:[%s1307 + $0x8] sm:$0xff]
        %v4916 = vld [vmem:[%s1307 + $0x10] sm:$0x1f]
        %v4917 = vld [vmem:[%s1307 + $0x18] sm:$0x1f]
        %v4918 = vlaneseq
        %v4919 = vshrl.u32 %v4918, 7
        %v4920 = vsub.s32 4, %v4919
        %v4921 = vrot.slane %v4770, %v4920
        %v4922 = vlaneseq
        %v4923 = vshrl.u32 %v4922, 7
        %v4924 = vsub.s32 4, %v4923
        %v4925 = vrot.slane %v4771, %v4924
        %v4926 = vmul.f32 %v4921, %v4914
        %v4927 = vmul.f32 %v4925, %v4915
        %v4928 = vmul.f32 %v4921, %v4916
        %v4929 = vmul.f32 %v4925, %v4917
        %v4930 = vadd.f32 %v4910, %v4926
        %v4931 = vadd.f32 %v4911, %v4927
        %v4932 = vadd.f32 %v4912, %v4928
        %v4933 = vadd.f32 %v4913, %v4929
        %v4934 = vld [vmem:[%s1328] sm:$0xff]
        %v4935 = vld [vmem:[%s1328 + $0x8] sm:$0xff]
        %v4936 = vld [vmem:[%s1328 + $0x10] sm:$0x1f]
        %v4937 = vld [vmem:[%s1328 + $0x18] sm:$0x1f]
        %v4938 = vlaneseq
        %v4939 = vshrl.u32 %v4938, 7
        %v4940 = vsub.s32 5, %v4939
        %v4941 = vrot.slane %v4770, %v4940
        %v4942 = vlaneseq
        %v4943 = vshrl.u32 %v4942, 7
        %v4944 = vsub.s32 5, %v4943
        %v4945 = vrot.slane %v4771, %v4944
        %v4946 = vmul.f32 %v4941, %v4934
        %v4947 = vmul.f32 %v4945, %v4935
        %v4948 = vmul.f32 %v4941, %v4936
        %v4949 = vmul.f32 %v4945, %v4937
        %v4950 = vadd.f32 %v4930, %v4946
        %v4951 = vadd.f32 %v4931, %v4947
        %v4952 = vadd.f32 %v4932, %v4948
        %v4953 = vadd.f32 %v4933, %v4949
        %v4954 = vld [vmem:[%s1349] sm:$0xff]
        %v4955 = vld [vmem:[%s1349 + $0x8] sm:$0xff]
        %v4956 = vld [vmem:[%s1349 + $0x10] sm:$0x1f]
        %v4957 = vld [vmem:[%s1349 + $0x18] sm:$0x1f]
        %v4958 = vlaneseq
        %v4959 = vshrl.u32 %v4958, 7
        %v4960 = vsub.s32 6, %v4959
        %v4961 = vrot.slane %v4770, %v4960
        %v4962 = vlaneseq
        %v4963 = vshrl.u32 %v4962, 7
        %v4964 = vsub.s32 6, %v4963
        %v4965 = vrot.slane %v4771, %v4964
        %v4966 = vmul.f32 %v4961, %v4954
        %v4967 = vmul.f32 %v4965, %v4955
        %v4968 = vmul.f32 %v4961, %v4956
        %v4969 = vmul.f32 %v4965, %v4957
        %v4970 = vadd.f32 %v4950, %v4966
        %v4971 = vadd.f32 %v4951, %v4967
        %v4972 = vadd.f32 %v4952, %v4968
        %v4973 = vadd.f32 %v4953, %v4969
        %v4974 = vld [vmem:[%s1370] sm:$0xff]
        %v4975 = vld [vmem:[%s1370 + $0x8] sm:$0xff]
        %v4976 = vld [vmem:[%s1370 + $0x10] sm:$0x1f]
        %v4977 = vld [vmem:[%s1370 + $0x18] sm:$0x1f]
        %v4978 = vlaneseq
        %v4979 = vshrl.u32 %v4978, 7
        %v4980 = vsub.s32 7, %v4979
        %v4981 = vrot.slane %v4770, %v4980
        %v4982 = vlaneseq
        %v4983 = vshrl.u32 %v4982, 7
        %v4984 = vsub.s32 7, %v4983
        %v4985 = vrot.slane %v4771, %v4984
        %v4986 = vmul.f32 %v4981, %v4974
        %v4987 = vmul.f32 %v4985, %v4975
        %v4988 = vmul.f32 %v4981, %v4976
        %v4989 = vmul.f32 %v4985, %v4977
        %v4990 = vadd.f32 %v4970, %v4986
        %v4991 = vadd.f32 %v4971, %v4987
        %v4992 = vadd.f32 %v4972, %v4988
        %v4993 = vadd.f32 %v4973, %v4989
        %v4994 = vpack.c.bf16 %v4992, %v4990
        %v4995 = vpack.c.bf16 %v4993, %v4991
        %v4997 = vshrl.u32 %v4994, 16
        %v4999 = vrot.slane %v4997, 6
        %v5000 = vshll.u32 %v4994, 16
        %v5002 = vrot.slane %v5000, 7
        %v5003 = vor.u32 %v4999, %v5002
        %v5005 = vshrl.u32 %v4995, 16
        %v5007 = vrot.slane %v5005, 6
        %v5008 = vshll.u32 %v4995, 16
        %v5010 = vrot.slane %v5008, 7
        %v5011 = vor.u32 %v5007, %v5010
        %v5014 = vld [vmem:[#allocation2 + $0xc0] sm:$0xfe]
        %v5015 = vsel %vm1413, %v5003, %v5014
        %5016 = vst [vmem:[#allocation2 + $0xc0] sm:$0xfe] %v5015
        %v5017 = vld [vmem:[#allocation2 + $0xc8] sm:$0xfe]
        %v5018 = vsel %vm1413, %v5011, %v5017
        %5019 = vst [vmem:[#allocation2 + $0xc8] sm:$0xfe] %v5018
        %s5020 = sld [smem:[#allocation11 + $0xd]]
        %v5021 = vstv %s5020
        %v5022 = vmul.f32 %v736, %v5021
        %v5023 = vmul.f32 %v737, %v5021
        %s5024 = sld [smem:[#allocation11 + $0x8d]]
        %v5025 = vstv %s5024
        %v5026 = vmul.f32 %v788, %v5025
        %v5027 = vmul.f32 %v789, %v5025
        %v5028 = vadd.f32 %v5022, %v5026
        %v5029 = vadd.f32 %v5023, %v5027
        %s5030 = sld [smem:[#allocation11 + $0x10d]]
        %v5031 = vstv %s5030
        %v5032 = vmul.f32 %v840, %v5031
        %v5033 = vmul.f32 %v841, %v5031
        %v5034 = vadd.f32 %v5028, %v5032
        %v5035 = vadd.f32 %v5029, %v5033
        %s5036 = sld [smem:[#allocation11 + $0x18d]]
        %v5037 = vstv %s5036
        %v5038 = vmul.f32 %v892, %v5037
        %v5039 = vmul.f32 %v893, %v5037
        %v5040 = vadd.f32 %v5034, %v5038
        %v5041 = vadd.f32 %v5035, %v5039
        %s5042 = sld [smem:[#allocation11 + $0x20d]]
        %v5043 = vstv %s5042
        %v5044 = vmul.f32 %v944, %v5043
        %v5045 = vmul.f32 %v945, %v5043
        %v5046 = vadd.f32 %v5040, %v5044
        %v5047 = vadd.f32 %v5041, %v5045
        %s5048 = sld [smem:[#allocation11 + $0x28d]]
        %v5049 = vstv %s5048
        %v5050 = vmul.f32 %v996, %v5049
        %v5051 = vmul.f32 %v997, %v5049
        %v5052 = vadd.f32 %v5046, %v5050
        %v5053 = vadd.f32 %v5047, %v5051
        %s5054 = sld [smem:[#allocation11 + $0x30d]]
        %v5055 = vstv %s5054
        %v5056 = vmul.f32 %v1048, %v5055
        %v5057 = vmul.f32 %v1049, %v5055
        %v5058 = vadd.f32 %v5052, %v5056
        %v5059 = vadd.f32 %v5053, %v5057
        %s5060 = sld [smem:[#allocation11 + $0x38d]]
        %v5061 = vstv %s5060
        %v5062 = vmul.f32 %v1100, %v5061
        %v5063 = vmul.f32 %v1101, %v5061
        %v5064 = vadd.f32 %v5058, %v5062
        %v5065 = vadd.f32 %v5059, %v5063
        %s5066 = sld [smem:[#allocation12 + $0xd]]
        %v5067 = vstv %s5066
        %v5068 = vadd.f32 %v5064, %v5067
        %v5069 = vadd.f32 %v5065, %v5067
        %v5070 = vmax.f32 %v5068, 0.0
        %v5071 = vmax.f32 %v5069, 0.0
        %v5072 = vmul.f32 %v502, %v5070
        %v5073 = vmul.f32 %v503, %v5071
        %v5074 = vrot.slane %v5072, 4
        %v5075 = vadd.f32 %v5072, %v5074
        %v5076 = vrot.slane %v5075, 2
        %v5077 = vadd.f32 %v5075, %v5076
        %v5078 = vrot.slane %v5077, 1
        %v5079 = vadd.f32 %v5077, %v5078
        %v5080 = vrot.slane %v5073, 4
        %v5081 = vadd.f32 %v5073, %v5080
        %v5082 = vrot.slane %v5081, 2
        %v5083 = vadd.f32 %v5081, %v5082
        %v5084 = vrot.slane %v5083, 1
        %v5085 = vadd.f32 %v5083, %v5084
        %v5086 = vpack.c.bf16 %v5079, %v5079
        %v5087 = vpack.c.bf16 %v5085, %v5085
        %v5088 = vld [vmem:[#allocation2 + $0xd0] sm:$0x1]
        %v5089 = vsel %vm1172, %v5086, %v5088
        %5090 = vst [vmem:[#allocation2 + $0xd0] sm:$0x1] %v5089
        %v5091 = vld [vmem:[#allocation2 + $0xd8] sm:$0x1]
        %v5092 = vsel %vm1172, %v5087, %v5091
        %5093 = vst [vmem:[#allocation2 + $0xd8] sm:$0x1] %v5092
        %v5094 = vmul.f32 %v505, %v5070
        %v5095 = vmul.f32 %v506, %v5071
        %v5096 = vrot.slane %v5094, 4
        %v5097 = vadd.f32 %v5094, %v5096
        %v5098 = vrot.slane %v5097, 2
        %v5099 = vadd.f32 %v5097, %v5098
        %v5100 = vrot.slane %v5099, 1
        %v5101 = vadd.f32 %v5099, %v5100
        %v5102 = vrot.slane %v5095, 4
        %v5103 = vadd.f32 %v5095, %v5102
        %v5104 = vrot.slane %v5103, 2
        %v5105 = vadd.f32 %v5103, %v5104
        %v5106 = vrot.slane %v5105, 1
        %v5107 = vadd.f32 %v5105, %v5106
        %v5108 = vpack.c.bf16 %v5101, %v5101
        %v5109 = vpack.c.bf16 %v5107, %v5107
        %v5110 = vld [vmem:[#allocation2 + $0xd0] sm:$0x1]
        %v5111 = vsel %vm1196, %v5108, %v5110
        %5112 = vst [vmem:[#allocation2 + $0xd0] sm:$0x1] %v5111
        %v5113 = vld [vmem:[#allocation2 + $0xd8] sm:$0x1]
        %v5114 = vsel %vm1196, %v5109, %v5113
        %5115 = vst [vmem:[#allocation2 + $0xd8] sm:$0x1] %v5114
        %v5116 = vmul.f32 %v508, %v5070
        %v5117 = vmul.f32 %v509, %v5071
        %v5118 = vrot.slane %v5116, 4
        %v5119 = vadd.f32 %v5116, %v5118
        %v5120 = vrot.slane %v5119, 2
        %v5121 = vadd.f32 %v5119, %v5120
        %v5122 = vrot.slane %v5121, 1
        %v5123 = vadd.f32 %v5121, %v5122
        %v5124 = vrot.slane %v5117, 4
        %v5125 = vadd.f32 %v5117, %v5124
        %v5126 = vrot.slane %v5125, 2
        %v5127 = vadd.f32 %v5125, %v5126
        %v5128 = vrot.slane %v5127, 1
        %v5129 = vadd.f32 %v5127, %v5128
        %v5130 = vpack.c.bf16 %v5123, %v5123
        %v5131 = vpack.c.bf16 %v5129, %v5129
        %v5132 = vld [vmem:[#allocation2 + $0xd0] sm:$0x2]
        %v5133 = vsel %vm1221, %v5130, %v5132
        %5134 = vst [vmem:[#allocation2 + $0xd0] sm:$0x2] %v5133
        %v5135 = vld [vmem:[#allocation2 + $0xd8] sm:$0x2]
        %v5136 = vsel %vm1221, %v5131, %v5135
        %5137 = vst [vmem:[#allocation2 + $0xd8] sm:$0x2] %v5136
        %v5138 = vld [vmem:[%s499] sm:$0xff]
        %v5139 = vld [vmem:[%s499 + $0x8] sm:$0xff]
        %v5140 = vld [vmem:[%s499 + $0x10] sm:$0x1f]
        %v5141 = vld [vmem:[%s499 + $0x18] sm:$0x1f]
        %v5142 = vlaneseq
        %v5143 = vshrl.u32 %v5142, 7
        %v5144 = vsub.s32 0, %v5143
        %v5145 = vrot.slane %v5070, %v5144
        %v5146 = vlaneseq
        %v5147 = vshrl.u32 %v5146, 7
        %v5148 = vsub.s32 0, %v5147
        %v5149 = vrot.slane %v5071, %v5148
        %v5150 = vmul.f32 %v5145, %v5138
        %v5151 = vmul.f32 %v5149, %v5139
        %v5152 = vmul.f32 %v5145, %v5140
        %v5153 = vmul.f32 %v5149, %v5141
        %v5154 = vld [vmem:[%s1244] sm:$0xff]
        %v5155 = vld [vmem:[%s1244 + $0x8] sm:$0xff]
        %v5156 = vld [vmem:[%s1244 + $0x10] sm:$0x1f]
        %v5157 = vld [vmem:[%s1244 + $0x18] sm:$0x1f]
        %v5158 = vlaneseq
        %v5159 = vshrl.u32 %v5158, 7
        %v5160 = vsub.s32 1, %v5159
        %v5161 = vrot.slane %v5070, %v5160
        %v5162 = vlaneseq
        %v5163 = vshrl.u32 %v5162, 7
        %v5164 = vsub.s32 1, %v5163
        %v5165 = vrot.slane %v5071, %v5164
        %v5166 = vmul.f32 %v5161, %v5154
        %v5167 = vmul.f32 %v5165, %v5155
        %v5168 = vmul.f32 %v5161, %v5156
        %v5169 = vmul.f32 %v5165, %v5157
        %v5170 = vadd.f32 %v5150, %v5166
        %v5171 = vadd.f32 %v5151, %v5167
        %v5172 = vadd.f32 %v5152, %v5168
        %v5173 = vadd.f32 %v5153, %v5169
        %v5174 = vld [vmem:[%s1265] sm:$0xff]
        %v5175 = vld [vmem:[%s1265 + $0x8] sm:$0xff]
        %v5176 = vld [vmem:[%s1265 + $0x10] sm:$0x1f]
        %v5177 = vld [vmem:[%s1265 + $0x18] sm:$0x1f]
        %v5178 = vlaneseq
        %v5179 = vshrl.u32 %v5178, 7
        %v5180 = vsub.s32 2, %v5179
        %v5181 = vrot.slane %v5070, %v5180
        %v5182 = vlaneseq
        %v5183 = vshrl.u32 %v5182, 7
        %v5184 = vsub.s32 2, %v5183
        %v5185 = vrot.slane %v5071, %v5184
        %v5186 = vmul.f32 %v5181, %v5174
        %v5187 = vmul.f32 %v5185, %v5175
        %v5188 = vmul.f32 %v5181, %v5176
        %v5189 = vmul.f32 %v5185, %v5177
        %v5190 = vadd.f32 %v5170, %v5186
        %v5191 = vadd.f32 %v5171, %v5187
        %v5192 = vadd.f32 %v5172, %v5188
        %v5193 = vadd.f32 %v5173, %v5189
        %v5194 = vld [vmem:[%s1286] sm:$0xff]
        %v5195 = vld [vmem:[%s1286 + $0x8] sm:$0xff]
        %v5196 = vld [vmem:[%s1286 + $0x10] sm:$0x1f]
        %v5197 = vld [vmem:[%s1286 + $0x18] sm:$0x1f]
        %v5198 = vlaneseq
        %v5199 = vshrl.u32 %v5198, 7
        %v5200 = vsub.s32 3, %v5199
        %v5201 = vrot.slane %v5070, %v5200
        %v5202 = vlaneseq
        %v5203 = vshrl.u32 %v5202, 7
        %v5204 = vsub.s32 3, %v5203
        %v5205 = vrot.slane %v5071, %v5204
        %v5206 = vmul.f32 %v5201, %v5194
        %v5207 = vmul.f32 %v5205, %v5195
        %v5208 = vmul.f32 %v5201, %v5196
        %v5209 = vmul.f32 %v5205, %v5197
        %v5210 = vadd.f32 %v5190, %v5206
        %v5211 = vadd.f32 %v5191, %v5207
        %v5212 = vadd.f32 %v5192, %v5208
        %v5213 = vadd.f32 %v5193, %v5209
        %v5214 = vld [vmem:[%s1307] sm:$0xff]
        %v5215 = vld [vmem:[%s1307 + $0x8] sm:$0xff]
        %v5216 = vld [vmem:[%s1307 + $0x10] sm:$0x1f]
        %v5217 = vld [vmem:[%s1307 + $0x18] sm:$0x1f]
        %v5218 = vlaneseq
        %v5219 = vshrl.u32 %v5218, 7
        %v5220 = vsub.s32 4, %v5219
        %v5221 = vrot.slane %v5070, %v5220
        %v5222 = vlaneseq
        %v5223 = vshrl.u32 %v5222, 7
        %v5224 = vsub.s32 4, %v5223
        %v5225 = vrot.slane %v5071, %v5224
        %v5226 = vmul.f32 %v5221, %v5214
        %v5227 = vmul.f32 %v5225, %v5215
        %v5228 = vmul.f32 %v5221, %v5216
        %v5229 = vmul.f32 %v5225, %v5217
        %v5230 = vadd.f32 %v5210, %v5226
        %v5231 = vadd.f32 %v5211, %v5227
        %v5232 = vadd.f32 %v5212, %v5228
        %v5233 = vadd.f32 %v5213, %v5229
        %v5234 = vld [vmem:[%s1328] sm:$0xff]
        %v5235 = vld [vmem:[%s1328 + $0x8] sm:$0xff]
        %v5236 = vld [vmem:[%s1328 + $0x10] sm:$0x1f]
        %v5237 = vld [vmem:[%s1328 + $0x18] sm:$0x1f]
        %v5238 = vlaneseq
        %v5239 = vshrl.u32 %v5238, 7
        %v5240 = vsub.s32 5, %v5239
        %v5241 = vrot.slane %v5070, %v5240
        %v5242 = vlaneseq
        %v5243 = vshrl.u32 %v5242, 7
        %v5244 = vsub.s32 5, %v5243
        %v5245 = vrot.slane %v5071, %v5244
        %v5246 = vmul.f32 %v5241, %v5234
        %v5247 = vmul.f32 %v5245, %v5235
        %v5248 = vmul.f32 %v5241, %v5236
        %v5249 = vmul.f32 %v5245, %v5237
        %v5250 = vadd.f32 %v5230, %v5246
        %v5251 = vadd.f32 %v5231, %v5247
        %v5252 = vadd.f32 %v5232, %v5248
        %v5253 = vadd.f32 %v5233, %v5249
        %v5254 = vld [vmem:[%s1349] sm:$0xff]
        %v5255 = vld [vmem:[%s1349 + $0x8] sm:$0xff]
        %v5256 = vld [vmem:[%s1349 + $0x10] sm:$0x1f]
        %v5257 = vld [vmem:[%s1349 + $0x18] sm:$0x1f]
        %v5258 = vlaneseq
        %v5259 = vshrl.u32 %v5258, 7
        %v5260 = vsub.s32 6, %v5259
        %v5261 = vrot.slane %v5070, %v5260
        %v5262 = vlaneseq
        %v5263 = vshrl.u32 %v5262, 7
        %v5264 = vsub.s32 6, %v5263
        %v5265 = vrot.slane %v5071, %v5264
        %v5266 = vmul.f32 %v5261, %v5254
        %v5267 = vmul.f32 %v5265, %v5255
        %v5268 = vmul.f32 %v5261, %v5256
        %v5269 = vmul.f32 %v5265, %v5257
        %v5270 = vadd.f32 %v5250, %v5266
        %v5271 = vadd.f32 %v5251, %v5267
        %v5272 = vadd.f32 %v5252, %v5268
        %v5273 = vadd.f32 %v5253, %v5269
        %v5274 = vld [vmem:[%s1370] sm:$0xff]
        %v5275 = vld [vmem:[%s1370 + $0x8] sm:$0xff]
        %v5276 = vld [vmem:[%s1370 + $0x10] sm:$0x1f]
        %v5277 = vld [vmem:[%s1370 + $0x18] sm:$0x1f]
        %v5278 = vlaneseq
        %v5279 = vshrl.u32 %v5278, 7
        %v5280 = vsub.s32 7, %v5279
        %v5281 = vrot.slane %v5070, %v5280
        %v5282 = vlaneseq
        %v5283 = vshrl.u32 %v5282, 7
        %v5284 = vsub.s32 7, %v5283
        %v5285 = vrot.slane %v5071, %v5284
        %v5286 = vmul.f32 %v5281, %v5274
        %v5287 = vmul.f32 %v5285, %v5275
        %v5288 = vmul.f32 %v5281, %v5276
        %v5289 = vmul.f32 %v5285, %v5277
        %v5290 = vadd.f32 %v5270, %v5286
        %v5291 = vadd.f32 %v5271, %v5287
        %v5292 = vadd.f32 %v5272, %v5288
        %v5293 = vadd.f32 %v5273, %v5289
        %v5294 = vpack.c.bf16 %v5292, %v5290
        %v5295 = vpack.c.bf16 %v5293, %v5291
        %v5297 = vshrl.u32 %v5294, 16
        %v5299 = vrot.slane %v5297, 6
        %v5300 = vshll.u32 %v5294, 16
        %v5302 = vrot.slane %v5300, 7
        %v5303 = vor.u32 %v5299, %v5302
        %v5305 = vshrl.u32 %v5295, 16
        %v5307 = vrot.slane %v5305, 6
        %v5308 = vshll.u32 %v5295, 16
        %v5310 = vrot.slane %v5308, 7
        %v5311 = vor.u32 %v5307, %v5310
        %v5314 = vld [vmem:[#allocation2 + $0xd0] sm:$0xfe]
        %v5315 = vsel %vm1413, %v5303, %v5314
        %5316 = vst [vmem:[#allocation2 + $0xd0] sm:$0xfe] %v5315
        %v5317 = vld [vmem:[#allocation2 + $0xd8] sm:$0xfe]
        %v5318 = vsel %vm1413, %v5311, %v5317
        %5319 = vst [vmem:[#allocation2 + $0xd8] sm:$0xfe] %v5318
        %s5320 = sld [smem:[#allocation11 + $0xe]]
        %v5321 = vstv %s5320
        %v5322 = vmul.f32 %v736, %v5321
        %v5323 = vmul.f32 %v737, %v5321
        %s5324 = sld [smem:[#allocation11 + $0x8e]]
        %v5325 = vstv %s5324
        %v5326 = vmul.f32 %v788, %v5325
        %v5327 = vmul.f32 %v789, %v5325
        %v5328 = vadd.f32 %v5322, %v5326
        %v5329 = vadd.f32 %v5323, %v5327
        %s5330 = sld [smem:[#allocation11 + $0x10e]]
        %v5331 = vstv %s5330
        %v5332 = vmul.f32 %v840, %v5331
        %v5333 = vmul.f32 %v841, %v5331
        %v5334 = vadd.f32 %v5328, %v5332
        %v5335 = vadd.f32 %v5329, %v5333
        %s5336 = sld [smem:[#allocation11 + $0x18e]]
        %v5337 = vstv %s5336
        %v5338 = vmul.f32 %v892, %v5337
        %v5339 = vmul.f32 %v893, %v5337
        %v5340 = vadd.f32 %v5334, %v5338
        %v5341 = vadd.f32 %v5335, %v5339
        %s5342 = sld [smem:[#allocation11 + $0x20e]]
        %v5343 = vstv %s5342
        %v5344 = vmul.f32 %v944, %v5343
        %v5345 = vmul.f32 %v945, %v5343
        %v5346 = vadd.f32 %v5340, %v5344
        %v5347 = vadd.f32 %v5341, %v5345
        %s5348 = sld [smem:[#allocation11 + $0x28e]]
        %v5349 = vstv %s5348
        %v5350 = vmul.f32 %v996, %v5349
        %v5351 = vmul.f32 %v997, %v5349
        %v5352 = vadd.f32 %v5346, %v5350
        %v5353 = vadd.f32 %v5347, %v5351
        %s5354 = sld [smem:[#allocation11 + $0x30e]]
        %v5355 = vstv %s5354
        %v5356 = vmul.f32 %v1048, %v5355
        %v5357 = vmul.f32 %v1049, %v5355
        %v5358 = vadd.f32 %v5352, %v5356
        %v5359 = vadd.f32 %v5353, %v5357
        %s5360 = sld [smem:[#allocation11 + $0x38e]]
        %v5361 = vstv %s5360
        %v5362 = vmul.f32 %v1100, %v5361
        %v5363 = vmul.f32 %v1101, %v5361
        %v5364 = vadd.f32 %v5358, %v5362
        %v5365 = vadd.f32 %v5359, %v5363
        %s5366 = sld [smem:[#allocation12 + $0xe]]
        %v5367 = vstv %s5366
        %v5368 = vadd.f32 %v5364, %v5367
        %v5369 = vadd.f32 %v5365, %v5367
        %v5370 = vmax.f32 %v5368, 0.0
        %v5371 = vmax.f32 %v5369, 0.0
        %v5372 = vmul.f32 %v502, %v5370
        %v5373 = vmul.f32 %v503, %v5371
        %v5374 = vrot.slane %v5372, 4
        %v5375 = vadd.f32 %v5372, %v5374
        %v5376 = vrot.slane %v5375, 2
        %v5377 = vadd.f32 %v5375, %v5376
        %v5378 = vrot.slane %v5377, 1
        %v5379 = vadd.f32 %v5377, %v5378
        %v5380 = vrot.slane %v5373, 4
        %v5381 = vadd.f32 %v5373, %v5380
        %v5382 = vrot.slane %v5381, 2
        %v5383 = vadd.f32 %v5381, %v5382
        %v5384 = vrot.slane %v5383, 1
        %v5385 = vadd.f32 %v5383, %v5384
        %v5386 = vpack.c.bf16 %v5379, %v5379
        %v5387 = vpack.c.bf16 %v5385, %v5385
        %v5388 = vld [vmem:[#allocation2 + $0xe0] sm:$0x1]
        %v5389 = vsel %vm1172, %v5386, %v5388
        %5390 = vst [vmem:[#allocation2 + $0xe0] sm:$0x1] %v5389
        %v5391 = vld [vmem:[#allocation2 + $0xe8] sm:$0x1]
        %v5392 = vsel %vm1172, %v5387, %v5391
        %5393 = vst [vmem:[#allocation2 + $0xe8] sm:$0x1] %v5392
        %v5394 = vmul.f32 %v505, %v5370
        %v5395 = vmul.f32 %v506, %v5371
        %v5396 = vrot.slane %v5394, 4
        %v5397 = vadd.f32 %v5394, %v5396
        %v5398 = vrot.slane %v5397, 2
        %v5399 = vadd.f32 %v5397, %v5398
        %v5400 = vrot.slane %v5399, 1
        %v5401 = vadd.f32 %v5399, %v5400
        %v5402 = vrot.slane %v5395, 4
        %v5403 = vadd.f32 %v5395, %v5402
        %v5404 = vrot.slane %v5403, 2
        %v5405 = vadd.f32 %v5403, %v5404
        %v5406 = vrot.slane %v5405, 1
        %v5407 = vadd.f32 %v5405, %v5406
        %v5408 = vpack.c.bf16 %v5401, %v5401
        %v5409 = vpack.c.bf16 %v5407, %v5407
        %v5410 = vld [vmem:[#allocation2 + $0xe0] sm:$0x1]
        %v5411 = vsel %vm1196, %v5408, %v5410
        %5412 = vst [vmem:[#allocation2 + $0xe0] sm:$0x1] %v5411
        %v5413 = vld [vmem:[#allocation2 + $0xe8] sm:$0x1]
        %v5414 = vsel %vm1196, %v5409, %v5413
        %5415 = vst [vmem:[#allocation2 + $0xe8] sm:$0x1] %v5414
        %v5416 = vmul.f32 %v508, %v5370
        %v5417 = vmul.f32 %v509, %v5371
        %v5418 = vrot.slane %v5416, 4
        %v5419 = vadd.f32 %v5416, %v5418
        %v5420 = vrot.slane %v5419, 2
        %v5421 = vadd.f32 %v5419, %v5420
        %v5422 = vrot.slane %v5421, 1
        %v5423 = vadd.f32 %v5421, %v5422
        %v5424 = vrot.slane %v5417, 4
        %v5425 = vadd.f32 %v5417, %v5424
        %v5426 = vrot.slane %v5425, 2
        %v5427 = vadd.f32 %v5425, %v5426
        %v5428 = vrot.slane %v5427, 1
        %v5429 = vadd.f32 %v5427, %v5428
        %v5430 = vpack.c.bf16 %v5423, %v5423
        %v5431 = vpack.c.bf16 %v5429, %v5429
        %v5432 = vld [vmem:[#allocation2 + $0xe0] sm:$0x2]
        %v5433 = vsel %vm1221, %v5430, %v5432
        %5434 = vst [vmem:[#allocation2 + $0xe0] sm:$0x2] %v5433
        %v5435 = vld [vmem:[#allocation2 + $0xe8] sm:$0x2]
        %v5436 = vsel %vm1221, %v5431, %v5435
        %5437 = vst [vmem:[#allocation2 + $0xe8] sm:$0x2] %v5436
        %v5438 = vld [vmem:[%s499] sm:$0xff]
        %v5439 = vld [vmem:[%s499 + $0x8] sm:$0xff]
        %v5440 = vld [vmem:[%s499 + $0x10] sm:$0x1f]
        %v5441 = vld [vmem:[%s499 + $0x18] sm:$0x1f]
        %v5442 = vlaneseq
        %v5443 = vshrl.u32 %v5442, 7
        %v5444 = vsub.s32 0, %v5443
        %v5445 = vrot.slane %v5370, %v5444
        %v5446 = vlaneseq
        %v5447 = vshrl.u32 %v5446, 7
        %v5448 = vsub.s32 0, %v5447
        %v5449 = vrot.slane %v5371, %v5448
        %v5450 = vmul.f32 %v5445, %v5438
        %v5451 = vmul.f32 %v5449, %v5439
        %v5452 = vmul.f32 %v5445, %v5440
        %v5453 = vmul.f32 %v5449, %v5441
        %v5454 = vld [vmem:[%s1244] sm:$0xff]
        %v5455 = vld [vmem:[%s1244 + $0x8] sm:$0xff]
        %v5456 = vld [vmem:[%s1244 + $0x10] sm:$0x1f]
        %v5457 = vld [vmem:[%s1244 + $0x18] sm:$0x1f]
        %v5458 = vlaneseq
        %v5459 = vshrl.u32 %v5458, 7
        %v5460 = vsub.s32 1, %v5459
        %v5461 = vrot.slane %v5370, %v5460
        %v5462 = vlaneseq
        %v5463 = vshrl.u32 %v5462, 7
        %v5464 = vsub.s32 1, %v5463
        %v5465 = vrot.slane %v5371, %v5464
        %v5466 = vmul.f32 %v5461, %v5454
        %v5467 = vmul.f32 %v5465, %v5455
        %v5468 = vmul.f32 %v5461, %v5456
        %v5469 = vmul.f32 %v5465, %v5457
        %v5470 = vadd.f32 %v5450, %v5466
        %v5471 = vadd.f32 %v5451, %v5467
        %v5472 = vadd.f32 %v5452, %v5468
        %v5473 = vadd.f32 %v5453, %v5469
        %v5474 = vld [vmem:[%s1265] sm:$0xff]
        %v5475 = vld [vmem:[%s1265 + $0x8] sm:$0xff]
        %v5476 = vld [vmem:[%s1265 + $0x10] sm:$0x1f]
        %v5477 = vld [vmem:[%s1265 + $0x18] sm:$0x1f]
        %v5478 = vlaneseq
        %v5479 = vshrl.u32 %v5478, 7
        %v5480 = vsub.s32 2, %v5479
        %v5481 = vrot.slane %v5370, %v5480
        %v5482 = vlaneseq
        %v5483 = vshrl.u32 %v5482, 7
        %v5484 = vsub.s32 2, %v5483
        %v5485 = vrot.slane %v5371, %v5484
        %v5486 = vmul.f32 %v5481, %v5474
        %v5487 = vmul.f32 %v5485, %v5475
        %v5488 = vmul.f32 %v5481, %v5476
        %v5489 = vmul.f32 %v5485, %v5477
        %v5490 = vadd.f32 %v5470, %v5486
        %v5491 = vadd.f32 %v5471, %v5487
        %v5492 = vadd.f32 %v5472, %v5488
        %v5493 = vadd.f32 %v5473, %v5489
        %v5494 = vld [vmem:[%s1286] sm:$0xff]
        %v5495 = vld [vmem:[%s1286 + $0x8] sm:$0xff]
        %v5496 = vld [vmem:[%s1286 + $0x10] sm:$0x1f]
        %v5497 = vld [vmem:[%s1286 + $0x18] sm:$0x1f]
        %v5498 = vlaneseq
        %v5499 = vshrl.u32 %v5498, 7
        %v5500 = vsub.s32 3, %v5499
        %v5501 = vrot.slane %v5370, %v5500
        %v5502 = vlaneseq
        %v5503 = vshrl.u32 %v5502, 7
        %v5504 = vsub.s32 3, %v5503
        %v5505 = vrot.slane %v5371, %v5504
        %v5506 = vmul.f32 %v5501, %v5494
        %v5507 = vmul.f32 %v5505, %v5495
        %v5508 = vmul.f32 %v5501, %v5496
        %v5509 = vmul.f32 %v5505, %v5497
        %v5510 = vadd.f32 %v5490, %v5506
        %v5511 = vadd.f32 %v5491, %v5507
        %v5512 = vadd.f32 %v5492, %v5508
        %v5513 = vadd.f32 %v5493, %v5509
        %v5514 = vld [vmem:[%s1307] sm:$0xff]
        %v5515 = vld [vmem:[%s1307 + $0x8] sm:$0xff]
        %v5516 = vld [vmem:[%s1307 + $0x10] sm:$0x1f]
        %v5517 = vld [vmem:[%s1307 + $0x18] sm:$0x1f]
        %v5518 = vlaneseq
        %v5519 = vshrl.u32 %v5518, 7
        %v5520 = vsub.s32 4, %v5519
        %v5521 = vrot.slane %v5370, %v5520
        %v5522 = vlaneseq
        %v5523 = vshrl.u32 %v5522, 7
        %v5524 = vsub.s32 4, %v5523
        %v5525 = vrot.slane %v5371, %v5524
        %v5526 = vmul.f32 %v5521, %v5514
        %v5527 = vmul.f32 %v5525, %v5515
        %v5528 = vmul.f32 %v5521, %v5516
        %v5529 = vmul.f32 %v5525, %v5517
        %v5530 = vadd.f32 %v5510, %v5526
        %v5531 = vadd.f32 %v5511, %v5527
        %v5532 = vadd.f32 %v5512, %v5528
        %v5533 = vadd.f32 %v5513, %v5529
        %v5534 = vld [vmem:[%s1328] sm:$0xff]
        %v5535 = vld [vmem:[%s1328 + $0x8] sm:$0xff]
        %v5536 = vld [vmem:[%s1328 + $0x10] sm:$0x1f]
        %v5537 = vld [vmem:[%s1328 + $0x18] sm:$0x1f]
        %v5538 = vlaneseq
        %v5539 = vshrl.u32 %v5538, 7
        %v5540 = vsub.s32 5, %v5539
        %v5541 = vrot.slane %v5370, %v5540
        %v5542 = vlaneseq
        %v5543 = vshrl.u32 %v5542, 7
        %v5544 = vsub.s32 5, %v5543
        %v5545 = vrot.slane %v5371, %v5544
        %v5546 = vmul.f32 %v5541, %v5534
        %v5547 = vmul.f32 %v5545, %v5535
        %v5548 = vmul.f32 %v5541, %v5536
        %v5549 = vmul.f32 %v5545, %v5537
        %v5550 = vadd.f32 %v5530, %v5546
        %v5551 = vadd.f32 %v5531, %v5547
        %v5552 = vadd.f32 %v5532, %v5548
        %v5553 = vadd.f32 %v5533, %v5549
        %v5554 = vld [vmem:[%s1349] sm:$0xff]
        %v5555 = vld [vmem:[%s1349 + $0x8] sm:$0xff]
        %v5556 = vld [vmem:[%s1349 + $0x10] sm:$0x1f]
        %v5557 = vld [vmem:[%s1349 + $0x18] sm:$0x1f]
        %v5558 = vlaneseq
        %v5559 = vshrl.u32 %v5558, 7
        %v5560 = vsub.s32 6, %v5559
        %v5561 = vrot.slane %v5370, %v5560
        %v5562 = vlaneseq
        %v5563 = vshrl.u32 %v5562, 7
        %v5564 = vsub.s32 6, %v5563
        %v5565 = vrot.slane %v5371, %v5564
        %v5566 = vmul.f32 %v5561, %v5554
        %v5567 = vmul.f32 %v5565, %v5555
        %v5568 = vmul.f32 %v5561, %v5556
        %v5569 = vmul.f32 %v5565, %v5557
        %v5570 = vadd.f32 %v5550, %v5566
        %v5571 = vadd.f32 %v5551, %v5567
        %v5572 = vadd.f32 %v5552, %v5568
        %v5573 = vadd.f32 %v5553, %v5569
        %v5574 = vld [vmem:[%s1370] sm:$0xff]
        %v5575 = vld [vmem:[%s1370 + $0x8] sm:$0xff]
        %v5576 = vld [vmem:[%s1370 + $0x10] sm:$0x1f]
        %v5577 = vld [vmem:[%s1370 + $0x18] sm:$0x1f]
        %v5578 = vlaneseq
        %v5579 = vshrl.u32 %v5578, 7
        %v5580 = vsub.s32 7, %v5579
        %v5581 = vrot.slane %v5370, %v5580
        %v5582 = vlaneseq
        %v5583 = vshrl.u32 %v5582, 7
        %v5584 = vsub.s32 7, %v5583
        %v5585 = vrot.slane %v5371, %v5584
        %v5586 = vmul.f32 %v5581, %v5574
        %v5587 = vmul.f32 %v5585, %v5575
        %v5588 = vmul.f32 %v5581, %v5576
        %v5589 = vmul.f32 %v5585, %v5577
        %v5590 = vadd.f32 %v5570, %v5586
        %v5591 = vadd.f32 %v5571, %v5587
        %v5592 = vadd.f32 %v5572, %v5588
        %v5593 = vadd.f32 %v5573, %v5589
        %v5594 = vpack.c.bf16 %v5592, %v5590
        %v5595 = vpack.c.bf16 %v5593, %v5591
        %v5597 = vshrl.u32 %v5594, 16
        %v5599 = vrot.slane %v5597, 6
        %v5600 = vshll.u32 %v5594, 16
        %v5602 = vrot.slane %v5600, 7
        %v5603 = vor.u32 %v5599, %v5602
        %v5605 = vshrl.u32 %v5595, 16
        %v5607 = vrot.slane %v5605, 6
        %v5608 = vshll.u32 %v5595, 16
        %v5610 = vrot.slane %v5608, 7
        %v5611 = vor.u32 %v5607, %v5610
        %v5614 = vld [vmem:[#allocation2 + $0xe0] sm:$0xfe]
        %v5615 = vsel %vm1413, %v5603, %v5614
        %5616 = vst [vmem:[#allocation2 + $0xe0] sm:$0xfe] %v5615
        %v5617 = vld [vmem:[#allocation2 + $0xe8] sm:$0xfe]
        %v5618 = vsel %vm1413, %v5611, %v5617
        %5619 = vst [vmem:[#allocation2 + $0xe8] sm:$0xfe] %v5618
        %s5620 = sld [smem:[#allocation11 + $0xf]]
        %v5621 = vstv %s5620
        %v5622 = vmul.f32 %v736, %v5621
        %v5623 = vmul.f32 %v737, %v5621
        %s5624 = sld [smem:[#allocation11 + $0x8f]]
        %v5625 = vstv %s5624
        %v5626 = vmul.f32 %v788, %v5625
        %v5627 = vmul.f32 %v789, %v5625
        %v5628 = vadd.f32 %v5622, %v5626
        %v5629 = vadd.f32 %v5623, %v5627
        %s5630 = sld [smem:[#allocation11 + $0x10f]]
        %v5631 = vstv %s5630
        %v5632 = vmul.f32 %v840, %v5631
        %v5633 = vmul.f32 %v841, %v5631
        %v5634 = vadd.f32 %v5628, %v5632
        %v5635 = vadd.f32 %v5629, %v5633
        %s5636 = sld [smem:[#allocation11 + $0x18f]]
        %v5637 = vstv %s5636
        %v5638 = vmul.f32 %v892, %v5637
        %v5639 = vmul.f32 %v893, %v5637
        %v5640 = vadd.f32 %v5634, %v5638
        %v5641 = vadd.f32 %v5635, %v5639
        %s5642 = sld [smem:[#allocation11 + $0x20f]]
        %v5643 = vstv %s5642
        %v5644 = vmul.f32 %v944, %v5643
        %v5645 = vmul.f32 %v945, %v5643
        %v5646 = vadd.f32 %v5640, %v5644
        %v5647 = vadd.f32 %v5641, %v5645
        %s5648 = sld [smem:[#allocation11 + $0x28f]]
        %v5649 = vstv %s5648
        %v5650 = vmul.f32 %v996, %v5649
        %v5651 = vmul.f32 %v997, %v5649
        %v5652 = vadd.f32 %v5646, %v5650
        %v5653 = vadd.f32 %v5647, %v5651
        %s5654 = sld [smem:[#allocation11 + $0x30f]]
        %v5655 = vstv %s5654
        %v5656 = vmul.f32 %v1048, %v5655
        %v5657 = vmul.f32 %v1049, %v5655
        %v5658 = vadd.f32 %v5652, %v5656
        %v5659 = vadd.f32 %v5653, %v5657
        %s5660 = sld [smem:[#allocation11 + $0x38f]]
        %v5661 = vstv %s5660
        %v5662 = vmul.f32 %v1100, %v5661
        %v5663 = vmul.f32 %v1101, %v5661
        %v5664 = vadd.f32 %v5658, %v5662
        %v5665 = vadd.f32 %v5659, %v5663
        %s5666 = sld [smem:[#allocation12 + $0xf]]
        %v5667 = vstv %s5666
        %v5668 = vadd.f32 %v5664, %v5667
        %v5669 = vadd.f32 %v5665, %v5667
        %v5670 = vmax.f32 %v5668, 0.0
        %v5671 = vmax.f32 %v5669, 0.0
        %v5672 = vmul.f32 %v502, %v5670
        %v5673 = vmul.f32 %v503, %v5671
        %v5674 = vrot.slane %v5672, 4
        %v5675 = vadd.f32 %v5672, %v5674
        %v5676 = vrot.slane %v5675, 2
        %v5677 = vadd.f32 %v5675, %v5676
        %v5678 = vrot.slane %v5677, 1
        %v5679 = vadd.f32 %v5677, %v5678
        %v5680 = vrot.slane %v5673, 4
        %v5681 = vadd.f32 %v5673, %v5680
        %v5682 = vrot.slane %v5681, 2
        %v5683 = vadd.f32 %v5681, %v5682
        %v5684 = vrot.slane %v5683, 1
        %v5685 = vadd.f32 %v5683, %v5684
        %v5686 = vpack.c.bf16 %v5679, %v5679
        %v5687 = vpack.c.bf16 %v5685, %v5685
        %v5688 = vld [vmem:[#allocation2 + $0xf0] sm:$0x1]
        %v5689 = vsel %vm1172, %v5686, %v5688
        %5690 = vst [vmem:[#allocation2 + $0xf0] sm:$0x1] %v5689
        %v5691 = vld [vmem:[#allocation2 + $0xf8] sm:$0x1]
        %v5692 = vsel %vm1172, %v5687, %v5691
        %5693 = vst [vmem:[#allocation2 + $0xf8] sm:$0x1] %v5692
        %v5694 = vmul.f32 %v505, %v5670
        %v5695 = vmul.f32 %v506, %v5671
        %v5696 = vrot.slane %v5694, 4
        %v5697 = vadd.f32 %v5694, %v5696
        %v5698 = vrot.slane %v5697, 2
        %v5699 = vadd.f32 %v5697, %v5698
        %v5700 = vrot.slane %v5699, 1
        %v5701 = vadd.f32 %v5699, %v5700
        %v5702 = vrot.slane %v5695, 4
        %v5703 = vadd.f32 %v5695, %v5702
        %v5704 = vrot.slane %v5703, 2
        %v5705 = vadd.f32 %v5703, %v5704
        %v5706 = vrot.slane %v5705, 1
        %v5707 = vadd.f32 %v5705, %v5706
        %v5708 = vpack.c.bf16 %v5701, %v5701
        %v5709 = vpack.c.bf16 %v5707, %v5707
        %v5710 = vld [vmem:[#allocation2 + $0xf0] sm:$0x1]
        %v5711 = vsel %vm1196, %v5708, %v5710
        %5712 = vst [vmem:[#allocation2 + $0xf0] sm:$0x1] %v5711
        %v5713 = vld [vmem:[#allocation2 + $0xf8] sm:$0x1]
        %v5714 = vsel %vm1196, %v5709, %v5713
        %5715 = vst [vmem:[#allocation2 + $0xf8] sm:$0x1] %v5714
        %v5716 = vmul.f32 %v508, %v5670
        %v5717 = vmul.f32 %v509, %v5671
        %v5718 = vrot.slane %v5716, 4
        %v5719 = vadd.f32 %v5716, %v5718
        %v5720 = vrot.slane %v5719, 2
        %v5721 = vadd.f32 %v5719, %v5720
        %v5722 = vrot.slane %v5721, 1
        %v5723 = vadd.f32 %v5721, %v5722
        %v5724 = vrot.slane %v5717, 4
        %v5725 = vadd.f32 %v5717, %v5724
        %v5726 = vrot.slane %v5725, 2
        %v5727 = vadd.f32 %v5725, %v5726
        %v5728 = vrot.slane %v5727, 1
        %v5729 = vadd.f32 %v5727, %v5728
        %v5730 = vpack.c.bf16 %v5723, %v5723
        %v5731 = vpack.c.bf16 %v5729, %v5729
        %v5732 = vld [vmem:[#allocation2 + $0xf0] sm:$0x2]
        %v5733 = vsel %vm1221, %v5730, %v5732
        %5734 = vst [vmem:[#allocation2 + $0xf0] sm:$0x2] %v5733
        %v5735 = vld [vmem:[#allocation2 + $0xf8] sm:$0x2]
        %v5736 = vsel %vm1221, %v5731, %v5735
        %5737 = vst [vmem:[#allocation2 + $0xf8] sm:$0x2] %v5736
        %v5738 = vld [vmem:[%s499] sm:$0xff]
        %v5739 = vld [vmem:[%s499 + $0x8] sm:$0xff]
        %v5740 = vld [vmem:[%s499 + $0x10] sm:$0x1f]
        %v5741 = vld [vmem:[%s499 + $0x18] sm:$0x1f]
        %v5742 = vlaneseq
        %v5743 = vshrl.u32 %v5742, 7
        %v5744 = vsub.s32 0, %v5743
        %v5745 = vrot.slane %v5670, %v5744
        %v5746 = vlaneseq
        %v5747 = vshrl.u32 %v5746, 7
        %v5748 = vsub.s32 0, %v5747
        %v5749 = vrot.slane %v5671, %v5748
        %v5750 = vmul.f32 %v5745, %v5738
        %v5751 = vmul.f32 %v5749, %v5739
        %v5752 = vmul.f32 %v5745, %v5740
        %v5753 = vmul.f32 %v5749, %v5741
        %v5754 = vld [vmem:[%s1244] sm:$0xff]
        %v5755 = vld [vmem:[%s1244 + $0x8] sm:$0xff]
        %v5756 = vld [vmem:[%s1244 + $0x10] sm:$0x1f]
        %v5757 = vld [vmem:[%s1244 + $0x18] sm:$0x1f]
        %v5758 = vlaneseq
        %v5759 = vshrl.u32 %v5758, 7
        %v5760 = vsub.s32 1, %v5759
        %v5761 = vrot.slane %v5670, %v5760
        %v5762 = vlaneseq
        %v5763 = vshrl.u32 %v5762, 7
        %v5764 = vsub.s32 1, %v5763
        %v5765 = vrot.slane %v5671, %v5764
        %v5766 = vmul.f32 %v5761, %v5754
        %v5767 = vmul.f32 %v5765, %v5755
        %v5768 = vmul.f32 %v5761, %v5756
        %v5769 = vmul.f32 %v5765, %v5757
        %v5770 = vadd.f32 %v5750, %v5766
        %v5771 = vadd.f32 %v5751, %v5767
        %v5772 = vadd.f32 %v5752, %v5768
        %v5773 = vadd.f32 %v5753, %v5769
        %v5774 = vld [vmem:[%s1265] sm:$0xff]
        %v5775 = vld [vmem:[%s1265 + $0x8] sm:$0xff]
        %v5776 = vld [vmem:[%s1265 + $0x10] sm:$0x1f]
        %v5777 = vld [vmem:[%s1265 + $0x18] sm:$0x1f]
        %v5778 = vlaneseq
        %v5779 = vshrl.u32 %v5778, 7
        %v5780 = vsub.s32 2, %v5779
        %v5781 = vrot.slane %v5670, %v5780
        %v5782 = vlaneseq
        %v5783 = vshrl.u32 %v5782, 7
        %v5784 = vsub.s32 2, %v5783
        %v5785 = vrot.slane %v5671, %v5784
        %v5786 = vmul.f32 %v5781, %v5774
        %v5787 = vmul.f32 %v5785, %v5775
        %v5788 = vmul.f32 %v5781, %v5776
        %v5789 = vmul.f32 %v5785, %v5777
        %v5790 = vadd.f32 %v5770, %v5786
        %v5791 = vadd.f32 %v5771, %v5787
        %v5792 = vadd.f32 %v5772, %v5788
        %v5793 = vadd.f32 %v5773, %v5789
        %v5794 = vld [vmem:[%s1286] sm:$0xff]
        %v5795 = vld [vmem:[%s1286 + $0x8] sm:$0xff]
        %v5796 = vld [vmem:[%s1286 + $0x10] sm:$0x1f]
        %v5797 = vld [vmem:[%s1286 + $0x18] sm:$0x1f]
        %v5798 = vlaneseq
        %v5799 = vshrl.u32 %v5798, 7
        %v5800 = vsub.s32 3, %v5799
        %v5801 = vrot.slane %v5670, %v5800
        %v5802 = vlaneseq
        %v5803 = vshrl.u32 %v5802, 7
        %v5804 = vsub.s32 3, %v5803
        %v5805 = vrot.slane %v5671, %v5804
        %v5806 = vmul.f32 %v5801, %v5794
        %v5807 = vmul.f32 %v5805, %v5795
        %v5808 = vmul.f32 %v5801, %v5796
        %v5809 = vmul.f32 %v5805, %v5797
        %v5810 = vadd.f32 %v5790, %v5806
        %v5811 = vadd.f32 %v5791, %v5807
        %v5812 = vadd.f32 %v5792, %v5808
        %v5813 = vadd.f32 %v5793, %v5809
        %v5814 = vld [vmem:[%s1307] sm:$0xff]
        %v5815 = vld [vmem:[%s1307 + $0x8] sm:$0xff]
        %v5816 = vld [vmem:[%s1307 + $0x10] sm:$0x1f]
        %v5817 = vld [vmem:[%s1307 + $0x18] sm:$0x1f]
        %v5818 = vlaneseq
        %v5819 = vshrl.u32 %v5818, 7
        %v5820 = vsub.s32 4, %v5819
        %v5821 = vrot.slane %v5670, %v5820
        %v5822 = vlaneseq
        %v5823 = vshrl.u32 %v5822, 7
        %v5824 = vsub.s32 4, %v5823
        %v5825 = vrot.slane %v5671, %v5824
        %v5826 = vmul.f32 %v5821, %v5814
        %v5827 = vmul.f32 %v5825, %v5815
        %v5828 = vmul.f32 %v5821, %v5816
        %v5829 = vmul.f32 %v5825, %v5817
        %v5830 = vadd.f32 %v5810, %v5826
        %v5831 = vadd.f32 %v5811, %v5827
        %v5832 = vadd.f32 %v5812, %v5828
        %v5833 = vadd.f32 %v5813, %v5829
        %v5834 = vld [vmem:[%s1328] sm:$0xff]
        %v5835 = vld [vmem:[%s1328 + $0x8] sm:$0xff]
        %v5836 = vld [vmem:[%s1328 + $0x10] sm:$0x1f]
        %v5837 = vld [vmem:[%s1328 + $0x18] sm:$0x1f]
        %v5838 = vlaneseq
        %v5839 = vshrl.u32 %v5838, 7
        %v5840 = vsub.s32 5, %v5839
        %v5841 = vrot.slane %v5670, %v5840
        %v5842 = vlaneseq
        %v5843 = vshrl.u32 %v5842, 7
        %v5844 = vsub.s32 5, %v5843
        %v5845 = vrot.slane %v5671, %v5844
        %v5846 = vmul.f32 %v5841, %v5834
        %v5847 = vmul.f32 %v5845, %v5835
        %v5848 = vmul.f32 %v5841, %v5836
        %v5849 = vmul.f32 %v5845, %v5837
        %v5850 = vadd.f32 %v5830, %v5846
        %v5851 = vadd.f32 %v5831, %v5847
        %v5852 = vadd.f32 %v5832, %v5848
        %v5853 = vadd.f32 %v5833, %v5849
        %v5854 = vld [vmem:[%s1349] sm:$0xff]
        %v5855 = vld [vmem:[%s1349 + $0x8] sm:$0xff]
        %v5856 = vld [vmem:[%s1349 + $0x10] sm:$0x1f]
        %v5857 = vld [vmem:[%s1349 + $0x18] sm:$0x1f]
        %v5858 = vlaneseq
        %v5859 = vshrl.u32 %v5858, 7
        %v5860 = vsub.s32 6, %v5859
        %v5861 = vrot.slane %v5670, %v5860
        %v5862 = vlaneseq
        %v5863 = vshrl.u32 %v5862, 7
        %v5864 = vsub.s32 6, %v5863
        %v5865 = vrot.slane %v5671, %v5864
        %v5866 = vmul.f32 %v5861, %v5854
        %v5867 = vmul.f32 %v5865, %v5855
        %v5868 = vmul.f32 %v5861, %v5856
        %v5869 = vmul.f32 %v5865, %v5857
        %v5870 = vadd.f32 %v5850, %v5866
        %v5871 = vadd.f32 %v5851, %v5867
        %v5872 = vadd.f32 %v5852, %v5868
        %v5873 = vadd.f32 %v5853, %v5869
        %v5874 = vld [vmem:[%s1370] sm:$0xff]
        %v5875 = vld [vmem:[%s1370 + $0x8] sm:$0xff]
        %v5876 = vld [vmem:[%s1370 + $0x10] sm:$0x1f]
        %v5877 = vld [vmem:[%s1370 + $0x18] sm:$0x1f]
        %v5878 = vlaneseq
        %v5879 = vshrl.u32 %v5878, 7
        %v5880 = vsub.s32 7, %v5879
        %v5881 = vrot.slane %v5670, %v5880
        %v5882 = vlaneseq
        %v5883 = vshrl.u32 %v5882, 7
        %v5884 = vsub.s32 7, %v5883
        %v5885 = vrot.slane %v5671, %v5884
        %v5886 = vmul.f32 %v5881, %v5874
        %v5887 = vmul.f32 %v5885, %v5875
        %v5888 = vmul.f32 %v5881, %v5876
        %v5889 = vmul.f32 %v5885, %v5877
        %v5890 = vadd.f32 %v5870, %v5886
        %v5891 = vadd.f32 %v5871, %v5887
        %v5892 = vadd.f32 %v5872, %v5888
        %v5893 = vadd.f32 %v5873, %v5889
        %v5894 = vpack.c.bf16 %v5892, %v5890
        %v5895 = vpack.c.bf16 %v5893, %v5891
        %v5897 = vshrl.u32 %v5894, 16
        %v5899 = vrot.slane %v5897, 6
        %v5900 = vshll.u32 %v5894, 16
        %v5902 = vrot.slane %v5900, 7
        %v5903 = vor.u32 %v5899, %v5902
        %v5905 = vshrl.u32 %v5895, 16
        %v5907 = vrot.slane %v5905, 6
        %v5908 = vshll.u32 %v5895, 16
        %v5910 = vrot.slane %v5908, 7
        %v5911 = vor.u32 %v5907, %v5910
        %v5914 = vld [vmem:[#allocation2 + $0xf0] sm:$0xfe]
        %v5915 = vsel %vm1413, %v5903, %v5914
        %5916 = vst [vmem:[#allocation2 + $0xf0] sm:$0xfe] %v5915
        %v5917 = vld [vmem:[#allocation2 + $0xf8] sm:$0xfe]
        %v5918 = vsel %vm1413, %v5911, %v5917
        %5919 = vst [vmem:[#allocation2 + $0xf8] sm:$0xfe] %v5918
        %v5920 = vld [vmem:[%s8] sm:$0xff]
        %v5921 = vld [vmem:[%s8 + $0x8] sm:$0xff]
        %v5922 = vld [vmem:[%s8 + $0x10] sm:$0xff]
        %v5923 = vld [vmem:[%s8 + $0x18] sm:$0xff]
        %v5924 = vld [vmem:[#allocation2] sm:$0xff]
        %v5925 = vld [vmem:[#allocation2 + $0x8] sm:$0xff]
        %v5926 = vld [vmem:[#allocation2 + $0x10] sm:$0xff]
        %v5927 = vld [vmem:[#allocation2 + $0x18] sm:$0xff]
        %v5928 = vld [vmem:[#allocation2 + $0x20] sm:$0xff]
        %v5929 = vld [vmem:[#allocation2 + $0x28] sm:$0xff]
        %v5930 = vld [vmem:[#allocation2 + $0x30] sm:$0xff]
        %v5931 = vld [vmem:[#allocation2 + $0x38] sm:$0xff]
        %v5932 = vld [vmem:[#allocation2 + $0x40] sm:$0xff]
        %v5933 = vld [vmem:[#allocation2 + $0x48] sm:$0xff]
        %v5934 = vld [vmem:[#allocation2 + $0x50] sm:$0xff]
        %v5935 = vld [vmem:[#allocation2 + $0x58] sm:$0xff]
        %v5936 = vld [vmem:[#allocation2 + $0x60] sm:$0xff]
        %v5937 = vld [vmem:[#allocation2 + $0x68] sm:$0xff]
        %v5938 = vld [vmem:[#allocation2 + $0x70] sm:$0xff]
        %v5939 = vld [vmem:[#allocation2 + $0x78] sm:$0xff]
        %v5940 = vld [vmem:[#allocation2 + $0x80] sm:$0xff]
        %v5941 = vld [vmem:[#allocation2 + $0x88] sm:$0xff]
        %v5942 = vld [vmem:[#allocation2 + $0x90] sm:$0xff]
        %v5943 = vld [vmem:[#allocation2 + $0x98] sm:$0xff]
        %v5944 = vld [vmem:[#allocation2 + $0xa0] sm:$0xff]
        %v5945 = vld [vmem:[#allocation2 + $0xa8] sm:$0xff]
        %v5946 = vld [vmem:[#allocation2 + $0xb0] sm:$0xff]
        %v5947 = vld [vmem:[#allocation2 + $0xb8] sm:$0xff]
        %v5948 = vld [vmem:[#allocation2 + $0xc0] sm:$0xff]
        %v5949 = vld [vmem:[#allocation2 + $0xc8] sm:$0xff]
        %v5950 = vld [vmem:[#allocation2 + $0xd0] sm:$0xff]
        %v5951 = vld [vmem:[#allocation2 + $0xd8] sm:$0xff]
        %v5952 = vld [vmem:[#allocation2 + $0xe0] sm:$0xff]
        %v5953 = vld [vmem:[#allocation2 + $0xe8] sm:$0xff]
        %v5954 = vld [vmem:[#allocation2 + $0xf0] sm:$0xff]
        %v5955 = vld [vmem:[#allocation2 + $0xf8] sm:$0xff]
        %v5956 = vld [vmem:[%s9] sm:$0xff]
        %v5957 = vld [vmem:[%s9 + $0x8] sm:$0xff]
        %v5958 = vld [vmem:[%s9 + $0x10] sm:$0xff]
        %v5959 = vld [vmem:[%s9 + $0x18] sm:$0xff]
        %5961 = vset.pattern.permute.xlu0 0
        %5962 = vperm.xlu0 %5961, %v5956
        %v5963 = vpop.permute.xlu0 %5962
        %5966 = vset.pattern.permute.xlu0 0
        %5967 = vperm.xlu0 %5966, %v5957
        %v5968 = vpop.permute.xlu0 %5967
        %5971 = vset.pattern.permute.xlu0 0
        %5972 = vperm.xlu0 %5971, %v5958
        %v5973 = vpop.permute.xlu0 %5972
        %5976 = vset.pattern.permute.xlu0 0
        %5977 = vperm.xlu0 %5976, %v5959
        %v5978 = vpop.permute.xlu0 %5977
        %v5984 = vunpack.c.l.b16 %v5920
        %v5985 = vunpack.c.h.b16 %v5920
        %v5986 = vunpack.c.l.b16 %v5921
        %v5987 = vunpack.c.h.b16 %v5921
        %v5988 = vunpack.c.l.b16 %v5922
        %v5989 = vunpack.c.h.b16 %v5922
        %v5990 = vunpack.c.l.b16 %v5923
        %v5991 = vunpack.c.h.b16 %v5923
        %v5992 = vpack.c.b16 %v5986, %v5984
        %v5993 = vpack.c.b16 %v5987, %v5985
        %v5994 = vpack.c.b16 %v5990, %v5988
        %v5995 = vpack.c.b16 %v5991, %v5989
        %6000 = vmatprep.subr.bf16.mxu0 %v5925
        %6001 = vmatpush1.bf16.msra.mxu0 %v5924
        %6002 = vmatprep.subr.bf16.mxu0 %v5927
        %6003 = vmatpush1.bf16.msra.mxu0 %v5926
        %6004 = vmatprep.subr.bf16.mxu0 %v5929
        %6005 = vmatpush1.bf16.msra.mxu0 %v5928
        %6006 = vmatprep.subr.bf16.mxu0 %v5931
        %6007 = vmatpush1.bf16.msra.mxu0 %v5930
        %6008 = vmatprep.subr.bf16.mxu0 %v5933
        %6009 = vmatpush1.bf16.msra.mxu0 %v5932
        %6010 = vmatprep.subr.bf16.mxu0 %v5935
        %6011 = vmatpush1.bf16.msra.mxu0 %v5934
        %6012 = vmatprep.subr.bf16.mxu0 %v5937
        %6013 = vmatpush1.bf16.msra.mxu0 %v5936
        %6014 = vmatprep.subr.bf16.mxu0 %v5939
        %6015 = vmatpush1.bf16.msra.mxu0 %v5938
        %6016 = vmatprep.subr.bf16.mxu0 %v5941
        %6017 = vmatpush1.bf16.msra.mxu0 %v5940
        %6018 = vmatprep.subr.bf16.mxu0 %v5943
        %6019 = vmatpush1.bf16.msra.mxu0 %v5942
        %6020 = vmatprep.subr.bf16.mxu0 %v5945
        %6021 = vmatpush1.bf16.msra.mxu0 %v5944
        %6022 = vmatprep.subr.bf16.mxu0 %v5947
        %6023 = vmatpush1.bf16.msra.mxu0 %v5946
        %6024 = vmatprep.subr.bf16.mxu0 %v5949
        %6025 = vmatpush1.bf16.msra.mxu0 %v5948
        %6026 = vmatprep.subr.bf16.mxu0 %v5951
        %6027 = vmatpush1.bf16.msra.mxu0 %v5950
        %6028 = vmatprep.subr.bf16.mxu0 %v5953
        %6029 = vmatpush1.bf16.msra.mxu0 %v5952
        %6030 = vmatprep.subr.bf16.mxu0 %v5955
        %6031 = vmatpush1.bf16.msra.mxu0 %v5954
        %6032 = vmatprep.mubr.bf16.mxu0 %v5993
        %6033 = vmatmul.mubr.bf16.gmra.mrb[0].mxu0 %v5992
        %v6034 = vpop.f32.mrb[0].mxu0
        %v6035 = vadd.f32 %v5963, %v6034
        %v6036 = vpop.f32.mrb[0].mxu0
        %v6037 = vadd.f32 %v5963, %v6036
        %v6038 = vpop.f32.mrb[0].mxu0
        %v6039 = vadd.f32 %v5968, %v6038
        %v6040 = vpop.f32.mrb[0].mxu0
        %v6041 = vadd.f32 %v5968, %v6040
        %6042 = vmatprep.mubr.bf16.mxu0 %v5995
        %6043 = vmatmul.mubr.bf16.gmra.mrb[0].mxu0 %v5994
        %v6044 = vpop.f32.mrb[0].mxu0
        %v6045 = vadd.f32 %v5973, %v6044
        %v6046 = vpop.f32.mrb[0].mxu0
        %v6047 = vadd.f32 %v5973, %v6046
        %v6048 = vpop.f32.mrb[0].mxu0
        %v6049 = vadd.f32 %v5978, %v6048
        %v6050 = vpop.f32.mrb[0].mxu0
        %v6051 = vadd.f32 %v5978, %v6050
        %6052 = vdwg.mxu0
        %vm6053 = vcmp.gt.f32.partialorder %v6035, 0.0
        %vm6054 = vcmp.gt.f32.partialorder %v6037, 0.0
        %vm6055 = vcmp.gt.f32.partialorder %v6039, 0.0
        %vm6056 = vcmp.gt.f32.partialorder %v6041, 0.0
        %vm6057 = vcmp.gt.f32.partialorder %v6045, 0.0
        %vm6058 = vcmp.gt.f32.partialorder %v6047, 0.0
        %vm6059 = vcmp.gt.f32.partialorder %v6049, 0.0
        %vm6060 = vcmp.gt.f32.partialorder %v6051, 0.0
        %v6061 = vmul.f32 %v6035, 0.1
        %v6062 = vmul.f32 %v6037, 0.1
        %v6063 = vmul.f32 %v6039, 0.1
        %v6064 = vmul.f32 %v6041, 0.1
        %v6065 = vmul.f32 %v6045, 0.1
        %v6066 = vmul.f32 %v6047, 0.1
        %v6067 = vmul.f32 %v6049, 0.1
        %v6068 = vmul.f32 %v6051, 0.1
        %v6069 = vsel %vm6053, %v6035, %v6061
        %v6070 = vsel %vm6054, %v6037, %v6062
        %v6071 = vsel %vm6055, %v6039, %v6063
        %v6072 = vsel %vm6056, %v6041, %v6064
        %v6073 = vsel %vm6057, %v6045, %v6065
        %v6074 = vsel %vm6058, %v6047, %v6066
        %v6075 = vsel %vm6059, %v6049, %v6067
        %v6076 = vsel %vm6060, %v6051, %v6068
        %6077 = vst [vmem:[%s480] sm:$0xff] %v6069
        %6078 = vst [vmem:[%s480 + $0x8] sm:$0xff] %v6070
        %6079 = vst [vmem:[%s480 + $0x10] sm:$0xff] %v6071
        %6080 = vst [vmem:[%s480 + $0x18] sm:$0xff] %v6072
        %6081 = vst [vmem:[%s480 + $0x20] sm:$0xff] %v6073
        %6082 = vst [vmem:[%s480 + $0x28] sm:$0xff] %v6074
        %6083 = vst [vmem:[%s480 + $0x30] sm:$0xff] %v6075
        %6084 = vst [vmem:[%s480 + $0x38] sm:$0xff] %v6076
        %s6085 = sand.u32 %s274, 1
        %s6086 = scalar_lea.sflag [#allocation4], %s6085
        %s6087 = sand.u32 %s274, 1
        %s6088 = smul.addr %s6087, 64
        %s6089 = scalar_lea.vmem [#allocation14], %s6088
        // Predicated region
        $region85: #{pointconv_forward.1} parent=59 // pred_check
          %p6090 = pneg %p284
        $region86: #{pointconv_forward.1} parent=59 // pred_check_branch
          %6092 = sbr.rel (%p6090) target = $region88
        $region87: #{pointconv_forward.1} parent=59 // pred_region
          %s6093 = smul.u32 2, %s33
          %s6095 = ssub.s32 1024, 1024
          %6096 = vsyncadd %s6086, %s6095
          %s6097 = smul.addr %s32, 8
          %s6098 = sadd.s32 %s6093, %s6097
          %s6099 = smul.addr %s6098, 128
          %s6100 = scalar_lea.hbm %s10, %s6099
          %s6101 = sshll.u32 %s6089, 4
          %s6102 = int_to_ptr.vmem [resolvable:$true] %s6101
          %6107 = dma.vmem_to_hbm [thread:$0]  %s6102, 1024, %s6100, %s6086, 256, 256, 16
        $region88: #{pointconv_forward.1} parent=59 // pred_fallthru
          _
      $region60: #{pointconv_forward.1} parent=5 // pred_fallthru
        _
      %p6108 = scmp.le.s32.totalorder 2, %s23
      // Predicated region
      $region89: #{pointconv_forward.1} parent=5 // pred_check
        %p6109 = pneg %p6108
      $region90: #{pointconv_forward.1} parent=5 // pred_check_branch
        %6111 = sbr.rel (%p6109) target = $region92
      $region91: #{pointconv_forward.1} parent=5 // pred_region
        %s6112 = ssub.s32 %s23, 2
        // Predicated region
        $region93: #{pointconv_forward.1} parent=91 // pred_check
          %p6113 = pneg %p290
        $region94: #{pointconv_forward.1} parent=91 // pred_check_branch
          %6115 = sbr.rel (%p6113) target = $region96
        $region95: #{pointconv_forward.1} parent=91 // pred_region
          %s6116 = sand.u32 %s275, 1
          %s6117 = scalar_lea.sflag [#allocation4], %s6116
          %s6118 = sand.u32 %s275, 1
          %s6119 = smul.addr %s6118, 64
          %s6120 = scalar_lea.vmem [#allocation14], %s6119
          %6121 = dma.done %s6117, 1024
        $region96: #{pointconv_forward.1} parent=91 // pred_fallthru
          _
      $region92: #{pointconv_forward.1} parent=5 // pred_fallthru
        _
    $region6: #{pointconv_forward.1} parent=1 // loop_footer
      %s27 = sadd.s32 1, %s23
    $region7: #{pointconv_forward.1} parent=1 // loop_footer_branch
      %22 = sbr.rel target = $region3
    $region8: #{pointconv_forward.1} parent=1 // loop_exit
      _
    %6122 = vsyncpa [#allocation4], 1
    %s6123 = scalar_lea.sflag [#allocation4], 1
    %6124 = vsyncpa %s6123, 1
    %6125 = vsyncpa [#allocation5], 1
    %s6126 = scalar_lea.sflag [#allocation5], 1
    %6127 = vsyncpa %s6126, 1
    %6128 = vsyncpa [#allocation7], 1
    %6129 = vsyncpa [#allocation10], 1
    %6130 = vsyncpa [#allocation13], 1

</llo_original>
